<compile_context>
chip_gen: v7x
topology: tpu7x:2x2x1
jax: 0.10.0
libtpu: 0.0.40
codegen_flags: <defaults>
</compile_context>

<pallas_src>
import functools
import math

import jax
import jax.numpy as jnp
from jax import lax
from jax.experimental import pallas as pl
from jax.experimental.pallas import tpu as pltpu


# ---------------------------------------------------------------------------
# In-kernel helpers
# ---------------------------------------------------------------------------
def _layer_norm(h, g, b):
    mu = jnp.mean(h, axis=-1, keepdims=True)
    var = jnp.mean((h - mu) ** 2, axis=-1, keepdims=True)
    return (h - mu) * lax.rsqrt(var + 1e-5) * g + b


def _mm(a, w_bf16):
    """(M,K) @ (K,N) with bf16 operands on the MXU, f32 accumulation."""
    return jnp.dot(a.astype(jnp.bfloat16), w_bf16,
                   preferred_element_type=jnp.float32)


# ---------------------------------------------------------------------------
# Fused forward kernel (one grid step == TB batch elements)
# ---------------------------------------------------------------------------
def fused_forward_kernel(patches_ref, w_patch_ref, b_patch_ref, pos_ref,
                         wqkv_ref, bqkv_ref, wo_ref, bo_ref,
                         g1_ref, be1_ref, w1_ref, bb1_ref,
                         w2_ref, bb2_ref, g2_ref, be2_ref,
                         out_ref, *, num_layers, num_heads, head_dim, tb, seq):
    H, hd, S, TB = num_heads, head_dim, seq, tb
    D = H * hd
    M = TB * S                                      # folded matmul M dimension
    scale = 1.0 / math.sqrt(hd)

    # --- Patch embedding (linear proj of flattened patches) + bias + pos enc.
    p2 = patches_ref[...].reshape(M, -1)            # leading-dim merge (free)
    x = _mm(p2, w_patch_ref[...]) + b_patch_ref[...]            # (M, D) f32
    x = (x.reshape(TB, S, D) + pos_ref[...]).reshape(M, D)

    # --- Transformer encoder layers (post-LN, relu, fused QKV projection).
    # TODO(synk): dropout layers (p=0.1) use eval/inference semantics (identity).
    def layer_body(l, x):
        qkv = _mm(x, wqkv_ref[l]) + bqkv_ref[l]                 # (M, 3D) f32
        wo_l = wo_ref[l]                                        # (D, D) bf16

        attn = jnp.zeros((M, D), jnp.float32)
        for h in range(H):                                      # short static loop
            lo = h * hd
            qh = qkv[:, lo:lo + hd].reshape(TB, S, hd).astype(jnp.bfloat16)
            kh = qkv[:, D + lo:D + lo + hd].reshape(TB, S, hd).astype(jnp.bfloat16)
            vh = qkv[:, 2 * D + lo:2 * D + lo + hd].reshape(TB, S, hd).astype(jnp.bfloat16)

            # Attention for this head, batched over the TB folded sequences.
            s = jnp.einsum('bqd,bkd->bqk', qh, kh,
                           preferred_element_type=jnp.float32) * scale
            s = s - jnp.max(s, axis=-1, keepdims=True)
            e = jnp.exp(s)
            p = e * pl.reciprocal(jnp.sum(e, axis=-1, keepdims=True), approx=True)
            oh = jnp.einsum('bqk,bkd->bqd', p.astype(jnp.bfloat16), vh,
                            preferred_element_type=jnp.float32)  # (TB, S, hd)

            # Per-head slice of W_o rows, accumulated on the MXU path
            # (avoids a lane-concatenate of head outputs).
            attn = attn + _mm(oh.reshape(M, hd), wo_l[lo:lo + hd, :])
        attn = attn + bo_ref[l]

        h1 = _layer_norm(x + attn, g1_ref[l], be1_ref[l])
        ff = jnp.maximum(_mm(h1, w1_ref[l]) + bb1_ref[l], 0.0)   # relu
        ff = _mm(ff, w2_ref[l]) + bb2_ref[l]
        return _layer_norm(h1 + ff, g2_ref[l], be2_ref[l])

    x = lax.fori_loop(0, num_layers, layer_body, x)

    # --- Mean pool over the patch/sequence axis -> (TB, D) block.
    out_ref[...] = jnp.mean(x.reshape(TB, S, D), axis=1)


# ---------------------------------------------------------------------------
# Wrapper
# ---------------------------------------------------------------------------
def shared_transformer_forward(x, params, *, patch_size, num_heads, batch_tile=8):
    """x: (B, C, H, W) NCHW, same as the PyTorch module."""
    B, C, Hh, Ww = x.shape
    p = patch_size
    gh, gw = Hh // p, Ww // p
    S = gh * gw
    Pdim = C * p * p
    D = params['w_patch'].shape[1]
    L = params['wqkv'].shape[0]

    # Non-overlapping patch extraction (pure data movement / glue, done by XLA).
    patches = (x.reshape(B, C, gh, p, gw, p)
                .transpose(0, 2, 4, 1, 3, 5)
                .reshape(B, S, Pdim))

    # Batch tiling: TB batch elements per grid step (M = TB*S matmul rows).
    if B <= batch_tile:
        TB, Bp = B, B                      # single step; block == full array dims
    else:
        TB = batch_tile                    # keep TB a multiple of 8 (sublanes)
        Bp = ((B + TB - 1) // TB) * TB
        if Bp != B:
            patches = jnp.concatenate(
                [patches, jnp.zeros((Bp - B, S, Pdim), patches.dtype)], axis=0)

    kernel = functools.partial(fused_forward_kernel,
                               num_layers=L, num_heads=num_heads,
                               head_dim=D // num_heads, tb=TB, seq=S)

    weight_args = (params['w_patch'], params['b_patch'], params['pos'],
                   params['wqkv'], params['bqkv'], params['wo'], params['bo'],
                   params['g1'], params['be1'], params['w1'], params['bb1'],
                   params['w2'], params['bb2'], params['g2'], params['be2'])

    def _const_map(b, nd):
        return (0,) * nd

    in_specs = [pl.BlockSpec((TB, S, Pdim), lambda b: (b, 0, 0))]
    for a in weight_args:
        # Full (untiled) block with a constant index_map: weights stay resident
        # in VMEM across batch grid steps (no re-DMA between steps).
        in_specs.append(pl.BlockSpec(a.shape,
                                     functools.partial(_const_map, nd=a.ndim)))

    # Raise the scoped VMEM limit explicitly (defaults: 16 MiB v5e / 32 MiB v6e+).
    weight_bytes = sum(int(a.size) * a.dtype.itemsize for a in weight_args)
    vmem_limit = int(min(64 << 20, max(32 << 20, 3 * weight_bytes + (8 << 20))))

    out = pl.pallas_call(
        kernel,
        out_shape=jax.ShapeDtypeStruct((Bp, D), jnp.float32),
        grid=(Bp // TB,),
        in_specs=in_specs,
        out_specs=pl.BlockSpec((TB, D), lambda b: (b, 0)),
        compiler_params=pltpu.CompilerParams(
            dimension_semantics=("parallel",),
            vmem_limit_bytes=vmem_limit),
    )(patches, *weight_args)
    return out[:B]


# ---------------------------------------------------------------------------
# Parameters (matmul weights stored bf16 at rest; biases / LN params f32)
# ---------------------------------------------------------------------------
def init_params(key, *, image_channels, patch_size, embedding_dim,
                num_layers, mlp_dim, num_patches):
    C, P, D, L, MLP, S = (image_channels, patch_size, embedding_dim,
                          num_layers, mlp_dim, num_patches)
    Pdim = C * P * P
    keys = jax.random.split(key, 6)

    def rnd(k, shape, dtype=jnp.bfloat16):
        return (jax.random.normal(k, shape, jnp.float32) * 0.02).astype(dtype)

    return dict(
        w_patch=rnd(keys[0], (Pdim, D)),
        b_patch=jnp.zeros((1, D), jnp.float32),
        pos=rnd(keys[1], (S, D), jnp.float32),
        # Per-layer weights stacked on a leading layer axis (fori_loop indexing).
        wqkv=rnd(keys[2], (L, D, 3 * D)),          # fused Q|K|V projection
        bqkv=jnp.zeros((L, 1, 3 * D), jnp.float32),
        wo=rnd(keys[3], (L, D, D)),
        bo=jnp.zeros((L, 1, D), jnp.float32),
        g1=jnp.ones((L, 1, D), jnp.float32),
        be1=jnp.zeros((L, 1, D), jnp.float32),
        w1=rnd(keys[4], (L, D, MLP)),
        bb1=jnp.zeros((L, 1, MLP), jnp.float32),
        w2=rnd(keys[5], (L, MLP, D)),
        bb2=jnp.zeros((L, 1, D), jnp.float32),
        g2=jnp.ones((L, 1, D), jnp.float32),
        be2=jnp.zeros((L, 1, D), jnp.float32),
    )


# ---------------------------------------------------------------------------
if __name__ == "__main__":
    # Small shapes consistent with the module (image_size % patch_size == 0).
    B = 16                      # 2 grid steps of TB=8 -> both v7x TCs get work
    image_channels = 4
    image_size = 16
    patch_size = 4
    embedding_dim = 32
    num_heads = 4
    num_layers = 2
    mlp_dim = 64
    num_patches = (image_size // patch_size) ** 2        # 16 patches

    key = jax.random.PRNGKey(0)
    kx, kp = jax.random.split(key)
    x = jax.random.normal(kx, (B, image_channels, image_size, image_size),
                          jnp.float32)
    params = init_params(kp,
                         image_channels=image_channels,
                         patch_size=patch_size,
                         embedding_dim=embedding_dim,
                         num_layers=num_layers,
                         mlp_dim=mlp_dim,
                         num_patches=num_patches)

    out = shared_transformer_forward(x, params,
                                     patch_size=patch_size,
                                     num_heads=num_heads,
                                     batch_tile=8)
    out = jax.block_until_ready(out)
    assert out.shape == (B, embedding_dim), out.shape
    assert bool(jnp.all(jnp.isfinite(out)))
    print("KERNEL_OK")
</pallas_src>

<mosaic_0001>
module attributes {stable_mosaic.version = 11 : i64} {
  func.func @fused_forward_kernel(%arg0: i32, %arg1: memref<8x16x64xf32, #tpu.memory_space<vmem>>, %arg2: memref<64x32xbf16, #tpu.memory_space<vmem>>, %arg3: memref<1x32xf32, #tpu.memory_space<vmem>>, %arg4: memref<16x32xf32, #tpu.memory_space<vmem>>, %arg5: memref<2x32x96xbf16, #tpu.memory_space<vmem>>, %arg6: memref<2x1x96xf32, #tpu.memory_space<vmem>>, %arg7: memref<2x32x32xbf16, #tpu.memory_space<vmem>>, %arg8: memref<2x1x32xf32, #tpu.memory_space<vmem>>, %arg9: memref<2x1x32xf32, #tpu.memory_space<vmem>>, %arg10: memref<2x1x32xf32, #tpu.memory_space<vmem>>, %arg11: memref<2x32x64xbf16, #tpu.memory_space<vmem>>, %arg12: memref<2x1x64xf32, #tpu.memory_space<vmem>>, %arg13: memref<2x64x32xbf16, #tpu.memory_space<vmem>>, %arg14: memref<2x1x32xf32, #tpu.memory_space<vmem>>, %arg15: memref<2x1x32xf32, #tpu.memory_space<vmem>>, %arg16: memref<2x1x32xf32, #tpu.memory_space<vmem>>, %arg17: memref<8x32xf32, #tpu.memory_space<vmem>>) attributes {dimension_semantics = [#tpu.dimension_semantics<parallel>], iteration_bounds = array<i64: 2>, scalar_prefetch = 0 : i64, scratch_operands = 0 : i64, tpu.core_type = #tpu.core_type<tc>, window_params = [{transform_indices = @transform_0, window_bounds = array<i64: 8, 16, 64>}, {pipeline_mode = #tpu.pipeline_mode<synchronous>, transform_indices = @transform_1, window_bounds = array<i64: 64, 32>}, {pipeline_mode = #tpu.pipeline_mode<synchronous>, transform_indices = @transform_2, window_bounds = array<i64: 1, 32>}, {pipeline_mode = #tpu.pipeline_mode<synchronous>, transform_indices = @transform_3, window_bounds = array<i64: 16, 32>}, {pipeline_mode = #tpu.pipeline_mode<synchronous>, transform_indices = @transform_4, window_bounds = array<i64: 2, 32, 96>}, {pipeline_mode = #tpu.pipeline_mode<synchronous>, transform_indices = @transform_5, window_bounds = array<i64: 2, 1, 96>}, {pipeline_mode = #tpu.pipeline_mode<synchronous>, transform_indices = @transform_6, window_bounds = array<i64: 2, 32, 32>}, {pipeline_mode = #tpu.pipeline_mode<synchronous>, transform_indices = @transform_7, window_bounds = array<i64: 2, 1, 32>}, {pipeline_mode = #tpu.pipeline_mode<synchronous>, transform_indices = @transform_8, window_bounds = array<i64: 2, 1, 32>}, {pipeline_mode = #tpu.pipeline_mode<synchronous>, transform_indices = @transform_9, window_bounds = array<i64: 2, 1, 32>}, {pipeline_mode = #tpu.pipeline_mode<synchronous>, transform_indices = @transform_10, window_bounds = array<i64: 2, 32, 64>}, {pipeline_mode = #tpu.pipeline_mode<synchronous>, transform_indices = @transform_11, window_bounds = array<i64: 2, 1, 64>}, {pipeline_mode = #tpu.pipeline_mode<synchronous>, transform_indices = @transform_12, window_bounds = array<i64: 2, 64, 32>}, {pipeline_mode = #tpu.pipeline_mode<synchronous>, transform_indices = @transform_13, window_bounds = array<i64: 2, 1, 32>}, {pipeline_mode = #tpu.pipeline_mode<synchronous>, transform_indices = @transform_14, window_bounds = array<i64: 2, 1, 32>}, {pipeline_mode = #tpu.pipeline_mode<synchronous>, transform_indices = @transform_15, window_bounds = array<i64: 2, 1, 32>}, {transform_indices = @transform_16, window_bounds = array<i64: 8, 32>}]} {
    %c0 = arith.constant 0 : index
    %c0_0 = arith.constant 0 : index
    %c0_1 = arith.constant 0 : index
    %0 = vector.load %arg1[%c0, %c0_0, %c0_1] : memref<8x16x64xf32, #tpu.memory_space<vmem>>, vector<8x16x64xf32>
    %1 = vector.shape_cast %0 : vector<8x16x64xf32> to vector<128x64xf32>
    %c0_2 = arith.constant 0 : index
    %c0_3 = arith.constant 0 : index
    %2 = vector.load %arg2[%c0_2, %c0_3] : memref<64x32xbf16, #tpu.memory_space<vmem>>, vector<64x32xbf16>
    %3 = arith.truncf %1 : vector<128x64xf32> to vector<128x64xbf16>
    %cst = arith.constant dense<0.000000e+00> : vector<128x32xf32>
    %4 = tpu.matmul %3, %2, %cst {dimension_numbers = #tpu.dot_dimension_numbers<[1], [0], [0], [1], [0, 0, 1, 1], [], []>} : vector<128x64xbf16>, vector<64x32xbf16>, vector<128x32xf32> -> vector<128x32xf32>
    %c0_4 = arith.constant 0 : index
    %c0_5 = arith.constant 0 : index
    %5 = vector.load %arg3[%c0_4, %c0_5] : memref<1x32xf32, #tpu.memory_space<vmem>>, vector<1x32xf32>
    %6 = vector.broadcast %5 : vector<1x32xf32> to vector<128x32xf32>
    %7 = arith.addf %4, %6 : vector<128x32xf32>
    %8 = vector.shape_cast %7 : vector<128x32xf32> to vector<8x16x32xf32>
    %c0_6 = arith.constant 0 : index
    %c0_7 = arith.constant 0 : index
    %9 = vector.load %arg4[%c0_6, %c0_7] : memref<16x32xf32, #tpu.memory_space<vmem>>, vector<16x32xf32>
    %10 = vector.shape_cast %9 : vector<16x32xf32> to vector<1x16x32xf32>
    %11 = vector.broadcast %10 : vector<1x16x32xf32> to vector<8x16x32xf32>
    %12 = arith.addf %8, %11 : vector<8x16x32xf32>
    %13 = vector.shape_cast %12 : vector<8x16x32xf32> to vector<128x32xf32>
    %c0_i32 = arith.constant 0 : i32
    %c2_i32 = arith.constant 2 : i32
    %14 = arith.addi %c0_i32, %c2_i32 : i32
    %c1_i32 = arith.constant 1 : i32
    %15 = scf.for %arg18 = %c0_i32 to %14 step %c1_i32 iter_args(%arg19 = %13) -> (vector<128x32xf32>)  : i32 {
      %21 = arith.index_cast %arg18 : i32 to index
      %c0_13 = arith.constant 0 : index
      %c0_14 = arith.constant 0 : index
      %22 = vector.load %arg5[%21, %c0_13, %c0_14] : memref<2x32x96xbf16, #tpu.memory_space<vmem>>, vector<1x32x96xbf16>
      %23 = vector.shape_cast %22 : vector<1x32x96xbf16> to vector<32x96xbf16>
      %24 = arith.truncf %arg19 : vector<128x32xf32> to vector<128x32xbf16>
      %cst_15 = arith.constant dense<0.000000e+00> : vector<128x96xf32>
      %25 = tpu.matmul %24, %23, %cst_15 {dimension_numbers = #tpu.dot_dimension_numbers<[1], [0], [0], [1], [0, 0, 1, 1], [], []>} : vector<128x32xbf16>, vector<32x96xbf16>, vector<128x96xf32> -> vector<128x96xf32>
      %26 = arith.index_cast %arg18 : i32 to index
      %c0_16 = arith.constant 0 : index
      %c0_17 = arith.constant 0 : index
      %27 = vector.load %arg6[%26, %c0_16, %c0_17] : memref<2x1x96xf32, #tpu.memory_space<vmem>>, vector<1x1x96xf32>
      %28 = vector.shape_cast %27 : vector<1x1x96xf32> to vector<1x96xf32>
      %29 = vector.broadcast %28 : vector<1x96xf32> to vector<128x96xf32>
      %30 = arith.addf %25, %29 : vector<128x96xf32>
      %31 = arith.index_cast %arg18 : i32 to index
      %c0_18 = arith.constant 0 : index
      %c0_19 = arith.constant 0 : index
      %32 = vector.load %arg7[%31, %c0_18, %c0_19] : memref<2x32x32xbf16, #tpu.memory_space<vmem>>, vector<1x32x32xbf16>
      %33 = vector.shape_cast %32 : vector<1x32x32xbf16> to vector<32x32xbf16>
      %cst_20 = arith.constant 0.000000e+00 : f32
      %34 = vector.broadcast %cst_20 : f32 to vector<128x32xf32>
      %35 = vector.extract_strided_slice %30 {offsets = [0, 0], sizes = [128, 8], strides = [1, 1]} : vector<128x96xf32> to vector<128x8xf32>
      %36 = vector.shape_cast %35 : vector<128x8xf32> to vector<8x16x8xf32>
      %37 = arith.truncf %36 : vector<8x16x8xf32> to vector<8x16x8xbf16>
      %38 = vector.extract_strided_slice %30 {offsets = [0, 32], sizes = [128, 8], strides = [1, 1]} : vector<128x96xf32> to vector<128x8xf32>
      %39 = vector.shape_cast %38 : vector<128x8xf32> to vector<8x16x8xf32>
      %40 = arith.truncf %39 : vector<8x16x8xf32> to vector<8x16x8xbf16>
      %41 = vector.extract_strided_slice %30 {offsets = [0, 64], sizes = [128, 8], strides = [1, 1]} : vector<128x96xf32> to vector<128x8xf32>
      %42 = vector.shape_cast %41 : vector<128x8xf32> to vector<8x16x8xf32>
      %43 = arith.truncf %42 : vector<8x16x8xf32> to vector<8x16x8xbf16>
      "tpu.trace_start"() <{level = 10 : i32, message = "bqd,bkd->bqk"}> : () -> ()
      %cst_21 = arith.constant dense<0.000000e+00> : vector<8x16x16xf32>
      %44 = tpu.matmul %37, %40, %cst_21 {dimension_numbers = #tpu.dot_dimension_numbers<[2], [2], [1], [1], [0, 0, 0, 1, 1, 1], [0], [0]>} : vector<8x16x8xbf16>, vector<8x16x8xbf16>, vector<8x16x16xf32> -> vector<8x16x16xf32>
      "tpu.trace_stop"() : () -> ()
      %cst_22 = arith.constant 0.353553385 : f32
      %45 = vector.broadcast %cst_22 : f32 to vector<8x16x16xf32>
      %46 = arith.mulf %44, %45 : vector<8x16x16xf32>
      %cst_23 = arith.constant dense<0xFF800000> : vector<8x16xf32>
      %47 = vector.multi_reduction <maximumf>, %46, %cst_23 [2] : vector<8x16x16xf32> to vector<8x16xf32>
      %48 = vector.shape_cast %47 : vector<8x16xf32> to vector<8x16x1xf32>
      %49 = vector.broadcast %48 : vector<8x16x1xf32> to vector<8x16x16xf32>
      %50 = arith.subf %46, %49 : vector<8x16x16xf32>
      %51 = math.exp %50 : vector<8x16x16xf32>
      %cst_24 = arith.constant dense<0.000000e+00> : vector<8x16xf32>
      %52 = vector.multi_reduction <add>, %51, %cst_24 [2] : vector<8x16x16xf32> to vector<8x16xf32>
      %53 = vector.shape_cast %52 : vector<8x16xf32> to vector<8x16x1xf32>
      %54 = tpu.reciprocal %53 {approx = true} : vector<8x16x1xf32> -> vector<8x16x1xf32>
      %55 = vector.broadcast %54 : vector<8x16x1xf32> to vector<8x16x16xf32>
      %56 = arith.mulf %51, %55 : vector<8x16x16xf32>
      %57 = arith.truncf %56 : vector<8x16x16xf32> to vector<8x16x16xbf16>
      "tpu.trace_start"() <{level = 10 : i32, message = "bqk,bkd->bqd"}> : () -> ()
      %cst_25 = arith.constant dense<0.000000e+00> : vector<8x16x8xf32>
      %58 = tpu.matmul %57, %43, %cst_25 {dimension_numbers = #tpu.dot_dimension_numbers<[2], [1], [1], [2], [0, 0, 0, 1, 1, 2], [0], [0]>} : vector<8x16x16xbf16>, vector<8x16x8xbf16>, vector<8x16x8xf32> -> vector<8x16x8xf32>
      "tpu.trace_stop"() : () -> ()
      %59 = vector.shape_cast %58 : vector<8x16x8xf32> to vector<128x8xf32>
      %60 = vector.extract_strided_slice %33 {offsets = [0, 0], sizes = [8, 32], strides = [1, 1]} : vector<32x32xbf16> to vector<8x32xbf16>
      %61 = arith.truncf %59 : vector<128x8xf32> to vector<128x8xbf16>
      %cst_26 = arith.constant dense<0.000000e+00> : vector<128x32xf32>
      %62 = tpu.matmul %61, %60, %cst_26 {dimension_numbers = #tpu.dot_dimension_numbers<[1], [0], [0], [1], [0, 0, 1, 1], [], []>} : vector<128x8xbf16>, vector<8x32xbf16>, vector<128x32xf32> -> vector<128x32xf32>
      %63 = arith.addf %34, %62 : vector<128x32xf32>
      %64 = vector.extract_strided_slice %30 {offsets = [0, 8], sizes = [128, 8], strides = [1, 1]} : vector<128x96xf32> to vector<128x8xf32>
      %65 = vector.shape_cast %64 : vector<128x8xf32> to vector<8x16x8xf32>
      %66 = arith.truncf %65 : vector<8x16x8xf32> to vector<8x16x8xbf16>
      %67 = vector.extract_strided_slice %30 {offsets = [0, 40], sizes = [128, 8], strides = [1, 1]} : vector<128x96xf32> to vector<128x8xf32>
      %68 = vector.shape_cast %67 : vector<128x8xf32> to vector<8x16x8xf32>
      %69 = arith.truncf %68 : vector<8x16x8xf32> to vector<8x16x8xbf16>
      %70 = vector.extract_strided_slice %30 {offsets = [0, 72], sizes = [128, 8], strides = [1, 1]} : vector<128x96xf32> to vector<128x8xf32>
      %71 = vector.shape_cast %70 : vector<128x8xf32> to vector<8x16x8xf32>
      %72 = arith.truncf %71 : vector<8x16x8xf32> to vector<8x16x8xbf16>
      "tpu.trace_start"() <{level = 10 : i32, message = "bqd,bkd->bqk"}> : () -> ()
      %cst_27 = arith.constant dense<0.000000e+00> : vector<8x16x16xf32>
      %73 = tpu.matmul %66, %69, %cst_27 {dimension_numbers = #tpu.dot_dimension_numbers<[2], [2], [1], [1], [0, 0, 0, 1, 1, 1], [0], [0]>} : vector<8x16x8xbf16>, vector<8x16x8xbf16>, vector<8x16x16xf32> -> vector<8x16x16xf32>
      "tpu.trace_stop"() : () -> ()
      %cst_28 = arith.constant 0.353553385 : f32
      %74 = vector.broadcast %cst_28 : f32 to vector<8x16x16xf32>
      %75 = arith.mulf %73, %74 : vector<8x16x16xf32>
      %cst_29 = arith.constant dense<0xFF800000> : vector<8x16xf32>
      %76 = vector.multi_reduction <maximumf>, %75, %cst_29 [2] : vector<8x16x16xf32> to vector<8x16xf32>
      %77 = vector.shape_cast %76 : vector<8x16xf32> to vector<8x16x1xf32>
      %78 = vector.broadcast %77 : vector<8x16x1xf32> to vector<8x16x16xf32>
      %79 = arith.subf %75, %78 : vector<8x16x16xf32>
      %80 = math.exp %79 : vector<8x16x16xf32>
      %cst_30 = arith.constant dense<0.000000e+00> : vector<8x16xf32>
      %81 = vector.multi_reduction <add>, %80, %cst_30 [2] : vector<8x16x16xf32> to vector<8x16xf32>
      %82 = vector.shape_cast %81 : vector<8x16xf32> to vector<8x16x1xf32>
      %83 = tpu.reciprocal %82 {approx = true} : vector<8x16x1xf32> -> vector<8x16x1xf32>
      %84 = vector.broadcast %83 : vector<8x16x1xf32> to vector<8x16x16xf32>
      %85 = arith.mulf %80, %84 : vector<8x16x16xf32>
      %86 = arith.truncf %85 : vector<8x16x16xf32> to vector<8x16x16xbf16>
      "tpu.trace_start"() <{level = 10 : i32, message = "bqk,bkd->bqd"}> : () -> ()
      %cst_31 = arith.constant dense<0.000000e+00> : vector<8x16x8xf32>
      %87 = tpu.matmul %86, %72, %cst_31 {dimension_numbers = #tpu.dot_dimension_numbers<[2], [1], [1], [2], [0, 0, 0, 1, 1, 2], [0], [0]>} : vector<8x16x16xbf16>, vector<8x16x8xbf16>, vector<8x16x8xf32> -> vector<8x16x8xf32>
      "tpu.trace_stop"() : () -> ()
      %88 = vector.shape_cast %87 : vector<8x16x8xf32> to vector<128x8xf32>
      %89 = vector.extract_strided_slice %33 {offsets = [8, 0], sizes = [8, 32], strides = [1, 1]} : vector<32x32xbf16> to vector<8x32xbf16>
      %90 = arith.truncf %88 : vector<128x8xf32> to vector<128x8xbf16>
      %cst_32 = arith.constant dense<0.000000e+00> : vector<128x32xf32>
      %91 = tpu.matmul %90, %89, %cst_32 {dimension_numbers = #tpu.dot_dimension_numbers<[1], [0], [0], [1], [0, 0, 1, 1], [], []>} : vector<128x8xbf16>, vector<8x32xbf16>, vector<128x32xf32> -> vector<128x32xf32>
      %92 = arith.addf %63, %91 : vector<128x32xf32>
      %93 = vector.extract_strided_slice %30 {offsets = [0, 16], sizes = [128, 8], strides = [1, 1]} : vector<128x96xf32> to vector<128x8xf32>
      %94 = vector.shape_cast %93 : vector<128x8xf32> to vector<8x16x8xf32>
      %95 = arith.truncf %94 : vector<8x16x8xf32> to vector<8x16x8xbf16>
      %96 = vector.extract_strided_slice %30 {offsets = [0, 48], sizes = [128, 8], strides = [1, 1]} : vector<128x96xf32> to vector<128x8xf32>
      %97 = vector.shape_cast %96 : vector<128x8xf32> to vector<8x16x8xf32>
      %98 = arith.truncf %97 : vector<8x16x8xf32> to vector<8x16x8xbf16>
      %99 = vector.extract_strided_slice %30 {offsets = [0, 80], sizes = [128, 8], strides = [1, 1]} : vector<128x96xf32> to vector<128x8xf32>
      %100 = vector.shape_cast %99 : vector<128x8xf32> to vector<8x16x8xf32>
      %101 = arith.truncf %100 : vector<8x16x8xf32> to vector<8x16x8xbf16>
      "tpu.trace_start"() <{level = 10 : i32, message = "bqd,bkd->bqk"}> : () -> ()
      %cst_33 = arith.constant dense<0.000000e+00> : vector<8x16x16xf32>
      %102 = tpu.matmul %95, %98, %cst_33 {dimension_numbers = #tpu.dot_dimension_numbers<[2], [2], [1], [1], [0, 0, 0, 1, 1, 1], [0], [0]>} : vector<8x16x8xbf16>, vector<8x16x8xbf16>, vector<8x16x16xf32> -> vector<8x16x16xf32>
      "tpu.trace_stop"() : () -> ()
      %cst_34 = arith.constant 0.353553385 : f32
      %103 = vector.broadcast %cst_34 : f32 to vector<8x16x16xf32>
      %104 = arith.mulf %102, %103 : vector<8x16x16xf32>
      %cst_35 = arith.constant dense<0xFF800000> : vector<8x16xf32>
      %105 = vector.multi_reduction <maximumf>, %104, %cst_35 [2] : vector<8x16x16xf32> to vector<8x16xf32>
      %106 = vector.shape_cast %105 : vector<8x16xf32> to vector<8x16x1xf32>
      %107 = vector.broadcast %106 : vector<8x16x1xf32> to vector<8x16x16xf32>
      %108 = arith.subf %104, %107 : vector<8x16x16xf32>
      %109 = math.exp %108 : vector<8x16x16xf32>
      %cst_36 = arith.constant dense<0.000000e+00> : vector<8x16xf32>
      %110 = vector.multi_reduction <add>, %109, %cst_36 [2] : vector<8x16x16xf32> to vector<8x16xf32>
      %111 = vector.shape_cast %110 : vector<8x16xf32> to vector<8x16x1xf32>
      %112 = tpu.reciprocal %111 {approx = true} : vector<8x16x1xf32> -> vector<8x16x1xf32>
      %113 = vector.broadcast %112 : vector<8x16x1xf32> to vector<8x16x16xf32>
      %114 = arith.mulf %109, %113 : vector<8x16x16xf32>
      %115 = arith.truncf %114 : vector<8x16x16xf32> to vector<8x16x16xbf16>
      "tpu.trace_start"() <{level = 10 : i32, message = "bqk,bkd->bqd"}> : () -> ()
      %cst_37 = arith.constant dense<0.000000e+00> : vector<8x16x8xf32>
      %116 = tpu.matmul %115, %101, %cst_37 {dimension_numbers = #tpu.dot_dimension_numbers<[2], [1], [1], [2], [0, 0, 0, 1, 1, 2], [0], [0]>} : vector<8x16x16xbf16>, vector<8x16x8xbf16>, vector<8x16x8xf32> -> vector<8x16x8xf32>
      "tpu.trace_stop"() : () -> ()
      %117 = vector.shape_cast %116 : vector<8x16x8xf32> to vector<128x8xf32>
      %118 = vector.extract_strided_slice %33 {offsets = [16, 0], sizes = [8, 32], strides = [1, 1]} : vector<32x32xbf16> to vector<8x32xbf16>
      %119 = arith.truncf %117 : vector<128x8xf32> to vector<128x8xbf16>
      %cst_38 = arith.constant dense<0.000000e+00> : vector<128x32xf32>
      %120 = tpu.matmul %119, %118, %cst_38 {dimension_numbers = #tpu.dot_dimension_numbers<[1], [0], [0], [1], [0, 0, 1, 1], [], []>} : vector<128x8xbf16>, vector<8x32xbf16>, vector<128x32xf32> -> vector<128x32xf32>
      %121 = arith.addf %92, %120 : vector<128x32xf32>
      %122 = vector.extract_strided_slice %30 {offsets = [0, 24], sizes = [128, 8], strides = [1, 1]} : vector<128x96xf32> to vector<128x8xf32>
      %123 = vector.shape_cast %122 : vector<128x8xf32> to vector<8x16x8xf32>
      %124 = arith.truncf %123 : vector<8x16x8xf32> to vector<8x16x8xbf16>
      %125 = vector.extract_strided_slice %30 {offsets = [0, 56], sizes = [128, 8], strides = [1, 1]} : vector<128x96xf32> to vector<128x8xf32>
      %126 = vector.shape_cast %125 : vector<128x8xf32> to vector<8x16x8xf32>
      %127 = arith.truncf %126 : vector<8x16x8xf32> to vector<8x16x8xbf16>
      %128 = vector.extract_strided_slice %30 {offsets = [0, 88], sizes = [128, 8], strides = [1, 1]} : vector<128x96xf32> to vector<128x8xf32>
      %129 = vector.shape_cast %128 : vector<128x8xf32> to vector<8x16x8xf32>
      %130 = arith.truncf %129 : vector<8x16x8xf32> to vector<8x16x8xbf16>
      "tpu.trace_start"() <{level = 10 : i32, message = "bqd,bkd->bqk"}> : () -> ()
      %cst_39 = arith.constant dense<0.000000e+00> : vector<8x16x16xf32>
      %131 = tpu.matmul %124, %127, %cst_39 {dimension_numbers = #tpu.dot_dimension_numbers<[2], [2], [1], [1], [0, 0, 0, 1, 1, 1], [0], [0]>} : vector<8x16x8xbf16>, vector<8x16x8xbf16>, vector<8x16x16xf32> -> vector<8x16x16xf32>
      "tpu.trace_stop"() : () -> ()
      %cst_40 = arith.constant 0.353553385 : f32
      %132 = vector.broadcast %cst_40 : f32 to vector<8x16x16xf32>
      %133 = arith.mulf %131, %132 : vector<8x16x16xf32>
      %cst_41 = arith.constant dense<0xFF800000> : vector<8x16xf32>
      %134 = vector.multi_reduction <maximumf>, %133, %cst_41 [2] : vector<8x16x16xf32> to vector<8x16xf32>
      %135 = vector.shape_cast %134 : vector<8x16xf32> to vector<8x16x1xf32>
      %136 = vector.broadcast %135 : vector<8x16x1xf32> to vector<8x16x16xf32>
      %137 = arith.subf %133, %136 : vector<8x16x16xf32>
      %138 = math.exp %137 : vector<8x16x16xf32>
      %cst_42 = arith.constant dense<0.000000e+00> : vector<8x16xf32>
      %139 = vector.multi_reduction <add>, %138, %cst_42 [2] : vector<8x16x16xf32> to vector<8x16xf32>
      %140 = vector.shape_cast %139 : vector<8x16xf32> to vector<8x16x1xf32>
      %141 = tpu.reciprocal %140 {approx = true} : vector<8x16x1xf32> -> vector<8x16x1xf32>
      %142 = vector.broadcast %141 : vector<8x16x1xf32> to vector<8x16x16xf32>
      %143 = arith.mulf %138, %142 : vector<8x16x16xf32>
      %144 = arith.truncf %143 : vector<8x16x16xf32> to vector<8x16x16xbf16>
      "tpu.trace_start"() <{level = 10 : i32, message = "bqk,bkd->bqd"}> : () -> ()
      %cst_43 = arith.constant dense<0.000000e+00> : vector<8x16x8xf32>
      %145 = tpu.matmul %144, %130, %cst_43 {dimension_numbers = #tpu.dot_dimension_numbers<[2], [1], [1], [2], [0, 0, 0, 1, 1, 2], [0], [0]>} : vector<8x16x16xbf16>, vector<8x16x8xbf16>, vector<8x16x8xf32> -> vector<8x16x8xf32>
      "tpu.trace_stop"() : () -> ()
      %146 = vector.shape_cast %145 : vector<8x16x8xf32> to vector<128x8xf32>
      %147 = vector.extract_strided_slice %33 {offsets = [24, 0], sizes = [8, 32], strides = [1, 1]} : vector<32x32xbf16> to vector<8x32xbf16>
      %148 = arith.truncf %146 : vector<128x8xf32> to vector<128x8xbf16>
      %cst_44 = arith.constant dense<0.000000e+00> : vector<128x32xf32>
      %149 = tpu.matmul %148, %147, %cst_44 {dimension_numbers = #tpu.dot_dimension_numbers<[1], [0], [0], [1], [0, 0, 1, 1], [], []>} : vector<128x8xbf16>, vector<8x32xbf16>, vector<128x32xf32> -> vector<128x32xf32>
      %150 = arith.addf %121, %149 : vector<128x32xf32>
      %151 = arith.index_cast %arg18 : i32 to index
      %c0_45 = arith.constant 0 : index
      %c0_46 = arith.constant 0 : index
      %152 = vector.load %arg8[%151, %c0_45, %c0_46] : memref<2x1x32xf32, #tpu.memory_space<vmem>>, vector<1x1x32xf32>
      %153 = vector.shape_cast %152 : vector<1x1x32xf32> to vector<1x32xf32>
      %154 = vector.broadcast %153 : vector<1x32xf32> to vector<128x32xf32>
      %155 = arith.addf %150, %154 : vector<128x32xf32>
      %156 = arith.addf %arg19, %155 : vector<128x32xf32>
      %157 = arith.index_cast %arg18 : i32 to index
      %c0_47 = arith.constant 0 : index
      %c0_48 = arith.constant 0 : index
      %158 = vector.load %arg9[%157, %c0_47, %c0_48] : memref<2x1x32xf32, #tpu.memory_space<vmem>>, vector<1x1x32xf32>
      %159 = vector.shape_cast %158 : vector<1x1x32xf32> to vector<1x32xf32>
      %160 = arith.index_cast %arg18 : i32 to index
      %c0_49 = arith.constant 0 : index
      %c0_50 = arith.constant 0 : index
      %161 = vector.load %arg10[%160, %c0_49, %c0_50] : memref<2x1x32xf32, #tpu.memory_space<vmem>>, vector<1x1x32xf32>
      %162 = vector.shape_cast %161 : vector<1x1x32xf32> to vector<1x32xf32>
      %cst_51 = arith.constant dense<0.000000e+00> : vector<128xf32>
      %163 = vector.multi_reduction <add>, %156, %cst_51 [1] : vector<128x32xf32> to vector<128xf32>
      %164 = vector.shape_cast %163 : vector<128xf32> to vector<128x1xf32>
      %cst_52 = arith.constant 3.200000e+01 : f32
      %165 = vector.broadcast %cst_52 : f32 to vector<128x1xf32>
      %166 = arith.divf %164, %165 : vector<128x1xf32>
      %167 = vector.broadcast %166 : vector<128x1xf32> to vector<128x32xf32>
      %168 = arith.subf %156, %167 : vector<128x32xf32>
      %169 = arith.mulf %168, %168 : vector<128x32xf32>
      %cst_53 = arith.constant dense<0.000000e+00> : vector<128xf32>
      %170 = vector.multi_reduction <add>, %169, %cst_53 [1] : vector<128x32xf32> to vector<128xf32>
      %171 = vector.shape_cast %170 : vector<128xf32> to vector<128x1xf32>
      %cst_54 = arith.constant 3.200000e+01 : f32
      %172 = vector.broadcast %cst_54 : f32 to vector<128x1xf32>
      %173 = arith.divf %171, %172 : vector<128x1xf32>
      %174 = vector.broadcast %166 : vector<128x1xf32> to vector<128x32xf32>
      %175 = arith.subf %156, %174 : vector<128x32xf32>
      %cst_55 = arith.constant 9.99999974E-6 : f32
      %176 = vector.broadcast %cst_55 : f32 to vector<128x1xf32>
      %177 = arith.addf %173, %176 : vector<128x1xf32>
      %178 = math.rsqrt %177 : vector<128x1xf32>
      %179 = vector.broadcast %178 : vector<128x1xf32> to vector<128x32xf32>
      %180 = arith.mulf %175, %179 : vector<128x32xf32>
      %181 = vector.broadcast %159 : vector<1x32xf32> to vector<128x32xf32>
      %182 = arith.mulf %180, %181 : vector<128x32xf32>
      %183 = vector.broadcast %162 : vector<1x32xf32> to vector<128x32xf32>
      %184 = arith.addf %182, %183 : vector<128x32xf32>
      %185 = arith.index_cast %arg18 : i32 to index
      %c0_56 = arith.constant 0 : index
      %c0_57 = arith.constant 0 : index
      %186 = vector.load %arg11[%185, %c0_56, %c0_57] : memref<2x32x64xbf16, #tpu.memory_space<vmem>>, vector<1x32x64xbf16>
      %187 = vector.shape_cast %186 : vector<1x32x64xbf16> to vector<32x64xbf16>
      %188 = arith.truncf %184 : vector<128x32xf32> to vector<128x32xbf16>
      %cst_58 = arith.constant dense<0.000000e+00> : vector<128x64xf32>
      %189 = tpu.matmul %188, %187, %cst_58 {dimension_numbers = #tpu.dot_dimension_numbers<[1], [0], [0], [1], [0, 0, 1, 1], [], []>} : vector<128x32xbf16>, vector<32x64xbf16>, vector<128x64xf32> -> vector<128x64xf32>
      %190 = arith.index_cast %arg18 : i32 to index
      %c0_59 = arith.constant 0 : index
      %c0_60 = arith.constant 0 : index
      %191 = vector.load %arg12[%190, %c0_59, %c0_60] : memref<2x1x64xf32, #tpu.memory_space<vmem>>, vector<1x1x64xf32>
      %192 = vector.shape_cast %191 : vector<1x1x64xf32> to vector<1x64xf32>
      %193 = vector.broadcast %192 : vector<1x64xf32> to vector<128x64xf32>
      %194 = arith.addf %189, %193 : vector<128x64xf32>
      %cst_61 = arith.constant 0.000000e+00 : f32
      %195 = vector.broadcast %cst_61 : f32 to vector<128x64xf32>
      %196 = arith.maximumf %194, %195 : vector<128x64xf32>
      %197 = arith.index_cast %arg18 : i32 to index
      %c0_62 = arith.constant 0 : index
      %c0_63 = arith.constant 0 : index
      %198 = vector.load %arg13[%197, %c0_62, %c0_63] : memref<2x64x32xbf16, #tpu.memory_space<vmem>>, vector<1x64x32xbf16>
      %199 = vector.shape_cast %198 : vector<1x64x32xbf16> to vector<64x32xbf16>
      %200 = arith.truncf %196 : vector<128x64xf32> to vector<128x64xbf16>
      %cst_64 = arith.constant dense<0.000000e+00> : vector<128x32xf32>
      %201 = tpu.matmul %200, %199, %cst_64 {dimension_numbers = #tpu.dot_dimension_numbers<[1], [0], [0], [1], [0, 0, 1, 1], [], []>} : vector<128x64xbf16>, vector<64x32xbf16>, vector<128x32xf32> -> vector<128x32xf32>
      %202 = arith.index_cast %arg18 : i32 to index
      %c0_65 = arith.constant 0 : index
      %c0_66 = arith.constant 0 : index
      %203 = vector.load %arg14[%202, %c0_65, %c0_66] : memref<2x1x32xf32, #tpu.memory_space<vmem>>, vector<1x1x32xf32>
      %204 = vector.shape_cast %203 : vector<1x1x32xf32> to vector<1x32xf32>
      %205 = vector.broadcast %204 : vector<1x32xf32> to vector<128x32xf32>
      %206 = arith.addf %201, %205 : vector<128x32xf32>
      %207 = arith.addf %184, %206 : vector<128x32xf32>
      %208 = arith.index_cast %arg18 : i32 to index
      %c0_67 = arith.constant 0 : index
      %c0_68 = arith.constant 0 : index
      %209 = vector.load %arg15[%208, %c0_67, %c0_68] : memref<2x1x32xf32, #tpu.memory_space<vmem>>, vector<1x1x32xf32>
      %210 = vector.shape_cast %209 : vector<1x1x32xf32> to vector<1x32xf32>
      %211 = arith.index_cast %arg18 : i32 to index
      %c0_69 = arith.constant 0 : index
      %c0_70 = arith.constant 0 : index
      %212 = vector.load %arg16[%211, %c0_69, %c0_70] : memref<2x1x32xf32, #tpu.memory_space<vmem>>, vector<1x1x32xf32>
      %213 = vector.shape_cast %212 : vector<1x1x32xf32> to vector<1x32xf32>
      %cst_71 = arith.constant dense<0.000000e+00> : vector<128xf32>
      %214 = vector.multi_reduction <add>, %207, %cst_71 [1] : vector<128x32xf32> to vector<128xf32>
      %215 = vector.shape_cast %214 : vector<128xf32> to vector<128x1xf32>
      %cst_72 = arith.constant 3.200000e+01 : f32
      %216 = vector.broadcast %cst_72 : f32 to vector<128x1xf32>
      %217 = arith.divf %215, %216 : vector<128x1xf32>
      %218 = vector.broadcast %217 : vector<128x1xf32> to vector<128x32xf32>
      %219 = arith.subf %207, %218 : vector<128x32xf32>
      %220 = arith.mulf %219, %219 : vector<128x32xf32>
      %cst_73 = arith.constant dense<0.000000e+00> : vector<128xf32>
      %221 = vector.multi_reduction <add>, %220, %cst_73 [1] : vector<128x32xf32> to vector<128xf32>
      %222 = vector.shape_cast %221 : vector<128xf32> to vector<128x1xf32>
      %cst_74 = arith.constant 3.200000e+01 : f32
      %223 = vector.broadcast %cst_74 : f32 to vector<128x1xf32>
      %224 = arith.divf %222, %223 : vector<128x1xf32>
      %225 = vector.broadcast %217 : vector<128x1xf32> to vector<128x32xf32>
      %226 = arith.subf %207, %225 : vector<128x32xf32>
      %cst_75 = arith.constant 9.99999974E-6 : f32
      %227 = vector.broadcast %cst_75 : f32 to vector<128x1xf32>
      %228 = arith.addf %224, %227 : vector<128x1xf32>
      %229 = math.rsqrt %228 : vector<128x1xf32>
      %230 = vector.broadcast %229 : vector<128x1xf32> to vector<128x32xf32>
      %231 = arith.mulf %226, %230 : vector<128x32xf32>
      %232 = vector.broadcast %210 : vector<1x32xf32> to vector<128x32xf32>
      %233 = arith.mulf %231, %232 : vector<128x32xf32>
      %234 = vector.broadcast %213 : vector<1x32xf32> to vector<128x32xf32>
      %235 = arith.addf %233, %234 : vector<128x32xf32>
      scf.yield %235 : vector<128x32xf32>
    }
    %c2_i32_8 = arith.constant 2 : i32
    %16 = vector.shape_cast %15 : vector<128x32xf32> to vector<8x16x32xf32>
    %cst_9 = arith.constant dense<0.000000e+00> : vector<8x32xf32>
    %17 = vector.multi_reduction <add>, %16, %cst_9 [1] : vector<8x16x32xf32> to vector<8x32xf32>
    %cst_10 = arith.constant 1.600000e+01 : f32
    %18 = vector.broadcast %cst_10 : f32 to vector<8x32xf32>
    %19 = arith.divf %17, %18 : vector<8x32xf32>
    %c0_11 = arith.constant 0 : index
    %c0_12 = arith.constant 0 : index
    %20 = vector.load %arg17[%c0_11, %c0_12] : memref<8x32xf32, #tpu.memory_space<vmem>>, vector<8x32xf32>
    tpu.vector_store %arg17[%c0_11, %c0_12], %19 {strides = array<i32>} : memref<8x32xf32, #tpu.memory_space<vmem>>, vector<8x32xf32>,
    return
  }
  func.func @transform_0(%arg0: i32) -> (i32, i32, i32) {
    %c0_i32 = arith.constant 0 : i32
    %c0_i32_0 = arith.constant 0 : i32
    %c0_i32_1 = arith.constant 0 : i32
    return %arg0, %c0_i32, %c0_i32_0 : i32, i32, i32
  }
  func.func @transform_1(%arg0: i32) -> (i32, i32) {
    %c0_i32 = arith.constant 0 : i32
    %c0_i32_0 = arith.constant 0 : i32
    %c0_i32_1 = arith.constant 0 : i32
    return %c0_i32, %c0_i32_0 : i32, i32
  }
  func.func @transform_2(%arg0: i32) -> (i32, i32) {
    %c0_i32 = arith.constant 0 : i32
    %c0_i32_0 = arith.constant 0 : i32
    %c0_i32_1 = arith.constant 0 : i32
    return %c0_i32, %c0_i32_0 : i32, i32
  }
  func.func @transform_3(%arg0: i32) -> (i32, i32) {
    %c0_i32 = arith.constant 0 : i32
    %c0_i32_0 = arith.constant 0 : i32
    %c0_i32_1 = arith.constant 0 : i32
    return %c0_i32, %c0_i32_0 : i32, i32
  }
  func.func @transform_4(%arg0: i32) -> (i32, i32, i32) {
    %c0_i32 = arith.constant 0 : i32
    %c0_i32_0 = arith.constant 0 : i32
    %c0_i32_1 = arith.constant 0 : i32
    %c0_i32_2 = arith.constant 0 : i32
    return %c0_i32, %c0_i32_0, %c0_i32_1 : i32, i32, i32
  }
  func.func @transform_5(%arg0: i32) -> (i32, i32, i32) {
    %c0_i32 = arith.constant 0 : i32
    %c0_i32_0 = arith.constant 0 : i32
    %c0_i32_1 = arith.constant 0 : i32
    %c0_i32_2 = arith.constant 0 : i32
    return %c0_i32, %c0_i32_0, %c0_i32_1 : i32, i32, i32
  }
  func.func @transform_6(%arg0: i32) -> (i32, i32, i32) {
    %c0_i32 = arith.constant 0 : i32
    %c0_i32_0 = arith.constant 0 : i32
    %c0_i32_1 = arith.constant 0 : i32
    %c0_i32_2 = arith.constant 0 : i32
    return %c0_i32, %c0_i32_0, %c0_i32_1 : i32, i32, i32
  }
  func.func @transform_7(%arg0: i32) -> (i32, i32, i32) {
    %c0_i32 = arith.constant 0 : i32
    %c0_i32_0 = arith.constant 0 : i32
    %c0_i32_1 = arith.constant 0 : i32
    %c0_i32_2 = arith.constant 0 : i32
    return %c0_i32, %c0_i32_0, %c0_i32_1 : i32, i32, i32
  }
  func.func @transform_8(%arg0: i32) -> (i32, i32, i32) {
    %c0_i32 = arith.constant 0 : i32
    %c0_i32_0 = arith.constant 0 : i32
    %c0_i32_1 = arith.constant 0 : i32
    %c0_i32_2 = arith.constant 0 : i32
    return %c0_i32, %c0_i32_0, %c0_i32_1 : i32, i32, i32
  }
  func.func @transform_9(%arg0: i32) -> (i32, i32, i32) {
    %c0_i32 = arith.constant 0 : i32
    %c0_i32_0 = arith.constant 0 : i32
    %c0_i32_1 = arith.constant 0 : i32
    %c0_i32_2 = arith.constant 0 : i32
    return %c0_i32, %c0_i32_0, %c0_i32_1 : i32, i32, i32
  }
  func.func @transform_10(%arg0: i32) -> (i32, i32, i32) {
    %c0_i32 = arith.constant 0 : i32
    %c0_i32_0 = arith.constant 0 : i32
    %c0_i32_1 = arith.constant 0 : i32
    %c0_i32_2 = arith.constant 0 : i32
    return %c0_i32, %c0_i32_0, %c0_i32_1 : i32, i32, i32
  }
  func.func @transform_11(%arg0: i32) -> (i32, i32, i32) {
    %c0_i32 = arith.constant 0 : i32
    %c0_i32_0 = arith.constant 0 : i32
    %c0_i32_1 = arith.constant 0 : i32
    %c0_i32_2 = arith.constant 0 : i32
    return %c0_i32, %c0_i32_0, %c0_i32_1 : i32, i32, i32
  }
  func.func @transform_12(%arg0: i32) -> (i32, i32, i32) {
    %c0_i32 = arith.constant 0 : i32
    %c0_i32_0 = arith.constant 0 : i32
    %c0_i32_1 = arith.constant 0 : i32
    %c0_i32_2 = arith.constant 0 : i32
    return %c0_i32, %c0_i32_0, %c0_i32_1 : i32, i32, i32
  }
  func.func @transform_13(%arg0: i32) -> (i32, i32, i32) {
    %c0_i32 = arith.constant 0 : i32
    %c0_i32_0 = arith.constant 0 : i32
    %c0_i32_1 = arith.constant 0 : i32
    %c0_i32_2 = arith.constant 0 : i32
    return %c0_i32, %c0_i32_0, %c0_i32_1 : i32, i32, i32
  }
  func.func @transform_14(%arg0: i32) -> (i32, i32, i32) {
    %c0_i32 = arith.constant 0 : i32
    %c0_i32_0 = arith.constant 0 : i32
    %c0_i32_1 = arith.constant 0 : i32
    %c0_i32_2 = arith.constant 0 : i32
    return %c0_i32, %c0_i32_0, %c0_i32_1 : i32, i32, i32
  }
  func.func @transform_15(%arg0: i32) -> (i32, i32, i32) {
    %c0_i32 = arith.constant 0 : i32
    %c0_i32_0 = arith.constant 0 : i32
    %c0_i32_1 = arith.constant 0 : i32
    %c0_i32_2 = arith.constant 0 : i32
    return %c0_i32, %c0_i32_0, %c0_i32_1 : i32, i32, i32
  }
  func.func @transform_16(%arg0: i32) -> (i32, i32) {
    %c0_i32 = arith.constant 0 : i32
    %c0_i32_0 = arith.constant 0 : i32
    return %arg0, %c0_i32 : i32, i32
  }
}

</mosaic_0001>

<llo_original>
// kernel: tpu_custom_call.1
$region0: #{tpu_custom_call.1}
  #allocation0 [shape = 'u32[]', space=smem, size = 0x4, offset = 0x4, fixed_abs, tag = 'smem constant byte address 0x4 - core index']
  #allocation1 [shape = 'u32[144,128]{1,0:T(1,128)}', space=vmem, size = 0x12000, scoped, tag = 'internal scratch']
  %s0 = inlined_call_operand.hbm [shape: f32[16,16,64], index: 0, kind: input, shape index: {}]
  %s1 = inlined_call_operand.vmem [shape: bf16[64,32], index: 1, kind: input, shape index: {}]
  %s2 = inlined_call_operand.vmem [shape: f32[1,32], index: 2, kind: input, shape index: {}]
  %s3 = inlined_call_operand.vmem [shape: f32[16,32], index: 3, kind: input, shape index: {}]
  %s4 = inlined_call_operand.vmem [shape: bf16[2,32,96], index: 4, kind: input, shape index: {}]
  %s5 = inlined_call_operand.vmem [shape: f32[2,1,96], index: 5, kind: input, shape index: {}]
  %s6 = inlined_call_operand.vmem [shape: bf16[2,32,32], index: 6, kind: input, shape index: {}]
  %s7 = inlined_call_operand.vmem [shape: f32[2,1,32], index: 7, kind: input, shape index: {}]
  %s8 = inlined_call_operand.vmem [shape: f32[2,1,32], index: 8, kind: input, shape index: {}]
  %s9 = inlined_call_operand.vmem [shape: f32[2,1,32], index: 9, kind: input, shape index: {}]
  %s10 = inlined_call_operand.vmem [shape: bf16[2,32,64], index: 10, kind: input, shape index: {}]
  %s11 = inlined_call_operand.vmem [shape: f32[2,1,64], index: 11, kind: input, shape index: {}]
  %s12 = inlined_call_operand.vmem [shape: bf16[2,64,32], index: 12, kind: input, shape index: {}]
  %s13 = inlined_call_operand.vmem [shape: f32[2,1,32], index: 13, kind: input, shape index: {}]
  %s14 = inlined_call_operand.vmem [shape: f32[2,1,32], index: 14, kind: input, shape index: {}]
  %s15 = inlined_call_operand.vmem [shape: f32[2,1,32], index: 15, kind: input, shape index: {}]
  %s16 = inlined_call_operand.hbm [shape: f32[16,32], index: 16, kind: output, shape index: {}]
  %s17 = sld [smem:[#allocation0]]
  $region108: #{tpu_custom_call.1} parent=0
    _
  %s19 = ssub.s32 1, %s17
  %s20 = scalar_select 0, %s19, %s17
  $region1: #{tpu_custom_call.1} parent=0
    #allocation2 [shape = 'u8[131072]{0}', space=vmem, size = 0x20000, scoped, tag = 'input window, operand 0']
    #allocation3 [shape = 's32[2]{0}', space=sflag, size = 0x8, scoped, tag = 'scoped memory for tpu_custom_call.1']
    #allocation4 [shape = 's32[2]{0}', space=sflag, size = 0x8, scoped, tag = 'scoped memory for tpu_custom_call.1']
    #allocation5 [shape = 'u8[8192]{0}', space=vmem, size = 0x2000, scoped, tag = 'output window, operand 0']
    %21 = vsyncpa [#allocation3], 0
    %s22 = scalar_lea.sflag [#allocation3], 1
    %23 = vsyncpa %s22, 0
    %24 = vsyncpa [#allocation4], 0
    %s25 = scalar_lea.sflag [#allocation4], 1
    %26 = vsyncpa %s25, 0
    loop: start=0, step=1, limit=4
    $region2: #{tpu_custom_call.1} parent=1 // loop_pre_header
      _
    $region3: #{tpu_custom_call.1} parent=1 // loop_header
      %s28 = sphi 0, %s32
      %p29 = scmp.ge.s32.totalorder %s28, 4
      %s38 = sphi 0, %s40
      %s41 = sphi 0, %s38
      %s42 = sphi 0, %s41
      %s58 = sphi 0, %s42
      %s62 = sphi 0, %s62
      %s64 = sphi 0, %s62
      %s65 = sphi 0, %s64
      %s79 = sphi 0, %s65
      %s83 = sphi 0, %s83
      %s85 = sphi 0, %s83
      %s86 = sphi 0, %s85
      %s100 = sphi 0, %s86
      %s104 = sphi 0, %s104
      %s106 = sphi 0, %s104
      %s107 = sphi 0, %s106
      %s121 = sphi 0, %s107
      %s125 = sphi 0, %s125
      %s127 = sphi 0, %s125
      %s128 = sphi 0, %s127
      %s142 = sphi 0, %s128
      %s146 = sphi 0, %s146
      %s148 = sphi 0, %s146
      %s149 = sphi 0, %s148
      %s163 = sphi 0, %s149
      %s167 = sphi 0, %s167
      %s169 = sphi 0, %s167
      %s170 = sphi 0, %s169
      %s184 = sphi 0, %s170
      %s188 = sphi 0, %s188
      %s190 = sphi 0, %s188
      %s191 = sphi 0, %s190
      %s205 = sphi 0, %s191
      %s209 = sphi 0, %s209
      %s211 = sphi 0, %s209
      %s212 = sphi 0, %s211
      %s226 = sphi 0, %s212
      %s230 = sphi 0, %s230
      %s232 = sphi 0, %s230
      %s233 = sphi 0, %s232
      %s247 = sphi 0, %s233
      %s251 = sphi 0, %s251
      %s253 = sphi 0, %s251
      %s254 = sphi 0, %s253
      %s268 = sphi 0, %s254
      %s272 = sphi 0, %s272
      %s274 = sphi 0, %s272
      %s275 = sphi 0, %s274
      %s289 = sphi 0, %s275
      %s293 = sphi 0, %s293
      %s295 = sphi 0, %s293
      %s296 = sphi 0, %s295
      %s310 = sphi 0, %s296
      %s314 = sphi 0, %s314
      %s316 = sphi 0, %s314
      %s317 = sphi 0, %s316
      %s331 = sphi 0, %s317
      %s335 = sphi 0, %s335
      %s337 = sphi 0, %s335
      %s338 = sphi 0, %s337
      %s352 = sphi 0, %s338
      %s356 = sphi 0, %s356
      %s358 = sphi 0, %s356
      %s359 = sphi 0, %s358
      %s373 = sphi 0, %s359
      %s379 = sphi 0, %s381
      %s382 = sphi 0, %s379
      %s383 = sphi 0, %s382
      %s399 = sphi 0, %s383
    $region4: #{tpu_custom_call.1} parent=1 // loop_header_branch
      %31 = sbr.rel (%p29) target = $region8
    $region5: #{tpu_custom_call.1} parent=1 // loop_body
      %s33 = ssub.s32 %s28, 1
      %s34 = ssub.s32 %s28, 2
      %s35 = sadd.s32 %s28, 1
      %s36 = ssub.s32 %s28, %s35
      %p37 = scmp.eq.s32.totalorder %s36, 0
      %s39 = sadd.s32 %s38, 1
      %s40 = scalar_select %p37, %s38, %s39
      %p43 = pneg %p37
      %p44 = scmp.eq.s32.totalorder %s28, 1
      %p45 = por %p43, %p44
      %p46 = scmp.ne.s32.totalorder %s38, %s41
      %p47 = scmp.eq.s32.totalorder %s28, 0
      %p48 = por %p46, %p47
      %p49 = scmp.ne.s32.totalorder %s38, %s41
      %p50 = scmp.eq.s32.totalorder %s33, 1
      %p51 = por %p49, %p50
      %p52 = scmp.ne.s32.totalorder %s41, %s42
      %p53 = scmp.eq.s32.totalorder %s33, 0
      %p54 = por %p52, %p53
      %p55 = scmp.ne.s32.totalorder %s41, %s42
      %p56 = scmp.eq.s32.totalorder %s34, 1
      %p57 = por %p55, %p56
      %p59 = scmp.ne.s32.totalorder %s42, %s58
      %p60 = scmp.eq.s32.totalorder %s34, 0
      %p61 = por %p59, %p60
      %s63 = sadd.s32 %s62, 1
      %p66 = scmp.eq.s32.totalorder %s28, 1
      %p67 = scmp.ne.s32.totalorder %s62, %s64
      %p68 = scmp.eq.s32.totalorder %s28, 0
      %p69 = por %p67, %p68
      %p70 = scmp.ne.s32.totalorder %s62, %s64
      %p71 = scmp.eq.s32.totalorder %s33, 1
      %p72 = por %p70, %p71
      %p73 = scmp.ne.s32.totalorder %s64, %s65
      %p74 = scmp.eq.s32.totalorder %s33, 0
      %p75 = por %p73, %p74
      %p76 = scmp.ne.s32.totalorder %s64, %s65
      %p77 = scmp.eq.s32.totalorder %s34, 1
      %p78 = por %p76, %p77
      %p80 = scmp.ne.s32.totalorder %s65, %s79
      %p81 = scmp.eq.s32.totalorder %s34, 0
      %p82 = por %p80, %p81
      %s84 = sadd.s32 %s83, 1
      %p87 = scmp.eq.s32.totalorder %s28, 1
      %p88 = scmp.ne.s32.totalorder %s83, %s85
      %p89 = scmp.eq.s32.totalorder %s28, 0
      %p90 = por %p88, %p89
      %p91 = scmp.ne.s32.totalorder %s83, %s85
      %p92 = scmp.eq.s32.totalorder %s33, 1
      %p93 = por %p91, %p92
      %p94 = scmp.ne.s32.totalorder %s85, %s86
      %p95 = scmp.eq.s32.totalorder %s33, 0
      %p96 = por %p94, %p95
      %p97 = scmp.ne.s32.totalorder %s85, %s86
      %p98 = scmp.eq.s32.totalorder %s34, 1
      %p99 = por %p97, %p98
      %p101 = scmp.ne.s32.totalorder %s86, %s100
      %p102 = scmp.eq.s32.totalorder %s34, 0
      %p103 = por %p101, %p102
      %s105 = sadd.s32 %s104, 1
      %p108 = scmp.eq.s32.totalorder %s28, 1
      %p109 = scmp.ne.s32.totalorder %s104, %s106
      %p110 = scmp.eq.s32.totalorder %s28, 0
      %p111 = por %p109, %p110
      %p112 = scmp.ne.s32.totalorder %s104, %s106
      %p113 = scmp.eq.s32.totalorder %s33, 1
      %p114 = por %p112, %p113
      %p115 = scmp.ne.s32.totalorder %s106, %s107
      %p116 = scmp.eq.s32.totalorder %s33, 0
      %p117 = por %p115, %p116
      %p118 = scmp.ne.s32.totalorder %s106, %s107
      %p119 = scmp.eq.s32.totalorder %s34, 1
      %p120 = por %p118, %p119
      %p122 = scmp.ne.s32.totalorder %s107, %s121
      %p123 = scmp.eq.s32.totalorder %s34, 0
      %p124 = por %p122, %p123
      %s126 = sadd.s32 %s125, 1
      %p129 = scmp.eq.s32.totalorder %s28, 1
      %p130 = scmp.ne.s32.totalorder %s125, %s127
      %p131 = scmp.eq.s32.totalorder %s28, 0
      %p132 = por %p130, %p131
      %p133 = scmp.ne.s32.totalorder %s125, %s127
      %p134 = scmp.eq.s32.totalorder %s33, 1
      %p135 = por %p133, %p134
      %p136 = scmp.ne.s32.totalorder %s127, %s128
      %p137 = scmp.eq.s32.totalorder %s33, 0
      %p138 = por %p136, %p137
      %p139 = scmp.ne.s32.totalorder %s127, %s128
      %p140 = scmp.eq.s32.totalorder %s34, 1
      %p141 = por %p139, %p140
      %p143 = scmp.ne.s32.totalorder %s128, %s142
      %p144 = scmp.eq.s32.totalorder %s34, 0
      %p145 = por %p143, %p144
      %s147 = sadd.s32 %s146, 1
      %p150 = scmp.eq.s32.totalorder %s28, 1
      %p151 = scmp.ne.s32.totalorder %s146, %s148
      %p152 = scmp.eq.s32.totalorder %s28, 0
      %p153 = por %p151, %p152
      %p154 = scmp.ne.s32.totalorder %s146, %s148
      %p155 = scmp.eq.s32.totalorder %s33, 1
      %p156 = por %p154, %p155
      %p157 = scmp.ne.s32.totalorder %s148, %s149
      %p158 = scmp.eq.s32.totalorder %s33, 0
      %p159 = por %p157, %p158
      %p160 = scmp.ne.s32.totalorder %s148, %s149
      %p161 = scmp.eq.s32.totalorder %s34, 1
      %p162 = por %p160, %p161
      %p164 = scmp.ne.s32.totalorder %s149, %s163
      %p165 = scmp.eq.s32.totalorder %s34, 0
      %p166 = por %p164, %p165
      %s168 = sadd.s32 %s167, 1
      %p171 = scmp.eq.s32.totalorder %s28, 1
      %p172 = scmp.ne.s32.totalorder %s167, %s169
      %p173 = scmp.eq.s32.totalorder %s28, 0
      %p174 = por %p172, %p173
      %p175 = scmp.ne.s32.totalorder %s167, %s169
      %p176 = scmp.eq.s32.totalorder %s33, 1
      %p177 = por %p175, %p176
      %p178 = scmp.ne.s32.totalorder %s169, %s170
      %p179 = scmp.eq.s32.totalorder %s33, 0
      %p180 = por %p178, %p179
      %p181 = scmp.ne.s32.totalorder %s169, %s170
      %p182 = scmp.eq.s32.totalorder %s34, 1
      %p183 = por %p181, %p182
      %p185 = scmp.ne.s32.totalorder %s170, %s184
      %p186 = scmp.eq.s32.totalorder %s34, 0
      %p187 = por %p185, %p186
      %s189 = sadd.s32 %s188, 1
      %p192 = scmp.eq.s32.totalorder %s28, 1
      %p193 = scmp.ne.s32.totalorder %s188, %s190
      %p194 = scmp.eq.s32.totalorder %s28, 0
      %p195 = por %p193, %p194
      %p196 = scmp.ne.s32.totalorder %s188, %s190
      %p197 = scmp.eq.s32.totalorder %s33, 1
      %p198 = por %p196, %p197
      %p199 = scmp.ne.s32.totalorder %s190, %s191
      %p200 = scmp.eq.s32.totalorder %s33, 0
      %p201 = por %p199, %p200
      %p202 = scmp.ne.s32.totalorder %s190, %s191
      %p203 = scmp.eq.s32.totalorder %s34, 1
      %p204 = por %p202, %p203
      %p206 = scmp.ne.s32.totalorder %s191, %s205
      %p207 = scmp.eq.s32.totalorder %s34, 0
      %p208 = por %p206, %p207
      %s210 = sadd.s32 %s209, 1
      %p213 = scmp.eq.s32.totalorder %s28, 1
      %p214 = scmp.ne.s32.totalorder %s209, %s211
      %p215 = scmp.eq.s32.totalorder %s28, 0
      %p216 = por %p214, %p215
      %p217 = scmp.ne.s32.totalorder %s209, %s211
      %p218 = scmp.eq.s32.totalorder %s33, 1
      %p219 = por %p217, %p218
      %p220 = scmp.ne.s32.totalorder %s211, %s212
      %p221 = scmp.eq.s32.totalorder %s33, 0
      %p222 = por %p220, %p221
      %p223 = scmp.ne.s32.totalorder %s211, %s212
      %p224 = scmp.eq.s32.totalorder %s34, 1
      %p225 = por %p223, %p224
      %p227 = scmp.ne.s32.totalorder %s212, %s226
      %p228 = scmp.eq.s32.totalorder %s34, 0
      %p229 = por %p227, %p228
      %s231 = sadd.s32 %s230, 1
      %p234 = scmp.eq.s32.totalorder %s28, 1
      %p235 = scmp.ne.s32.totalorder %s230, %s232
      %p236 = scmp.eq.s32.totalorder %s28, 0
      %p237 = por %p235, %p236
      %p238 = scmp.ne.s32.totalorder %s230, %s232
      %p239 = scmp.eq.s32.totalorder %s33, 1
      %p240 = por %p238, %p239
      %p241 = scmp.ne.s32.totalorder %s232, %s233
      %p242 = scmp.eq.s32.totalorder %s33, 0
      %p243 = por %p241, %p242
      %p244 = scmp.ne.s32.totalorder %s232, %s233
      %p245 = scmp.eq.s32.totalorder %s34, 1
      %p246 = por %p244, %p245
      %p248 = scmp.ne.s32.totalorder %s233, %s247
      %p249 = scmp.eq.s32.totalorder %s34, 0
      %p250 = por %p248, %p249
      %s252 = sadd.s32 %s251, 1
      %p255 = scmp.eq.s32.totalorder %s28, 1
      %p256 = scmp.ne.s32.totalorder %s251, %s253
      %p257 = scmp.eq.s32.totalorder %s28, 0
      %p258 = por %p256, %p257
      %p259 = scmp.ne.s32.totalorder %s251, %s253
      %p260 = scmp.eq.s32.totalorder %s33, 1
      %p261 = por %p259, %p260
      %p262 = scmp.ne.s32.totalorder %s253, %s254
      %p263 = scmp.eq.s32.totalorder %s33, 0
      %p264 = por %p262, %p263
      %p265 = scmp.ne.s32.totalorder %s253, %s254
      %p266 = scmp.eq.s32.totalorder %s34, 1
      %p267 = por %p265, %p266
      %p269 = scmp.ne.s32.totalorder %s254, %s268
      %p270 = scmp.eq.s32.totalorder %s34, 0
      %p271 = por %p269, %p270
      %s273 = sadd.s32 %s272, 1
      %p276 = scmp.eq.s32.totalorder %s28, 1
      %p277 = scmp.ne.s32.totalorder %s272, %s274
      %p278 = scmp.eq.s32.totalorder %s28, 0
      %p279 = por %p277, %p278
      %p280 = scmp.ne.s32.totalorder %s272, %s274
      %p281 = scmp.eq.s32.totalorder %s33, 1
      %p282 = por %p280, %p281
      %p283 = scmp.ne.s32.totalorder %s274, %s275
      %p284 = scmp.eq.s32.totalorder %s33, 0
      %p285 = por %p283, %p284
      %p286 = scmp.ne.s32.totalorder %s274, %s275
      %p287 = scmp.eq.s32.totalorder %s34, 1
      %p288 = por %p286, %p287
      %p290 = scmp.ne.s32.totalorder %s275, %s289
      %p291 = scmp.eq.s32.totalorder %s34, 0
      %p292 = por %p290, %p291
      %s294 = sadd.s32 %s293, 1
      %p297 = scmp.eq.s32.totalorder %s28, 1
      %p298 = scmp.ne.s32.totalorder %s293, %s295
      %p299 = scmp.eq.s32.totalorder %s28, 0
      %p300 = por %p298, %p299
      %p301 = scmp.ne.s32.totalorder %s293, %s295
      %p302 = scmp.eq.s32.totalorder %s33, 1
      %p303 = por %p301, %p302
      %p304 = scmp.ne.s32.totalorder %s295, %s296
      %p305 = scmp.eq.s32.totalorder %s33, 0
      %p306 = por %p304, %p305
      %p307 = scmp.ne.s32.totalorder %s295, %s296
      %p308 = scmp.eq.s32.totalorder %s34, 1
      %p309 = por %p307, %p308
      %p311 = scmp.ne.s32.totalorder %s296, %s310
      %p312 = scmp.eq.s32.totalorder %s34, 0
      %p313 = por %p311, %p312
      %s315 = sadd.s32 %s314, 1
      %p318 = scmp.eq.s32.totalorder %s28, 1
      %p319 = scmp.ne.s32.totalorder %s314, %s316
      %p320 = scmp.eq.s32.totalorder %s28, 0
      %p321 = por %p319, %p320
      %p322 = scmp.ne.s32.totalorder %s314, %s316
      %p323 = scmp.eq.s32.totalorder %s33, 1
      %p324 = por %p322, %p323
      %p325 = scmp.ne.s32.totalorder %s316, %s317
      %p326 = scmp.eq.s32.totalorder %s33, 0
      %p327 = por %p325, %p326
      %p328 = scmp.ne.s32.totalorder %s316, %s317
      %p329 = scmp.eq.s32.totalorder %s34, 1
      %p330 = por %p328, %p329
      %p332 = scmp.ne.s32.totalorder %s317, %s331
      %p333 = scmp.eq.s32.totalorder %s34, 0
      %p334 = por %p332, %p333
      %s336 = sadd.s32 %s335, 1
      %p339 = scmp.eq.s32.totalorder %s28, 1
      %p340 = scmp.ne.s32.totalorder %s335, %s337
      %p341 = scmp.eq.s32.totalorder %s28, 0
      %p342 = por %p340, %p341
      %p343 = scmp.ne.s32.totalorder %s335, %s337
      %p344 = scmp.eq.s32.totalorder %s33, 1
      %p345 = por %p343, %p344
      %p346 = scmp.ne.s32.totalorder %s337, %s338
      %p347 = scmp.eq.s32.totalorder %s33, 0
      %p348 = por %p346, %p347
      %p349 = scmp.ne.s32.totalorder %s337, %s338
      %p350 = scmp.eq.s32.totalorder %s34, 1
      %p351 = por %p349, %p350
      %p353 = scmp.ne.s32.totalorder %s338, %s352
      %p354 = scmp.eq.s32.totalorder %s34, 0
      %p355 = por %p353, %p354
      %s357 = sadd.s32 %s356, 1
      %p360 = scmp.eq.s32.totalorder %s28, 1
      %p361 = scmp.ne.s32.totalorder %s356, %s358
      %p362 = scmp.eq.s32.totalorder %s28, 0
      %p363 = por %p361, %p362
      %p364 = scmp.ne.s32.totalorder %s356, %s358
      %p365 = scmp.eq.s32.totalorder %s33, 1
      %p366 = por %p364, %p365
      %p367 = scmp.ne.s32.totalorder %s358, %s359
      %p368 = scmp.eq.s32.totalorder %s33, 0
      %p369 = por %p367, %p368
      %p370 = scmp.ne.s32.totalorder %s358, %s359
      %p371 = scmp.eq.s32.totalorder %s34, 1
      %p372 = por %p370, %p371
      %p374 = scmp.ne.s32.totalorder %s359, %s373
      %p375 = scmp.eq.s32.totalorder %s34, 0
      %p376 = por %p374, %p375
      %s377 = ssub.s32 %s28, %s35
      %p378 = scmp.eq.s32.totalorder %s377, 0
      %s380 = sadd.s32 %s379, 1
      %s381 = scalar_select %p378, %s379, %s380
      %p384 = pneg %p378
      %p385 = scmp.eq.s32.totalorder %s28, 1
      %p386 = por %p384, %p385
      %p387 = scmp.ne.s32.totalorder %s379, %s382
      %p388 = scmp.eq.s32.totalorder %s28, 0
      %p389 = por %p387, %p388
      %p390 = scmp.ne.s32.totalorder %s379, %s382
      %p391 = scmp.eq.s32.totalorder %s33, 1
      %p392 = por %p390, %p391
      %p393 = scmp.ne.s32.totalorder %s382, %s383
      %p394 = scmp.eq.s32.totalorder %s33, 0
      %p395 = por %p393, %p394
      %p396 = scmp.ne.s32.totalorder %s382, %s383
      %p397 = scmp.eq.s32.totalorder %s34, 1
      %p398 = por %p396, %p397
      %p400 = scmp.ne.s32.totalorder %s383, %s399
      %p401 = scmp.eq.s32.totalorder %s34, 0
      %p402 = por %p400, %p401
      %p403 = scmp.le.s32.totalorder 1, %s28
      %p404 = scmp.lt.s32.totalorder %s28, 3
      %p405 = pnand %p403, %p404
      %p406 = pneg %p405
      // Predicated region
      $region9: #{tpu_custom_call.1} parent=5 // pred_check
        _
      $region10: #{tpu_custom_call.1} parent=5 // pred_check_branch
        %408 = sbr.rel (%p405) target = $region12
      $region11: #{tpu_custom_call.1} parent=5 // pred_region
        %s409 = ssub.s32 %s28, 1
        // Predicated region
        $region13: #{tpu_custom_call.1} parent=11 // pred_check
          %p410 = pneg %p75
        $region14: #{tpu_custom_call.1} parent=11 // pred_check_branch
          %412 = sbr.rel (%p410) target = $region16
        $region15: #{tpu_custom_call.1} parent=11 // pred_region
          _
        $region16: #{tpu_custom_call.1} parent=11 // pred_fallthru
          _
        // Predicated region
        $region17: #{tpu_custom_call.1} parent=11 // pred_check
          %p413 = pneg %p96
        $region18: #{tpu_custom_call.1} parent=11 // pred_check_branch
          %415 = sbr.rel (%p413) target = $region20
        $region19: #{tpu_custom_call.1} parent=11 // pred_region
          _
        $region20: #{tpu_custom_call.1} parent=11 // pred_fallthru
          _
        // Predicated region
        $region21: #{tpu_custom_call.1} parent=11 // pred_check
          %p416 = pneg %p117
        $region22: #{tpu_custom_call.1} parent=11 // pred_check_branch
          %418 = sbr.rel (%p416) target = $region24
        $region23: #{tpu_custom_call.1} parent=11 // pred_region
          _
        $region24: #{tpu_custom_call.1} parent=11 // pred_fallthru
          _
        // Predicated region
        $region25: #{tpu_custom_call.1} parent=11 // pred_check
          %p419 = pneg %p138
        $region26: #{tpu_custom_call.1} parent=11 // pred_check_branch
          %421 = sbr.rel (%p419) target = $region28
        $region27: #{tpu_custom_call.1} parent=11 // pred_region
          _
        $region28: #{tpu_custom_call.1} parent=11 // pred_fallthru
          _
        // Predicated region
        $region29: #{tpu_custom_call.1} parent=11 // pred_check
          %p422 = pneg %p159
        $region30: #{tpu_custom_call.1} parent=11 // pred_check_branch
          %424 = sbr.rel (%p422) target = $region32
        $region31: #{tpu_custom_call.1} parent=11 // pred_region
          _
        $region32: #{tpu_custom_call.1} parent=11 // pred_fallthru
          _
        // Predicated region
        $region33: #{tpu_custom_call.1} parent=11 // pred_check
          %p425 = pneg %p180
        $region34: #{tpu_custom_call.1} parent=11 // pred_check_branch
          %427 = sbr.rel (%p425) target = $region36
        $region35: #{tpu_custom_call.1} parent=11 // pred_region
          _
        $region36: #{tpu_custom_call.1} parent=11 // pred_fallthru
          _
        // Predicated region
        $region37: #{tpu_custom_call.1} parent=11 // pred_check
          %p428 = pneg %p201
        $region38: #{tpu_custom_call.1} parent=11 // pred_check_branch
          %430 = sbr.rel (%p428) target = $region40
        $region39: #{tpu_custom_call.1} parent=11 // pred_region
          _
        $region40: #{tpu_custom_call.1} parent=11 // pred_fallthru
          _
        // Predicated region
        $region41: #{tpu_custom_call.1} parent=11 // pred_check
          %p431 = pneg %p222
        $region42: #{tpu_custom_call.1} parent=11 // pred_check_branch
          %433 = sbr.rel (%p431) target = $region44
        $region43: #{tpu_custom_call.1} parent=11 // pred_region
          _
        $region44: #{tpu_custom_call.1} parent=11 // pred_fallthru
          _
        // Predicated region
        $region45: #{tpu_custom_call.1} parent=11 // pred_check
          %p434 = pneg %p243
        $region46: #{tpu_custom_call.1} parent=11 // pred_check_branch
          %436 = sbr.rel (%p434) target = $region48
        $region47: #{tpu_custom_call.1} parent=11 // pred_region
          _
        $region48: #{tpu_custom_call.1} parent=11 // pred_fallthru
          _
        // Predicated region
        $region49: #{tpu_custom_call.1} parent=11 // pred_check
          %p437 = pneg %p264
        $region50: #{tpu_custom_call.1} parent=11 // pred_check_branch
          %439 = sbr.rel (%p437) target = $region52
        $region51: #{tpu_custom_call.1} parent=11 // pred_region
          _
        $region52: #{tpu_custom_call.1} parent=11 // pred_fallthru
          _
        // Predicated region
        $region53: #{tpu_custom_call.1} parent=11 // pred_check
          %p440 = pneg %p285
        $region54: #{tpu_custom_call.1} parent=11 // pred_check_branch
          %442 = sbr.rel (%p440) target = $region56
        $region55: #{tpu_custom_call.1} parent=11 // pred_region
          _
        $region56: #{tpu_custom_call.1} parent=11 // pred_fallthru
          _
        // Predicated region
        $region57: #{tpu_custom_call.1} parent=11 // pred_check
          %p443 = pneg %p306
        $region58: #{tpu_custom_call.1} parent=11 // pred_check_branch
          %445 = sbr.rel (%p443) target = $region60
        $region59: #{tpu_custom_call.1} parent=11 // pred_region
          _
        $region60: #{tpu_custom_call.1} parent=11 // pred_fallthru
          _
        // Predicated region
        $region61: #{tpu_custom_call.1} parent=11 // pred_check
          %p446 = pneg %p327
        $region62: #{tpu_custom_call.1} parent=11 // pred_check_branch
          %448 = sbr.rel (%p446) target = $region64
        $region63: #{tpu_custom_call.1} parent=11 // pred_region
          _
        $region64: #{tpu_custom_call.1} parent=11 // pred_fallthru
          _
        // Predicated region
        $region65: #{tpu_custom_call.1} parent=11 // pred_check
          %p449 = pneg %p348
        $region66: #{tpu_custom_call.1} parent=11 // pred_check_branch
          %451 = sbr.rel (%p449) target = $region68
        $region67: #{tpu_custom_call.1} parent=11 // pred_region
          _
        $region68: #{tpu_custom_call.1} parent=11 // pred_fallthru
          _
        // Predicated region
        $region69: #{tpu_custom_call.1} parent=11 // pred_check
          %p452 = pneg %p369
        $region70: #{tpu_custom_call.1} parent=11 // pred_check_branch
          %454 = sbr.rel (%p452) target = $region72
        $region71: #{tpu_custom_call.1} parent=11 // pred_region
          _
        $region72: #{tpu_custom_call.1} parent=11 // pred_fallthru
          _
      $region12: #{tpu_custom_call.1} parent=5 // pred_fallthru
        _
      %p455 = scmp.lt.s32.totalorder %s28, 2
      // Predicated region
      $region73: #{tpu_custom_call.1} parent=5 // pred_check
        %p456 = pneg %p455
      $region74: #{tpu_custom_call.1} parent=5 // pred_check_branch
        %458 = sbr.rel (%p456) target = $region76
      $region75: #{tpu_custom_call.1} parent=5 // pred_region
        // Predicated region
        $region77: #{tpu_custom_call.1} parent=75 // pred_check
          %p459 = pneg %p48
        $region78: #{tpu_custom_call.1} parent=75 // pred_check_branch
          %461 = sbr.rel (%p459) target = $region80
        $region79: #{tpu_custom_call.1} parent=75 // pred_region
          %s462 = sand.u32 %s38, 1
          %s463 = scalar_lea.sflag [#allocation3], %s462
          %s464 = sand.u32 %s38, 1
          %s465 = smul.addr %s464, 128
          %s466 = scalar_lea.vmem [#allocation2], %s465
          %s467 = smul.u32 8, %s28
          %s469 = ssub.s32 2048, 2048
          %470 = vsyncadd %s463, %s469
          %s471 = smul.addr %s467, 2
          %s472 = smul.addr %s471, 128
          %s473 = scalar_lea.hbm %s0, %s472
          %s474 = sshll.u32 %s466, 4
          %s475 = int_to_ptr.vmem [resolvable:$true] %s474
          %480 = dma.hbm_to_vmem [thread:$0]  %s473, 2048, %s475, %s463, 128, 128, 8
        $region80: #{tpu_custom_call.1} parent=75 // pred_fallthru
          _
      $region76: #{tpu_custom_call.1} parent=5 // pred_fallthru
        _
      %p481 = scmp.le.s32.totalorder 1, %s28
      %p482 = scmp.lt.s32.totalorder %s28, 3
      %p483 = pnand %p481, %p482
      %p484 = pneg %p483
      // Predicated region
      $region81: #{tpu_custom_call.1} parent=5 // pred_check
        _
      $region82: #{tpu_custom_call.1} parent=5 // pred_check_branch
        %486 = sbr.rel (%p483) target = $region84
      $region83: #{tpu_custom_call.1} parent=5 // pred_region
        %s487 = ssub.s32 %s28, 1
        %s488 = sand.u32 %s41, 1
        %s489 = scalar_lea.sflag [#allocation3], %s488
        %s490 = sand.u32 %s41, 1
        %s491 = smul.addr %s490, 128
        %s492 = scalar_lea.vmem [#allocation2], %s491
        // Predicated region
        $region85: #{tpu_custom_call.1} parent=83 // pred_check
          %p493 = pneg %p54
        $region86: #{tpu_custom_call.1} parent=83 // pred_check_branch
          %495 = sbr.rel (%p493) target = $region88
        $region87: #{tpu_custom_call.1} parent=83 // pred_region
          %496 = dma.done %s489, 2048
        $region88: #{tpu_custom_call.1} parent=83 // pred_fallthru
          _
        %s497 = sand.u32 %s41, 1
        %s498 = scalar_lea.sflag [#allocation3], %s497
        %s499 = sand.u32 %s41, 1
        %s500 = smul.addr %s499, 128
        %s501 = scalar_lea.vmem [#allocation2], %s500
        %p502 = pneg %p54
        %p503 = pneg %p51
        %p504 = pneg %p75
        %p505 = pneg %p72
        %p506 = pneg %p96
        %p507 = pneg %p93
        %p508 = pneg %p117
        %p509 = pneg %p114
        %p510 = pneg %p138
        %p511 = pneg %p135
        %p512 = pneg %p159
        %p513 = pneg %p156
        %p514 = pneg %p180
        %p515 = pneg %p177
        %p516 = pneg %p201
        %p517 = pneg %p198
        %p518 = pneg %p222
        %p519 = pneg %p219
        %p520 = pneg %p243
        %p521 = pneg %p240
        %p522 = pneg %p264
        %p523 = pneg %p261
        %p524 = pneg %p285
        %p525 = pneg %p282
        %p526 = pneg %p306
        %p527 = pneg %p303
        %p528 = pneg %p327
        %p529 = pneg %p324
        %p530 = pneg %p348
        %p531 = pneg %p345
        %p532 = pneg %p369
        %p533 = pneg %p366
        %p534 = pneg %p395
        %p535 = pneg %p392
        %s536 = sand.u32 %s382, 1
        %s537 = scalar_lea.sflag [#allocation4], %s536
        %s538 = sand.u32 %s382, 1
        %s539 = smul.addr %s538, 8
        %s540 = scalar_lea.vmem [#allocation5], %s539
        %s541 = smul.u32 8, %s33
        %v543 = vld [vmem:[%s492] sm:$0xff]
        %v544 = vld [vmem:[%s492 + $0x8] sm:$0xff]
        %v545 = vld [vmem:[%s492 + $0x10] sm:$0xff]
        %v546 = vld [vmem:[%s492 + $0x18] sm:$0xff]
        %v547 = vld [vmem:[%s492 + $0x20] sm:$0xff]
        %v548 = vld [vmem:[%s492 + $0x28] sm:$0xff]
        %v549 = vld [vmem:[%s492 + $0x30] sm:$0xff]
        %v550 = vld [vmem:[%s492 + $0x38] sm:$0xff]
        %v551 = vld [vmem:[%s492 + $0x40] sm:$0xff]
        %v552 = vld [vmem:[%s492 + $0x48] sm:$0xff]
        %v553 = vld [vmem:[%s492 + $0x50] sm:$0xff]
        %v554 = vld [vmem:[%s492 + $0x58] sm:$0xff]
        %v555 = vld [vmem:[%s492 + $0x60] sm:$0xff]
        %v556 = vld [vmem:[%s492 + $0x68] sm:$0xff]
        %v557 = vld [vmem:[%s492 + $0x70] sm:$0xff]
        %v558 = vld [vmem:[%s492 + $0x78] sm:$0xff]
        %v559 = vld [vmem:[%s1] sm:$0xf]
        %v560 = vld [vmem:[%s1 + $0x4] sm:$0xf]
        %v561 = vld [vmem:[%s1 + $0x8] sm:$0xf]
        %v562 = vld [vmem:[%s1 + $0xc] sm:$0xf]
        %v563 = vld [vmem:[%s1 + $0x10] sm:$0xf]
        %v564 = vld [vmem:[%s1 + $0x14] sm:$0xf]
        %v565 = vld [vmem:[%s1 + $0x18] sm:$0xf]
        %v566 = vld [vmem:[%s1 + $0x1c] sm:$0xf]
        %v567 = vpack.c.bf16 %v544, %v543
        %v568 = vpack.c.bf16 %v546, %v545
        %v569 = vpack.c.bf16 %v548, %v547
        %v570 = vpack.c.bf16 %v550, %v549
        %v571 = vpack.c.bf16 %v552, %v551
        %v572 = vpack.c.bf16 %v554, %v553
        %v573 = vpack.c.bf16 %v556, %v555
        %v574 = vpack.c.bf16 %v558, %v557
        %v575 = vld [vmem:[%s2] sm:$0x1]
        %v577 = vlaneseq
        %v578 = vshrl.u32 %v577, 7
        %v579 = vsub.s32 0, %v578
        %v580 = vrot.slane %v575, %v579
        %v590 = vunpack.c.l.b16 %v559
        %v591 = vunpack.c.l.b16 %v560
        %v592 = vunpack.c.l.b16 %v561
        %v593 = vunpack.c.l.b16 %v562
        %v594 = vunpack.c.l.b16 %v563
        %v595 = vunpack.c.l.b16 %v564
        %v596 = vunpack.c.l.b16 %v565
        %v597 = vunpack.c.l.b16 %v566
        %v598 = vpack.c.b16 %v591, %v590
        %v599 = vpack.c.b16 %v593, %v592
        %v600 = vpack.c.b16 %v595, %v594
        %v601 = vpack.c.b16 %v597, %v596
        %vm606 = vcmask 523264
        %v608 = vsel %vm606, %v567, 0
        %v611 = vsel %vm606, %v568, 0
        %v614 = vsel %vm606, %v569, 0
        %v617 = vsel %vm606, %v570, 0
        %v620 = vsel %vm606, %v571, 0
        %v623 = vsel %vm606, %v572, 0
        %v626 = vsel %vm606, %v573, 0
        %v629 = vsel %vm606, %v574, 0
        %631 = vmatprep.subr.bf16.mxu0 0
        %632 = vmatpush1.bf16.msra.mxu0 %v598
        %633 = vmatprep.subr.bf16.mxu0 0
        %634 = vmatpush1.bf16.msra.mxu0 %v599
        %635 = vmatprep.subr.bf16.mxu0 0
        %636 = vmatpush1.bf16.msra.mxu0 %v600
        %637 = vmatprep.subr.bf16.mxu0 0
        %638 = vmatpush1.bf16.msra.mxu0 %v601
        %639 = vmatprep.subr.bf16.mxu0 0
        %640 = vmatpush1.bf16.msra.mxu0 0
        %641 = vmatprep.subr.bf16.mxu0 0
        %642 = vmatpush1.bf16.msra.mxu0 0
        %643 = vmatprep.subr.bf16.mxu0 0
        %644 = vmatpush1.bf16.msra.mxu0 0
        %645 = vmatprep.subr.bf16.mxu0 0
        %646 = vmatpush1.bf16.msra.mxu0 0
        %647 = vmatprep.subr.bf16.mxu0 0
        %648 = vmatpush1.bf16.msra.mxu0 0
        %649 = vmatprep.subr.bf16.mxu0 0
        %650 = vmatpush1.bf16.msra.mxu0 0
        %651 = vmatprep.subr.bf16.mxu0 0
        %652 = vmatpush1.bf16.msra.mxu0 0
        %653 = vmatprep.subr.bf16.mxu0 0
        %654 = vmatpush1.bf16.msra.mxu0 0
        %655 = vmatprep.subr.bf16.mxu0 0
        %656 = vmatpush1.bf16.msra.mxu0 0
        %657 = vmatprep.subr.bf16.mxu0 0
        %658 = vmatpush1.bf16.msra.mxu0 0
        %659 = vmatprep.subr.bf16.mxu0 0
        %660 = vmatpush1.bf16.msra.mxu0 0
        %661 = vmatprep.subr.bf16.mxu0 0
        %662 = vmatpush1.bf16.msra.mxu0 0
        %663 = vmatprep.mubr.bf16.mxu0 0
        %664 = vmatmul.mubr.bf16.gmra.mrb[0].mxu0 %v608
        %v665 = vpop.f32.mrb[0].mxu0
        %v666 = vadd.f32 %v580, %v665
        %v667 = vpop.f32.mrb[0].mxu0
        %v668 = vpop.f32.mrb[0].mxu0
        %v669 = vadd.f32 %v580, %v668
        %v670 = vpop.f32.mrb[0].mxu0
        %671 = vmatprep.mubr.bf16.mxu0 0
        %672 = vmatmul.mubr.bf16.gmra.mrb[0].mxu0 %v611
        %v673 = vpop.f32.mrb[0].mxu0
        %v674 = vadd.f32 %v580, %v673
        %v675 = vpop.f32.mrb[0].mxu0
        %v676 = vpop.f32.mrb[0].mxu0
        %v677 = vadd.f32 %v580, %v676
        %v678 = vpop.f32.mrb[0].mxu0
        %679 = vmatprep.mubr.bf16.mxu0 0
        %680 = vmatmul.mubr.bf16.gmra.mrb[0].mxu0 %v614
        %v681 = vpop.f32.mrb[0].mxu0
        %v682 = vadd.f32 %v580, %v681
        %v683 = vpop.f32.mrb[0].mxu0
        %v684 = vpop.f32.mrb[0].mxu0
        %v685 = vadd.f32 %v580, %v684
        %v686 = vpop.f32.mrb[0].mxu0
        %687 = vmatprep.mubr.bf16.mxu0 0
        %688 = vmatmul.mubr.bf16.gmra.mrb[0].mxu0 %v617
        %v689 = vpop.f32.mrb[0].mxu0
        %v690 = vadd.f32 %v580, %v689
        %v691 = vpop.f32.mrb[0].mxu0
        %v692 = vpop.f32.mrb[0].mxu0
        %v693 = vadd.f32 %v580, %v692
        %v694 = vpop.f32.mrb[0].mxu0
        %695 = vmatprep.mubr.bf16.mxu0 0
        %696 = vmatmul.mubr.bf16.gmra.mrb[0].mxu0 %v620
        %v697 = vpop.f32.mrb[0].mxu0
        %v698 = vadd.f32 %v580, %v697
        %v699 = vpop.f32.mrb[0].mxu0
        %v700 = vpop.f32.mrb[0].mxu0
        %v701 = vadd.f32 %v580, %v700
        %v702 = vpop.f32.mrb[0].mxu0
        %703 = vmatprep.mubr.bf16.mxu0 0
        %704 = vmatmul.mubr.bf16.gmra.mrb[0].mxu0 %v623
        %v705 = vpop.f32.mrb[0].mxu0
        %v706 = vadd.f32 %v580, %v705
        %v707 = vpop.f32.mrb[0].mxu0
        %v708 = vpop.f32.mrb[0].mxu0
        %v709 = vadd.f32 %v580, %v708
        %v710 = vpop.f32.mrb[0].mxu0
        %711 = vmatprep.mubr.bf16.mxu0 0
        %712 = vmatmul.mubr.bf16.gmra.mrb[0].mxu0 %v626
        %v713 = vpop.f32.mrb[0].mxu0
        %v714 = vadd.f32 %v580, %v713
        %v715 = vpop.f32.mrb[0].mxu0
        %v716 = vpop.f32.mrb[0].mxu0
        %v717 = vadd.f32 %v580, %v716
        %v718 = vpop.f32.mrb[0].mxu0
        %719 = vmatprep.mubr.bf16.mxu0 0
        %720 = vmatmul.mubr.bf16.gmra.mrb[0].mxu0 %v629
        %v721 = vpop.f32.mrb[0].mxu0
        %v722 = vadd.f32 %v580, %v721
        %v723 = vpop.f32.mrb[0].mxu0
        %v724 = vpop.f32.mrb[0].mxu0
        %v725 = vadd.f32 %v580, %v724
        %v726 = vpop.f32.mrb[0].mxu0
        %727 = vdwg.mxu0
        %v728 = vld [vmem:[%s3] sm:$0xff]
        %v729 = vld [vmem:[%s3 + $0x8] sm:$0xff]
        %v730 = vadd.f32 %v666, %v728
        %v731 = vadd.f32 %v669, %v729
        %v732 = vadd.f32 %v674, %v728
        %v733 = vadd.f32 %v677, %v729
        %v734 = vadd.f32 %v682, %v728
        %v735 = vadd.f32 %v685, %v729
        %v736 = vadd.f32 %v690, %v728
        %v737 = vadd.f32 %v693, %v729
        %v738 = vadd.f32 %v698, %v728
        %v739 = vadd.f32 %v701, %v729
        %v740 = vadd.f32 %v706, %v728
        %v741 = vadd.f32 %v709, %v729
        %v742 = vadd.f32 %v714, %v728
        %v743 = vadd.f32 %v717, %v729
        %v744 = vadd.f32 %v722, %v728
        %v745 = vadd.f32 %v725, %v729
        loop: start=0, step=1, limit=2
        $region89: #{tpu_custom_call.1} parent=83 // loop_pre_header
          _
        $region90: #{tpu_custom_call.1} parent=83 // loop_header
          %s747 = sphi 0, %s751
          %p748 = scmp.ge.s32.totalorder %s747, 2
          %v752 = vphi %v730, %v6326
          %v753 = vphi %v731, %v6327
          %v754 = vphi %v732, %v6328
          %v755 = vphi %v733, %v6329
          %v756 = vphi %v734, %v6330
          %v757 = vphi %v735, %v6331
          %v758 = vphi %v736, %v6332
          %v759 = vphi %v737, %v6333
          %v760 = vphi %v738, %v6334
          %v761 = vphi %v739, %v6335
          %v762 = vphi %v740, %v6336
          %v763 = vphi %v741, %v6337
          %v764 = vphi %v742, %v6338
          %v765 = vphi %v743, %v6339
          %v766 = vphi %v744, %v6340
          %v767 = vphi %v745, %v6341
        $region91: #{tpu_custom_call.1} parent=83 // loop_header_branch
          %750 = sbr.rel (%p748) target = $region95
        $region92: #{tpu_custom_call.1} parent=83 // loop_body
          %s768 = smul.u32 %s747, 4
          %s769 = smul.addr %s768, 4
          %s770 = scalar_lea.vmem %s4, %s769
          %v771 = vld [vmem:[%s770] sm:$0xf]
          %v772 = vld [vmem:[%s770 + $0x4] sm:$0xf]
          %v773 = vld [vmem:[%s770 + $0x8] sm:$0xf]
          %v774 = vld [vmem:[%s770 + $0xc] sm:$0xf]
          %v775 = vpack.c.bf16 %v753, %v752
          %v776 = vpack.c.bf16 %v755, %v754
          %v777 = vpack.c.bf16 %v757, %v756
          %v778 = vpack.c.bf16 %v759, %v758
          %v779 = vpack.c.bf16 %v761, %v760
          %v780 = vpack.c.bf16 %v763, %v762
          %v781 = vpack.c.bf16 %v765, %v764
          %v782 = vpack.c.bf16 %v767, %v766
          %s783 = scalar_lea.vmem %s5, %s747
          %v784 = vld [vmem:[%s783] sm:$0x1]
          %v786 = vlaneseq
          %v787 = vshrl.u32 %v786, 7
          %v788 = vsub.s32 0, %v787
          %v789 = vrot.slane %v784, %v788
          %v795 = vunpack.c.l.b16 %v771
          %v796 = vunpack.c.l.b16 %v772
          %v797 = vunpack.c.l.b16 %v773
          %v798 = vunpack.c.l.b16 %v774
          %v799 = vpack.c.b16 %v796, %v795
          %v800 = vpack.c.b16 %v798, %v797
          %vm803 = vcmask 261120
          %v805 = vsel %vm803, %v775, 0
          %v808 = vsel %vm803, %v776, 0
          %v811 = vsel %vm803, %v777, 0
          %v814 = vsel %vm803, %v778, 0
          %v817 = vsel %vm803, %v779, 0
          %v820 = vsel %vm803, %v780, 0
          %v823 = vsel %vm803, %v781, 0
          %v826 = vsel %vm803, %v782, 0
          %828 = vmatprep.subr.bf16.mxu0 0
          %829 = vmatpush1.bf16.msra.mxu0 %v799
          %830 = vmatprep.subr.bf16.mxu0 0
          %831 = vmatpush1.bf16.msra.mxu0 %v800
          %832 = vmatprep.subr.bf16.mxu0 0
          %833 = vmatpush1.bf16.msra.mxu0 0
          %834 = vmatprep.subr.bf16.mxu0 0
          %835 = vmatpush1.bf16.msra.mxu0 0
          %836 = vmatprep.subr.bf16.mxu0 0
          %837 = vmatpush1.bf16.msra.mxu0 0
          %838 = vmatprep.subr.bf16.mxu0 0
          %839 = vmatpush1.bf16.msra.mxu0 0
          %840 = vmatprep.subr.bf16.mxu0 0
          %841 = vmatpush1.bf16.msra.mxu0 0
          %842 = vmatprep.subr.bf16.mxu0 0
          %843 = vmatpush1.bf16.msra.mxu0 0
          %844 = vmatprep.subr.bf16.mxu0 0
          %845 = vmatpush1.bf16.msra.mxu0 0
          %846 = vmatprep.subr.bf16.mxu0 0
          %847 = vmatpush1.bf16.msra.mxu0 0
          %848 = vmatprep.subr.bf16.mxu0 0
          %849 = vmatpush1.bf16.msra.mxu0 0
          %850 = vmatprep.subr.bf16.mxu0 0
          %851 = vmatpush1.bf16.msra.mxu0 0
          %852 = vmatprep.subr.bf16.mxu0 0
          %853 = vmatpush1.bf16.msra.mxu0 0
          %854 = vmatprep.subr.bf16.mxu0 0
          %855 = vmatpush1.bf16.msra.mxu0 0
          %856 = vmatprep.subr.bf16.mxu0 0
          %857 = vmatpush1.bf16.msra.mxu0 0
          %858 = vmatprep.subr.bf16.mxu0 0
          %859 = vmatpush1.bf16.msra.mxu0 0
          %860 = vmatprep.mubr.bf16.mxu0 0
          %861 = vmatmul.mubr.bf16.gmra.mrb[0].mxu0 %v805
          %v862 = vpop.f32.mrb[0].mxu0
          %v863 = vadd.f32 %v789, %v862
          %v864 = vpop.f32.mrb[0].mxu0
          %v865 = vpop.f32.mrb[0].mxu0
          %v866 = vadd.f32 %v789, %v865
          %v867 = vpop.f32.mrb[0].mxu0
          %868 = vmatprep.mubr.bf16.mxu0 0
          %869 = vmatmul.mubr.bf16.gmra.mrb[0].mxu0 %v808
          %v870 = vpop.f32.mrb[0].mxu0
          %v871 = vadd.f32 %v789, %v870
          %v872 = vpop.f32.mrb[0].mxu0
          %v873 = vpop.f32.mrb[0].mxu0
          %v874 = vadd.f32 %v789, %v873
          %v875 = vpop.f32.mrb[0].mxu0
          %876 = vmatprep.mubr.bf16.mxu0 0
          %877 = vmatmul.mubr.bf16.gmra.mrb[0].mxu0 %v811
          %v878 = vpop.f32.mrb[0].mxu0
          %v879 = vadd.f32 %v789, %v878
          %v880 = vpop.f32.mrb[0].mxu0
          %v881 = vpop.f32.mrb[0].mxu0
          %v882 = vadd.f32 %v789, %v881
          %v883 = vpop.f32.mrb[0].mxu0
          %884 = vmatprep.mubr.bf16.mxu0 0
          %885 = vmatmul.mubr.bf16.gmra.mrb[0].mxu0 %v814
          %v886 = vpop.f32.mrb[0].mxu0
          %v887 = vadd.f32 %v789, %v886
          %v888 = vpop.f32.mrb[0].mxu0
          %v889 = vpop.f32.mrb[0].mxu0
          %v890 = vadd.f32 %v789, %v889
          %v891 = vpop.f32.mrb[0].mxu0
          %892 = vmatprep.mubr.bf16.mxu0 0
          %893 = vmatmul.mubr.bf16.gmra.mrb[0].mxu0 %v817
          %v894 = vpop.f32.mrb[0].mxu0
          %v895 = vadd.f32 %v789, %v894
          %v896 = vpop.f32.mrb[0].mxu0
          %v897 = vpop.f32.mrb[0].mxu0
          %v898 = vadd.f32 %v789, %v897
          %v899 = vpop.f32.mrb[0].mxu0
          %900 = vmatprep.mubr.bf16.mxu0 0
          %901 = vmatmul.mubr.bf16.gmra.mrb[0].mxu0 %v820
          %v902 = vpop.f32.mrb[0].mxu0
          %v903 = vadd.f32 %v789, %v902
          %v904 = vpop.f32.mrb[0].mxu0
          %v905 = vpop.f32.mrb[0].mxu0
          %v906 = vadd.f32 %v789, %v905
          %v907 = vpop.f32.mrb[0].mxu0
          %908 = vmatprep.mubr.bf16.mxu0 0
          %909 = vmatmul.mubr.bf16.gmra.mrb[0].mxu0 %v823
          %v910 = vpop.f32.mrb[0].mxu0
          %v911 = vadd.f32 %v789, %v910
          %v912 = vpop.f32.mrb[0].mxu0
          %v913 = vpop.f32.mrb[0].mxu0
          %v914 = vadd.f32 %v789, %v913
          %v915 = vpop.f32.mrb[0].mxu0
          %916 = vmatprep.mubr.bf16.mxu0 0
          %917 = vmatmul.mubr.bf16.gmra.mrb[0].mxu0 %v826
          %v918 = vpop.f32.mrb[0].mxu0
          %v919 = vadd.f32 %v789, %v918
          %v920 = vpop.f32.mrb[0].mxu0
          %v921 = vpop.f32.mrb[0].mxu0
          %v922 = vadd.f32 %v789, %v921
          %v923 = vpop.f32.mrb[0].mxu0
          %924 = vdwg.mxu0
          %s925 = smul.addr %s768, 4
          %s926 = scalar_lea.vmem %s6, %s925
          %v927 = vld [vmem:[%s926] sm:$0xf]
          %v928 = vld [vmem:[%s926 + $0x4] sm:$0xf]
          %v929 = vld [vmem:[%s926 + $0x8] sm:$0xf]
          %v930 = vld [vmem:[%s926 + $0xc] sm:$0xf]
          %v931 = vpack.c.bf16 %v866, %v863
          %v932 = vpack.c.bf16 %v874, %v871
          %v933 = vpack.c.bf16 %v882, %v879
          %v934 = vpack.c.bf16 %v890, %v887
          %v935 = vpack.c.bf16 %v898, %v895
          %v936 = vpack.c.bf16 %v906, %v903
          %v937 = vpack.c.bf16 %v914, %v911
          %v938 = vpack.c.bf16 %v922, %v919
          %940 = vrot.lane.b32.xlu0 %v931, 96
          %v941 = vpop.permute.xlu0 %940
          %vm942 = vcmask 64512
          %v944 = vsel %vm942, %v931, 0
          %v947 = vsel %vm942, %v941, 0
          %949 = vmatprep.subr.bf16.mxu0 0
          %950 = vmatpush1.bf16.xpose.msra.mxu0 %v947
          %951 = vmatprep.subr.bf16.mxu0 0
          %952 = vmatpush1.bf16.xpose.msra.mxu0 0
          %953 = vmatprep.subr.bf16.mxu0 0
          %954 = vmatpush1.bf16.xpose.msra.mxu0 0
          %955 = vmatprep.subr.bf16.mxu0 0
          %956 = vmatpush1.bf16.xpose.msra.mxu0 0
          %957 = vmatprep.subr.bf16.mxu0 0
          %958 = vmatpush1.bf16.xpose.msra.mxu0 0
          %959 = vmatprep.subr.bf16.mxu0 0
          %960 = vmatpush1.bf16.xpose.msra.mxu0 0
          %961 = vmatprep.subr.bf16.mxu0 0
          %962 = vmatpush1.bf16.xpose.msra.mxu0 0
          %963 = vmatprep.subr.bf16.mxu0 0
          %964 = vmatpush1.bf16.xpose.msra.mxu0 0
          %965 = vmatprep.subr.bf16.mxu0 0
          %966 = vmatpush1.bf16.xpose.msra.mxu0 0
          %967 = vmatprep.subr.bf16.mxu0 0
          %968 = vmatpush1.bf16.xpose.msra.mxu0 0
          %969 = vmatprep.subr.bf16.mxu0 0
          %970 = vmatpush1.bf16.xpose.msra.mxu0 0
          %971 = vmatprep.subr.bf16.mxu0 0
          %972 = vmatpush1.bf16.xpose.msra.mxu0 0
          %973 = vmatprep.subr.bf16.mxu0 0
          %974 = vmatpush1.bf16.xpose.msra.mxu0 0
          %975 = vmatprep.subr.bf16.mxu0 0
          %976 = vmatpush1.bf16.xpose.msra.mxu0 0
          %977 = vmatprep.subr.bf16.mxu0 0
          %978 = vmatpush1.bf16.xpose.msra.mxu0 0
          %979 = vmatprep.subr.bf16.mxu0 0
          %980 = vmatpush1.bf16.xpose.msra.mxu0 0
          %981 = vmatprep.mubr.bf16.mxu0 0
          %982 = vmatmul.mubr.bf16.gmra.mrb[0].mxu0 %v944
          %v983 = vpop.f32.mrb[0].mxu0
          %v984 = vadd.f32 0.0, %v983
          %v985 = vpop.f32.mrb[0].mxu0
          %v986 = vpop.f32.mrb[0].mxu0
          %v987 = vadd.f32 0.0, %v986
          %v988 = vpop.f32.mrb[0].mxu0
          %989 = vdwg.mxu0
          %991 = vrot.lane.b32.xlu0 %v932, 96
          %v992 = vpop.permute.xlu0 %991
          %v994 = vsel %vm942, %v932, 0
          %v997 = vsel %vm942, %v992, 0
          %999 = vmatprep.subr.bf16.mxu0 0
          %1000 = vmatpush1.bf16.xpose.msra.mxu0 %v997
          %1001 = vmatprep.subr.bf16.mxu0 0
          %1002 = vmatpush1.bf16.xpose.msra.mxu0 0
          %1003 = vmatprep.subr.bf16.mxu0 0
          %1004 = vmatpush1.bf16.xpose.msra.mxu0 0
          %1005 = vmatprep.subr.bf16.mxu0 0
          %1006 = vmatpush1.bf16.xpose.msra.mxu0 0
          %1007 = vmatprep.subr.bf16.mxu0 0
          %1008 = vmatpush1.bf16.xpose.msra.mxu0 0
          %1009 = vmatprep.subr.bf16.mxu0 0
          %1010 = vmatpush1.bf16.xpose.msra.mxu0 0
          %1011 = vmatprep.subr.bf16.mxu0 0
          %1012 = vmatpush1.bf16.xpose.msra.mxu0 0
          %1013 = vmatprep.subr.bf16.mxu0 0
          %1014 = vmatpush1.bf16.xpose.msra.mxu0 0
          %1015 = vmatprep.subr.bf16.mxu0 0
          %1016 = vmatpush1.bf16.xpose.msra.mxu0 0
          %1017 = vmatprep.subr.bf16.mxu0 0
          %1018 = vmatpush1.bf16.xpose.msra.mxu0 0
          %1019 = vmatprep.subr.bf16.mxu0 0
          %1020 = vmatpush1.bf16.xpose.msra.mxu0 0
          %1021 = vmatprep.subr.bf16.mxu0 0
          %1022 = vmatpush1.bf16.xpose.msra.mxu0 0
          %1023 = vmatprep.subr.bf16.mxu0 0
          %1024 = vmatpush1.bf16.xpose.msra.mxu0 0
          %1025 = vmatprep.subr.bf16.mxu0 0
          %1026 = vmatpush1.bf16.xpose.msra.mxu0 0
          %1027 = vmatprep.subr.bf16.mxu0 0
          %1028 = vmatpush1.bf16.xpose.msra.mxu0 0
          %1029 = vmatprep.subr.bf16.mxu0 0
          %1030 = vmatpush1.bf16.xpose.msra.mxu0 0
          %1031 = vmatprep.mubr.bf16.mxu0 0
          %1032 = vmatmul.mubr.bf16.gmra.mrb[0].mxu0 %v994
          %v1033 = vpop.f32.mrb[0].mxu0
          %v1034 = vadd.f32 0.0, %v1033
          %v1035 = vpop.f32.mrb[0].mxu0
          %v1036 = vpop.f32.mrb[0].mxu0
          %v1037 = vadd.f32 0.0, %v1036
          %v1038 = vpop.f32.mrb[0].mxu0
          %1039 = vdwg.mxu0
          %1041 = vrot.lane.b32.xlu0 %v933, 96
          %v1042 = vpop.permute.xlu0 %1041
          %v1044 = vsel %vm942, %v933, 0
          %v1047 = vsel %vm942, %v1042, 0
          %1049 = vmatprep.subr.bf16.mxu0 0
          %1050 = vmatpush1.bf16.xpose.msra.mxu0 %v1047
          %1051 = vmatprep.subr.bf16.mxu0 0
          %1052 = vmatpush1.bf16.xpose.msra.mxu0 0
          %1053 = vmatprep.subr.bf16.mxu0 0
          %1054 = vmatpush1.bf16.xpose.msra.mxu0 0
          %1055 = vmatprep.subr.bf16.mxu0 0
          %1056 = vmatpush1.bf16.xpose.msra.mxu0 0
          %1057 = vmatprep.subr.bf16.mxu0 0
          %1058 = vmatpush1.bf16.xpose.msra.mxu0 0
          %1059 = vmatprep.subr.bf16.mxu0 0
          %1060 = vmatpush1.bf16.xpose.msra.mxu0 0
          %1061 = vmatprep.subr.bf16.mxu0 0
          %1062 = vmatpush1.bf16.xpose.msra.mxu0 0
          %1063 = vmatprep.subr.bf16.mxu0 0
          %1064 = vmatpush1.bf16.xpose.msra.mxu0 0
          %1065 = vmatprep.subr.bf16.mxu0 0
          %1066 = vmatpush1.bf16.xpose.msra.mxu0 0
          %1067 = vmatprep.subr.bf16.mxu0 0
          %1068 = vmatpush1.bf16.xpose.msra.mxu0 0
          %1069 = vmatprep.subr.bf16.mxu0 0
          %1070 = vmatpush1.bf16.xpose.msra.mxu0 0
          %1071 = vmatprep.subr.bf16.mxu0 0
          %1072 = vmatpush1.bf16.xpose.msra.mxu0 0
          %1073 = vmatprep.subr.bf16.mxu0 0
          %1074 = vmatpush1.bf16.xpose.msra.mxu0 0
          %1075 = vmatprep.subr.bf16.mxu0 0
          %1076 = vmatpush1.bf16.xpose.msra.mxu0 0
          %1077 = vmatprep.subr.bf16.mxu0 0
          %1078 = vmatpush1.bf16.xpose.msra.mxu0 0
          %1079 = vmatprep.subr.bf16.mxu0 0
          %1080 = vmatpush1.bf16.xpose.msra.mxu0 0
          %1081 = vmatprep.mubr.bf16.mxu0 0
          %1082 = vmatmul.mubr.bf16.gmra.mrb[0].mxu0 %v1044
          %v1083 = vpop.f32.mrb[0].mxu0
          %v1084 = vadd.f32 0.0, %v1083
          %v1085 = vpop.f32.mrb[0].mxu0
          %v1086 = vpop.f32.mrb[0].mxu0
          %v1087 = vadd.f32 0.0, %v1086
          %v1088 = vpop.f32.mrb[0].mxu0
          %1089 = vdwg.mxu0
          %1091 = vrot.lane.b32.xlu0 %v934, 96
          %v1092 = vpop.permute.xlu0 %1091
          %v1094 = vsel %vm942, %v934, 0
          %v1097 = vsel %vm942, %v1092, 0
          %1099 = vmatprep.subr.bf16.mxu0 0
          %1100 = vmatpush1.bf16.xpose.msra.mxu0 %v1097
          %1101 = vmatprep.subr.bf16.mxu0 0
          %1102 = vmatpush1.bf16.xpose.msra.mxu0 0
          %1103 = vmatprep.subr.bf16.mxu0 0
          %1104 = vmatpush1.bf16.xpose.msra.mxu0 0
          %1105 = vmatprep.subr.bf16.mxu0 0
          %1106 = vmatpush1.bf16.xpose.msra.mxu0 0
          %1107 = vmatprep.subr.bf16.mxu0 0
          %1108 = vmatpush1.bf16.xpose.msra.mxu0 0
          %1109 = vmatprep.subr.bf16.mxu0 0
          %1110 = vmatpush1.bf16.xpose.msra.mxu0 0
          %1111 = vmatprep.subr.bf16.mxu0 0
          %1112 = vmatpush1.bf16.xpose.msra.mxu0 0
          %1113 = vmatprep.subr.bf16.mxu0 0
          %1114 = vmatpush1.bf16.xpose.msra.mxu0 0
          %1115 = vmatprep.subr.bf16.mxu0 0
          %1116 = vmatpush1.bf16.xpose.msra.mxu0 0
          %1117 = vmatprep.subr.bf16.mxu0 0
          %1118 = vmatpush1.bf16.xpose.msra.mxu0 0
          %1119 = vmatprep.subr.bf16.mxu0 0
          %1120 = vmatpush1.bf16.xpose.msra.mxu0 0
          %1121 = vmatprep.subr.bf16.mxu0 0
          %1122 = vmatpush1.bf16.xpose.msra.mxu0 0
          %1123 = vmatprep.subr.bf16.mxu0 0
          %1124 = vmatpush1.bf16.xpose.msra.mxu0 0
          %1125 = vmatprep.subr.bf16.mxu0 0
          %1126 = vmatpush1.bf16.xpose.msra.mxu0 0
          %1127 = vmatprep.subr.bf16.mxu0 0
          %1128 = vmatpush1.bf16.xpose.msra.mxu0 0
          %1129 = vmatprep.subr.bf16.mxu0 0
          %1130 = vmatpush1.bf16.xpose.msra.mxu0 0
          %1131 = vmatprep.mubr.bf16.mxu0 0
          %1132 = vmatmul.mubr.bf16.gmra.mrb[0].mxu0 %v1094
          %v1133 = vpop.f32.mrb[0].mxu0
          %v1134 = vadd.f32 0.0, %v1133
          %v1135 = vpop.f32.mrb[0].mxu0
          %v1136 = vpop.f32.mrb[0].mxu0
          %v1137 = vadd.f32 0.0, %v1136
          %v1138 = vpop.f32.mrb[0].mxu0
          %1139 = vdwg.mxu0
          %1141 = vrot.lane.b32.xlu0 %v935, 96
          %v1142 = vpop.permute.xlu0 %1141
          %v1144 = vsel %vm942, %v935, 0
          %v1147 = vsel %vm942, %v1142, 0
          %1149 = vmatprep.subr.bf16.mxu0 0
          %1150 = vmatpush1.bf16.xpose.msra.mxu0 %v1147
          %1151 = vmatprep.subr.bf16.mxu0 0
          %1152 = vmatpush1.bf16.xpose.msra.mxu0 0
          %1153 = vmatprep.subr.bf16.mxu0 0
          %1154 = vmatpush1.bf16.xpose.msra.mxu0 0
          %1155 = vmatprep.subr.bf16.mxu0 0
          %1156 = vmatpush1.bf16.xpose.msra.mxu0 0
          %1157 = vmatprep.subr.bf16.mxu0 0
          %1158 = vmatpush1.bf16.xpose.msra.mxu0 0
          %1159 = vmatprep.subr.bf16.mxu0 0
          %1160 = vmatpush1.bf16.xpose.msra.mxu0 0
          %1161 = vmatprep.subr.bf16.mxu0 0
          %1162 = vmatpush1.bf16.xpose.msra.mxu0 0
          %1163 = vmatprep.subr.bf16.mxu0 0
          %1164 = vmatpush1.bf16.xpose.msra.mxu0 0
          %1165 = vmatprep.subr.bf16.mxu0 0
          %1166 = vmatpush1.bf16.xpose.msra.mxu0 0
          %1167 = vmatprep.subr.bf16.mxu0 0
          %1168 = vmatpush1.bf16.xpose.msra.mxu0 0
          %1169 = vmatprep.subr.bf16.mxu0 0
          %1170 = vmatpush1.bf16.xpose.msra.mxu0 0
          %1171 = vmatprep.subr.bf16.mxu0 0
          %1172 = vmatpush1.bf16.xpose.msra.mxu0 0
          %1173 = vmatprep.subr.bf16.mxu0 0
          %1174 = vmatpush1.bf16.xpose.msra.mxu0 0
          %1175 = vmatprep.subr.bf16.mxu0 0
          %1176 = vmatpush1.bf16.xpose.msra.mxu0 0
          %1177 = vmatprep.subr.bf16.mxu0 0
          %1178 = vmatpush1.bf16.xpose.msra.mxu0 0
          %1179 = vmatprep.subr.bf16.mxu0 0
          %1180 = vmatpush1.bf16.xpose.msra.mxu0 0
          %1181 = vmatprep.mubr.bf16.mxu0 0
          %1182 = vmatmul.mubr.bf16.gmra.mrb[0].mxu0 %v1144
          %v1183 = vpop.f32.mrb[0].mxu0
          %v1184 = vadd.f32 0.0, %v1183
          %v1185 = vpop.f32.mrb[0].mxu0
          %v1186 = vpop.f32.mrb[0].mxu0
          %v1187 = vadd.f32 0.0, %v1186
          %v1188 = vpop.f32.mrb[0].mxu0
          %1189 = vdwg.mxu0
          %1191 = vrot.lane.b32.xlu0 %v936, 96
          %v1192 = vpop.permute.xlu0 %1191
          %v1194 = vsel %vm942, %v936, 0
          %v1197 = vsel %vm942, %v1192, 0
          %1199 = vmatprep.subr.bf16.mxu0 0
          %1200 = vmatpush1.bf16.xpose.msra.mxu0 %v1197
          %1201 = vmatprep.subr.bf16.mxu0 0
          %1202 = vmatpush1.bf16.xpose.msra.mxu0 0
          %1203 = vmatprep.subr.bf16.mxu0 0
          %1204 = vmatpush1.bf16.xpose.msra.mxu0 0
          %1205 = vmatprep.subr.bf16.mxu0 0
          %1206 = vmatpush1.bf16.xpose.msra.mxu0 0
          %1207 = vmatprep.subr.bf16.mxu0 0
          %1208 = vmatpush1.bf16.xpose.msra.mxu0 0
          %1209 = vmatprep.subr.bf16.mxu0 0
          %1210 = vmatpush1.bf16.xpose.msra.mxu0 0
          %1211 = vmatprep.subr.bf16.mxu0 0
          %1212 = vmatpush1.bf16.xpose.msra.mxu0 0
          %1213 = vmatprep.subr.bf16.mxu0 0
          %1214 = vmatpush1.bf16.xpose.msra.mxu0 0
          %1215 = vmatprep.subr.bf16.mxu0 0
          %1216 = vmatpush1.bf16.xpose.msra.mxu0 0
          %1217 = vmatprep.subr.bf16.mxu0 0
          %1218 = vmatpush1.bf16.xpose.msra.mxu0 0
          %1219 = vmatprep.subr.bf16.mxu0 0
          %1220 = vmatpush1.bf16.xpose.msra.mxu0 0
          %1221 = vmatprep.subr.bf16.mxu0 0
          %1222 = vmatpush1.bf16.xpose.msra.mxu0 0
          %1223 = vmatprep.subr.bf16.mxu0 0
          %1224 = vmatpush1.bf16.xpose.msra.mxu0 0
          %1225 = vmatprep.subr.bf16.mxu0 0
          %1226 = vmatpush1.bf16.xpose.msra.mxu0 0
          %1227 = vmatprep.subr.bf16.mxu0 0
          %1228 = vmatpush1.bf16.xpose.msra.mxu0 0
          %1229 = vmatprep.subr.bf16.mxu0 0
          %1230 = vmatpush1.bf16.xpose.msra.mxu0 0
          %1231 = vmatprep.mubr.bf16.mxu0 0
          %1232 = vmatmul.mubr.bf16.gmra.mrb[0].mxu0 %v1194
          %v1233 = vpop.f32.mrb[0].mxu0
          %v1234 = vadd.f32 0.0, %v1233
          %v1235 = vpop.f32.mrb[0].mxu0
          %v1236 = vpop.f32.mrb[0].mxu0
          %v1237 = vadd.f32 0.0, %v1236
          %v1238 = vpop.f32.mrb[0].mxu0
          %1239 = vdwg.mxu0
          %1241 = vrot.lane.b32.xlu0 %v937, 96
          %v1242 = vpop.permute.xlu0 %1241
          %v1244 = vsel %vm942, %v937, 0
          %v1247 = vsel %vm942, %v1242, 0
          %1249 = vmatprep.subr.bf16.mxu0 0
          %1250 = vmatpush1.bf16.xpose.msra.mxu0 %v1247
          %1251 = vmatprep.subr.bf16.mxu0 0
          %1252 = vmatpush1.bf16.xpose.msra.mxu0 0
          %1253 = vmatprep.subr.bf16.mxu0 0
          %1254 = vmatpush1.bf16.xpose.msra.mxu0 0
          %1255 = vmatprep.subr.bf16.mxu0 0
          %1256 = vmatpush1.bf16.xpose.msra.mxu0 0
          %1257 = vmatprep.subr.bf16.mxu0 0
          %1258 = vmatpush1.bf16.xpose.msra.mxu0 0
          %1259 = vmatprep.subr.bf16.mxu0 0
          %1260 = vmatpush1.bf16.xpose.msra.mxu0 0
          %1261 = vmatprep.subr.bf16.mxu0 0
          %1262 = vmatpush1.bf16.xpose.msra.mxu0 0
          %1263 = vmatprep.subr.bf16.mxu0 0
          %1264 = vmatpush1.bf16.xpose.msra.mxu0 0
          %1265 = vmatprep.subr.bf16.mxu0 0
          %1266 = vmatpush1.bf16.xpose.msra.mxu0 0
          %1267 = vmatprep.subr.bf16.mxu0 0
          %1268 = vmatpush1.bf16.xpose.msra.mxu0 0
          %1269 = vmatprep.subr.bf16.mxu0 0
          %1270 = vmatpush1.bf16.xpose.msra.mxu0 0
          %1271 = vmatprep.subr.bf16.mxu0 0
          %1272 = vmatpush1.bf16.xpose.msra.mxu0 0
          %1273 = vmatprep.subr.bf16.mxu0 0
          %1274 = vmatpush1.bf16.xpose.msra.mxu0 0
          %1275 = vmatprep.subr.bf16.mxu0 0
          %1276 = vmatpush1.bf16.xpose.msra.mxu0 0
          %1277 = vmatprep.subr.bf16.mxu0 0
          %1278 = vmatpush1.bf16.xpose.msra.mxu0 0
          %1279 = vmatprep.subr.bf16.mxu0 0
          %1280 = vmatpush1.bf16.xpose.msra.mxu0 0
          %1281 = vmatprep.mubr.bf16.mxu0 0
          %1282 = vmatmul.mubr.bf16.gmra.mrb[0].mxu0 %v1244
          %v1283 = vpop.f32.mrb[0].mxu0
          %v1284 = vadd.f32 0.0, %v1283
          %v1285 = vpop.f32.mrb[0].mxu0
          %v1286 = vpop.f32.mrb[0].mxu0
          %v1287 = vadd.f32 0.0, %v1286
          %v1288 = vpop.f32.mrb[0].mxu0
          %1289 = vdwg.mxu0
          %1291 = vrot.lane.b32.xlu0 %v938, 96
          %v1292 = vpop.permute.xlu0 %1291
          %v1294 = vsel %vm942, %v938, 0
          %v1297 = vsel %vm942, %v1292, 0
          %1299 = vmatprep.subr.bf16.mxu0 0
          %1300 = vmatpush1.bf16.xpose.msra.mxu0 %v1297
          %1301 = vmatprep.subr.bf16.mxu0 0
          %1302 = vmatpush1.bf16.xpose.msra.mxu0 0
          %1303 = vmatprep.subr.bf16.mxu0 0
          %1304 = vmatpush1.bf16.xpose.msra.mxu0 0
          %1305 = vmatprep.subr.bf16.mxu0 0
          %1306 = vmatpush1.bf16.xpose.msra.mxu0 0
          %1307 = vmatprep.subr.bf16.mxu0 0
          %1308 = vmatpush1.bf16.xpose.msra.mxu0 0
          %1309 = vmatprep.subr.bf16.mxu0 0
          %1310 = vmatpush1.bf16.xpose.msra.mxu0 0
          %1311 = vmatprep.subr.bf16.mxu0 0
          %1312 = vmatpush1.bf16.xpose.msra.mxu0 0
          %1313 = vmatprep.subr.bf16.mxu0 0
          %1314 = vmatpush1.bf16.xpose.msra.mxu0 0
          %1315 = vmatprep.subr.bf16.mxu0 0
          %1316 = vmatpush1.bf16.xpose.msra.mxu0 0
          %1317 = vmatprep.subr.bf16.mxu0 0
          %1318 = vmatpush1.bf16.xpose.msra.mxu0 0
          %1319 = vmatprep.subr.bf16.mxu0 0
          %1320 = vmatpush1.bf16.xpose.msra.mxu0 0
          %1321 = vmatprep.subr.bf16.mxu0 0
          %1322 = vmatpush1.bf16.xpose.msra.mxu0 0
          %1323 = vmatprep.subr.bf16.mxu0 0
          %1324 = vmatpush1.bf16.xpose.msra.mxu0 0
          %1325 = vmatprep.subr.bf16.mxu0 0
          %1326 = vmatpush1.bf16.xpose.msra.mxu0 0
          %1327 = vmatprep.subr.bf16.mxu0 0
          %1328 = vmatpush1.bf16.xpose.msra.mxu0 0
          %1329 = vmatprep.subr.bf16.mxu0 0
          %1330 = vmatpush1.bf16.xpose.msra.mxu0 0
          %1331 = vmatprep.mubr.bf16.mxu0 0
          %1332 = vmatmul.mubr.bf16.gmra.mrb[0].mxu0 %v1294
          %v1333 = vpop.f32.mrb[0].mxu0
          %v1334 = vadd.f32 0.0, %v1333
          %v1335 = vpop.f32.mrb[0].mxu0
          %v1336 = vpop.f32.mrb[0].mxu0
          %v1337 = vadd.f32 0.0, %v1336
          %v1338 = vpop.f32.mrb[0].mxu0
          %1339 = vdwg.mxu0
          %v1340 = vmul.f32 %v984, 0.35355338
          %v1341 = vmul.f32 %v987, 0.35355338
          %v1342 = vmul.f32 %v1034, 0.35355338
          %v1343 = vmul.f32 %v1037, 0.35355338
          %v1344 = vmul.f32 %v1084, 0.35355338
          %v1345 = vmul.f32 %v1087, 0.35355338
          %v1346 = vmul.f32 %v1134, 0.35355338
          %v1347 = vmul.f32 %v1137, 0.35355338
          %v1348 = vmul.f32 %v1184, 0.35355338
          %v1349 = vmul.f32 %v1187, 0.35355338
          %v1350 = vmul.f32 %v1234, 0.35355338
          %v1351 = vmul.f32 %v1237, 0.35355338
          %v1352 = vmul.f32 %v1284, 0.35355338
          %v1353 = vmul.f32 %v1287, 0.35355338
          %v1354 = vmul.f32 %v1334, 0.35355338
          %v1355 = vmul.f32 %v1337, 0.35355338
          %vm1356 = vcmask 130048
          %v1357 = vsel %vm1356, %v1340, -inf
          %1358 = vmax.xlane.f32.xlu0 %v1357
          %v1359 = vpop.xlane.xlu0 %1358
          %v1360 = vsel %vm1356, %v1341, -inf
          %1361 = vmax.xlane.f32.xlu0 %v1360
          %v1362 = vpop.xlane.xlu0 %1361
          %v1363 = vsel %vm1356, %v1342, -inf
          %1364 = vmax.xlane.f32.xlu0 %v1363
          %v1365 = vpop.xlane.xlu0 %1364
          %v1366 = vsel %vm1356, %v1343, -inf
          %1367 = vmax.xlane.f32.xlu0 %v1366
          %v1368 = vpop.xlane.xlu0 %1367
          %v1369 = vsel %vm1356, %v1344, -inf
          %1370 = vmax.xlane.f32.xlu0 %v1369
          %v1371 = vpop.xlane.xlu0 %1370
          %v1372 = vsel %vm1356, %v1345, -inf
          %1373 = vmax.xlane.f32.xlu0 %v1372
          %v1374 = vpop.xlane.xlu0 %1373
          %v1375 = vsel %vm1356, %v1346, -inf
          %1376 = vmax.xlane.f32.xlu0 %v1375
          %v1377 = vpop.xlane.xlu0 %1376
          %v1378 = vsel %vm1356, %v1347, -inf
          %1379 = vmax.xlane.f32.xlu0 %v1378
          %v1380 = vpop.xlane.xlu0 %1379
          %v1381 = vsel %vm1356, %v1348, -inf
          %1382 = vmax.xlane.f32.xlu0 %v1381
          %v1383 = vpop.xlane.xlu0 %1382
          %v1384 = vsel %vm1356, %v1349, -inf
          %1385 = vmax.xlane.f32.xlu0 %v1384
          %v1386 = vpop.xlane.xlu0 %1385
          %v1387 = vsel %vm1356, %v1350, -inf
          %1388 = vmax.xlane.f32.xlu0 %v1387
          %v1389 = vpop.xlane.xlu0 %1388
          %v1390 = vsel %vm1356, %v1351, -inf
          %1391 = vmax.xlane.f32.xlu0 %v1390
          %v1392 = vpop.xlane.xlu0 %1391
          %v1393 = vsel %vm1356, %v1352, -inf
          %1394 = vmax.xlane.f32.xlu0 %v1393
          %v1395 = vpop.xlane.xlu0 %1394
          %v1396 = vsel %vm1356, %v1353, -inf
          %1397 = vmax.xlane.f32.xlu0 %v1396
          %v1398 = vpop.xlane.xlu0 %1397
          %v1399 = vsel %vm1356, %v1354, -inf
          %1400 = vmax.xlane.f32.xlu0 %v1399
          %v1401 = vpop.xlane.xlu0 %1400
          %v1402 = vsel %vm1356, %v1355, -inf
          %1403 = vmax.xlane.f32.xlu0 %v1402
          %v1404 = vpop.xlane.xlu0 %1403
          %v1405 = vsub.f32 %v1340, %v1359
          %v1406 = vsub.f32 %v1341, %v1362
          %v1407 = vsub.f32 %v1342, %v1365
          %v1408 = vsub.f32 %v1343, %v1368
          %v1409 = vsub.f32 %v1344, %v1371
          %v1410 = vsub.f32 %v1345, %v1374
          %v1411 = vsub.f32 %v1346, %v1377
          %v1412 = vsub.f32 %v1347, %v1380
          %v1413 = vsub.f32 %v1348, %v1383
          %v1414 = vsub.f32 %v1349, %v1386
          %v1415 = vsub.f32 %v1350, %v1389
          %v1416 = vsub.f32 %v1351, %v1392
          %v1417 = vsub.f32 %v1352, %v1395
          %v1418 = vsub.f32 %v1353, %v1398
          %v1419 = vsub.f32 %v1354, %v1401
          %v1420 = vsub.f32 %v1355, %v1404
          %v1421 = vmul.f32 %v1405, 1.442695
          %v1422 = vpow.pop %v1421
          %v1423 = vmul.f32 %v1406, 1.442695
          %v1424 = vpow.pop %v1423
          %v1425 = vmul.f32 %v1407, 1.442695
          %v1426 = vpow.pop %v1425
          %v1427 = vmul.f32 %v1408, 1.442695
          %v1428 = vpow.pop %v1427
          %v1429 = vmul.f32 %v1409, 1.442695
          %v1430 = vpow.pop %v1429
          %v1431 = vmul.f32 %v1410, 1.442695
          %v1432 = vpow.pop %v1431
          %v1433 = vmul.f32 %v1411, 1.442695
          %v1434 = vpow.pop %v1433
          %v1435 = vmul.f32 %v1412, 1.442695
          %v1436 = vpow.pop %v1435
          %v1437 = vmul.f32 %v1413, 1.442695
          %v1438 = vpow.pop %v1437
          %v1439 = vmul.f32 %v1414, 1.442695
          %v1440 = vpow.pop %v1439
          %v1441 = vmul.f32 %v1415, 1.442695
          %v1442 = vpow.pop %v1441
          %v1443 = vmul.f32 %v1416, 1.442695
          %v1444 = vpow.pop %v1443
          %v1445 = vmul.f32 %v1417, 1.442695
          %v1446 = vpow.pop %v1445
          %v1447 = vmul.f32 %v1418, 1.442695
          %v1448 = vpow.pop %v1447
          %v1449 = vmul.f32 %v1419, 1.442695
          %v1450 = vpow.pop %v1449
          %v1451 = vmul.f32 %v1420, 1.442695
          %v1452 = vpow.pop %v1451
          %v1453 = vsel %vm1356, %v1422, 0.0
          %1454 = vadd.xlane.f32.xlu0 %v1453
          %v1455 = vpop.xlane.xlu0 %1454
          %v1456 = vsel %vm1356, %v1424, 0.0
          %1457 = vadd.xlane.f32.xlu0 %v1456
          %v1458 = vpop.xlane.xlu0 %1457
          %v1459 = vsel %vm1356, %v1426, 0.0
          %1460 = vadd.xlane.f32.xlu0 %v1459
          %v1461 = vpop.xlane.xlu0 %1460
          %v1462 = vsel %vm1356, %v1428, 0.0
          %1463 = vadd.xlane.f32.xlu0 %v1462
          %v1464 = vpop.xlane.xlu0 %1463
          %v1465 = vsel %vm1356, %v1430, 0.0
          %1466 = vadd.xlane.f32.xlu0 %v1465
          %v1467 = vpop.xlane.xlu0 %1466
          %v1468 = vsel %vm1356, %v1432, 0.0
          %1469 = vadd.xlane.f32.xlu0 %v1468
          %v1470 = vpop.xlane.xlu0 %1469
          %v1471 = vsel %vm1356, %v1434, 0.0
          %1472 = vadd.xlane.f32.xlu0 %v1471
          %v1473 = vpop.xlane.xlu0 %1472
          %v1474 = vsel %vm1356, %v1436, 0.0
          %1475 = vadd.xlane.f32.xlu0 %v1474
          %v1476 = vpop.xlane.xlu0 %1475
          %v1477 = vsel %vm1356, %v1438, 0.0
          %1478 = vadd.xlane.f32.xlu0 %v1477
          %v1479 = vpop.xlane.xlu0 %1478
          %v1480 = vsel %vm1356, %v1440, 0.0
          %1481 = vadd.xlane.f32.xlu0 %v1480
          %v1482 = vpop.xlane.xlu0 %1481
          %v1483 = vsel %vm1356, %v1442, 0.0
          %1484 = vadd.xlane.f32.xlu0 %v1483
          %v1485 = vpop.xlane.xlu0 %1484
          %v1486 = vsel %vm1356, %v1444, 0.0
          %1487 = vadd.xlane.f32.xlu0 %v1486
          %v1488 = vpop.xlane.xlu0 %1487
          %v1489 = vsel %vm1356, %v1446, 0.0
          %1490 = vadd.xlane.f32.xlu0 %v1489
          %v1491 = vpop.xlane.xlu0 %1490
          %v1492 = vsel %vm1356, %v1448, 0.0
          %1493 = vadd.xlane.f32.xlu0 %v1492
          %v1494 = vpop.xlane.xlu0 %1493
          %v1495 = vsel %vm1356, %v1450, 0.0
          %1496 = vadd.xlane.f32.xlu0 %v1495
          %v1497 = vpop.xlane.xlu0 %1496
          %v1498 = vsel %vm1356, %v1452, 0.0
          %1499 = vadd.xlane.f32.xlu0 %v1498
          %v1500 = vpop.xlane.xlu0 %1499
          %v1501 = vrcp.pop %v1455
          %v1502 = vrcp.pop %v1458
          %v1503 = vrcp.pop %v1461
          %v1504 = vrcp.pop %v1464
          %v1505 = vrcp.pop %v1467
          %v1506 = vrcp.pop %v1470
          %v1507 = vrcp.pop %v1473
          %v1508 = vrcp.pop %v1476
          %v1509 = vrcp.pop %v1479
          %v1510 = vrcp.pop %v1482
          %v1511 = vrcp.pop %v1485
          %v1512 = vrcp.pop %v1488
          %v1513 = vrcp.pop %v1491
          %v1514 = vrcp.pop %v1494
          %v1515 = vrcp.pop %v1497
          %v1516 = vrcp.pop %v1500
          %v1517 = vmul.f32 %v1422, %v1501
          %v1518 = vmul.f32 %v1424, %v1502
          %v1519 = vmul.f32 %v1426, %v1503
          %v1520 = vmul.f32 %v1428, %v1504
          %v1521 = vmul.f32 %v1430, %v1505
          %v1522 = vmul.f32 %v1432, %v1506
          %v1523 = vmul.f32 %v1434, %v1507
          %v1524 = vmul.f32 %v1436, %v1508
          %v1525 = vmul.f32 %v1438, %v1509
          %v1526 = vmul.f32 %v1440, %v1510
          %v1527 = vmul.f32 %v1442, %v1511
          %v1528 = vmul.f32 %v1444, %v1512
          %v1529 = vmul.f32 %v1446, %v1513
          %v1530 = vmul.f32 %v1448, %v1514
          %v1531 = vmul.f32 %v1450, %v1515
          %v1532 = vmul.f32 %v1452, %v1516
          %v1533 = vpack.c.bf16 %v1518, %v1517
          %v1534 = vpack.c.bf16 %v1520, %v1519
          %v1535 = vpack.c.bf16 %v1522, %v1521
          %v1536 = vpack.c.bf16 %v1524, %v1523
          %v1537 = vpack.c.bf16 %v1526, %v1525
          %v1538 = vpack.c.bf16 %v1528, %v1527
          %v1539 = vpack.c.bf16 %v1530, %v1529
          %v1540 = vpack.c.bf16 %v1532, %v1531
          %1541 = vrot.lane.b32.xlu0 %v931, 64
          %v1542 = vpop.permute.xlu0 %1541
          %v1545 = vsel %vm1356, %v1533, 0
          %1547 = vmatprep.subr.bf16.mxu0 0
          %1548 = vmatpush1.bf16.msra.mxu0 %v1542
          %1549 = vmatprep.subr.bf16.mxu0 0
          %1550 = vmatpush1.bf16.msra.mxu0 0
          %1551 = vmatprep.subr.bf16.mxu0 0
          %1552 = vmatpush1.bf16.msra.mxu0 0
          %1553 = vmatprep.subr.bf16.mxu0 0
          %1554 = vmatpush1.bf16.msra.mxu0 0
          %1555 = vmatprep.subr.bf16.mxu0 0
          %1556 = vmatpush1.bf16.msra.mxu0 0
          %1557 = vmatprep.subr.bf16.mxu0 0
          %1558 = vmatpush1.bf16.msra.mxu0 0
          %1559 = vmatprep.subr.bf16.mxu0 0
          %1560 = vmatpush1.bf16.msra.mxu0 0
          %1561 = vmatprep.subr.bf16.mxu0 0
          %1562 = vmatpush1.bf16.msra.mxu0 0
          %1563 = vmatprep.subr.bf16.mxu0 0
          %1564 = vmatpush1.bf16.msra.mxu0 0
          %1565 = vmatprep.subr.bf16.mxu0 0
          %1566 = vmatpush1.bf16.msra.mxu0 0
          %1567 = vmatprep.subr.bf16.mxu0 0
          %1568 = vmatpush1.bf16.msra.mxu0 0
          %1569 = vmatprep.subr.bf16.mxu0 0
          %1570 = vmatpush1.bf16.msra.mxu0 0
          %1571 = vmatprep.subr.bf16.mxu0 0
          %1572 = vmatpush1.bf16.msra.mxu0 0
          %1573 = vmatprep.subr.bf16.mxu0 0
          %1574 = vmatpush1.bf16.msra.mxu0 0
          %1575 = vmatprep.subr.bf16.mxu0 0
          %1576 = vmatpush1.bf16.msra.mxu0 0
          %1577 = vmatprep.subr.bf16.mxu0 0
          %1578 = vmatpush1.bf16.msra.mxu0 0
          %1579 = vmatprep.mubr.bf16.mxu0 0
          %1580 = vmatmul.mubr.bf16.gmra.mrb[0].mxu0 %v1545
          %v1581 = vpop.f32.mrb[0].mxu0
          %v1582 = vadd.f32 0.0, %v1581
          %v1583 = vpop.f32.mrb[0].mxu0
          %v1584 = vpop.f32.mrb[0].mxu0
          %v1585 = vadd.f32 0.0, %v1584
          %v1586 = vpop.f32.mrb[0].mxu0
          %1587 = vdwg.mxu0
          %1588 = vrot.lane.b32.xlu0 %v932, 64
          %v1589 = vpop.permute.xlu0 %1588
          %v1592 = vsel %vm1356, %v1534, 0
          %1594 = vmatprep.subr.bf16.mxu0 0
          %1595 = vmatpush1.bf16.msra.mxu0 %v1589
          %1596 = vmatprep.subr.bf16.mxu0 0
          %1597 = vmatpush1.bf16.msra.mxu0 0
          %1598 = vmatprep.subr.bf16.mxu0 0
          %1599 = vmatpush1.bf16.msra.mxu0 0
          %1600 = vmatprep.subr.bf16.mxu0 0
          %1601 = vmatpush1.bf16.msra.mxu0 0
          %1602 = vmatprep.subr.bf16.mxu0 0
          %1603 = vmatpush1.bf16.msra.mxu0 0
          %1604 = vmatprep.subr.bf16.mxu0 0
          %1605 = vmatpush1.bf16.msra.mxu0 0
          %1606 = vmatprep.subr.bf16.mxu0 0
          %1607 = vmatpush1.bf16.msra.mxu0 0
          %1608 = vmatprep.subr.bf16.mxu0 0
          %1609 = vmatpush1.bf16.msra.mxu0 0
          %1610 = vmatprep.subr.bf16.mxu0 0
          %1611 = vmatpush1.bf16.msra.mxu0 0
          %1612 = vmatprep.subr.bf16.mxu0 0
          %1613 = vmatpush1.bf16.msra.mxu0 0
          %1614 = vmatprep.subr.bf16.mxu0 0
          %1615 = vmatpush1.bf16.msra.mxu0 0
          %1616 = vmatprep.subr.bf16.mxu0 0
          %1617 = vmatpush1.bf16.msra.mxu0 0
          %1618 = vmatprep.subr.bf16.mxu0 0
          %1619 = vmatpush1.bf16.msra.mxu0 0
          %1620 = vmatprep.subr.bf16.mxu0 0
          %1621 = vmatpush1.bf16.msra.mxu0 0
          %1622 = vmatprep.subr.bf16.mxu0 0
          %1623 = vmatpush1.bf16.msra.mxu0 0
          %1624 = vmatprep.subr.bf16.mxu0 0
          %1625 = vmatpush1.bf16.msra.mxu0 0
          %1626 = vmatprep.mubr.bf16.mxu0 0
          %1627 = vmatmul.mubr.bf16.gmra.mrb[0].mxu0 %v1592
          %v1628 = vpop.f32.mrb[0].mxu0
          %v1629 = vadd.f32 0.0, %v1628
          %v1630 = vpop.f32.mrb[0].mxu0
          %v1631 = vpop.f32.mrb[0].mxu0
          %v1632 = vadd.f32 0.0, %v1631
          %v1633 = vpop.f32.mrb[0].mxu0
          %1634 = vdwg.mxu0
          %1635 = vrot.lane.b32.xlu0 %v933, 64
          %v1636 = vpop.permute.xlu0 %1635
          %v1639 = vsel %vm1356, %v1535, 0
          %1641 = vmatprep.subr.bf16.mxu0 0
          %1642 = vmatpush1.bf16.msra.mxu0 %v1636
          %1643 = vmatprep.subr.bf16.mxu0 0
          %1644 = vmatpush1.bf16.msra.mxu0 0
          %1645 = vmatprep.subr.bf16.mxu0 0
          %1646 = vmatpush1.bf16.msra.mxu0 0
          %1647 = vmatprep.subr.bf16.mxu0 0
          %1648 = vmatpush1.bf16.msra.mxu0 0
          %1649 = vmatprep.subr.bf16.mxu0 0
          %1650 = vmatpush1.bf16.msra.mxu0 0
          %1651 = vmatprep.subr.bf16.mxu0 0
          %1652 = vmatpush1.bf16.msra.mxu0 0
          %1653 = vmatprep.subr.bf16.mxu0 0
          %1654 = vmatpush1.bf16.msra.mxu0 0
          %1655 = vmatprep.subr.bf16.mxu0 0
          %1656 = vmatpush1.bf16.msra.mxu0 0
          %1657 = vmatprep.subr.bf16.mxu0 0
          %1658 = vmatpush1.bf16.msra.mxu0 0
          %1659 = vmatprep.subr.bf16.mxu0 0
          %1660 = vmatpush1.bf16.msra.mxu0 0
          %1661 = vmatprep.subr.bf16.mxu0 0
          %1662 = vmatpush1.bf16.msra.mxu0 0
          %1663 = vmatprep.subr.bf16.mxu0 0
          %1664 = vmatpush1.bf16.msra.mxu0 0
          %1665 = vmatprep.subr.bf16.mxu0 0
          %1666 = vmatpush1.bf16.msra.mxu0 0
          %1667 = vmatprep.subr.bf16.mxu0 0
          %1668 = vmatpush1.bf16.msra.mxu0 0
          %1669 = vmatprep.subr.bf16.mxu0 0
          %1670 = vmatpush1.bf16.msra.mxu0 0
          %1671 = vmatprep.subr.bf16.mxu0 0
          %1672 = vmatpush1.bf16.msra.mxu0 0
          %1673 = vmatprep.mubr.bf16.mxu0 0
          %1674 = vmatmul.mubr.bf16.gmra.mrb[0].mxu0 %v1639
          %v1675 = vpop.f32.mrb[0].mxu0
          %v1676 = vadd.f32 0.0, %v1675
          %v1677 = vpop.f32.mrb[0].mxu0
          %v1678 = vpop.f32.mrb[0].mxu0
          %v1679 = vadd.f32 0.0, %v1678
          %v1680 = vpop.f32.mrb[0].mxu0
          %1681 = vdwg.mxu0
          %1682 = vrot.lane.b32.xlu0 %v934, 64
          %v1683 = vpop.permute.xlu0 %1682
          %v1686 = vsel %vm1356, %v1536, 0
          %1688 = vmatprep.subr.bf16.mxu0 0
          %1689 = vmatpush1.bf16.msra.mxu0 %v1683
          %1690 = vmatprep.subr.bf16.mxu0 0
          %1691 = vmatpush1.bf16.msra.mxu0 0
          %1692 = vmatprep.subr.bf16.mxu0 0
          %1693 = vmatpush1.bf16.msra.mxu0 0
          %1694 = vmatprep.subr.bf16.mxu0 0
          %1695 = vmatpush1.bf16.msra.mxu0 0
          %1696 = vmatprep.subr.bf16.mxu0 0
          %1697 = vmatpush1.bf16.msra.mxu0 0
          %1698 = vmatprep.subr.bf16.mxu0 0
          %1699 = vmatpush1.bf16.msra.mxu0 0
          %1700 = vmatprep.subr.bf16.mxu0 0
          %1701 = vmatpush1.bf16.msra.mxu0 0
          %1702 = vmatprep.subr.bf16.mxu0 0
          %1703 = vmatpush1.bf16.msra.mxu0 0
          %1704 = vmatprep.subr.bf16.mxu0 0
          %1705 = vmatpush1.bf16.msra.mxu0 0
          %1706 = vmatprep.subr.bf16.mxu0 0
          %1707 = vmatpush1.bf16.msra.mxu0 0
          %1708 = vmatprep.subr.bf16.mxu0 0
          %1709 = vmatpush1.bf16.msra.mxu0 0
          %1710 = vmatprep.subr.bf16.mxu0 0
          %1711 = vmatpush1.bf16.msra.mxu0 0
          %1712 = vmatprep.subr.bf16.mxu0 0
          %1713 = vmatpush1.bf16.msra.mxu0 0
          %1714 = vmatprep.subr.bf16.mxu0 0
          %1715 = vmatpush1.bf16.msra.mxu0 0
          %1716 = vmatprep.subr.bf16.mxu0 0
          %1717 = vmatpush1.bf16.msra.mxu0 0
          %1718 = vmatprep.subr.bf16.mxu0 0
          %1719 = vmatpush1.bf16.msra.mxu0 0
          %1720 = vmatprep.mubr.bf16.mxu0 0
          %1721 = vmatmul.mubr.bf16.gmra.mrb[0].mxu0 %v1686
          %v1722 = vpop.f32.mrb[0].mxu0
          %v1723 = vadd.f32 0.0, %v1722
          %v1724 = vpop.f32.mrb[0].mxu0
          %v1725 = vpop.f32.mrb[0].mxu0
          %v1726 = vadd.f32 0.0, %v1725
          %v1727 = vpop.f32.mrb[0].mxu0
          %1728 = vdwg.mxu0
          %1729 = vrot.lane.b32.xlu0 %v935, 64
          %v1730 = vpop.permute.xlu0 %1729
          %v1733 = vsel %vm1356, %v1537, 0
          %1735 = vmatprep.subr.bf16.mxu0 0
          %1736 = vmatpush1.bf16.msra.mxu0 %v1730
          %1737 = vmatprep.subr.bf16.mxu0 0
          %1738 = vmatpush1.bf16.msra.mxu0 0
          %1739 = vmatprep.subr.bf16.mxu0 0
          %1740 = vmatpush1.bf16.msra.mxu0 0
          %1741 = vmatprep.subr.bf16.mxu0 0
          %1742 = vmatpush1.bf16.msra.mxu0 0
          %1743 = vmatprep.subr.bf16.mxu0 0
          %1744 = vmatpush1.bf16.msra.mxu0 0
          %1745 = vmatprep.subr.bf16.mxu0 0
          %1746 = vmatpush1.bf16.msra.mxu0 0
          %1747 = vmatprep.subr.bf16.mxu0 0
          %1748 = vmatpush1.bf16.msra.mxu0 0
          %1749 = vmatprep.subr.bf16.mxu0 0
          %1750 = vmatpush1.bf16.msra.mxu0 0
          %1751 = vmatprep.subr.bf16.mxu0 0
          %1752 = vmatpush1.bf16.msra.mxu0 0
          %1753 = vmatprep.subr.bf16.mxu0 0
          %1754 = vmatpush1.bf16.msra.mxu0 0
          %1755 = vmatprep.subr.bf16.mxu0 0
          %1756 = vmatpush1.bf16.msra.mxu0 0
          %1757 = vmatprep.subr.bf16.mxu0 0
          %1758 = vmatpush1.bf16.msra.mxu0 0
          %1759 = vmatprep.subr.bf16.mxu0 0
          %1760 = vmatpush1.bf16.msra.mxu0 0
          %1761 = vmatprep.subr.bf16.mxu0 0
          %1762 = vmatpush1.bf16.msra.mxu0 0
          %1763 = vmatprep.subr.bf16.mxu0 0
          %1764 = vmatpush1.bf16.msra.mxu0 0
          %1765 = vmatprep.subr.bf16.mxu0 0
          %1766 = vmatpush1.bf16.msra.mxu0 0
          %1767 = vmatprep.mubr.bf16.mxu0 0
          %1768 = vmatmul.mubr.bf16.gmra.mrb[0].mxu0 %v1733
          %v1769 = vpop.f32.mrb[0].mxu0
          %v1770 = vadd.f32 0.0, %v1769
          %v1771 = vpop.f32.mrb[0].mxu0
          %v1772 = vpop.f32.mrb[0].mxu0
          %v1773 = vadd.f32 0.0, %v1772
          %v1774 = vpop.f32.mrb[0].mxu0
          %1775 = vdwg.mxu0
          %1776 = vrot.lane.b32.xlu0 %v936, 64
          %v1777 = vpop.permute.xlu0 %1776
          %v1780 = vsel %vm1356, %v1538, 0
          %1782 = vmatprep.subr.bf16.mxu0 0
          %1783 = vmatpush1.bf16.msra.mxu0 %v1777
          %1784 = vmatprep.subr.bf16.mxu0 0
          %1785 = vmatpush1.bf16.msra.mxu0 0
          %1786 = vmatprep.subr.bf16.mxu0 0
          %1787 = vmatpush1.bf16.msra.mxu0 0
          %1788 = vmatprep.subr.bf16.mxu0 0
          %1789 = vmatpush1.bf16.msra.mxu0 0
          %1790 = vmatprep.subr.bf16.mxu0 0
          %1791 = vmatpush1.bf16.msra.mxu0 0
          %1792 = vmatprep.subr.bf16.mxu0 0
          %1793 = vmatpush1.bf16.msra.mxu0 0
          %1794 = vmatprep.subr.bf16.mxu0 0
          %1795 = vmatpush1.bf16.msra.mxu0 0
          %1796 = vmatprep.subr.bf16.mxu0 0
          %1797 = vmatpush1.bf16.msra.mxu0 0
          %1798 = vmatprep.subr.bf16.mxu0 0
          %1799 = vmatpush1.bf16.msra.mxu0 0
          %1800 = vmatprep.subr.bf16.mxu0 0
          %1801 = vmatpush1.bf16.msra.mxu0 0
          %1802 = vmatprep.subr.bf16.mxu0 0
          %1803 = vmatpush1.bf16.msra.mxu0 0
          %1804 = vmatprep.subr.bf16.mxu0 0
          %1805 = vmatpush1.bf16.msra.mxu0 0
          %1806 = vmatprep.subr.bf16.mxu0 0
          %1807 = vmatpush1.bf16.msra.mxu0 0
          %1808 = vmatprep.subr.bf16.mxu0 0
          %1809 = vmatpush1.bf16.msra.mxu0 0
          %1810 = vmatprep.subr.bf16.mxu0 0
          %1811 = vmatpush1.bf16.msra.mxu0 0
          %1812 = vmatprep.subr.bf16.mxu0 0
          %1813 = vmatpush1.bf16.msra.mxu0 0
          %1814 = vmatprep.mubr.bf16.mxu0 0
          %1815 = vmatmul.mubr.bf16.gmra.mrb[0].mxu0 %v1780
          %v1816 = vpop.f32.mrb[0].mxu0
          %v1817 = vadd.f32 0.0, %v1816
          %v1818 = vpop.f32.mrb[0].mxu0
          %v1819 = vpop.f32.mrb[0].mxu0
          %v1820 = vadd.f32 0.0, %v1819
          %v1821 = vpop.f32.mrb[0].mxu0
          %1822 = vdwg.mxu0
          %1823 = vrot.lane.b32.xlu0 %v937, 64
          %v1824 = vpop.permute.xlu0 %1823
          %v1827 = vsel %vm1356, %v1539, 0
          %1829 = vmatprep.subr.bf16.mxu0 0
          %1830 = vmatpush1.bf16.msra.mxu0 %v1824
          %1831 = vmatprep.subr.bf16.mxu0 0
          %1832 = vmatpush1.bf16.msra.mxu0 0
          %1833 = vmatprep.subr.bf16.mxu0 0
          %1834 = vmatpush1.bf16.msra.mxu0 0
          %1835 = vmatprep.subr.bf16.mxu0 0
          %1836 = vmatpush1.bf16.msra.mxu0 0
          %1837 = vmatprep.subr.bf16.mxu0 0
          %1838 = vmatpush1.bf16.msra.mxu0 0
          %1839 = vmatprep.subr.bf16.mxu0 0
          %1840 = vmatpush1.bf16.msra.mxu0 0
          %1841 = vmatprep.subr.bf16.mxu0 0
          %1842 = vmatpush1.bf16.msra.mxu0 0
          %1843 = vmatprep.subr.bf16.mxu0 0
          %1844 = vmatpush1.bf16.msra.mxu0 0
          %1845 = vmatprep.subr.bf16.mxu0 0
          %1846 = vmatpush1.bf16.msra.mxu0 0
          %1847 = vmatprep.subr.bf16.mxu0 0
          %1848 = vmatpush1.bf16.msra.mxu0 0
          %1849 = vmatprep.subr.bf16.mxu0 0
          %1850 = vmatpush1.bf16.msra.mxu0 0
          %1851 = vmatprep.subr.bf16.mxu0 0
          %1852 = vmatpush1.bf16.msra.mxu0 0
          %1853 = vmatprep.subr.bf16.mxu0 0
          %1854 = vmatpush1.bf16.msra.mxu0 0
          %1855 = vmatprep.subr.bf16.mxu0 0
          %1856 = vmatpush1.bf16.msra.mxu0 0
          %1857 = vmatprep.subr.bf16.mxu0 0
          %1858 = vmatpush1.bf16.msra.mxu0 0
          %1859 = vmatprep.subr.bf16.mxu0 0
          %1860 = vmatpush1.bf16.msra.mxu0 0
          %1861 = vmatprep.mubr.bf16.mxu0 0
          %1862 = vmatmul.mubr.bf16.gmra.mrb[0].mxu0 %v1827
          %v1863 = vpop.f32.mrb[0].mxu0
          %v1864 = vadd.f32 0.0, %v1863
          %v1865 = vpop.f32.mrb[0].mxu0
          %v1866 = vpop.f32.mrb[0].mxu0
          %v1867 = vadd.f32 0.0, %v1866
          %v1868 = vpop.f32.mrb[0].mxu0
          %1869 = vdwg.mxu0
          %1870 = vrot.lane.b32.xlu0 %v938, 64
          %v1871 = vpop.permute.xlu0 %1870
          %v1874 = vsel %vm1356, %v1540, 0
          %1876 = vmatprep.subr.bf16.mxu0 0
          %1877 = vmatpush1.bf16.msra.mxu0 %v1871
          %1878 = vmatprep.subr.bf16.mxu0 0
          %1879 = vmatpush1.bf16.msra.mxu0 0
          %1880 = vmatprep.subr.bf16.mxu0 0
          %1881 = vmatpush1.bf16.msra.mxu0 0
          %1882 = vmatprep.subr.bf16.mxu0 0
          %1883 = vmatpush1.bf16.msra.mxu0 0
          %1884 = vmatprep.subr.bf16.mxu0 0
          %1885 = vmatpush1.bf16.msra.mxu0 0
          %1886 = vmatprep.subr.bf16.mxu0 0
          %1887 = vmatpush1.bf16.msra.mxu0 0
          %1888 = vmatprep.subr.bf16.mxu0 0
          %1889 = vmatpush1.bf16.msra.mxu0 0
          %1890 = vmatprep.subr.bf16.mxu0 0
          %1891 = vmatpush1.bf16.msra.mxu0 0
          %1892 = vmatprep.subr.bf16.mxu0 0
          %1893 = vmatpush1.bf16.msra.mxu0 0
          %1894 = vmatprep.subr.bf16.mxu0 0
          %1895 = vmatpush1.bf16.msra.mxu0 0
          %1896 = vmatprep.subr.bf16.mxu0 0
          %1897 = vmatpush1.bf16.msra.mxu0 0
          %1898 = vmatprep.subr.bf16.mxu0 0
          %1899 = vmatpush1.bf16.msra.mxu0 0
          %1900 = vmatprep.subr.bf16.mxu0 0
          %1901 = vmatpush1.bf16.msra.mxu0 0
          %1902 = vmatprep.subr.bf16.mxu0 0
          %1903 = vmatpush1.bf16.msra.mxu0 0
          %1904 = vmatprep.subr.bf16.mxu0 0
          %1905 = vmatpush1.bf16.msra.mxu0 0
          %1906 = vmatprep.subr.bf16.mxu0 0
          %1907 = vmatpush1.bf16.msra.mxu0 0
          %1908 = vmatprep.mubr.bf16.mxu0 0
          %1909 = vmatmul.mubr.bf16.gmra.mrb[0].mxu0 %v1874
          %v1910 = vpop.f32.mrb[0].mxu0
          %v1911 = vadd.f32 0.0, %v1910
          %v1912 = vpop.f32.mrb[0].mxu0
          %v1913 = vpop.f32.mrb[0].mxu0
          %v1914 = vadd.f32 0.0, %v1913
          %v1915 = vpop.f32.mrb[0].mxu0
          %1916 = vdwg.mxu0
          %v1917 = vpack.c.bf16 %v1585, %v1582
          %v1918 = vpack.c.bf16 %v1632, %v1629
          %v1919 = vpack.c.bf16 %v1679, %v1676
          %v1920 = vpack.c.bf16 %v1726, %v1723
          %v1921 = vpack.c.bf16 %v1773, %v1770
          %v1922 = vpack.c.bf16 %v1820, %v1817
          %v1923 = vpack.c.bf16 %v1867, %v1864
          %v1924 = vpack.c.bf16 %v1914, %v1911
          %1925 = vrot.lane.b32.xlu0 %v931, 120
          %v1926 = vpop.permute.xlu0 %1925
          %1927 = vrot.lane.b32.xlu0 %v931, 88
          %v1928 = vpop.permute.xlu0 %1927
          %v1930 = vsel %vm942, %v1926, 0
          %v1933 = vsel %vm942, %v1928, 0
          %1935 = vmatprep.subr.bf16.mxu0 0
          %1936 = vmatpush1.bf16.xpose.msra.mxu0 %v1933
          %1937 = vmatprep.subr.bf16.mxu0 0
          %1938 = vmatpush1.bf16.xpose.msra.mxu0 0
          %1939 = vmatprep.subr.bf16.mxu0 0
          %1940 = vmatpush1.bf16.xpose.msra.mxu0 0
          %1941 = vmatprep.subr.bf16.mxu0 0
          %1942 = vmatpush1.bf16.xpose.msra.mxu0 0
          %1943 = vmatprep.subr.bf16.mxu0 0
          %1944 = vmatpush1.bf16.xpose.msra.mxu0 0
          %1945 = vmatprep.subr.bf16.mxu0 0
          %1946 = vmatpush1.bf16.xpose.msra.mxu0 0
          %1947 = vmatprep.subr.bf16.mxu0 0
          %1948 = vmatpush1.bf16.xpose.msra.mxu0 0
          %1949 = vmatprep.subr.bf16.mxu0 0
          %1950 = vmatpush1.bf16.xpose.msra.mxu0 0
          %1951 = vmatprep.subr.bf16.mxu0 0
          %1952 = vmatpush1.bf16.xpose.msra.mxu0 0
          %1953 = vmatprep.subr.bf16.mxu0 0
          %1954 = vmatpush1.bf16.xpose.msra.mxu0 0
          %1955 = vmatprep.subr.bf16.mxu0 0
          %1956 = vmatpush1.bf16.xpose.msra.mxu0 0
          %1957 = vmatprep.subr.bf16.mxu0 0
          %1958 = vmatpush1.bf16.xpose.msra.mxu0 0
          %1959 = vmatprep.subr.bf16.mxu0 0
          %1960 = vmatpush1.bf16.xpose.msra.mxu0 0
          %1961 = vmatprep.subr.bf16.mxu0 0
          %1962 = vmatpush1.bf16.xpose.msra.mxu0 0
          %1963 = vmatprep.subr.bf16.mxu0 0
          %1964 = vmatpush1.bf16.xpose.msra.mxu0 0
          %1965 = vmatprep.subr.bf16.mxu0 0
          %1966 = vmatpush1.bf16.xpose.msra.mxu0 0
          %1967 = vmatprep.mubr.bf16.mxu0 0
          %1968 = vmatmul.mubr.bf16.gmra.mrb[0].mxu0 %v1930
          %v1969 = vpop.f32.mrb[0].mxu0
          %v1970 = vadd.f32 0.0, %v1969
          %v1971 = vpop.f32.mrb[0].mxu0
          %v1972 = vpop.f32.mrb[0].mxu0
          %v1973 = vadd.f32 0.0, %v1972
          %v1974 = vpop.f32.mrb[0].mxu0
          %1975 = vdwg.mxu0
          %1976 = vrot.lane.b32.xlu0 %v932, 120
          %v1977 = vpop.permute.xlu0 %1976
          %1978 = vrot.lane.b32.xlu0 %v932, 88
          %v1979 = vpop.permute.xlu0 %1978
          %v1981 = vsel %vm942, %v1977, 0
          %v1984 = vsel %vm942, %v1979, 0
          %1986 = vmatprep.subr.bf16.mxu0 0
          %1987 = vmatpush1.bf16.xpose.msra.mxu0 %v1984
          %1988 = vmatprep.subr.bf16.mxu0 0
          %1989 = vmatpush1.bf16.xpose.msra.mxu0 0
          %1990 = vmatprep.subr.bf16.mxu0 0
          %1991 = vmatpush1.bf16.xpose.msra.mxu0 0
          %1992 = vmatprep.subr.bf16.mxu0 0
          %1993 = vmatpush1.bf16.xpose.msra.mxu0 0
          %1994 = vmatprep.subr.bf16.mxu0 0
          %1995 = vmatpush1.bf16.xpose.msra.mxu0 0
          %1996 = vmatprep.subr.bf16.mxu0 0
          %1997 = vmatpush1.bf16.xpose.msra.mxu0 0
          %1998 = vmatprep.subr.bf16.mxu0 0
          %1999 = vmatpush1.bf16.xpose.msra.mxu0 0
          %2000 = vmatprep.subr.bf16.mxu0 0
          %2001 = vmatpush1.bf16.xpose.msra.mxu0 0
          %2002 = vmatprep.subr.bf16.mxu0 0
          %2003 = vmatpush1.bf16.xpose.msra.mxu0 0
          %2004 = vmatprep.subr.bf16.mxu0 0
          %2005 = vmatpush1.bf16.xpose.msra.mxu0 0
          %2006 = vmatprep.subr.bf16.mxu0 0
          %2007 = vmatpush1.bf16.xpose.msra.mxu0 0
          %2008 = vmatprep.subr.bf16.mxu0 0
          %2009 = vmatpush1.bf16.xpose.msra.mxu0 0
          %2010 = vmatprep.subr.bf16.mxu0 0
          %2011 = vmatpush1.bf16.xpose.msra.mxu0 0
          %2012 = vmatprep.subr.bf16.mxu0 0
          %2013 = vmatpush1.bf16.xpose.msra.mxu0 0
          %2014 = vmatprep.subr.bf16.mxu0 0
          %2015 = vmatpush1.bf16.xpose.msra.mxu0 0
          %2016 = vmatprep.subr.bf16.mxu0 0
          %2017 = vmatpush1.bf16.xpose.msra.mxu0 0
          %2018 = vmatprep.mubr.bf16.mxu0 0
          %2019 = vmatmul.mubr.bf16.gmra.mrb[0].mxu0 %v1981
          %v2020 = vpop.f32.mrb[0].mxu0
          %v2021 = vadd.f32 0.0, %v2020
          %v2022 = vpop.f32.mrb[0].mxu0
          %v2023 = vpop.f32.mrb[0].mxu0
          %v2024 = vadd.f32 0.0, %v2023
          %v2025 = vpop.f32.mrb[0].mxu0
          %2026 = vdwg.mxu0
          %2027 = vrot.lane.b32.xlu0 %v933, 120
          %v2028 = vpop.permute.xlu0 %2027
          %2029 = vrot.lane.b32.xlu0 %v933, 88
          %v2030 = vpop.permute.xlu0 %2029
          %v2032 = vsel %vm942, %v2028, 0
          %v2035 = vsel %vm942, %v2030, 0
          %2037 = vmatprep.subr.bf16.mxu0 0
          %2038 = vmatpush1.bf16.xpose.msra.mxu0 %v2035
          %2039 = vmatprep.subr.bf16.mxu0 0
          %2040 = vmatpush1.bf16.xpose.msra.mxu0 0
          %2041 = vmatprep.subr.bf16.mxu0 0
          %2042 = vmatpush1.bf16.xpose.msra.mxu0 0
          %2043 = vmatprep.subr.bf16.mxu0 0
          %2044 = vmatpush1.bf16.xpose.msra.mxu0 0
          %2045 = vmatprep.subr.bf16.mxu0 0
          %2046 = vmatpush1.bf16.xpose.msra.mxu0 0
          %2047 = vmatprep.subr.bf16.mxu0 0
          %2048 = vmatpush1.bf16.xpose.msra.mxu0 0
          %2049 = vmatprep.subr.bf16.mxu0 0
          %2050 = vmatpush1.bf16.xpose.msra.mxu0 0
          %2051 = vmatprep.subr.bf16.mxu0 0
          %2052 = vmatpush1.bf16.xpose.msra.mxu0 0
          %2053 = vmatprep.subr.bf16.mxu0 0
          %2054 = vmatpush1.bf16.xpose.msra.mxu0 0
          %2055 = vmatprep.subr.bf16.mxu0 0
          %2056 = vmatpush1.bf16.xpose.msra.mxu0 0
          %2057 = vmatprep.subr.bf16.mxu0 0
          %2058 = vmatpush1.bf16.xpose.msra.mxu0 0
          %2059 = vmatprep.subr.bf16.mxu0 0
          %2060 = vmatpush1.bf16.xpose.msra.mxu0 0
          %2061 = vmatprep.subr.bf16.mxu0 0
          %2062 = vmatpush1.bf16.xpose.msra.mxu0 0
          %2063 = vmatprep.subr.bf16.mxu0 0
          %2064 = vmatpush1.bf16.xpose.msra.mxu0 0
          %2065 = vmatprep.subr.bf16.mxu0 0
          %2066 = vmatpush1.bf16.xpose.msra.mxu0 0
          %2067 = vmatprep.subr.bf16.mxu0 0
          %2068 = vmatpush1.bf16.xpose.msra.mxu0 0
          %2069 = vmatprep.mubr.bf16.mxu0 0
          %2070 = vmatmul.mubr.bf16.gmra.mrb[0].mxu0 %v2032
          %v2071 = vpop.f32.mrb[0].mxu0
          %v2072 = vadd.f32 0.0, %v2071
          %v2073 = vpop.f32.mrb[0].mxu0
          %v2074 = vpop.f32.mrb[0].mxu0
          %v2075 = vadd.f32 0.0, %v2074
          %v2076 = vpop.f32.mrb[0].mxu0
          %2077 = vdwg.mxu0
          %2078 = vrot.lane.b32.xlu0 %v934, 120
          %v2079 = vpop.permute.xlu0 %2078
          %2080 = vrot.lane.b32.xlu0 %v934, 88
          %v2081 = vpop.permute.xlu0 %2080
          %v2083 = vsel %vm942, %v2079, 0
          %v2086 = vsel %vm942, %v2081, 0
          %2088 = vmatprep.subr.bf16.mxu0 0
          %2089 = vmatpush1.bf16.xpose.msra.mxu0 %v2086
          %2090 = vmatprep.subr.bf16.mxu0 0
          %2091 = vmatpush1.bf16.xpose.msra.mxu0 0
          %2092 = vmatprep.subr.bf16.mxu0 0
          %2093 = vmatpush1.bf16.xpose.msra.mxu0 0
          %2094 = vmatprep.subr.bf16.mxu0 0
          %2095 = vmatpush1.bf16.xpose.msra.mxu0 0
          %2096 = vmatprep.subr.bf16.mxu0 0
          %2097 = vmatpush1.bf16.xpose.msra.mxu0 0
          %2098 = vmatprep.subr.bf16.mxu0 0
          %2099 = vmatpush1.bf16.xpose.msra.mxu0 0
          %2100 = vmatprep.subr.bf16.mxu0 0
          %2101 = vmatpush1.bf16.xpose.msra.mxu0 0
          %2102 = vmatprep.subr.bf16.mxu0 0
          %2103 = vmatpush1.bf16.xpose.msra.mxu0 0
          %2104 = vmatprep.subr.bf16.mxu0 0
          %2105 = vmatpush1.bf16.xpose.msra.mxu0 0
          %2106 = vmatprep.subr.bf16.mxu0 0
          %2107 = vmatpush1.bf16.xpose.msra.mxu0 0
          %2108 = vmatprep.subr.bf16.mxu0 0
          %2109 = vmatpush1.bf16.xpose.msra.mxu0 0
          %2110 = vmatprep.subr.bf16.mxu0 0
          %2111 = vmatpush1.bf16.xpose.msra.mxu0 0
          %2112 = vmatprep.subr.bf16.mxu0 0
          %2113 = vmatpush1.bf16.xpose.msra.mxu0 0
          %2114 = vmatprep.subr.bf16.mxu0 0
          %2115 = vmatpush1.bf16.xpose.msra.mxu0 0
          %2116 = vmatprep.subr.bf16.mxu0 0
          %2117 = vmatpush1.bf16.xpose.msra.mxu0 0
          %2118 = vmatprep.subr.bf16.mxu0 0
          %2119 = vmatpush1.bf16.xpose.msra.mxu0 0
          %2120 = vmatprep.mubr.bf16.mxu0 0
          %2121 = vmatmul.mubr.bf16.gmra.mrb[0].mxu0 %v2083
          %v2122 = vpop.f32.mrb[0].mxu0
          %v2123 = vadd.f32 0.0, %v2122
          %v2124 = vpop.f32.mrb[0].mxu0
          %v2125 = vpop.f32.mrb[0].mxu0
          %v2126 = vadd.f32 0.0, %v2125
          %v2127 = vpop.f32.mrb[0].mxu0
          %2128 = vdwg.mxu0
          %2129 = vrot.lane.b32.xlu0 %v935, 120
          %v2130 = vpop.permute.xlu0 %2129
          %2131 = vrot.lane.b32.xlu0 %v935, 88
          %v2132 = vpop.permute.xlu0 %2131
          %v2134 = vsel %vm942, %v2130, 0
          %v2137 = vsel %vm942, %v2132, 0
          %2139 = vmatprep.subr.bf16.mxu0 0
          %2140 = vmatpush1.bf16.xpose.msra.mxu0 %v2137
          %2141 = vmatprep.subr.bf16.mxu0 0
          %2142 = vmatpush1.bf16.xpose.msra.mxu0 0
          %2143 = vmatprep.subr.bf16.mxu0 0
          %2144 = vmatpush1.bf16.xpose.msra.mxu0 0
          %2145 = vmatprep.subr.bf16.mxu0 0
          %2146 = vmatpush1.bf16.xpose.msra.mxu0 0
          %2147 = vmatprep.subr.bf16.mxu0 0
          %2148 = vmatpush1.bf16.xpose.msra.mxu0 0
          %2149 = vmatprep.subr.bf16.mxu0 0
          %2150 = vmatpush1.bf16.xpose.msra.mxu0 0
          %2151 = vmatprep.subr.bf16.mxu0 0
          %2152 = vmatpush1.bf16.xpose.msra.mxu0 0
          %2153 = vmatprep.subr.bf16.mxu0 0
          %2154 = vmatpush1.bf16.xpose.msra.mxu0 0
          %2155 = vmatprep.subr.bf16.mxu0 0
          %2156 = vmatpush1.bf16.xpose.msra.mxu0 0
          %2157 = vmatprep.subr.bf16.mxu0 0
          %2158 = vmatpush1.bf16.xpose.msra.mxu0 0
          %2159 = vmatprep.subr.bf16.mxu0 0
          %2160 = vmatpush1.bf16.xpose.msra.mxu0 0
          %2161 = vmatprep.subr.bf16.mxu0 0
          %2162 = vmatpush1.bf16.xpose.msra.mxu0 0
          %2163 = vmatprep.subr.bf16.mxu0 0
          %2164 = vmatpush1.bf16.xpose.msra.mxu0 0
          %2165 = vmatprep.subr.bf16.mxu0 0
          %2166 = vmatpush1.bf16.xpose.msra.mxu0 0
          %2167 = vmatprep.subr.bf16.mxu0 0
          %2168 = vmatpush1.bf16.xpose.msra.mxu0 0
          %2169 = vmatprep.subr.bf16.mxu0 0
          %2170 = vmatpush1.bf16.xpose.msra.mxu0 0
          %2171 = vmatprep.mubr.bf16.mxu0 0
          %2172 = vmatmul.mubr.bf16.gmra.mrb[0].mxu0 %v2134
          %v2173 = vpop.f32.mrb[0].mxu0
          %v2174 = vadd.f32 0.0, %v2173
          %v2175 = vpop.f32.mrb[0].mxu0
          %v2176 = vpop.f32.mrb[0].mxu0
          %v2177 = vadd.f32 0.0, %v2176
          %v2178 = vpop.f32.mrb[0].mxu0
          %2179 = vdwg.mxu0
          %2180 = vrot.lane.b32.xlu0 %v936, 120
          %v2181 = vpop.permute.xlu0 %2180
          %2182 = vrot.lane.b32.xlu0 %v936, 88
          %v2183 = vpop.permute.xlu0 %2182
          %v2185 = vsel %vm942, %v2181, 0
          %v2188 = vsel %vm942, %v2183, 0
          %2190 = vmatprep.subr.bf16.mxu0 0
          %2191 = vmatpush1.bf16.xpose.msra.mxu0 %v2188
          %2192 = vmatprep.subr.bf16.mxu0 0
          %2193 = vmatpush1.bf16.xpose.msra.mxu0 0
          %2194 = vmatprep.subr.bf16.mxu0 0
          %2195 = vmatpush1.bf16.xpose.msra.mxu0 0
          %2196 = vmatprep.subr.bf16.mxu0 0
          %2197 = vmatpush1.bf16.xpose.msra.mxu0 0
          %2198 = vmatprep.subr.bf16.mxu0 0
          %2199 = vmatpush1.bf16.xpose.msra.mxu0 0
          %2200 = vmatprep.subr.bf16.mxu0 0
          %2201 = vmatpush1.bf16.xpose.msra.mxu0 0
          %2202 = vmatprep.subr.bf16.mxu0 0
          %2203 = vmatpush1.bf16.xpose.msra.mxu0 0
          %2204 = vmatprep.subr.bf16.mxu0 0
          %2205 = vmatpush1.bf16.xpose.msra.mxu0 0
          %2206 = vmatprep.subr.bf16.mxu0 0
          %2207 = vmatpush1.bf16.xpose.msra.mxu0 0
          %2208 = vmatprep.subr.bf16.mxu0 0
          %2209 = vmatpush1.bf16.xpose.msra.mxu0 0
          %2210 = vmatprep.subr.bf16.mxu0 0
          %2211 = vmatpush1.bf16.xpose.msra.mxu0 0
          %2212 = vmatprep.subr.bf16.mxu0 0
          %2213 = vmatpush1.bf16.xpose.msra.mxu0 0
          %2214 = vmatprep.subr.bf16.mxu0 0
          %2215 = vmatpush1.bf16.xpose.msra.mxu0 0
          %2216 = vmatprep.subr.bf16.mxu0 0
          %2217 = vmatpush1.bf16.xpose.msra.mxu0 0
          %2218 = vmatprep.subr.bf16.mxu0 0
          %2219 = vmatpush1.bf16.xpose.msra.mxu0 0
          %2220 = vmatprep.subr.bf16.mxu0 0
          %2221 = vmatpush1.bf16.xpose.msra.mxu0 0
          %2222 = vmatprep.mubr.bf16.mxu0 0
          %2223 = vmatmul.mubr.bf16.gmra.mrb[0].mxu0 %v2185
          %v2224 = vpop.f32.mrb[0].mxu0
          %v2225 = vadd.f32 0.0, %v2224
          %v2226 = vpop.f32.mrb[0].mxu0
          %v2227 = vpop.f32.mrb[0].mxu0
          %v2228 = vadd.f32 0.0, %v2227
          %v2229 = vpop.f32.mrb[0].mxu0
          %2230 = vdwg.mxu0
          %2231 = vrot.lane.b32.xlu0 %v937, 120
          %v2232 = vpop.permute.xlu0 %2231
          %2233 = vrot.lane.b32.xlu0 %v937, 88
          %v2234 = vpop.permute.xlu0 %2233
          %v2236 = vsel %vm942, %v2232, 0
          %v2239 = vsel %vm942, %v2234, 0
          %2241 = vmatprep.subr.bf16.mxu0 0
          %2242 = vmatpush1.bf16.xpose.msra.mxu0 %v2239
          %2243 = vmatprep.subr.bf16.mxu0 0
          %2244 = vmatpush1.bf16.xpose.msra.mxu0 0
          %2245 = vmatprep.subr.bf16.mxu0 0
          %2246 = vmatpush1.bf16.xpose.msra.mxu0 0
          %2247 = vmatprep.subr.bf16.mxu0 0
          %2248 = vmatpush1.bf16.xpose.msra.mxu0 0
          %2249 = vmatprep.subr.bf16.mxu0 0
          %2250 = vmatpush1.bf16.xpose.msra.mxu0 0
          %2251 = vmatprep.subr.bf16.mxu0 0
          %2252 = vmatpush1.bf16.xpose.msra.mxu0 0
          %2253 = vmatprep.subr.bf16.mxu0 0
          %2254 = vmatpush1.bf16.xpose.msra.mxu0 0
          %2255 = vmatprep.subr.bf16.mxu0 0
          %2256 = vmatpush1.bf16.xpose.msra.mxu0 0
          %2257 = vmatprep.subr.bf16.mxu0 0
          %2258 = vmatpush1.bf16.xpose.msra.mxu0 0
          %2259 = vmatprep.subr.bf16.mxu0 0
          %2260 = vmatpush1.bf16.xpose.msra.mxu0 0
          %2261 = vmatprep.subr.bf16.mxu0 0
          %2262 = vmatpush1.bf16.xpose.msra.mxu0 0
          %2263 = vmatprep.subr.bf16.mxu0 0
          %2264 = vmatpush1.bf16.xpose.msra.mxu0 0
          %2265 = vmatprep.subr.bf16.mxu0 0
          %2266 = vmatpush1.bf16.xpose.msra.mxu0 0
          %2267 = vmatprep.subr.bf16.mxu0 0
          %2268 = vmatpush1.bf16.xpose.msra.mxu0 0
          %2269 = vmatprep.subr.bf16.mxu0 0
          %2270 = vmatpush1.bf16.xpose.msra.mxu0 0
          %2271 = vmatprep.subr.bf16.mxu0 0
          %2272 = vmatpush1.bf16.xpose.msra.mxu0 0
          %2273 = vmatprep.mubr.bf16.mxu0 0
          %2274 = vmatmul.mubr.bf16.gmra.mrb[0].mxu0 %v2236
          %v2275 = vpop.f32.mrb[0].mxu0
          %v2276 = vadd.f32 0.0, %v2275
          %v2277 = vpop.f32.mrb[0].mxu0
          %v2278 = vpop.f32.mrb[0].mxu0
          %v2279 = vadd.f32 0.0, %v2278
          %v2280 = vpop.f32.mrb[0].mxu0
          %2281 = vdwg.mxu0
          %2282 = vrot.lane.b32.xlu0 %v938, 120
          %v2283 = vpop.permute.xlu0 %2282
          %2284 = vrot.lane.b32.xlu0 %v938, 88
          %v2285 = vpop.permute.xlu0 %2284
          %v2287 = vsel %vm942, %v2283, 0
          %v2290 = vsel %vm942, %v2285, 0
          %2292 = vmatprep.subr.bf16.mxu0 0
          %2293 = vmatpush1.bf16.xpose.msra.mxu0 %v2290
          %2294 = vmatprep.subr.bf16.mxu0 0
          %2295 = vmatpush1.bf16.xpose.msra.mxu0 0
          %2296 = vmatprep.subr.bf16.mxu0 0
          %2297 = vmatpush1.bf16.xpose.msra.mxu0 0
          %2298 = vmatprep.subr.bf16.mxu0 0
          %2299 = vmatpush1.bf16.xpose.msra.mxu0 0
          %2300 = vmatprep.subr.bf16.mxu0 0
          %2301 = vmatpush1.bf16.xpose.msra.mxu0 0
          %2302 = vmatprep.subr.bf16.mxu0 0
          %2303 = vmatpush1.bf16.xpose.msra.mxu0 0
          %2304 = vmatprep.subr.bf16.mxu0 0
          %2305 = vmatpush1.bf16.xpose.msra.mxu0 0
          %2306 = vmatprep.subr.bf16.mxu0 0
          %2307 = vmatpush1.bf16.xpose.msra.mxu0 0
          %2308 = vmatprep.subr.bf16.mxu0 0
          %2309 = vmatpush1.bf16.xpose.msra.mxu0 0
          %2310 = vmatprep.subr.bf16.mxu0 0
          %2311 = vmatpush1.bf16.xpose.msra.mxu0 0
          %2312 = vmatprep.subr.bf16.mxu0 0
          %2313 = vmatpush1.bf16.xpose.msra.mxu0 0
          %2314 = vmatprep.subr.bf16.mxu0 0
          %2315 = vmatpush1.bf16.xpose.msra.mxu0 0
          %2316 = vmatprep.subr.bf16.mxu0 0
          %2317 = vmatpush1.bf16.xpose.msra.mxu0 0
          %2318 = vmatprep.subr.bf16.mxu0 0
          %2319 = vmatpush1.bf16.xpose.msra.mxu0 0
          %2320 = vmatprep.subr.bf16.mxu0 0
          %2321 = vmatpush1.bf16.xpose.msra.mxu0 0
          %2322 = vmatprep.subr.bf16.mxu0 0
          %2323 = vmatpush1.bf16.xpose.msra.mxu0 0
          %2324 = vmatprep.mubr.bf16.mxu0 0
          %2325 = vmatmul.mubr.bf16.gmra.mrb[0].mxu0 %v2287
          %v2326 = vpop.f32.mrb[0].mxu0
          %v2327 = vadd.f32 0.0, %v2326
          %v2328 = vpop.f32.mrb[0].mxu0
          %v2329 = vpop.f32.mrb[0].mxu0
          %v2330 = vadd.f32 0.0, %v2329
          %v2331 = vpop.f32.mrb[0].mxu0
          %2332 = vdwg.mxu0
          %v2333 = vmul.f32 %v1970, 0.35355338
          %v2334 = vmul.f32 %v1973, 0.35355338
          %v2335 = vmul.f32 %v2021, 0.35355338
          %v2336 = vmul.f32 %v2024, 0.35355338
          %v2337 = vmul.f32 %v2072, 0.35355338
          %v2338 = vmul.f32 %v2075, 0.35355338
          %v2339 = vmul.f32 %v2123, 0.35355338
          %v2340 = vmul.f32 %v2126, 0.35355338
          %v2341 = vmul.f32 %v2174, 0.35355338
          %v2342 = vmul.f32 %v2177, 0.35355338
          %v2343 = vmul.f32 %v2225, 0.35355338
          %v2344 = vmul.f32 %v2228, 0.35355338
          %v2345 = vmul.f32 %v2276, 0.35355338
          %v2346 = vmul.f32 %v2279, 0.35355338
          %v2347 = vmul.f32 %v2327, 0.35355338
          %v2348 = vmul.f32 %v2330, 0.35355338
          %v2349 = vsel %vm1356, %v2333, -inf
          %2350 = vmax.xlane.f32.xlu0 %v2349
          %v2351 = vpop.xlane.xlu0 %2350
          %v2352 = vsel %vm1356, %v2334, -inf
          %2353 = vmax.xlane.f32.xlu0 %v2352
          %v2354 = vpop.xlane.xlu0 %2353
          %v2355 = vsel %vm1356, %v2335, -inf
          %2356 = vmax.xlane.f32.xlu0 %v2355
          %v2357 = vpop.xlane.xlu0 %2356
          %v2358 = vsel %vm1356, %v2336, -inf
          %2359 = vmax.xlane.f32.xlu0 %v2358
          %v2360 = vpop.xlane.xlu0 %2359
          %v2361 = vsel %vm1356, %v2337, -inf
          %2362 = vmax.xlane.f32.xlu0 %v2361
          %v2363 = vpop.xlane.xlu0 %2362
          %v2364 = vsel %vm1356, %v2338, -inf
          %2365 = vmax.xlane.f32.xlu0 %v2364
          %v2366 = vpop.xlane.xlu0 %2365
          %v2367 = vsel %vm1356, %v2339, -inf
          %2368 = vmax.xlane.f32.xlu0 %v2367
          %v2369 = vpop.xlane.xlu0 %2368
          %v2370 = vsel %vm1356, %v2340, -inf
          %2371 = vmax.xlane.f32.xlu0 %v2370
          %v2372 = vpop.xlane.xlu0 %2371
          %v2373 = vsel %vm1356, %v2341, -inf
          %2374 = vmax.xlane.f32.xlu0 %v2373
          %v2375 = vpop.xlane.xlu0 %2374
          %v2376 = vsel %vm1356, %v2342, -inf
          %2377 = vmax.xlane.f32.xlu0 %v2376
          %v2378 = vpop.xlane.xlu0 %2377
          %v2379 = vsel %vm1356, %v2343, -inf
          %2380 = vmax.xlane.f32.xlu0 %v2379
          %v2381 = vpop.xlane.xlu0 %2380
          %v2382 = vsel %vm1356, %v2344, -inf
          %2383 = vmax.xlane.f32.xlu0 %v2382
          %v2384 = vpop.xlane.xlu0 %2383
          %v2385 = vsel %vm1356, %v2345, -inf
          %2386 = vmax.xlane.f32.xlu0 %v2385
          %v2387 = vpop.xlane.xlu0 %2386
          %v2388 = vsel %vm1356, %v2346, -inf
          %2389 = vmax.xlane.f32.xlu0 %v2388
          %v2390 = vpop.xlane.xlu0 %2389
          %v2391 = vsel %vm1356, %v2347, -inf
          %2392 = vmax.xlane.f32.xlu0 %v2391
          %v2393 = vpop.xlane.xlu0 %2392
          %v2394 = vsel %vm1356, %v2348, -inf
          %2395 = vmax.xlane.f32.xlu0 %v2394
          %v2396 = vpop.xlane.xlu0 %2395
          %v2397 = vsub.f32 %v2333, %v2351
          %v2398 = vsub.f32 %v2334, %v2354
          %v2399 = vsub.f32 %v2335, %v2357
          %v2400 = vsub.f32 %v2336, %v2360
          %v2401 = vsub.f32 %v2337, %v2363
          %v2402 = vsub.f32 %v2338, %v2366
          %v2403 = vsub.f32 %v2339, %v2369
          %v2404 = vsub.f32 %v2340, %v2372
          %v2405 = vsub.f32 %v2341, %v2375
          %v2406 = vsub.f32 %v2342, %v2378
          %v2407 = vsub.f32 %v2343, %v2381
          %v2408 = vsub.f32 %v2344, %v2384
          %v2409 = vsub.f32 %v2345, %v2387
          %v2410 = vsub.f32 %v2346, %v2390
          %v2411 = vsub.f32 %v2347, %v2393
          %v2412 = vsub.f32 %v2348, %v2396
          %v2413 = vmul.f32 %v2397, 1.442695
          %v2414 = vpow.pop %v2413
          %v2415 = vmul.f32 %v2398, 1.442695
          %v2416 = vpow.pop %v2415
          %v2417 = vmul.f32 %v2399, 1.442695
          %v2418 = vpow.pop %v2417
          %v2419 = vmul.f32 %v2400, 1.442695
          %v2420 = vpow.pop %v2419
          %v2421 = vmul.f32 %v2401, 1.442695
          %v2422 = vpow.pop %v2421
          %v2423 = vmul.f32 %v2402, 1.442695
          %v2424 = vpow.pop %v2423
          %v2425 = vmul.f32 %v2403, 1.442695
          %v2426 = vpow.pop %v2425
          %v2427 = vmul.f32 %v2404, 1.442695
          %v2428 = vpow.pop %v2427
          %v2429 = vmul.f32 %v2405, 1.442695
          %v2430 = vpow.pop %v2429
          %v2431 = vmul.f32 %v2406, 1.442695
          %v2432 = vpow.pop %v2431
          %v2433 = vmul.f32 %v2407, 1.442695
          %v2434 = vpow.pop %v2433
          %v2435 = vmul.f32 %v2408, 1.442695
          %v2436 = vpow.pop %v2435
          %v2437 = vmul.f32 %v2409, 1.442695
          %v2438 = vpow.pop %v2437
          %v2439 = vmul.f32 %v2410, 1.442695
          %v2440 = vpow.pop %v2439
          %v2441 = vmul.f32 %v2411, 1.442695
          %v2442 = vpow.pop %v2441
          %v2443 = vmul.f32 %v2412, 1.442695
          %v2444 = vpow.pop %v2443
          %v2445 = vsel %vm1356, %v2414, 0.0
          %2446 = vadd.xlane.f32.xlu0 %v2445
          %v2447 = vpop.xlane.xlu0 %2446
          %v2448 = vsel %vm1356, %v2416, 0.0
          %2449 = vadd.xlane.f32.xlu0 %v2448
          %v2450 = vpop.xlane.xlu0 %2449
          %v2451 = vsel %vm1356, %v2418, 0.0
          %2452 = vadd.xlane.f32.xlu0 %v2451
          %v2453 = vpop.xlane.xlu0 %2452
          %v2454 = vsel %vm1356, %v2420, 0.0
          %2455 = vadd.xlane.f32.xlu0 %v2454
          %v2456 = vpop.xlane.xlu0 %2455
          %v2457 = vsel %vm1356, %v2422, 0.0
          %2458 = vadd.xlane.f32.xlu0 %v2457
          %v2459 = vpop.xlane.xlu0 %2458
          %v2460 = vsel %vm1356, %v2424, 0.0
          %2461 = vadd.xlane.f32.xlu0 %v2460
          %v2462 = vpop.xlane.xlu0 %2461
          %v2463 = vsel %vm1356, %v2426, 0.0
          %2464 = vadd.xlane.f32.xlu0 %v2463
          %v2465 = vpop.xlane.xlu0 %2464
          %v2466 = vsel %vm1356, %v2428, 0.0
          %2467 = vadd.xlane.f32.xlu0 %v2466
          %v2468 = vpop.xlane.xlu0 %2467
          %v2469 = vsel %vm1356, %v2430, 0.0
          %2470 = vadd.xlane.f32.xlu0 %v2469
          %v2471 = vpop.xlane.xlu0 %2470
          %v2472 = vsel %vm1356, %v2432, 0.0
          %2473 = vadd.xlane.f32.xlu0 %v2472
          %v2474 = vpop.xlane.xlu0 %2473
          %v2475 = vsel %vm1356, %v2434, 0.0
          %2476 = vadd.xlane.f32.xlu0 %v2475
          %v2477 = vpop.xlane.xlu0 %2476
          %v2478 = vsel %vm1356, %v2436, 0.0
          %2479 = vadd.xlane.f32.xlu0 %v2478
          %v2480 = vpop.xlane.xlu0 %2479
          %v2481 = vsel %vm1356, %v2438, 0.0
          %2482 = vadd.xlane.f32.xlu0 %v2481
          %v2483 = vpop.xlane.xlu0 %2482
          %v2484 = vsel %vm1356, %v2440, 0.0
          %2485 = vadd.xlane.f32.xlu0 %v2484
          %v2486 = vpop.xlane.xlu0 %2485
          %v2487 = vsel %vm1356, %v2442, 0.0
          %2488 = vadd.xlane.f32.xlu0 %v2487
          %v2489 = vpop.xlane.xlu0 %2488
          %v2490 = vsel %vm1356, %v2444, 0.0
          %2491 = vadd.xlane.f32.xlu0 %v2490
          %v2492 = vpop.xlane.xlu0 %2491
          %v2493 = vrcp.pop %v2447
          %v2494 = vrcp.pop %v2450
          %v2495 = vrcp.pop %v2453
          %v2496 = vrcp.pop %v2456
          %v2497 = vrcp.pop %v2459
          %v2498 = vrcp.pop %v2462
          %v2499 = vrcp.pop %v2465
          %v2500 = vrcp.pop %v2468
          %v2501 = vrcp.pop %v2471
          %v2502 = vrcp.pop %v2474
          %v2503 = vrcp.pop %v2477
          %v2504 = vrcp.pop %v2480
          %v2505 = vrcp.pop %v2483
          %v2506 = vrcp.pop %v2486
          %v2507 = vrcp.pop %v2489
          %v2508 = vrcp.pop %v2492
          %v2509 = vmul.f32 %v2414, %v2493
          %v2510 = vmul.f32 %v2416, %v2494
          %v2511 = vmul.f32 %v2418, %v2495
          %v2512 = vmul.f32 %v2420, %v2496
          %v2513 = vmul.f32 %v2422, %v2497
          %v2514 = vmul.f32 %v2424, %v2498
          %v2515 = vmul.f32 %v2426, %v2499
          %v2516 = vmul.f32 %v2428, %v2500
          %v2517 = vmul.f32 %v2430, %v2501
          %v2518 = vmul.f32 %v2432, %v2502
          %v2519 = vmul.f32 %v2434, %v2503
          %v2520 = vmul.f32 %v2436, %v2504
          %v2521 = vmul.f32 %v2438, %v2505
          %v2522 = vmul.f32 %v2440, %v2506
          %v2523 = vmul.f32 %v2442, %v2507
          %v2524 = vmul.f32 %v2444, %v2508
          %v2525 = vpack.c.bf16 %v2510, %v2509
          %v2526 = vpack.c.bf16 %v2512, %v2511
          %v2527 = vpack.c.bf16 %v2514, %v2513
          %v2528 = vpack.c.bf16 %v2516, %v2515
          %v2529 = vpack.c.bf16 %v2518, %v2517
          %v2530 = vpack.c.bf16 %v2520, %v2519
          %v2531 = vpack.c.bf16 %v2522, %v2521
          %v2532 = vpack.c.bf16 %v2524, %v2523
          %2533 = vrot.lane.b32.xlu0 %v931, 56
          %v2534 = vpop.permute.xlu0 %2533
          %v2537 = vsel %vm1356, %v2525, 0
          %2539 = vmatprep.subr.bf16.mxu0 0
          %2540 = vmatpush1.bf16.msra.mxu0 %v2534
          %2541 = vmatprep.subr.bf16.mxu0 0
          %2542 = vmatpush1.bf16.msra.mxu0 0
          %2543 = vmatprep.subr.bf16.mxu0 0
          %2544 = vmatpush1.bf16.msra.mxu0 0
          %2545 = vmatprep.subr.bf16.mxu0 0
          %2546 = vmatpush1.bf16.msra.mxu0 0
          %2547 = vmatprep.subr.bf16.mxu0 0
          %2548 = vmatpush1.bf16.msra.mxu0 0
          %2549 = vmatprep.subr.bf16.mxu0 0
          %2550 = vmatpush1.bf16.msra.mxu0 0
          %2551 = vmatprep.subr.bf16.mxu0 0
          %2552 = vmatpush1.bf16.msra.mxu0 0
          %2553 = vmatprep.subr.bf16.mxu0 0
          %2554 = vmatpush1.bf16.msra.mxu0 0
          %2555 = vmatprep.subr.bf16.mxu0 0
          %2556 = vmatpush1.bf16.msra.mxu0 0
          %2557 = vmatprep.subr.bf16.mxu0 0
          %2558 = vmatpush1.bf16.msra.mxu0 0
          %2559 = vmatprep.subr.bf16.mxu0 0
          %2560 = vmatpush1.bf16.msra.mxu0 0
          %2561 = vmatprep.subr.bf16.mxu0 0
          %2562 = vmatpush1.bf16.msra.mxu0 0
          %2563 = vmatprep.subr.bf16.mxu0 0
          %2564 = vmatpush1.bf16.msra.mxu0 0
          %2565 = vmatprep.subr.bf16.mxu0 0
          %2566 = vmatpush1.bf16.msra.mxu0 0
          %2567 = vmatprep.subr.bf16.mxu0 0
          %2568 = vmatpush1.bf16.msra.mxu0 0
          %2569 = vmatprep.subr.bf16.mxu0 0
          %2570 = vmatpush1.bf16.msra.mxu0 0
          %2571 = vmatprep.mubr.bf16.mxu0 0
          %2572 = vmatmul.mubr.bf16.gmra.mrb[0].mxu0 %v2537
          %v2573 = vpop.f32.mrb[0].mxu0
          %v2574 = vadd.f32 0.0, %v2573
          %v2575 = vpop.f32.mrb[0].mxu0
          %v2576 = vpop.f32.mrb[0].mxu0
          %v2577 = vadd.f32 0.0, %v2576
          %v2578 = vpop.f32.mrb[0].mxu0
          %2579 = vdwg.mxu0
          %2580 = vrot.lane.b32.xlu0 %v932, 56
          %v2581 = vpop.permute.xlu0 %2580
          %v2584 = vsel %vm1356, %v2526, 0
          %2586 = vmatprep.subr.bf16.mxu0 0
          %2587 = vmatpush1.bf16.msra.mxu0 %v2581
          %2588 = vmatprep.subr.bf16.mxu0 0
          %2589 = vmatpush1.bf16.msra.mxu0 0
          %2590 = vmatprep.subr.bf16.mxu0 0
          %2591 = vmatpush1.bf16.msra.mxu0 0
          %2592 = vmatprep.subr.bf16.mxu0 0
          %2593 = vmatpush1.bf16.msra.mxu0 0
          %2594 = vmatprep.subr.bf16.mxu0 0
          %2595 = vmatpush1.bf16.msra.mxu0 0
          %2596 = vmatprep.subr.bf16.mxu0 0
          %2597 = vmatpush1.bf16.msra.mxu0 0
          %2598 = vmatprep.subr.bf16.mxu0 0
          %2599 = vmatpush1.bf16.msra.mxu0 0
          %2600 = vmatprep.subr.bf16.mxu0 0
          %2601 = vmatpush1.bf16.msra.mxu0 0
          %2602 = vmatprep.subr.bf16.mxu0 0
          %2603 = vmatpush1.bf16.msra.mxu0 0
          %2604 = vmatprep.subr.bf16.mxu0 0
          %2605 = vmatpush1.bf16.msra.mxu0 0
          %2606 = vmatprep.subr.bf16.mxu0 0
          %2607 = vmatpush1.bf16.msra.mxu0 0
          %2608 = vmatprep.subr.bf16.mxu0 0
          %2609 = vmatpush1.bf16.msra.mxu0 0
          %2610 = vmatprep.subr.bf16.mxu0 0
          %2611 = vmatpush1.bf16.msra.mxu0 0
          %2612 = vmatprep.subr.bf16.mxu0 0
          %2613 = vmatpush1.bf16.msra.mxu0 0
          %2614 = vmatprep.subr.bf16.mxu0 0
          %2615 = vmatpush1.bf16.msra.mxu0 0
          %2616 = vmatprep.subr.bf16.mxu0 0
          %2617 = vmatpush1.bf16.msra.mxu0 0
          %2618 = vmatprep.mubr.bf16.mxu0 0
          %2619 = vmatmul.mubr.bf16.gmra.mrb[0].mxu0 %v2584
          %v2620 = vpop.f32.mrb[0].mxu0
          %v2621 = vadd.f32 0.0, %v2620
          %v2622 = vpop.f32.mrb[0].mxu0
          %v2623 = vpop.f32.mrb[0].mxu0
          %v2624 = vadd.f32 0.0, %v2623
          %v2625 = vpop.f32.mrb[0].mxu0
          %2626 = vdwg.mxu0
          %2627 = vrot.lane.b32.xlu0 %v933, 56
          %v2628 = vpop.permute.xlu0 %2627
          %v2631 = vsel %vm1356, %v2527, 0
          %2633 = vmatprep.subr.bf16.mxu0 0
          %2634 = vmatpush1.bf16.msra.mxu0 %v2628
          %2635 = vmatprep.subr.bf16.mxu0 0
          %2636 = vmatpush1.bf16.msra.mxu0 0
          %2637 = vmatprep.subr.bf16.mxu0 0
          %2638 = vmatpush1.bf16.msra.mxu0 0
          %2639 = vmatprep.subr.bf16.mxu0 0
          %2640 = vmatpush1.bf16.msra.mxu0 0
          %2641 = vmatprep.subr.bf16.mxu0 0
          %2642 = vmatpush1.bf16.msra.mxu0 0
          %2643 = vmatprep.subr.bf16.mxu0 0
          %2644 = vmatpush1.bf16.msra.mxu0 0
          %2645 = vmatprep.subr.bf16.mxu0 0
          %2646 = vmatpush1.bf16.msra.mxu0 0
          %2647 = vmatprep.subr.bf16.mxu0 0
          %2648 = vmatpush1.bf16.msra.mxu0 0
          %2649 = vmatprep.subr.bf16.mxu0 0
          %2650 = vmatpush1.bf16.msra.mxu0 0
          %2651 = vmatprep.subr.bf16.mxu0 0
          %2652 = vmatpush1.bf16.msra.mxu0 0
          %2653 = vmatprep.subr.bf16.mxu0 0
          %2654 = vmatpush1.bf16.msra.mxu0 0
          %2655 = vmatprep.subr.bf16.mxu0 0
          %2656 = vmatpush1.bf16.msra.mxu0 0
          %2657 = vmatprep.subr.bf16.mxu0 0
          %2658 = vmatpush1.bf16.msra.mxu0 0
          %2659 = vmatprep.subr.bf16.mxu0 0
          %2660 = vmatpush1.bf16.msra.mxu0 0
          %2661 = vmatprep.subr.bf16.mxu0 0
          %2662 = vmatpush1.bf16.msra.mxu0 0
          %2663 = vmatprep.subr.bf16.mxu0 0
          %2664 = vmatpush1.bf16.msra.mxu0 0
          %2665 = vmatprep.mubr.bf16.mxu0 0
          %2666 = vmatmul.mubr.bf16.gmra.mrb[0].mxu0 %v2631
          %v2667 = vpop.f32.mrb[0].mxu0
          %v2668 = vadd.f32 0.0, %v2667
          %v2669 = vpop.f32.mrb[0].mxu0
          %v2670 = vpop.f32.mrb[0].mxu0
          %v2671 = vadd.f32 0.0, %v2670
          %v2672 = vpop.f32.mrb[0].mxu0
          %2673 = vdwg.mxu0
          %2674 = vrot.lane.b32.xlu0 %v934, 56
          %v2675 = vpop.permute.xlu0 %2674
          %v2678 = vsel %vm1356, %v2528, 0
          %2680 = vmatprep.subr.bf16.mxu0 0
          %2681 = vmatpush1.bf16.msra.mxu0 %v2675
          %2682 = vmatprep.subr.bf16.mxu0 0
          %2683 = vmatpush1.bf16.msra.mxu0 0
          %2684 = vmatprep.subr.bf16.mxu0 0
          %2685 = vmatpush1.bf16.msra.mxu0 0
          %2686 = vmatprep.subr.bf16.mxu0 0
          %2687 = vmatpush1.bf16.msra.mxu0 0
          %2688 = vmatprep.subr.bf16.mxu0 0
          %2689 = vmatpush1.bf16.msra.mxu0 0
          %2690 = vmatprep.subr.bf16.mxu0 0
          %2691 = vmatpush1.bf16.msra.mxu0 0
          %2692 = vmatprep.subr.bf16.mxu0 0
          %2693 = vmatpush1.bf16.msra.mxu0 0
          %2694 = vmatprep.subr.bf16.mxu0 0
          %2695 = vmatpush1.bf16.msra.mxu0 0
          %2696 = vmatprep.subr.bf16.mxu0 0
          %2697 = vmatpush1.bf16.msra.mxu0 0
          %2698 = vmatprep.subr.bf16.mxu0 0
          %2699 = vmatpush1.bf16.msra.mxu0 0
          %2700 = vmatprep.subr.bf16.mxu0 0
          %2701 = vmatpush1.bf16.msra.mxu0 0
          %2702 = vmatprep.subr.bf16.mxu0 0
          %2703 = vmatpush1.bf16.msra.mxu0 0
          %2704 = vmatprep.subr.bf16.mxu0 0
          %2705 = vmatpush1.bf16.msra.mxu0 0
          %2706 = vmatprep.subr.bf16.mxu0 0
          %2707 = vmatpush1.bf16.msra.mxu0 0
          %2708 = vmatprep.subr.bf16.mxu0 0
          %2709 = vmatpush1.bf16.msra.mxu0 0
          %2710 = vmatprep.subr.bf16.mxu0 0
          %2711 = vmatpush1.bf16.msra.mxu0 0
          %2712 = vmatprep.mubr.bf16.mxu0 0
          %2713 = vmatmul.mubr.bf16.gmra.mrb[0].mxu0 %v2678
          %v2714 = vpop.f32.mrb[0].mxu0
          %v2715 = vadd.f32 0.0, %v2714
          %v2716 = vpop.f32.mrb[0].mxu0
          %v2717 = vpop.f32.mrb[0].mxu0
          %v2718 = vadd.f32 0.0, %v2717
          %v2719 = vpop.f32.mrb[0].mxu0
          %2720 = vdwg.mxu0
          %2721 = vrot.lane.b32.xlu0 %v935, 56
          %v2722 = vpop.permute.xlu0 %2721
          %v2725 = vsel %vm1356, %v2529, 0
          %2727 = vmatprep.subr.bf16.mxu0 0
          %2728 = vmatpush1.bf16.msra.mxu0 %v2722
          %2729 = vmatprep.subr.bf16.mxu0 0
          %2730 = vmatpush1.bf16.msra.mxu0 0
          %2731 = vmatprep.subr.bf16.mxu0 0
          %2732 = vmatpush1.bf16.msra.mxu0 0
          %2733 = vmatprep.subr.bf16.mxu0 0
          %2734 = vmatpush1.bf16.msra.mxu0 0
          %2735 = vmatprep.subr.bf16.mxu0 0
          %2736 = vmatpush1.bf16.msra.mxu0 0
          %2737 = vmatprep.subr.bf16.mxu0 0
          %2738 = vmatpush1.bf16.msra.mxu0 0
          %2739 = vmatprep.subr.bf16.mxu0 0
          %2740 = vmatpush1.bf16.msra.mxu0 0
          %2741 = vmatprep.subr.bf16.mxu0 0
          %2742 = vmatpush1.bf16.msra.mxu0 0
          %2743 = vmatprep.subr.bf16.mxu0 0
          %2744 = vmatpush1.bf16.msra.mxu0 0
          %2745 = vmatprep.subr.bf16.mxu0 0
          %2746 = vmatpush1.bf16.msra.mxu0 0
          %2747 = vmatprep.subr.bf16.mxu0 0
          %2748 = vmatpush1.bf16.msra.mxu0 0
          %2749 = vmatprep.subr.bf16.mxu0 0
          %2750 = vmatpush1.bf16.msra.mxu0 0
          %2751 = vmatprep.subr.bf16.mxu0 0
          %2752 = vmatpush1.bf16.msra.mxu0 0
          %2753 = vmatprep.subr.bf16.mxu0 0
          %2754 = vmatpush1.bf16.msra.mxu0 0
          %2755 = vmatprep.subr.bf16.mxu0 0
          %2756 = vmatpush1.bf16.msra.mxu0 0
          %2757 = vmatprep.subr.bf16.mxu0 0
          %2758 = vmatpush1.bf16.msra.mxu0 0
          %2759 = vmatprep.mubr.bf16.mxu0 0
          %2760 = vmatmul.mubr.bf16.gmra.mrb[0].mxu0 %v2725
          %v2761 = vpop.f32.mrb[0].mxu0
          %v2762 = vadd.f32 0.0, %v2761
          %v2763 = vpop.f32.mrb[0].mxu0
          %v2764 = vpop.f32.mrb[0].mxu0
          %v2765 = vadd.f32 0.0, %v2764
          %v2766 = vpop.f32.mrb[0].mxu0
          %2767 = vdwg.mxu0
          %2768 = vrot.lane.b32.xlu0 %v936, 56
          %v2769 = vpop.permute.xlu0 %2768
          %v2772 = vsel %vm1356, %v2530, 0
          %2774 = vmatprep.subr.bf16.mxu0 0
          %2775 = vmatpush1.bf16.msra.mxu0 %v2769
          %2776 = vmatprep.subr.bf16.mxu0 0
          %2777 = vmatpush1.bf16.msra.mxu0 0
          %2778 = vmatprep.subr.bf16.mxu0 0
          %2779 = vmatpush1.bf16.msra.mxu0 0
          %2780 = vmatprep.subr.bf16.mxu0 0
          %2781 = vmatpush1.bf16.msra.mxu0 0
          %2782 = vmatprep.subr.bf16.mxu0 0
          %2783 = vmatpush1.bf16.msra.mxu0 0
          %2784 = vmatprep.subr.bf16.mxu0 0
          %2785 = vmatpush1.bf16.msra.mxu0 0
          %2786 = vmatprep.subr.bf16.mxu0 0
          %2787 = vmatpush1.bf16.msra.mxu0 0
          %2788 = vmatprep.subr.bf16.mxu0 0
          %2789 = vmatpush1.bf16.msra.mxu0 0
          %2790 = vmatprep.subr.bf16.mxu0 0
          %2791 = vmatpush1.bf16.msra.mxu0 0
          %2792 = vmatprep.subr.bf16.mxu0 0
          %2793 = vmatpush1.bf16.msra.mxu0 0
          %2794 = vmatprep.subr.bf16.mxu0 0
          %2795 = vmatpush1.bf16.msra.mxu0 0
          %2796 = vmatprep.subr.bf16.mxu0 0
          %2797 = vmatpush1.bf16.msra.mxu0 0
          %2798 = vmatprep.subr.bf16.mxu0 0
          %2799 = vmatpush1.bf16.msra.mxu0 0
          %2800 = vmatprep.subr.bf16.mxu0 0
          %2801 = vmatpush1.bf16.msra.mxu0 0
          %2802 = vmatprep.subr.bf16.mxu0 0
          %2803 = vmatpush1.bf16.msra.mxu0 0
          %2804 = vmatprep.subr.bf16.mxu0 0
          %2805 = vmatpush1.bf16.msra.mxu0 0
          %2806 = vmatprep.mubr.bf16.mxu0 0
          %2807 = vmatmul.mubr.bf16.gmra.mrb[0].mxu0 %v2772
          %v2808 = vpop.f32.mrb[0].mxu0
          %v2809 = vadd.f32 0.0, %v2808
          %v2810 = vpop.f32.mrb[0].mxu0
          %v2811 = vpop.f32.mrb[0].mxu0
          %v2812 = vadd.f32 0.0, %v2811
          %v2813 = vpop.f32.mrb[0].mxu0
          %2814 = vdwg.mxu0
          %2815 = vrot.lane.b32.xlu0 %v937, 56
          %v2816 = vpop.permute.xlu0 %2815
          %v2819 = vsel %vm1356, %v2531, 0
          %2821 = vmatprep.subr.bf16.mxu0 0
          %2822 = vmatpush1.bf16.msra.mxu0 %v2816
          %2823 = vmatprep.subr.bf16.mxu0 0
          %2824 = vmatpush1.bf16.msra.mxu0 0
          %2825 = vmatprep.subr.bf16.mxu0 0
          %2826 = vmatpush1.bf16.msra.mxu0 0
          %2827 = vmatprep.subr.bf16.mxu0 0
          %2828 = vmatpush1.bf16.msra.mxu0 0
          %2829 = vmatprep.subr.bf16.mxu0 0
          %2830 = vmatpush1.bf16.msra.mxu0 0
          %2831 = vmatprep.subr.bf16.mxu0 0
          %2832 = vmatpush1.bf16.msra.mxu0 0
          %2833 = vmatprep.subr.bf16.mxu0 0
          %2834 = vmatpush1.bf16.msra.mxu0 0
          %2835 = vmatprep.subr.bf16.mxu0 0
          %2836 = vmatpush1.bf16.msra.mxu0 0
          %2837 = vmatprep.subr.bf16.mxu0 0
          %2838 = vmatpush1.bf16.msra.mxu0 0
          %2839 = vmatprep.subr.bf16.mxu0 0
          %2840 = vmatpush1.bf16.msra.mxu0 0
          %2841 = vmatprep.subr.bf16.mxu0 0
          %2842 = vmatpush1.bf16.msra.mxu0 0
          %2843 = vmatprep.subr.bf16.mxu0 0
          %2844 = vmatpush1.bf16.msra.mxu0 0
          %2845 = vmatprep.subr.bf16.mxu0 0
          %2846 = vmatpush1.bf16.msra.mxu0 0
          %2847 = vmatprep.subr.bf16.mxu0 0
          %2848 = vmatpush1.bf16.msra.mxu0 0
          %2849 = vmatprep.subr.bf16.mxu0 0
          %2850 = vmatpush1.bf16.msra.mxu0 0
          %2851 = vmatprep.subr.bf16.mxu0 0
          %2852 = vmatpush1.bf16.msra.mxu0 0
          %2853 = vmatprep.mubr.bf16.mxu0 0
          %2854 = vmatmul.mubr.bf16.gmra.mrb[0].mxu0 %v2819
          %v2855 = vpop.f32.mrb[0].mxu0
          %v2856 = vadd.f32 0.0, %v2855
          %v2857 = vpop.f32.mrb[0].mxu0
          %v2858 = vpop.f32.mrb[0].mxu0
          %v2859 = vadd.f32 0.0, %v2858
          %v2860 = vpop.f32.mrb[0].mxu0
          %2861 = vdwg.mxu0
          %2862 = vrot.lane.b32.xlu0 %v938, 56
          %v2863 = vpop.permute.xlu0 %2862
          %v2866 = vsel %vm1356, %v2532, 0
          %2868 = vmatprep.subr.bf16.mxu0 0
          %2869 = vmatpush1.bf16.msra.mxu0 %v2863
          %2870 = vmatprep.subr.bf16.mxu0 0
          %2871 = vmatpush1.bf16.msra.mxu0 0
          %2872 = vmatprep.subr.bf16.mxu0 0
          %2873 = vmatpush1.bf16.msra.mxu0 0
          %2874 = vmatprep.subr.bf16.mxu0 0
          %2875 = vmatpush1.bf16.msra.mxu0 0
          %2876 = vmatprep.subr.bf16.mxu0 0
          %2877 = vmatpush1.bf16.msra.mxu0 0
          %2878 = vmatprep.subr.bf16.mxu0 0
          %2879 = vmatpush1.bf16.msra.mxu0 0
          %2880 = vmatprep.subr.bf16.mxu0 0
          %2881 = vmatpush1.bf16.msra.mxu0 0
          %2882 = vmatprep.subr.bf16.mxu0 0
          %2883 = vmatpush1.bf16.msra.mxu0 0
          %2884 = vmatprep.subr.bf16.mxu0 0
          %2885 = vmatpush1.bf16.msra.mxu0 0
          %2886 = vmatprep.subr.bf16.mxu0 0
          %2887 = vmatpush1.bf16.msra.mxu0 0
          %2888 = vmatprep.subr.bf16.mxu0 0
          %2889 = vmatpush1.bf16.msra.mxu0 0
          %2890 = vmatprep.subr.bf16.mxu0 0
          %2891 = vmatpush1.bf16.msra.mxu0 0
          %2892 = vmatprep.subr.bf16.mxu0 0
          %2893 = vmatpush1.bf16.msra.mxu0 0
          %2894 = vmatprep.subr.bf16.mxu0 0
          %2895 = vmatpush1.bf16.msra.mxu0 0
          %2896 = vmatprep.subr.bf16.mxu0 0
          %2897 = vmatpush1.bf16.msra.mxu0 0
          %2898 = vmatprep.subr.bf16.mxu0 0
          %2899 = vmatpush1.bf16.msra.mxu0 0
          %2900 = vmatprep.mubr.bf16.mxu0 0
          %2901 = vmatmul.mubr.bf16.gmra.mrb[0].mxu0 %v2866
          %v2902 = vpop.f32.mrb[0].mxu0
          %v2903 = vadd.f32 0.0, %v2902
          %v2904 = vpop.f32.mrb[0].mxu0
          %v2905 = vpop.f32.mrb[0].mxu0
          %v2906 = vadd.f32 0.0, %v2905
          %v2907 = vpop.f32.mrb[0].mxu0
          %2908 = vdwg.mxu0
          %v2909 = vpack.c.bf16 %v2577, %v2574
          %v2910 = vpack.c.bf16 %v2624, %v2621
          %v2911 = vpack.c.bf16 %v2671, %v2668
          %v2912 = vpack.c.bf16 %v2718, %v2715
          %v2913 = vpack.c.bf16 %v2765, %v2762
          %v2914 = vpack.c.bf16 %v2812, %v2809
          %v2915 = vpack.c.bf16 %v2859, %v2856
          %v2916 = vpack.c.bf16 %v2906, %v2903
          %v2918 = vsel %vm942, %v2909, 0
          %v2921 = vsel %vm942, %v2910, 0
          %v2924 = vsel %vm942, %v2911, 0
          %v2927 = vsel %vm942, %v2912, 0
          %v2930 = vsel %vm942, %v2913, 0
          %v2933 = vsel %vm942, %v2914, 0
          %v2936 = vsel %vm942, %v2915, 0
          %v2939 = vsel %vm942, %v2916, 0
          %vm2941 = vcmask 1043456
          %v2943 = vsel %vm2941, %v928, 0
          %2945 = vmatprep.subr.bf16.mxu0 0
          %2946 = vmatpush1.bf16.msra.mxu0 %v2943
          %2947 = vmatprep.subr.bf16.mxu0 0
          %2948 = vmatpush1.bf16.msra.mxu0 0
          %2949 = vmatprep.subr.bf16.mxu0 0
          %2950 = vmatpush1.bf16.msra.mxu0 0
          %2951 = vmatprep.subr.bf16.mxu0 0
          %2952 = vmatpush1.bf16.msra.mxu0 0
          %2953 = vmatprep.subr.bf16.mxu0 0
          %2954 = vmatpush1.bf16.msra.mxu0 0
          %2955 = vmatprep.subr.bf16.mxu0 0
          %2956 = vmatpush1.bf16.msra.mxu0 0
          %2957 = vmatprep.subr.bf16.mxu0 0
          %2958 = vmatpush1.bf16.msra.mxu0 0
          %2959 = vmatprep.subr.bf16.mxu0 0
          %2960 = vmatpush1.bf16.msra.mxu0 0
          %2961 = vmatprep.subr.bf16.mxu0 0
          %2962 = vmatpush1.bf16.msra.mxu0 0
          %2963 = vmatprep.subr.bf16.mxu0 0
          %2964 = vmatpush1.bf16.msra.mxu0 0
          %2965 = vmatprep.subr.bf16.mxu0 0
          %2966 = vmatpush1.bf16.msra.mxu0 0
          %2967 = vmatprep.subr.bf16.mxu0 0
          %2968 = vmatpush1.bf16.msra.mxu0 0
          %2969 = vmatprep.subr.bf16.mxu0 0
          %2970 = vmatpush1.bf16.msra.mxu0 0
          %2971 = vmatprep.subr.bf16.mxu0 0
          %2972 = vmatpush1.bf16.msra.mxu0 0
          %2973 = vmatprep.subr.bf16.mxu0 0
          %2974 = vmatpush1.bf16.msra.mxu0 0
          %2975 = vmatprep.subr.bf16.mxu0 0
          %2976 = vmatpush1.bf16.msra.mxu0 0
          %2977 = vmatprep.mubr.bf16.mxu0 0
          %2978 = vmatmul.mubr.bf16.gmra.mrb[0].mxu0 %v2918
          %v2979 = vpop.f32.mrb[0].mxu0
          %v2980 = vadd.f32 0.0, %v2979
          %v2981 = vpop.f32.mrb[0].mxu0
          %v2982 = vpop.f32.mrb[0].mxu0
          %v2983 = vadd.f32 0.0, %v2982
          %v2984 = vpop.f32.mrb[0].mxu0
          %2985 = vmatprep.mubr.bf16.mxu0 0
          %2986 = vmatmul.mubr.bf16.gmra.mrb[0].mxu0 %v2921
          %v2987 = vpop.f32.mrb[0].mxu0
          %v2988 = vadd.f32 0.0, %v2987
          %v2989 = vpop.f32.mrb[0].mxu0
          %v2990 = vpop.f32.mrb[0].mxu0
          %v2991 = vadd.f32 0.0, %v2990
          %v2992 = vpop.f32.mrb[0].mxu0
          %2993 = vmatprep.mubr.bf16.mxu0 0
          %2994 = vmatmul.mubr.bf16.gmra.mrb[0].mxu0 %v2924
          %v2995 = vpop.f32.mrb[0].mxu0
          %v2996 = vadd.f32 0.0, %v2995
          %v2997 = vpop.f32.mrb[0].mxu0
          %v2998 = vpop.f32.mrb[0].mxu0
          %v2999 = vadd.f32 0.0, %v2998
          %v3000 = vpop.f32.mrb[0].mxu0
          %3001 = vmatprep.mubr.bf16.mxu0 0
          %3002 = vmatmul.mubr.bf16.gmra.mrb[0].mxu0 %v2927
          %v3003 = vpop.f32.mrb[0].mxu0
          %v3004 = vadd.f32 0.0, %v3003
          %v3005 = vpop.f32.mrb[0].mxu0
          %v3006 = vpop.f32.mrb[0].mxu0
          %v3007 = vadd.f32 0.0, %v3006
          %v3008 = vpop.f32.mrb[0].mxu0
          %3009 = vmatprep.mubr.bf16.mxu0 0
          %3010 = vmatmul.mubr.bf16.gmra.mrb[0].mxu0 %v2930
          %v3011 = vpop.f32.mrb[0].mxu0
          %v3012 = vadd.f32 0.0, %v3011
          %v3013 = vpop.f32.mrb[0].mxu0
          %v3014 = vpop.f32.mrb[0].mxu0
          %v3015 = vadd.f32 0.0, %v3014
          %v3016 = vpop.f32.mrb[0].mxu0
          %3017 = vmatprep.mubr.bf16.mxu0 0
          %3018 = vmatmul.mubr.bf16.gmra.mrb[0].mxu0 %v2933
          %v3019 = vpop.f32.mrb[0].mxu0
          %v3020 = vadd.f32 0.0, %v3019
          %v3021 = vpop.f32.mrb[0].mxu0
          %v3022 = vpop.f32.mrb[0].mxu0
          %v3023 = vadd.f32 0.0, %v3022
          %v3024 = vpop.f32.mrb[0].mxu0
          %3025 = vmatprep.mubr.bf16.mxu0 0
          %3026 = vmatmul.mubr.bf16.gmra.mrb[0].mxu0 %v2936
          %v3027 = vpop.f32.mrb[0].mxu0
          %v3028 = vadd.f32 0.0, %v3027
          %v3029 = vpop.f32.mrb[0].mxu0
          %v3030 = vpop.f32.mrb[0].mxu0
          %v3031 = vadd.f32 0.0, %v3030
          %v3032 = vpop.f32.mrb[0].mxu0
          %3033 = vmatprep.mubr.bf16.mxu0 0
          %3034 = vmatmul.mubr.bf16.gmra.mrb[0].mxu0 %v2939
          %v3035 = vpop.f32.mrb[0].mxu0
          %v3036 = vadd.f32 0.0, %v3035
          %v3037 = vpop.f32.mrb[0].mxu0
          %v3038 = vpop.f32.mrb[0].mxu0
          %v3039 = vadd.f32 0.0, %v3038
          %v3040 = vpop.f32.mrb[0].mxu0
          %3041 = vdwg.mxu0
          %v3043 = vsel %vm942, %v1917, 0
          %v3046 = vsel %vm942, %v1918, 0
          %v3049 = vsel %vm942, %v1919, 0
          %v3052 = vsel %vm942, %v1920, 0
          %v3055 = vsel %vm942, %v1921, 0
          %v3058 = vsel %vm942, %v1922, 0
          %v3061 = vsel %vm942, %v1923, 0
          %v3064 = vsel %vm942, %v1924, 0
          %v3067 = vsel %vm2941, %v927, 0
          %3069 = vmatprep.subr.bf16.mxu0 0
          %3070 = vmatpush1.bf16.msra.mxu0 %v3067
          %3071 = vmatprep.subr.bf16.mxu0 0
          %3072 = vmatpush1.bf16.msra.mxu0 0
          %3073 = vmatprep.subr.bf16.mxu0 0
          %3074 = vmatpush1.bf16.msra.mxu0 0
          %3075 = vmatprep.subr.bf16.mxu0 0
          %3076 = vmatpush1.bf16.msra.mxu0 0
          %3077 = vmatprep.subr.bf16.mxu0 0
          %3078 = vmatpush1.bf16.msra.mxu0 0
          %3079 = vmatprep.subr.bf16.mxu0 0
          %3080 = vmatpush1.bf16.msra.mxu0 0
          %3081 = vmatprep.subr.bf16.mxu0 0
          %3082 = vmatpush1.bf16.msra.mxu0 0
          %3083 = vmatprep.subr.bf16.mxu0 0
          %3084 = vmatpush1.bf16.msra.mxu0 0
          %3085 = vmatprep.subr.bf16.mxu0 0
          %3086 = vmatpush1.bf16.msra.mxu0 0
          %3087 = vmatprep.subr.bf16.mxu0 0
          %3088 = vmatpush1.bf16.msra.mxu0 0
          %3089 = vmatprep.subr.bf16.mxu0 0
          %3090 = vmatpush1.bf16.msra.mxu0 0
          %3091 = vmatprep.subr.bf16.mxu0 0
          %3092 = vmatpush1.bf16.msra.mxu0 0
          %3093 = vmatprep.subr.bf16.mxu0 0
          %3094 = vmatpush1.bf16.msra.mxu0 0
          %3095 = vmatprep.subr.bf16.mxu0 0
          %3096 = vmatpush1.bf16.msra.mxu0 0
          %3097 = vmatprep.subr.bf16.mxu0 0
          %3098 = vmatpush1.bf16.msra.mxu0 0
          %3099 = vmatprep.subr.bf16.mxu0 0
          %3100 = vmatpush1.bf16.msra.mxu0 0
          %3101 = vmatprep.mubr.bf16.mxu0 0
          %3102 = vmatmul.mubr.bf16.gmra.mrb[0].mxu0 %v3043
          %v3103 = vpop.f32.mrb[0].mxu0
          %v3104 = vadd.f32 %v2980, %v3103
          %v3105 = vpop.f32.mrb[0].mxu0
          %v3106 = vpop.f32.mrb[0].mxu0
          %v3107 = vadd.f32 %v2983, %v3106
          %v3108 = vpop.f32.mrb[0].mxu0
          %3109 = vmatprep.mubr.bf16.mxu0 0
          %3110 = vmatmul.mubr.bf16.gmra.mrb[0].mxu0 %v3046
          %v3111 = vpop.f32.mrb[0].mxu0
          %v3112 = vadd.f32 %v2988, %v3111
          %v3113 = vpop.f32.mrb[0].mxu0
          %v3114 = vpop.f32.mrb[0].mxu0
          %v3115 = vadd.f32 %v2991, %v3114
          %v3116 = vpop.f32.mrb[0].mxu0
          %3117 = vmatprep.mubr.bf16.mxu0 0
          %3118 = vmatmul.mubr.bf16.gmra.mrb[0].mxu0 %v3049
          %v3119 = vpop.f32.mrb[0].mxu0
          %v3120 = vadd.f32 %v2996, %v3119
          %v3121 = vpop.f32.mrb[0].mxu0
          %v3122 = vpop.f32.mrb[0].mxu0
          %v3123 = vadd.f32 %v2999, %v3122
          %v3124 = vpop.f32.mrb[0].mxu0
          %3125 = vmatprep.mubr.bf16.mxu0 0
          %3126 = vmatmul.mubr.bf16.gmra.mrb[0].mxu0 %v3052
          %v3127 = vpop.f32.mrb[0].mxu0
          %v3128 = vadd.f32 %v3004, %v3127
          %v3129 = vpop.f32.mrb[0].mxu0
          %v3130 = vpop.f32.mrb[0].mxu0
          %v3131 = vadd.f32 %v3007, %v3130
          %v3132 = vpop.f32.mrb[0].mxu0
          %3133 = vmatprep.mubr.bf16.mxu0 0
          %3134 = vmatmul.mubr.bf16.gmra.mrb[0].mxu0 %v3055
          %v3135 = vpop.f32.mrb[0].mxu0
          %v3136 = vadd.f32 %v3012, %v3135
          %v3137 = vpop.f32.mrb[0].mxu0
          %v3138 = vpop.f32.mrb[0].mxu0
          %v3139 = vadd.f32 %v3015, %v3138
          %v3140 = vpop.f32.mrb[0].mxu0
          %3141 = vmatprep.mubr.bf16.mxu0 0
          %3142 = vmatmul.mubr.bf16.gmra.mrb[0].mxu0 %v3058
          %v3143 = vpop.f32.mrb[0].mxu0
          %v3144 = vadd.f32 %v3020, %v3143
          %v3145 = vpop.f32.mrb[0].mxu0
          %v3146 = vpop.f32.mrb[0].mxu0
          %v3147 = vadd.f32 %v3023, %v3146
          %v3148 = vpop.f32.mrb[0].mxu0
          %3149 = vmatprep.mubr.bf16.mxu0 0
          %3150 = vmatmul.mubr.bf16.gmra.mrb[0].mxu0 %v3061
          %v3151 = vpop.f32.mrb[0].mxu0
          %v3152 = vadd.f32 %v3028, %v3151
          %v3153 = vpop.f32.mrb[0].mxu0
          %v3154 = vpop.f32.mrb[0].mxu0
          %v3155 = vadd.f32 %v3031, %v3154
          %v3156 = vpop.f32.mrb[0].mxu0
          %3157 = vmatprep.mubr.bf16.mxu0 0
          %3158 = vmatmul.mubr.bf16.gmra.mrb[0].mxu0 %v3064
          %v3159 = vpop.f32.mrb[0].mxu0
          %v3160 = vadd.f32 %v3036, %v3159
          %v3161 = vpop.f32.mrb[0].mxu0
          %v3162 = vpop.f32.mrb[0].mxu0
          %v3163 = vadd.f32 %v3039, %v3162
          %v3164 = vpop.f32.mrb[0].mxu0
          %3165 = vdwg.mxu0
          %3166 = vrot.lane.b32.xlu0 %v931, 112
          %v3167 = vpop.permute.xlu0 %3166
          %3168 = vrot.lane.b32.xlu0 %v931, 80
          %v3169 = vpop.permute.xlu0 %3168
          %v3171 = vsel %vm942, %v3167, 0
          %v3174 = vsel %vm942, %v3169, 0
          %3176 = vmatprep.subr.bf16.mxu0 0
          %3177 = vmatpush1.bf16.xpose.msra.mxu0 %v3174
          %3178 = vmatprep.subr.bf16.mxu0 0
          %3179 = vmatpush1.bf16.xpose.msra.mxu0 0
          %3180 = vmatprep.subr.bf16.mxu0 0
          %3181 = vmatpush1.bf16.xpose.msra.mxu0 0
          %3182 = vmatprep.subr.bf16.mxu0 0
          %3183 = vmatpush1.bf16.xpose.msra.mxu0 0
          %3184 = vmatprep.subr.bf16.mxu0 0
          %3185 = vmatpush1.bf16.xpose.msra.mxu0 0
          %3186 = vmatprep.subr.bf16.mxu0 0
          %3187 = vmatpush1.bf16.xpose.msra.mxu0 0
          %3188 = vmatprep.subr.bf16.mxu0 0
          %3189 = vmatpush1.bf16.xpose.msra.mxu0 0
          %3190 = vmatprep.subr.bf16.mxu0 0
          %3191 = vmatpush1.bf16.xpose.msra.mxu0 0
          %3192 = vmatprep.subr.bf16.mxu0 0
          %3193 = vmatpush1.bf16.xpose.msra.mxu0 0
          %3194 = vmatprep.subr.bf16.mxu0 0
          %3195 = vmatpush1.bf16.xpose.msra.mxu0 0
          %3196 = vmatprep.subr.bf16.mxu0 0
          %3197 = vmatpush1.bf16.xpose.msra.mxu0 0
          %3198 = vmatprep.subr.bf16.mxu0 0
          %3199 = vmatpush1.bf16.xpose.msra.mxu0 0
          %3200 = vmatprep.subr.bf16.mxu0 0
          %3201 = vmatpush1.bf16.xpose.msra.mxu0 0
          %3202 = vmatprep.subr.bf16.mxu0 0
          %3203 = vmatpush1.bf16.xpose.msra.mxu0 0
          %3204 = vmatprep.subr.bf16.mxu0 0
          %3205 = vmatpush1.bf16.xpose.msra.mxu0 0
          %3206 = vmatprep.subr.bf16.mxu0 0
          %3207 = vmatpush1.bf16.xpose.msra.mxu0 0
          %3208 = vmatprep.mubr.bf16.mxu0 0
          %3209 = vmatmul.mubr.bf16.gmra.mrb[0].mxu0 %v3171
          %v3210 = vpop.f32.mrb[0].mxu0
          %v3211 = vadd.f32 0.0, %v3210
          %v3212 = vpop.f32.mrb[0].mxu0
          %v3213 = vpop.f32.mrb[0].mxu0
          %v3214 = vadd.f32 0.0, %v3213
          %v3215 = vpop.f32.mrb[0].mxu0
          %3216 = vdwg.mxu0
          %3217 = vrot.lane.b32.xlu0 %v932, 112
          %v3218 = vpop.permute.xlu0 %3217
          %3219 = vrot.lane.b32.xlu0 %v932, 80
          %v3220 = vpop.permute.xlu0 %3219
          %v3222 = vsel %vm942, %v3218, 0
          %v3225 = vsel %vm942, %v3220, 0
          %3227 = vmatprep.subr.bf16.mxu0 0
          %3228 = vmatpush1.bf16.xpose.msra.mxu0 %v3225
          %3229 = vmatprep.subr.bf16.mxu0 0
          %3230 = vmatpush1.bf16.xpose.msra.mxu0 0
          %3231 = vmatprep.subr.bf16.mxu0 0
          %3232 = vmatpush1.bf16.xpose.msra.mxu0 0
          %3233 = vmatprep.subr.bf16.mxu0 0
          %3234 = vmatpush1.bf16.xpose.msra.mxu0 0
          %3235 = vmatprep.subr.bf16.mxu0 0
          %3236 = vmatpush1.bf16.xpose.msra.mxu0 0
          %3237 = vmatprep.subr.bf16.mxu0 0
          %3238 = vmatpush1.bf16.xpose.msra.mxu0 0
          %3239 = vmatprep.subr.bf16.mxu0 0
          %3240 = vmatpush1.bf16.xpose.msra.mxu0 0
          %3241 = vmatprep.subr.bf16.mxu0 0
          %3242 = vmatpush1.bf16.xpose.msra.mxu0 0
          %3243 = vmatprep.subr.bf16.mxu0 0
          %3244 = vmatpush1.bf16.xpose.msra.mxu0 0
          %3245 = vmatprep.subr.bf16.mxu0 0
          %3246 = vmatpush1.bf16.xpose.msra.mxu0 0
          %3247 = vmatprep.subr.bf16.mxu0 0
          %3248 = vmatpush1.bf16.xpose.msra.mxu0 0
          %3249 = vmatprep.subr.bf16.mxu0 0
          %3250 = vmatpush1.bf16.xpose.msra.mxu0 0
          %3251 = vmatprep.subr.bf16.mxu0 0
          %3252 = vmatpush1.bf16.xpose.msra.mxu0 0
          %3253 = vmatprep.subr.bf16.mxu0 0
          %3254 = vmatpush1.bf16.xpose.msra.mxu0 0
          %3255 = vmatprep.subr.bf16.mxu0 0
          %3256 = vmatpush1.bf16.xpose.msra.mxu0 0
          %3257 = vmatprep.subr.bf16.mxu0 0
          %3258 = vmatpush1.bf16.xpose.msra.mxu0 0
          %3259 = vmatprep.mubr.bf16.mxu0 0
          %3260 = vmatmul.mubr.bf16.gmra.mrb[0].mxu0 %v3222
          %v3261 = vpop.f32.mrb[0].mxu0
          %v3262 = vadd.f32 0.0, %v3261
          %v3263 = vpop.f32.mrb[0].mxu0
          %v3264 = vpop.f32.mrb[0].mxu0
          %v3265 = vadd.f32 0.0, %v3264
          %v3266 = vpop.f32.mrb[0].mxu0
          %3267 = vdwg.mxu0
          %3268 = vrot.lane.b32.xlu0 %v933, 112
          %v3269 = vpop.permute.xlu0 %3268
          %3270 = vrot.lane.b32.xlu0 %v933, 80
          %v3271 = vpop.permute.xlu0 %3270
          %v3273 = vsel %vm942, %v3269, 0
          %v3276 = vsel %vm942, %v3271, 0
          %3278 = vmatprep.subr.bf16.mxu0 0
          %3279 = vmatpush1.bf16.xpose.msra.mxu0 %v3276
          %3280 = vmatprep.subr.bf16.mxu0 0
          %3281 = vmatpush1.bf16.xpose.msra.mxu0 0
          %3282 = vmatprep.subr.bf16.mxu0 0
          %3283 = vmatpush1.bf16.xpose.msra.mxu0 0
          %3284 = vmatprep.subr.bf16.mxu0 0
          %3285 = vmatpush1.bf16.xpose.msra.mxu0 0
          %3286 = vmatprep.subr.bf16.mxu0 0
          %3287 = vmatpush1.bf16.xpose.msra.mxu0 0
          %3288 = vmatprep.subr.bf16.mxu0 0
          %3289 = vmatpush1.bf16.xpose.msra.mxu0 0
          %3290 = vmatprep.subr.bf16.mxu0 0
          %3291 = vmatpush1.bf16.xpose.msra.mxu0 0
          %3292 = vmatprep.subr.bf16.mxu0 0
          %3293 = vmatpush1.bf16.xpose.msra.mxu0 0
          %3294 = vmatprep.subr.bf16.mxu0 0
          %3295 = vmatpush1.bf16.xpose.msra.mxu0 0
          %3296 = vmatprep.subr.bf16.mxu0 0
          %3297 = vmatpush1.bf16.xpose.msra.mxu0 0
          %3298 = vmatprep.subr.bf16.mxu0 0
          %3299 = vmatpush1.bf16.xpose.msra.mxu0 0
          %3300 = vmatprep.subr.bf16.mxu0 0
          %3301 = vmatpush1.bf16.xpose.msra.mxu0 0
          %3302 = vmatprep.subr.bf16.mxu0 0
          %3303 = vmatpush1.bf16.xpose.msra.mxu0 0
          %3304 = vmatprep.subr.bf16.mxu0 0
          %3305 = vmatpush1.bf16.xpose.msra.mxu0 0
          %3306 = vmatprep.subr.bf16.mxu0 0
          %3307 = vmatpush1.bf16.xpose.msra.mxu0 0
          %3308 = vmatprep.subr.bf16.mxu0 0
          %3309 = vmatpush1.bf16.xpose.msra.mxu0 0
          %3310 = vmatprep.mubr.bf16.mxu0 0
          %3311 = vmatmul.mubr.bf16.gmra.mrb[0].mxu0 %v3273
          %v3312 = vpop.f32.mrb[0].mxu0
          %v3313 = vadd.f32 0.0, %v3312
          %v3314 = vpop.f32.mrb[0].mxu0
          %v3315 = vpop.f32.mrb[0].mxu0
          %v3316 = vadd.f32 0.0, %v3315
          %v3317 = vpop.f32.mrb[0].mxu0
          %3318 = vdwg.mxu0
          %3319 = vrot.lane.b32.xlu0 %v934, 112
          %v3320 = vpop.permute.xlu0 %3319
          %3321 = vrot.lane.b32.xlu0 %v934, 80
          %v3322 = vpop.permute.xlu0 %3321
          %v3324 = vsel %vm942, %v3320, 0
          %v3327 = vsel %vm942, %v3322, 0
          %3329 = vmatprep.subr.bf16.mxu0 0
          %3330 = vmatpush1.bf16.xpose.msra.mxu0 %v3327
          %3331 = vmatprep.subr.bf16.mxu0 0
          %3332 = vmatpush1.bf16.xpose.msra.mxu0 0
          %3333 = vmatprep.subr.bf16.mxu0 0
          %3334 = vmatpush1.bf16.xpose.msra.mxu0 0
          %3335 = vmatprep.subr.bf16.mxu0 0
          %3336 = vmatpush1.bf16.xpose.msra.mxu0 0
          %3337 = vmatprep.subr.bf16.mxu0 0
          %3338 = vmatpush1.bf16.xpose.msra.mxu0 0
          %3339 = vmatprep.subr.bf16.mxu0 0
          %3340 = vmatpush1.bf16.xpose.msra.mxu0 0
          %3341 = vmatprep.subr.bf16.mxu0 0
          %3342 = vmatpush1.bf16.xpose.msra.mxu0 0
          %3343 = vmatprep.subr.bf16.mxu0 0
          %3344 = vmatpush1.bf16.xpose.msra.mxu0 0
          %3345 = vmatprep.subr.bf16.mxu0 0
          %3346 = vmatpush1.bf16.xpose.msra.mxu0 0
          %3347 = vmatprep.subr.bf16.mxu0 0
          %3348 = vmatpush1.bf16.xpose.msra.mxu0 0
          %3349 = vmatprep.subr.bf16.mxu0 0
          %3350 = vmatpush1.bf16.xpose.msra.mxu0 0
          %3351 = vmatprep.subr.bf16.mxu0 0
          %3352 = vmatpush1.bf16.xpose.msra.mxu0 0
          %3353 = vmatprep.subr.bf16.mxu0 0
          %3354 = vmatpush1.bf16.xpose.msra.mxu0 0
          %3355 = vmatprep.subr.bf16.mxu0 0
          %3356 = vmatpush1.bf16.xpose.msra.mxu0 0
          %3357 = vmatprep.subr.bf16.mxu0 0
          %3358 = vmatpush1.bf16.xpose.msra.mxu0 0
          %3359 = vmatprep.subr.bf16.mxu0 0
          %3360 = vmatpush1.bf16.xpose.msra.mxu0 0
          %3361 = vmatprep.mubr.bf16.mxu0 0
          %3362 = vmatmul.mubr.bf16.gmra.mrb[0].mxu0 %v3324
          %v3363 = vpop.f32.mrb[0].mxu0
          %v3364 = vadd.f32 0.0, %v3363
          %v3365 = vpop.f32.mrb[0].mxu0
          %v3366 = vpop.f32.mrb[0].mxu0
          %v3367 = vadd.f32 0.0, %v3366
          %v3368 = vpop.f32.mrb[0].mxu0
          %3369 = vdwg.mxu0
          %3370 = vrot.lane.b32.xlu0 %v935, 112
          %v3371 = vpop.permute.xlu0 %3370
          %3372 = vrot.lane.b32.xlu0 %v935, 80
          %v3373 = vpop.permute.xlu0 %3372
          %v3375 = vsel %vm942, %v3371, 0
          %v3378 = vsel %vm942, %v3373, 0
          %3380 = vmatprep.subr.bf16.mxu0 0
          %3381 = vmatpush1.bf16.xpose.msra.mxu0 %v3378
          %3382 = vmatprep.subr.bf16.mxu0 0
          %3383 = vmatpush1.bf16.xpose.msra.mxu0 0
          %3384 = vmatprep.subr.bf16.mxu0 0
          %3385 = vmatpush1.bf16.xpose.msra.mxu0 0
          %3386 = vmatprep.subr.bf16.mxu0 0
          %3387 = vmatpush1.bf16.xpose.msra.mxu0 0
          %3388 = vmatprep.subr.bf16.mxu0 0
          %3389 = vmatpush1.bf16.xpose.msra.mxu0 0
          %3390 = vmatprep.subr.bf16.mxu0 0
          %3391 = vmatpush1.bf16.xpose.msra.mxu0 0
          %3392 = vmatprep.subr.bf16.mxu0 0
          %3393 = vmatpush1.bf16.xpose.msra.mxu0 0
          %3394 = vmatprep.subr.bf16.mxu0 0
          %3395 = vmatpush1.bf16.xpose.msra.mxu0 0
          %3396 = vmatprep.subr.bf16.mxu0 0
          %3397 = vmatpush1.bf16.xpose.msra.mxu0 0
          %3398 = vmatprep.subr.bf16.mxu0 0
          %3399 = vmatpush1.bf16.xpose.msra.mxu0 0
          %3400 = vmatprep.subr.bf16.mxu0 0
          %3401 = vmatpush1.bf16.xpose.msra.mxu0 0
          %3402 = vmatprep.subr.bf16.mxu0 0
          %3403 = vmatpush1.bf16.xpose.msra.mxu0 0
          %3404 = vmatprep.subr.bf16.mxu0 0
          %3405 = vmatpush1.bf16.xpose.msra.mxu0 0
          %3406 = vmatprep.subr.bf16.mxu0 0
          %3407 = vmatpush1.bf16.xpose.msra.mxu0 0
          %3408 = vmatprep.subr.bf16.mxu0 0
          %3409 = vmatpush1.bf16.xpose.msra.mxu0 0
          %3410 = vmatprep.subr.bf16.mxu0 0
          %3411 = vmatpush1.bf16.xpose.msra.mxu0 0
          %3412 = vmatprep.mubr.bf16.mxu0 0
          %3413 = vmatmul.mubr.bf16.gmra.mrb[0].mxu0 %v3375
          %v3414 = vpop.f32.mrb[0].mxu0
          %v3415 = vadd.f32 0.0, %v3414
          %v3416 = vpop.f32.mrb[0].mxu0
          %v3417 = vpop.f32.mrb[0].mxu0
          %v3418 = vadd.f32 0.0, %v3417
          %v3419 = vpop.f32.mrb[0].mxu0
          %3420 = vdwg.mxu0
          %3421 = vrot.lane.b32.xlu0 %v936, 112
          %v3422 = vpop.permute.xlu0 %3421
          %3423 = vrot.lane.b32.xlu0 %v936, 80
          %v3424 = vpop.permute.xlu0 %3423
          %v3426 = vsel %vm942, %v3422, 0
          %v3429 = vsel %vm942, %v3424, 0
          %3431 = vmatprep.subr.bf16.mxu0 0
          %3432 = vmatpush1.bf16.xpose.msra.mxu0 %v3429
          %3433 = vmatprep.subr.bf16.mxu0 0
          %3434 = vmatpush1.bf16.xpose.msra.mxu0 0
          %3435 = vmatprep.subr.bf16.mxu0 0
          %3436 = vmatpush1.bf16.xpose.msra.mxu0 0
          %3437 = vmatprep.subr.bf16.mxu0 0
          %3438 = vmatpush1.bf16.xpose.msra.mxu0 0
          %3439 = vmatprep.subr.bf16.mxu0 0
          %3440 = vmatpush1.bf16.xpose.msra.mxu0 0
          %3441 = vmatprep.subr.bf16.mxu0 0
          %3442 = vmatpush1.bf16.xpose.msra.mxu0 0
          %3443 = vmatprep.subr.bf16.mxu0 0
          %3444 = vmatpush1.bf16.xpose.msra.mxu0 0
          %3445 = vmatprep.subr.bf16.mxu0 0
          %3446 = vmatpush1.bf16.xpose.msra.mxu0 0
          %3447 = vmatprep.subr.bf16.mxu0 0
          %3448 = vmatpush1.bf16.xpose.msra.mxu0 0
          %3449 = vmatprep.subr.bf16.mxu0 0
          %3450 = vmatpush1.bf16.xpose.msra.mxu0 0
          %3451 = vmatprep.subr.bf16.mxu0 0
          %3452 = vmatpush1.bf16.xpose.msra.mxu0 0
          %3453 = vmatprep.subr.bf16.mxu0 0
          %3454 = vmatpush1.bf16.xpose.msra.mxu0 0
          %3455 = vmatprep.subr.bf16.mxu0 0
          %3456 = vmatpush1.bf16.xpose.msra.mxu0 0
          %3457 = vmatprep.subr.bf16.mxu0 0
          %3458 = vmatpush1.bf16.xpose.msra.mxu0 0
          %3459 = vmatprep.subr.bf16.mxu0 0
          %3460 = vmatpush1.bf16.xpose.msra.mxu0 0
          %3461 = vmatprep.subr.bf16.mxu0 0
          %3462 = vmatpush1.bf16.xpose.msra.mxu0 0
          %3463 = vmatprep.mubr.bf16.mxu0 0
          %3464 = vmatmul.mubr.bf16.gmra.mrb[0].mxu0 %v3426
          %v3465 = vpop.f32.mrb[0].mxu0
          %v3466 = vadd.f32 0.0, %v3465
          %v3467 = vpop.f32.mrb[0].mxu0
          %v3468 = vpop.f32.mrb[0].mxu0
          %v3469 = vadd.f32 0.0, %v3468
          %v3470 = vpop.f32.mrb[0].mxu0
          %3471 = vdwg.mxu0
          %3472 = vrot.lane.b32.xlu0 %v937, 112
          %v3473 = vpop.permute.xlu0 %3472
          %3474 = vrot.lane.b32.xlu0 %v937, 80
          %v3475 = vpop.permute.xlu0 %3474
          %v3477 = vsel %vm942, %v3473, 0
          %v3480 = vsel %vm942, %v3475, 0
          %3482 = vmatprep.subr.bf16.mxu0 0
          %3483 = vmatpush1.bf16.xpose.msra.mxu0 %v3480
          %3484 = vmatprep.subr.bf16.mxu0 0
          %3485 = vmatpush1.bf16.xpose.msra.mxu0 0
          %3486 = vmatprep.subr.bf16.mxu0 0
          %3487 = vmatpush1.bf16.xpose.msra.mxu0 0
          %3488 = vmatprep.subr.bf16.mxu0 0
          %3489 = vmatpush1.bf16.xpose.msra.mxu0 0
          %3490 = vmatprep.subr.bf16.mxu0 0
          %3491 = vmatpush1.bf16.xpose.msra.mxu0 0
          %3492 = vmatprep.subr.bf16.mxu0 0
          %3493 = vmatpush1.bf16.xpose.msra.mxu0 0
          %3494 = vmatprep.subr.bf16.mxu0 0
          %3495 = vmatpush1.bf16.xpose.msra.mxu0 0
          %3496 = vmatprep.subr.bf16.mxu0 0
          %3497 = vmatpush1.bf16.xpose.msra.mxu0 0
          %3498 = vmatprep.subr.bf16.mxu0 0
          %3499 = vmatpush1.bf16.xpose.msra.mxu0 0
          %3500 = vmatprep.subr.bf16.mxu0 0
          %3501 = vmatpush1.bf16.xpose.msra.mxu0 0
          %3502 = vmatprep.subr.bf16.mxu0 0
          %3503 = vmatpush1.bf16.xpose.msra.mxu0 0
          %3504 = vmatprep.subr.bf16.mxu0 0
          %3505 = vmatpush1.bf16.xpose.msra.mxu0 0
          %3506 = vmatprep.subr.bf16.mxu0 0
          %3507 = vmatpush1.bf16.xpose.msra.mxu0 0
          %3508 = vmatprep.subr.bf16.mxu0 0
          %3509 = vmatpush1.bf16.xpose.msra.mxu0 0
          %3510 = vmatprep.subr.bf16.mxu0 0
          %3511 = vmatpush1.bf16.xpose.msra.mxu0 0
          %3512 = vmatprep.subr.bf16.mxu0 0
          %3513 = vmatpush1.bf16.xpose.msra.mxu0 0
          %3514 = vmatprep.mubr.bf16.mxu0 0
          %3515 = vmatmul.mubr.bf16.gmra.mrb[0].mxu0 %v3477
          %v3516 = vpop.f32.mrb[0].mxu0
          %v3517 = vadd.f32 0.0, %v3516
          %v3518 = vpop.f32.mrb[0].mxu0
          %v3519 = vpop.f32.mrb[0].mxu0
          %v3520 = vadd.f32 0.0, %v3519
          %v3521 = vpop.f32.mrb[0].mxu0
          %3522 = vdwg.mxu0
          %3523 = vrot.lane.b32.xlu0 %v938, 112
          %v3524 = vpop.permute.xlu0 %3523
          %3525 = vrot.lane.b32.xlu0 %v938, 80
          %v3526 = vpop.permute.xlu0 %3525
          %v3528 = vsel %vm942, %v3524, 0
          %v3531 = vsel %vm942, %v3526, 0
          %3533 = vmatprep.subr.bf16.mxu0 0
          %3534 = vmatpush1.bf16.xpose.msra.mxu0 %v3531
          %3535 = vmatprep.subr.bf16.mxu0 0
          %3536 = vmatpush1.bf16.xpose.msra.mxu0 0
          %3537 = vmatprep.subr.bf16.mxu0 0
          %3538 = vmatpush1.bf16.xpose.msra.mxu0 0
          %3539 = vmatprep.subr.bf16.mxu0 0
          %3540 = vmatpush1.bf16.xpose.msra.mxu0 0
          %3541 = vmatprep.subr.bf16.mxu0 0
          %3542 = vmatpush1.bf16.xpose.msra.mxu0 0
          %3543 = vmatprep.subr.bf16.mxu0 0
          %3544 = vmatpush1.bf16.xpose.msra.mxu0 0
          %3545 = vmatprep.subr.bf16.mxu0 0
          %3546 = vmatpush1.bf16.xpose.msra.mxu0 0
          %3547 = vmatprep.subr.bf16.mxu0 0
          %3548 = vmatpush1.bf16.xpose.msra.mxu0 0
          %3549 = vmatprep.subr.bf16.mxu0 0
          %3550 = vmatpush1.bf16.xpose.msra.mxu0 0
          %3551 = vmatprep.subr.bf16.mxu0 0
          %3552 = vmatpush1.bf16.xpose.msra.mxu0 0
          %3553 = vmatprep.subr.bf16.mxu0 0
          %3554 = vmatpush1.bf16.xpose.msra.mxu0 0
          %3555 = vmatprep.subr.bf16.mxu0 0
          %3556 = vmatpush1.bf16.xpose.msra.mxu0 0
          %3557 = vmatprep.subr.bf16.mxu0 0
          %3558 = vmatpush1.bf16.xpose.msra.mxu0 0
          %3559 = vmatprep.subr.bf16.mxu0 0
          %3560 = vmatpush1.bf16.xpose.msra.mxu0 0
          %3561 = vmatprep.subr.bf16.mxu0 0
          %3562 = vmatpush1.bf16.xpose.msra.mxu0 0
          %3563 = vmatprep.subr.bf16.mxu0 0
          %3564 = vmatpush1.bf16.xpose.msra.mxu0 0
          %3565 = vmatprep.mubr.bf16.mxu0 0
          %3566 = vmatmul.mubr.bf16.gmra.mrb[0].mxu0 %v3528
          %v3567 = vpop.f32.mrb[0].mxu0
          %v3568 = vadd.f32 0.0, %v3567
          %v3569 = vpop.f32.mrb[0].mxu0
          %v3570 = vpop.f32.mrb[0].mxu0
          %v3571 = vadd.f32 0.0, %v3570
          %v3572 = vpop.f32.mrb[0].mxu0
          %3573 = vdwg.mxu0
          %v3574 = vmul.f32 %v3211, 0.35355338
          %v3575 = vmul.f32 %v3214, 0.35355338
          %v3576 = vmul.f32 %v3262, 0.35355338
          %v3577 = vmul.f32 %v3265, 0.35355338
          %v3578 = vmul.f32 %v3313, 0.35355338
          %v3579 = vmul.f32 %v3316, 0.35355338
          %v3580 = vmul.f32 %v3364, 0.35355338
          %v3581 = vmul.f32 %v3367, 0.35355338
          %v3582 = vmul.f32 %v3415, 0.35355338
          %v3583 = vmul.f32 %v3418, 0.35355338
          %v3584 = vmul.f32 %v3466, 0.35355338
          %v3585 = vmul.f32 %v3469, 0.35355338
          %v3586 = vmul.f32 %v3517, 0.35355338
          %v3587 = vmul.f32 %v3520, 0.35355338
          %v3588 = vmul.f32 %v3568, 0.35355338
          %v3589 = vmul.f32 %v3571, 0.35355338
          %v3590 = vsel %vm1356, %v3574, -inf
          %3591 = vmax.xlane.f32.xlu0 %v3590
          %v3592 = vpop.xlane.xlu0 %3591
          %v3593 = vsel %vm1356, %v3575, -inf
          %3594 = vmax.xlane.f32.xlu0 %v3593
          %v3595 = vpop.xlane.xlu0 %3594
          %v3596 = vsel %vm1356, %v3576, -inf
          %3597 = vmax.xlane.f32.xlu0 %v3596
          %v3598 = vpop.xlane.xlu0 %3597
          %v3599 = vsel %vm1356, %v3577, -inf
          %3600 = vmax.xlane.f32.xlu0 %v3599
          %v3601 = vpop.xlane.xlu0 %3600
          %v3602 = vsel %vm1356, %v3578, -inf
          %3603 = vmax.xlane.f32.xlu0 %v3602
          %v3604 = vpop.xlane.xlu0 %3603
          %v3605 = vsel %vm1356, %v3579, -inf
          %3606 = vmax.xlane.f32.xlu0 %v3605
          %v3607 = vpop.xlane.xlu0 %3606
          %v3608 = vsel %vm1356, %v3580, -inf
          %3609 = vmax.xlane.f32.xlu0 %v3608
          %v3610 = vpop.xlane.xlu0 %3609
          %v3611 = vsel %vm1356, %v3581, -inf
          %3612 = vmax.xlane.f32.xlu0 %v3611
          %v3613 = vpop.xlane.xlu0 %3612
          %v3614 = vsel %vm1356, %v3582, -inf
          %3615 = vmax.xlane.f32.xlu0 %v3614
          %v3616 = vpop.xlane.xlu0 %3615
          %v3617 = vsel %vm1356, %v3583, -inf
          %3618 = vmax.xlane.f32.xlu0 %v3617
          %v3619 = vpop.xlane.xlu0 %3618
          %v3620 = vsel %vm1356, %v3584, -inf
          %3621 = vmax.xlane.f32.xlu0 %v3620
          %v3622 = vpop.xlane.xlu0 %3621
          %v3623 = vsel %vm1356, %v3585, -inf
          %3624 = vmax.xlane.f32.xlu0 %v3623
          %v3625 = vpop.xlane.xlu0 %3624
          %v3626 = vsel %vm1356, %v3586, -inf
          %3627 = vmax.xlane.f32.xlu0 %v3626
          %v3628 = vpop.xlane.xlu0 %3627
          %v3629 = vsel %vm1356, %v3587, -inf
          %3630 = vmax.xlane.f32.xlu0 %v3629
          %v3631 = vpop.xlane.xlu0 %3630
          %v3632 = vsel %vm1356, %v3588, -inf
          %3633 = vmax.xlane.f32.xlu0 %v3632
          %v3634 = vpop.xlane.xlu0 %3633
          %v3635 = vsel %vm1356, %v3589, -inf
          %3636 = vmax.xlane.f32.xlu0 %v3635
          %v3637 = vpop.xlane.xlu0 %3636
          %v3638 = vsub.f32 %v3574, %v3592
          %v3639 = vsub.f32 %v3575, %v3595
          %v3640 = vsub.f32 %v3576, %v3598
          %v3641 = vsub.f32 %v3577, %v3601
          %v3642 = vsub.f32 %v3578, %v3604
          %v3643 = vsub.f32 %v3579, %v3607
          %v3644 = vsub.f32 %v3580, %v3610
          %v3645 = vsub.f32 %v3581, %v3613
          %v3646 = vsub.f32 %v3582, %v3616
          %v3647 = vsub.f32 %v3583, %v3619
          %v3648 = vsub.f32 %v3584, %v3622
          %v3649 = vsub.f32 %v3585, %v3625
          %v3650 = vsub.f32 %v3586, %v3628
          %v3651 = vsub.f32 %v3587, %v3631
          %v3652 = vsub.f32 %v3588, %v3634
          %v3653 = vsub.f32 %v3589, %v3637
          %v3654 = vmul.f32 %v3638, 1.442695
          %v3655 = vpow.pop %v3654
          %v3656 = vmul.f32 %v3639, 1.442695
          %v3657 = vpow.pop %v3656
          %v3658 = vmul.f32 %v3640, 1.442695
          %v3659 = vpow.pop %v3658
          %v3660 = vmul.f32 %v3641, 1.442695
          %v3661 = vpow.pop %v3660
          %v3662 = vmul.f32 %v3642, 1.442695
          %v3663 = vpow.pop %v3662
          %v3664 = vmul.f32 %v3643, 1.442695
          %v3665 = vpow.pop %v3664
          %v3666 = vmul.f32 %v3644, 1.442695
          %v3667 = vpow.pop %v3666
          %v3668 = vmul.f32 %v3645, 1.442695
          %v3669 = vpow.pop %v3668
          %v3670 = vmul.f32 %v3646, 1.442695
          %v3671 = vpow.pop %v3670
          %v3672 = vmul.f32 %v3647, 1.442695
          %v3673 = vpow.pop %v3672
          %v3674 = vmul.f32 %v3648, 1.442695
          %v3675 = vpow.pop %v3674
          %v3676 = vmul.f32 %v3649, 1.442695
          %v3677 = vpow.pop %v3676
          %v3678 = vmul.f32 %v3650, 1.442695
          %v3679 = vpow.pop %v3678
          %v3680 = vmul.f32 %v3651, 1.442695
          %v3681 = vpow.pop %v3680
          %v3682 = vmul.f32 %v3652, 1.442695
          %v3683 = vpow.pop %v3682
          %v3684 = vmul.f32 %v3653, 1.442695
          %v3685 = vpow.pop %v3684
          %v3686 = vsel %vm1356, %v3655, 0.0
          %3687 = vadd.xlane.f32.xlu0 %v3686
          %v3688 = vpop.xlane.xlu0 %3687
          %v3689 = vsel %vm1356, %v3657, 0.0
          %3690 = vadd.xlane.f32.xlu0 %v3689
          %v3691 = vpop.xlane.xlu0 %3690
          %v3692 = vsel %vm1356, %v3659, 0.0
          %3693 = vadd.xlane.f32.xlu0 %v3692
          %v3694 = vpop.xlane.xlu0 %3693
          %v3695 = vsel %vm1356, %v3661, 0.0
          %3696 = vadd.xlane.f32.xlu0 %v3695
          %v3697 = vpop.xlane.xlu0 %3696
          %v3698 = vsel %vm1356, %v3663, 0.0
          %3699 = vadd.xlane.f32.xlu0 %v3698
          %v3700 = vpop.xlane.xlu0 %3699
          %v3701 = vsel %vm1356, %v3665, 0.0
          %3702 = vadd.xlane.f32.xlu0 %v3701
          %v3703 = vpop.xlane.xlu0 %3702
          %v3704 = vsel %vm1356, %v3667, 0.0
          %3705 = vadd.xlane.f32.xlu0 %v3704
          %v3706 = vpop.xlane.xlu0 %3705
          %v3707 = vsel %vm1356, %v3669, 0.0
          %3708 = vadd.xlane.f32.xlu0 %v3707
          %v3709 = vpop.xlane.xlu0 %3708
          %v3710 = vsel %vm1356, %v3671, 0.0
          %3711 = vadd.xlane.f32.xlu0 %v3710
          %v3712 = vpop.xlane.xlu0 %3711
          %v3713 = vsel %vm1356, %v3673, 0.0
          %3714 = vadd.xlane.f32.xlu0 %v3713
          %v3715 = vpop.xlane.xlu0 %3714
          %v3716 = vsel %vm1356, %v3675, 0.0
          %3717 = vadd.xlane.f32.xlu0 %v3716
          %v3718 = vpop.xlane.xlu0 %3717
          %v3719 = vsel %vm1356, %v3677, 0.0
          %3720 = vadd.xlane.f32.xlu0 %v3719
          %v3721 = vpop.xlane.xlu0 %3720
          %v3722 = vsel %vm1356, %v3679, 0.0
          %3723 = vadd.xlane.f32.xlu0 %v3722
          %v3724 = vpop.xlane.xlu0 %3723
          %v3725 = vsel %vm1356, %v3681, 0.0
          %3726 = vadd.xlane.f32.xlu0 %v3725
          %v3727 = vpop.xlane.xlu0 %3726
          %v3728 = vsel %vm1356, %v3683, 0.0
          %3729 = vadd.xlane.f32.xlu0 %v3728
          %v3730 = vpop.xlane.xlu0 %3729
          %v3731 = vsel %vm1356, %v3685, 0.0
          %3732 = vadd.xlane.f32.xlu0 %v3731
          %v3733 = vpop.xlane.xlu0 %3732
          %v3734 = vrcp.pop %v3688
          %v3735 = vrcp.pop %v3691
          %v3736 = vrcp.pop %v3694
          %v3737 = vrcp.pop %v3697
          %v3738 = vrcp.pop %v3700
          %v3739 = vrcp.pop %v3703
          %v3740 = vrcp.pop %v3706
          %v3741 = vrcp.pop %v3709
          %v3742 = vrcp.pop %v3712
          %v3743 = vrcp.pop %v3715
          %v3744 = vrcp.pop %v3718
          %v3745 = vrcp.pop %v3721
          %v3746 = vrcp.pop %v3724
          %v3747 = vrcp.pop %v3727
          %v3748 = vrcp.pop %v3730
          %v3749 = vrcp.pop %v3733
          %v3750 = vmul.f32 %v3655, %v3734
          %v3751 = vmul.f32 %v3657, %v3735
          %v3752 = vmul.f32 %v3659, %v3736
          %v3753 = vmul.f32 %v3661, %v3737
          %v3754 = vmul.f32 %v3663, %v3738
          %v3755 = vmul.f32 %v3665, %v3739
          %v3756 = vmul.f32 %v3667, %v3740
          %v3757 = vmul.f32 %v3669, %v3741
          %v3758 = vmul.f32 %v3671, %v3742
          %v3759 = vmul.f32 %v3673, %v3743
          %v3760 = vmul.f32 %v3675, %v3744
          %v3761 = vmul.f32 %v3677, %v3745
          %v3762 = vmul.f32 %v3679, %v3746
          %v3763 = vmul.f32 %v3681, %v3747
          %v3764 = vmul.f32 %v3683, %v3748
          %v3765 = vmul.f32 %v3685, %v3749
          %v3766 = vpack.c.bf16 %v3751, %v3750
          %v3767 = vpack.c.bf16 %v3753, %v3752
          %v3768 = vpack.c.bf16 %v3755, %v3754
          %v3769 = vpack.c.bf16 %v3757, %v3756
          %v3770 = vpack.c.bf16 %v3759, %v3758
          %v3771 = vpack.c.bf16 %v3761, %v3760
          %v3772 = vpack.c.bf16 %v3763, %v3762
          %v3773 = vpack.c.bf16 %v3765, %v3764
          %3774 = vrot.lane.b32.xlu0 %v931, 48
          %v3775 = vpop.permute.xlu0 %3774
          %v3778 = vsel %vm1356, %v3766, 0
          %3780 = vmatprep.subr.bf16.mxu0 0
          %3781 = vmatpush1.bf16.msra.mxu0 %v3775
          %3782 = vmatprep.subr.bf16.mxu0 0
          %3783 = vmatpush1.bf16.msra.mxu0 0
          %3784 = vmatprep.subr.bf16.mxu0 0
          %3785 = vmatpush1.bf16.msra.mxu0 0
          %3786 = vmatprep.subr.bf16.mxu0 0
          %3787 = vmatpush1.bf16.msra.mxu0 0
          %3788 = vmatprep.subr.bf16.mxu0 0
          %3789 = vmatpush1.bf16.msra.mxu0 0
          %3790 = vmatprep.subr.bf16.mxu0 0
          %3791 = vmatpush1.bf16.msra.mxu0 0
          %3792 = vmatprep.subr.bf16.mxu0 0
          %3793 = vmatpush1.bf16.msra.mxu0 0
          %3794 = vmatprep.subr.bf16.mxu0 0
          %3795 = vmatpush1.bf16.msra.mxu0 0
          %3796 = vmatprep.subr.bf16.mxu0 0
          %3797 = vmatpush1.bf16.msra.mxu0 0
          %3798 = vmatprep.subr.bf16.mxu0 0
          %3799 = vmatpush1.bf16.msra.mxu0 0
          %3800 = vmatprep.subr.bf16.mxu0 0
          %3801 = vmatpush1.bf16.msra.mxu0 0
          %3802 = vmatprep.subr.bf16.mxu0 0
          %3803 = vmatpush1.bf16.msra.mxu0 0
          %3804 = vmatprep.subr.bf16.mxu0 0
          %3805 = vmatpush1.bf16.msra.mxu0 0
          %3806 = vmatprep.subr.bf16.mxu0 0
          %3807 = vmatpush1.bf16.msra.mxu0 0
          %3808 = vmatprep.subr.bf16.mxu0 0
          %3809 = vmatpush1.bf16.msra.mxu0 0
          %3810 = vmatprep.subr.bf16.mxu0 0
          %3811 = vmatpush1.bf16.msra.mxu0 0
          %3812 = vmatprep.mubr.bf16.mxu0 0
          %3813 = vmatmul.mubr.bf16.gmra.mrb[0].mxu0 %v3778
          %v3814 = vpop.f32.mrb[0].mxu0
          %v3815 = vadd.f32 0.0, %v3814
          %v3816 = vpop.f32.mrb[0].mxu0
          %v3817 = vpop.f32.mrb[0].mxu0
          %v3818 = vadd.f32 0.0, %v3817
          %v3819 = vpop.f32.mrb[0].mxu0
          %3820 = vdwg.mxu0
          %3821 = vrot.lane.b32.xlu0 %v932, 48
          %v3822 = vpop.permute.xlu0 %3821
          %v3825 = vsel %vm1356, %v3767, 0
          %3827 = vmatprep.subr.bf16.mxu0 0
          %3828 = vmatpush1.bf16.msra.mxu0 %v3822
          %3829 = vmatprep.subr.bf16.mxu0 0
          %3830 = vmatpush1.bf16.msra.mxu0 0
          %3831 = vmatprep.subr.bf16.mxu0 0
          %3832 = vmatpush1.bf16.msra.mxu0 0
          %3833 = vmatprep.subr.bf16.mxu0 0
          %3834 = vmatpush1.bf16.msra.mxu0 0
          %3835 = vmatprep.subr.bf16.mxu0 0
          %3836 = vmatpush1.bf16.msra.mxu0 0
          %3837 = vmatprep.subr.bf16.mxu0 0
          %3838 = vmatpush1.bf16.msra.mxu0 0
          %3839 = vmatprep.subr.bf16.mxu0 0
          %3840 = vmatpush1.bf16.msra.mxu0 0
          %3841 = vmatprep.subr.bf16.mxu0 0
          %3842 = vmatpush1.bf16.msra.mxu0 0
          %3843 = vmatprep.subr.bf16.mxu0 0
          %3844 = vmatpush1.bf16.msra.mxu0 0
          %3845 = vmatprep.subr.bf16.mxu0 0
          %3846 = vmatpush1.bf16.msra.mxu0 0
          %3847 = vmatprep.subr.bf16.mxu0 0
          %3848 = vmatpush1.bf16.msra.mxu0 0
          %3849 = vmatprep.subr.bf16.mxu0 0
          %3850 = vmatpush1.bf16.msra.mxu0 0
          %3851 = vmatprep.subr.bf16.mxu0 0
          %3852 = vmatpush1.bf16.msra.mxu0 0
          %3853 = vmatprep.subr.bf16.mxu0 0
          %3854 = vmatpush1.bf16.msra.mxu0 0
          %3855 = vmatprep.subr.bf16.mxu0 0
          %3856 = vmatpush1.bf16.msra.mxu0 0
          %3857 = vmatprep.subr.bf16.mxu0 0
          %3858 = vmatpush1.bf16.msra.mxu0 0
          %3859 = vmatprep.mubr.bf16.mxu0 0
          %3860 = vmatmul.mubr.bf16.gmra.mrb[0].mxu0 %v3825
          %v3861 = vpop.f32.mrb[0].mxu0
          %v3862 = vadd.f32 0.0, %v3861
          %v3863 = vpop.f32.mrb[0].mxu0
          %v3864 = vpop.f32.mrb[0].mxu0
          %v3865 = vadd.f32 0.0, %v3864
          %v3866 = vpop.f32.mrb[0].mxu0
          %3867 = vdwg.mxu0
          %3868 = vrot.lane.b32.xlu0 %v933, 48
          %v3869 = vpop.permute.xlu0 %3868
          %v3872 = vsel %vm1356, %v3768, 0
          %3874 = vmatprep.subr.bf16.mxu0 0
          %3875 = vmatpush1.bf16.msra.mxu0 %v3869
          %3876 = vmatprep.subr.bf16.mxu0 0
          %3877 = vmatpush1.bf16.msra.mxu0 0
          %3878 = vmatprep.subr.bf16.mxu0 0
          %3879 = vmatpush1.bf16.msra.mxu0 0
          %3880 = vmatprep.subr.bf16.mxu0 0
          %3881 = vmatpush1.bf16.msra.mxu0 0
          %3882 = vmatprep.subr.bf16.mxu0 0
          %3883 = vmatpush1.bf16.msra.mxu0 0
          %3884 = vmatprep.subr.bf16.mxu0 0
          %3885 = vmatpush1.bf16.msra.mxu0 0
          %3886 = vmatprep.subr.bf16.mxu0 0
          %3887 = vmatpush1.bf16.msra.mxu0 0
          %3888 = vmatprep.subr.bf16.mxu0 0
          %3889 = vmatpush1.bf16.msra.mxu0 0
          %3890 = vmatprep.subr.bf16.mxu0 0
          %3891 = vmatpush1.bf16.msra.mxu0 0
          %3892 = vmatprep.subr.bf16.mxu0 0
          %3893 = vmatpush1.bf16.msra.mxu0 0
          %3894 = vmatprep.subr.bf16.mxu0 0
          %3895 = vmatpush1.bf16.msra.mxu0 0
          %3896 = vmatprep.subr.bf16.mxu0 0
          %3897 = vmatpush1.bf16.msra.mxu0 0
          %3898 = vmatprep.subr.bf16.mxu0 0
          %3899 = vmatpush1.bf16.msra.mxu0 0
          %3900 = vmatprep.subr.bf16.mxu0 0
          %3901 = vmatpush1.bf16.msra.mxu0 0
          %3902 = vmatprep.subr.bf16.mxu0 0
          %3903 = vmatpush1.bf16.msra.mxu0 0
          %3904 = vmatprep.subr.bf16.mxu0 0
          %3905 = vmatpush1.bf16.msra.mxu0 0
          %3906 = vmatprep.mubr.bf16.mxu0 0
          %3907 = vmatmul.mubr.bf16.gmra.mrb[0].mxu0 %v3872
          %v3908 = vpop.f32.mrb[0].mxu0
          %v3909 = vadd.f32 0.0, %v3908
          %v3910 = vpop.f32.mrb[0].mxu0
          %v3911 = vpop.f32.mrb[0].mxu0
          %v3912 = vadd.f32 0.0, %v3911
          %v3913 = vpop.f32.mrb[0].mxu0
          %3914 = vdwg.mxu0
          %3915 = vrot.lane.b32.xlu0 %v934, 48
          %v3916 = vpop.permute.xlu0 %3915
          %v3919 = vsel %vm1356, %v3769, 0
          %3921 = vmatprep.subr.bf16.mxu0 0
          %3922 = vmatpush1.bf16.msra.mxu0 %v3916
          %3923 = vmatprep.subr.bf16.mxu0 0
          %3924 = vmatpush1.bf16.msra.mxu0 0
          %3925 = vmatprep.subr.bf16.mxu0 0
          %3926 = vmatpush1.bf16.msra.mxu0 0
          %3927 = vmatprep.subr.bf16.mxu0 0
          %3928 = vmatpush1.bf16.msra.mxu0 0
          %3929 = vmatprep.subr.bf16.mxu0 0
          %3930 = vmatpush1.bf16.msra.mxu0 0
          %3931 = vmatprep.subr.bf16.mxu0 0
          %3932 = vmatpush1.bf16.msra.mxu0 0
          %3933 = vmatprep.subr.bf16.mxu0 0
          %3934 = vmatpush1.bf16.msra.mxu0 0
          %3935 = vmatprep.subr.bf16.mxu0 0
          %3936 = vmatpush1.bf16.msra.mxu0 0
          %3937 = vmatprep.subr.bf16.mxu0 0
          %3938 = vmatpush1.bf16.msra.mxu0 0
          %3939 = vmatprep.subr.bf16.mxu0 0
          %3940 = vmatpush1.bf16.msra.mxu0 0
          %3941 = vmatprep.subr.bf16.mxu0 0
          %3942 = vmatpush1.bf16.msra.mxu0 0
          %3943 = vmatprep.subr.bf16.mxu0 0
          %3944 = vmatpush1.bf16.msra.mxu0 0
          %3945 = vmatprep.subr.bf16.mxu0 0
          %3946 = vmatpush1.bf16.msra.mxu0 0
          %3947 = vmatprep.subr.bf16.mxu0 0
          %3948 = vmatpush1.bf16.msra.mxu0 0
          %3949 = vmatprep.subr.bf16.mxu0 0
          %3950 = vmatpush1.bf16.msra.mxu0 0
          %3951 = vmatprep.subr.bf16.mxu0 0
          %3952 = vmatpush1.bf16.msra.mxu0 0
          %3953 = vmatprep.mubr.bf16.mxu0 0
          %3954 = vmatmul.mubr.bf16.gmra.mrb[0].mxu0 %v3919
          %v3955 = vpop.f32.mrb[0].mxu0
          %v3956 = vadd.f32 0.0, %v3955
          %v3957 = vpop.f32.mrb[0].mxu0
          %v3958 = vpop.f32.mrb[0].mxu0
          %v3959 = vadd.f32 0.0, %v3958
          %v3960 = vpop.f32.mrb[0].mxu0
          %3961 = vdwg.mxu0
          %3962 = vrot.lane.b32.xlu0 %v935, 48
          %v3963 = vpop.permute.xlu0 %3962
          %v3966 = vsel %vm1356, %v3770, 0
          %3968 = vmatprep.subr.bf16.mxu0 0
          %3969 = vmatpush1.bf16.msra.mxu0 %v3963
          %3970 = vmatprep.subr.bf16.mxu0 0
          %3971 = vmatpush1.bf16.msra.mxu0 0
          %3972 = vmatprep.subr.bf16.mxu0 0
          %3973 = vmatpush1.bf16.msra.mxu0 0
          %3974 = vmatprep.subr.bf16.mxu0 0
          %3975 = vmatpush1.bf16.msra.mxu0 0
          %3976 = vmatprep.subr.bf16.mxu0 0
          %3977 = vmatpush1.bf16.msra.mxu0 0
          %3978 = vmatprep.subr.bf16.mxu0 0
          %3979 = vmatpush1.bf16.msra.mxu0 0
          %3980 = vmatprep.subr.bf16.mxu0 0
          %3981 = vmatpush1.bf16.msra.mxu0 0
          %3982 = vmatprep.subr.bf16.mxu0 0
          %3983 = vmatpush1.bf16.msra.mxu0 0
          %3984 = vmatprep.subr.bf16.mxu0 0
          %3985 = vmatpush1.bf16.msra.mxu0 0
          %3986 = vmatprep.subr.bf16.mxu0 0
          %3987 = vmatpush1.bf16.msra.mxu0 0
          %3988 = vmatprep.subr.bf16.mxu0 0
          %3989 = vmatpush1.bf16.msra.mxu0 0
          %3990 = vmatprep.subr.bf16.mxu0 0
          %3991 = vmatpush1.bf16.msra.mxu0 0
          %3992 = vmatprep.subr.bf16.mxu0 0
          %3993 = vmatpush1.bf16.msra.mxu0 0
          %3994 = vmatprep.subr.bf16.mxu0 0
          %3995 = vmatpush1.bf16.msra.mxu0 0
          %3996 = vmatprep.subr.bf16.mxu0 0
          %3997 = vmatpush1.bf16.msra.mxu0 0
          %3998 = vmatprep.subr.bf16.mxu0 0
          %3999 = vmatpush1.bf16.msra.mxu0 0
          %4000 = vmatprep.mubr.bf16.mxu0 0
          %4001 = vmatmul.mubr.bf16.gmra.mrb[0].mxu0 %v3966
          %v4002 = vpop.f32.mrb[0].mxu0
          %v4003 = vadd.f32 0.0, %v4002
          %v4004 = vpop.f32.mrb[0].mxu0
          %v4005 = vpop.f32.mrb[0].mxu0
          %v4006 = vadd.f32 0.0, %v4005
          %v4007 = vpop.f32.mrb[0].mxu0
          %4008 = vdwg.mxu0
          %4009 = vrot.lane.b32.xlu0 %v936, 48
          %v4010 = vpop.permute.xlu0 %4009
          %v4013 = vsel %vm1356, %v3771, 0
          %4015 = vmatprep.subr.bf16.mxu0 0
          %4016 = vmatpush1.bf16.msra.mxu0 %v4010
          %4017 = vmatprep.subr.bf16.mxu0 0
          %4018 = vmatpush1.bf16.msra.mxu0 0
          %4019 = vmatprep.subr.bf16.mxu0 0
          %4020 = vmatpush1.bf16.msra.mxu0 0
          %4021 = vmatprep.subr.bf16.mxu0 0
          %4022 = vmatpush1.bf16.msra.mxu0 0
          %4023 = vmatprep.subr.bf16.mxu0 0
          %4024 = vmatpush1.bf16.msra.mxu0 0
          %4025 = vmatprep.subr.bf16.mxu0 0
          %4026 = vmatpush1.bf16.msra.mxu0 0
          %4027 = vmatprep.subr.bf16.mxu0 0
          %4028 = vmatpush1.bf16.msra.mxu0 0
          %4029 = vmatprep.subr.bf16.mxu0 0
          %4030 = vmatpush1.bf16.msra.mxu0 0
          %4031 = vmatprep.subr.bf16.mxu0 0
          %4032 = vmatpush1.bf16.msra.mxu0 0
          %4033 = vmatprep.subr.bf16.mxu0 0
          %4034 = vmatpush1.bf16.msra.mxu0 0
          %4035 = vmatprep.subr.bf16.mxu0 0
          %4036 = vmatpush1.bf16.msra.mxu0 0
          %4037 = vmatprep.subr.bf16.mxu0 0
          %4038 = vmatpush1.bf16.msra.mxu0 0
          %4039 = vmatprep.subr.bf16.mxu0 0
          %4040 = vmatpush1.bf16.msra.mxu0 0
          %4041 = vmatprep.subr.bf16.mxu0 0
          %4042 = vmatpush1.bf16.msra.mxu0 0
          %4043 = vmatprep.subr.bf16.mxu0 0
          %4044 = vmatpush1.bf16.msra.mxu0 0
          %4045 = vmatprep.subr.bf16.mxu0 0
          %4046 = vmatpush1.bf16.msra.mxu0 0
          %4047 = vmatprep.mubr.bf16.mxu0 0
          %4048 = vmatmul.mubr.bf16.gmra.mrb[0].mxu0 %v4013
          %v4049 = vpop.f32.mrb[0].mxu0
          %v4050 = vadd.f32 0.0, %v4049
          %v4051 = vpop.f32.mrb[0].mxu0
          %v4052 = vpop.f32.mrb[0].mxu0
          %v4053 = vadd.f32 0.0, %v4052
          %v4054 = vpop.f32.mrb[0].mxu0
          %4055 = vdwg.mxu0
          %4056 = vrot.lane.b32.xlu0 %v937, 48
          %v4057 = vpop.permute.xlu0 %4056
          %v4060 = vsel %vm1356, %v3772, 0
          %4062 = vmatprep.subr.bf16.mxu0 0
          %4063 = vmatpush1.bf16.msra.mxu0 %v4057
          %4064 = vmatprep.subr.bf16.mxu0 0
          %4065 = vmatpush1.bf16.msra.mxu0 0
          %4066 = vmatprep.subr.bf16.mxu0 0
          %4067 = vmatpush1.bf16.msra.mxu0 0
          %4068 = vmatprep.subr.bf16.mxu0 0
          %4069 = vmatpush1.bf16.msra.mxu0 0
          %4070 = vmatprep.subr.bf16.mxu0 0
          %4071 = vmatpush1.bf16.msra.mxu0 0
          %4072 = vmatprep.subr.bf16.mxu0 0
          %4073 = vmatpush1.bf16.msra.mxu0 0
          %4074 = vmatprep.subr.bf16.mxu0 0
          %4075 = vmatpush1.bf16.msra.mxu0 0
          %4076 = vmatprep.subr.bf16.mxu0 0
          %4077 = vmatpush1.bf16.msra.mxu0 0
          %4078 = vmatprep.subr.bf16.mxu0 0
          %4079 = vmatpush1.bf16.msra.mxu0 0
          %4080 = vmatprep.subr.bf16.mxu0 0
          %4081 = vmatpush1.bf16.msra.mxu0 0
          %4082 = vmatprep.subr.bf16.mxu0 0
          %4083 = vmatpush1.bf16.msra.mxu0 0
          %4084 = vmatprep.subr.bf16.mxu0 0
          %4085 = vmatpush1.bf16.msra.mxu0 0
          %4086 = vmatprep.subr.bf16.mxu0 0
          %4087 = vmatpush1.bf16.msra.mxu0 0
          %4088 = vmatprep.subr.bf16.mxu0 0
          %4089 = vmatpush1.bf16.msra.mxu0 0
          %4090 = vmatprep.subr.bf16.mxu0 0
          %4091 = vmatpush1.bf16.msra.mxu0 0
          %4092 = vmatprep.subr.bf16.mxu0 0
          %4093 = vmatpush1.bf16.msra.mxu0 0
          %4094 = vmatprep.mubr.bf16.mxu0 0
          %4095 = vmatmul.mubr.bf16.gmra.mrb[0].mxu0 %v4060
          %v4096 = vpop.f32.mrb[0].mxu0
          %v4097 = vadd.f32 0.0, %v4096
          %v4098 = vpop.f32.mrb[0].mxu0
          %v4099 = vpop.f32.mrb[0].mxu0
          %v4100 = vadd.f32 0.0, %v4099
          %v4101 = vpop.f32.mrb[0].mxu0
          %4102 = vdwg.mxu0
          %4103 = vrot.lane.b32.xlu0 %v938, 48
          %v4104 = vpop.permute.xlu0 %4103
          %v4107 = vsel %vm1356, %v3773, 0
          %4109 = vmatprep.subr.bf16.mxu0 0
          %4110 = vmatpush1.bf16.msra.mxu0 %v4104
          %4111 = vmatprep.subr.bf16.mxu0 0
          %4112 = vmatpush1.bf16.msra.mxu0 0
          %4113 = vmatprep.subr.bf16.mxu0 0
          %4114 = vmatpush1.bf16.msra.mxu0 0
          %4115 = vmatprep.subr.bf16.mxu0 0
          %4116 = vmatpush1.bf16.msra.mxu0 0
          %4117 = vmatprep.subr.bf16.mxu0 0
          %4118 = vmatpush1.bf16.msra.mxu0 0
          %4119 = vmatprep.subr.bf16.mxu0 0
          %4120 = vmatpush1.bf16.msra.mxu0 0
          %4121 = vmatprep.subr.bf16.mxu0 0
          %4122 = vmatpush1.bf16.msra.mxu0 0
          %4123 = vmatprep.subr.bf16.mxu0 0
          %4124 = vmatpush1.bf16.msra.mxu0 0
          %4125 = vmatprep.subr.bf16.mxu0 0
          %4126 = vmatpush1.bf16.msra.mxu0 0
          %4127 = vmatprep.subr.bf16.mxu0 0
          %4128 = vmatpush1.bf16.msra.mxu0 0
          %4129 = vmatprep.subr.bf16.mxu0 0
          %4130 = vmatpush1.bf16.msra.mxu0 0
          %4131 = vmatprep.subr.bf16.mxu0 0
          %4132 = vmatpush1.bf16.msra.mxu0 0
          %4133 = vmatprep.subr.bf16.mxu0 0
          %4134 = vmatpush1.bf16.msra.mxu0 0
          %4135 = vmatprep.subr.bf16.mxu0 0
          %4136 = vmatpush1.bf16.msra.mxu0 0
          %4137 = vmatprep.subr.bf16.mxu0 0
          %4138 = vmatpush1.bf16.msra.mxu0 0
          %4139 = vmatprep.subr.bf16.mxu0 0
          %4140 = vmatpush1.bf16.msra.mxu0 0
          %4141 = vmatprep.mubr.bf16.mxu0 0
          %4142 = vmatmul.mubr.bf16.gmra.mrb[0].mxu0 %v4107
          %v4143 = vpop.f32.mrb[0].mxu0
          %v4144 = vadd.f32 0.0, %v4143
          %v4145 = vpop.f32.mrb[0].mxu0
          %v4146 = vpop.f32.mrb[0].mxu0
          %v4147 = vadd.f32 0.0, %v4146
          %v4148 = vpop.f32.mrb[0].mxu0
          %4149 = vdwg.mxu0
          %v4150 = vpack.c.bf16 %v3818, %v3815
          %v4151 = vpack.c.bf16 %v3865, %v3862
          %v4152 = vpack.c.bf16 %v3912, %v3909
          %v4153 = vpack.c.bf16 %v3959, %v3956
          %v4154 = vpack.c.bf16 %v4006, %v4003
          %v4155 = vpack.c.bf16 %v4053, %v4050
          %v4156 = vpack.c.bf16 %v4100, %v4097
          %v4157 = vpack.c.bf16 %v4147, %v4144
          %v4159 = vsel %vm942, %v4150, 0
          %v4162 = vsel %vm942, %v4151, 0
          %v4165 = vsel %vm942, %v4152, 0
          %v4168 = vsel %vm942, %v4153, 0
          %v4171 = vsel %vm942, %v4154, 0
          %v4174 = vsel %vm942, %v4155, 0
          %v4177 = vsel %vm942, %v4156, 0
          %v4180 = vsel %vm942, %v4157, 0
          %v4183 = vsel %vm2941, %v929, 0
          %4185 = vmatprep.subr.bf16.mxu0 0
          %4186 = vmatpush1.bf16.msra.mxu0 %v4183
          %4187 = vmatprep.subr.bf16.mxu0 0
          %4188 = vmatpush1.bf16.msra.mxu0 0
          %4189 = vmatprep.subr.bf16.mxu0 0
          %4190 = vmatpush1.bf16.msra.mxu0 0
          %4191 = vmatprep.subr.bf16.mxu0 0
          %4192 = vmatpush1.bf16.msra.mxu0 0
          %4193 = vmatprep.subr.bf16.mxu0 0
          %4194 = vmatpush1.bf16.msra.mxu0 0
          %4195 = vmatprep.subr.bf16.mxu0 0
          %4196 = vmatpush1.bf16.msra.mxu0 0
          %4197 = vmatprep.subr.bf16.mxu0 0
          %4198 = vmatpush1.bf16.msra.mxu0 0
          %4199 = vmatprep.subr.bf16.mxu0 0
          %4200 = vmatpush1.bf16.msra.mxu0 0
          %4201 = vmatprep.subr.bf16.mxu0 0
          %4202 = vmatpush1.bf16.msra.mxu0 0
          %4203 = vmatprep.subr.bf16.mxu0 0
          %4204 = vmatpush1.bf16.msra.mxu0 0
          %4205 = vmatprep.subr.bf16.mxu0 0
          %4206 = vmatpush1.bf16.msra.mxu0 0
          %4207 = vmatprep.subr.bf16.mxu0 0
          %4208 = vmatpush1.bf16.msra.mxu0 0
          %4209 = vmatprep.subr.bf16.mxu0 0
          %4210 = vmatpush1.bf16.msra.mxu0 0
          %4211 = vmatprep.subr.bf16.mxu0 0
          %4212 = vmatpush1.bf16.msra.mxu0 0
          %4213 = vmatprep.subr.bf16.mxu0 0
          %4214 = vmatpush1.bf16.msra.mxu0 0
          %4215 = vmatprep.subr.bf16.mxu0 0
          %4216 = vmatpush1.bf16.msra.mxu0 0
          %4217 = vmatprep.mubr.bf16.mxu0 0
          %4218 = vmatmul.mubr.bf16.gmra.mrb[0].mxu0 %v4159
          %v4219 = vpop.f32.mrb[0].mxu0
          %v4220 = vadd.f32 0.0, %v4219
          %v4221 = vpop.f32.mrb[0].mxu0
          %v4222 = vpop.f32.mrb[0].mxu0
          %v4223 = vadd.f32 0.0, %v4222
          %v4224 = vpop.f32.mrb[0].mxu0
          %4225 = vmatprep.mubr.bf16.mxu0 0
          %4226 = vmatmul.mubr.bf16.gmra.mrb[0].mxu0 %v4162
          %v4227 = vpop.f32.mrb[0].mxu0
          %v4228 = vadd.f32 0.0, %v4227
          %v4229 = vpop.f32.mrb[0].mxu0
          %v4230 = vpop.f32.mrb[0].mxu0
          %v4231 = vadd.f32 0.0, %v4230
          %v4232 = vpop.f32.mrb[0].mxu0
          %4233 = vmatprep.mubr.bf16.mxu0 0
          %4234 = vmatmul.mubr.bf16.gmra.mrb[0].mxu0 %v4165
          %v4235 = vpop.f32.mrb[0].mxu0
          %v4236 = vadd.f32 0.0, %v4235
          %v4237 = vpop.f32.mrb[0].mxu0
          %v4238 = vpop.f32.mrb[0].mxu0
          %v4239 = vadd.f32 0.0, %v4238
          %v4240 = vpop.f32.mrb[0].mxu0
          %4241 = vmatprep.mubr.bf16.mxu0 0
          %4242 = vmatmul.mubr.bf16.gmra.mrb[0].mxu0 %v4168
          %v4243 = vpop.f32.mrb[0].mxu0
          %v4244 = vadd.f32 0.0, %v4243
          %v4245 = vpop.f32.mrb[0].mxu0
          %v4246 = vpop.f32.mrb[0].mxu0
          %v4247 = vadd.f32 0.0, %v4246
          %v4248 = vpop.f32.mrb[0].mxu0
          %4249 = vmatprep.mubr.bf16.mxu0 0
          %4250 = vmatmul.mubr.bf16.gmra.mrb[0].mxu0 %v4171
          %v4251 = vpop.f32.mrb[0].mxu0
          %v4252 = vadd.f32 0.0, %v4251
          %v4253 = vpop.f32.mrb[0].mxu0
          %v4254 = vpop.f32.mrb[0].mxu0
          %v4255 = vadd.f32 0.0, %v4254
          %v4256 = vpop.f32.mrb[0].mxu0
          %4257 = vmatprep.mubr.bf16.mxu0 0
          %4258 = vmatmul.mubr.bf16.gmra.mrb[0].mxu0 %v4174
          %v4259 = vpop.f32.mrb[0].mxu0
          %v4260 = vadd.f32 0.0, %v4259
          %v4261 = vpop.f32.mrb[0].mxu0
          %v4262 = vpop.f32.mrb[0].mxu0
          %v4263 = vadd.f32 0.0, %v4262
          %v4264 = vpop.f32.mrb[0].mxu0
          %4265 = vmatprep.mubr.bf16.mxu0 0
          %4266 = vmatmul.mubr.bf16.gmra.mrb[0].mxu0 %v4177
          %v4267 = vpop.f32.mrb[0].mxu0
          %v4268 = vadd.f32 0.0, %v4267
          %v4269 = vpop.f32.mrb[0].mxu0
          %v4270 = vpop.f32.mrb[0].mxu0
          %v4271 = vadd.f32 0.0, %v4270
          %v4272 = vpop.f32.mrb[0].mxu0
          %4273 = vmatprep.mubr.bf16.mxu0 0
          %4274 = vmatmul.mubr.bf16.gmra.mrb[0].mxu0 %v4180
          %v4275 = vpop.f32.mrb[0].mxu0
          %v4276 = vadd.f32 0.0, %v4275
          %v4277 = vpop.f32.mrb[0].mxu0
          %v4278 = vpop.f32.mrb[0].mxu0
          %v4279 = vadd.f32 0.0, %v4278
          %v4280 = vpop.f32.mrb[0].mxu0
          %4281 = vdwg.mxu0
          %v4282 = vadd.f32 %v3104, %v4220
          %v4283 = vadd.f32 %v3107, %v4223
          %v4284 = vadd.f32 %v3112, %v4228
          %v4285 = vadd.f32 %v3115, %v4231
          %v4286 = vadd.f32 %v3120, %v4236
          %v4287 = vadd.f32 %v3123, %v4239
          %v4288 = vadd.f32 %v3128, %v4244
          %v4289 = vadd.f32 %v3131, %v4247
          %v4290 = vadd.f32 %v3136, %v4252
          %v4291 = vadd.f32 %v3139, %v4255
          %v4292 = vadd.f32 %v3144, %v4260
          %v4293 = vadd.f32 %v3147, %v4263
          %v4294 = vadd.f32 %v3152, %v4268
          %v4295 = vadd.f32 %v3155, %v4271
          %v4296 = vadd.f32 %v3160, %v4276
          %v4297 = vadd.f32 %v3163, %v4279
          %4298 = vrot.lane.b32.xlu0 %v931, 104
          %v4299 = vpop.permute.xlu0 %4298
          %4300 = vrot.lane.b32.xlu0 %v931, 72
          %v4301 = vpop.permute.xlu0 %4300
          %v4303 = vsel %vm942, %v4299, 0
          %v4306 = vsel %vm942, %v4301, 0
          %4308 = vmatprep.subr.bf16.mxu0 0
          %4309 = vmatpush1.bf16.xpose.msra.mxu0 %v4306
          %4310 = vmatprep.subr.bf16.mxu0 0
          %4311 = vmatpush1.bf16.xpose.msra.mxu0 0
          %4312 = vmatprep.subr.bf16.mxu0 0
          %4313 = vmatpush1.bf16.xpose.msra.mxu0 0
          %4314 = vmatprep.subr.bf16.mxu0 0
          %4315 = vmatpush1.bf16.xpose.msra.mxu0 0
          %4316 = vmatprep.subr.bf16.mxu0 0
          %4317 = vmatpush1.bf16.xpose.msra.mxu0 0
          %4318 = vmatprep.subr.bf16.mxu0 0
          %4319 = vmatpush1.bf16.xpose.msra.mxu0 0
          %4320 = vmatprep.subr.bf16.mxu0 0
          %4321 = vmatpush1.bf16.xpose.msra.mxu0 0
          %4322 = vmatprep.subr.bf16.mxu0 0
          %4323 = vmatpush1.bf16.xpose.msra.mxu0 0
          %4324 = vmatprep.subr.bf16.mxu0 0
          %4325 = vmatpush1.bf16.xpose.msra.mxu0 0
          %4326 = vmatprep.subr.bf16.mxu0 0
          %4327 = vmatpush1.bf16.xpose.msra.mxu0 0
          %4328 = vmatprep.subr.bf16.mxu0 0
          %4329 = vmatpush1.bf16.xpose.msra.mxu0 0
          %4330 = vmatprep.subr.bf16.mxu0 0
          %4331 = vmatpush1.bf16.xpose.msra.mxu0 0
          %4332 = vmatprep.subr.bf16.mxu0 0
          %4333 = vmatpush1.bf16.xpose.msra.mxu0 0
          %4334 = vmatprep.subr.bf16.mxu0 0
          %4335 = vmatpush1.bf16.xpose.msra.mxu0 0
          %4336 = vmatprep.subr.bf16.mxu0 0
          %4337 = vmatpush1.bf16.xpose.msra.mxu0 0
          %4338 = vmatprep.subr.bf16.mxu0 0
          %4339 = vmatpush1.bf16.xpose.msra.mxu0 0
          %4340 = vmatprep.mubr.bf16.mxu0 0
          %4341 = vmatmul.mubr.bf16.gmra.mrb[0].mxu0 %v4303
          %v4342 = vpop.f32.mrb[0].mxu0
          %v4343 = vadd.f32 0.0, %v4342
          %v4344 = vpop.f32.mrb[0].mxu0
          %v4345 = vpop.f32.mrb[0].mxu0
          %v4346 = vadd.f32 0.0, %v4345
          %v4347 = vpop.f32.mrb[0].mxu0
          %4348 = vdwg.mxu0
          %4349 = vrot.lane.b32.xlu0 %v932, 104
          %v4350 = vpop.permute.xlu0 %4349
          %4351 = vrot.lane.b32.xlu0 %v932, 72
          %v4352 = vpop.permute.xlu0 %4351
          %v4354 = vsel %vm942, %v4350, 0
          %v4357 = vsel %vm942, %v4352, 0
          %4359 = vmatprep.subr.bf16.mxu0 0
          %4360 = vmatpush1.bf16.xpose.msra.mxu0 %v4357
          %4361 = vmatprep.subr.bf16.mxu0 0
          %4362 = vmatpush1.bf16.xpose.msra.mxu0 0
          %4363 = vmatprep.subr.bf16.mxu0 0
          %4364 = vmatpush1.bf16.xpose.msra.mxu0 0
          %4365 = vmatprep.subr.bf16.mxu0 0
          %4366 = vmatpush1.bf16.xpose.msra.mxu0 0
          %4367 = vmatprep.subr.bf16.mxu0 0
          %4368 = vmatpush1.bf16.xpose.msra.mxu0 0
          %4369 = vmatprep.subr.bf16.mxu0 0
          %4370 = vmatpush1.bf16.xpose.msra.mxu0 0
          %4371 = vmatprep.subr.bf16.mxu0 0
          %4372 = vmatpush1.bf16.xpose.msra.mxu0 0
          %4373 = vmatprep.subr.bf16.mxu0 0
          %4374 = vmatpush1.bf16.xpose.msra.mxu0 0
          %4375 = vmatprep.subr.bf16.mxu0 0
          %4376 = vmatpush1.bf16.xpose.msra.mxu0 0
          %4377 = vmatprep.subr.bf16.mxu0 0
          %4378 = vmatpush1.bf16.xpose.msra.mxu0 0
          %4379 = vmatprep.subr.bf16.mxu0 0
          %4380 = vmatpush1.bf16.xpose.msra.mxu0 0
          %4381 = vmatprep.subr.bf16.mxu0 0
          %4382 = vmatpush1.bf16.xpose.msra.mxu0 0
          %4383 = vmatprep.subr.bf16.mxu0 0
          %4384 = vmatpush1.bf16.xpose.msra.mxu0 0
          %4385 = vmatprep.subr.bf16.mxu0 0
          %4386 = vmatpush1.bf16.xpose.msra.mxu0 0
          %4387 = vmatprep.subr.bf16.mxu0 0
          %4388 = vmatpush1.bf16.xpose.msra.mxu0 0
          %4389 = vmatprep.subr.bf16.mxu0 0
          %4390 = vmatpush1.bf16.xpose.msra.mxu0 0
          %4391 = vmatprep.mubr.bf16.mxu0 0
          %4392 = vmatmul.mubr.bf16.gmra.mrb[0].mxu0 %v4354
          %v4393 = vpop.f32.mrb[0].mxu0
          %v4394 = vadd.f32 0.0, %v4393
          %v4395 = vpop.f32.mrb[0].mxu0
          %v4396 = vpop.f32.mrb[0].mxu0
          %v4397 = vadd.f32 0.0, %v4396
          %v4398 = vpop.f32.mrb[0].mxu0
          %4399 = vdwg.mxu0
          %4400 = vrot.lane.b32.xlu0 %v933, 104
          %v4401 = vpop.permute.xlu0 %4400
          %4402 = vrot.lane.b32.xlu0 %v933, 72
          %v4403 = vpop.permute.xlu0 %4402
          %v4405 = vsel %vm942, %v4401, 0
          %v4408 = vsel %vm942, %v4403, 0
          %4410 = vmatprep.subr.bf16.mxu0 0
          %4411 = vmatpush1.bf16.xpose.msra.mxu0 %v4408
          %4412 = vmatprep.subr.bf16.mxu0 0
          %4413 = vmatpush1.bf16.xpose.msra.mxu0 0
          %4414 = vmatprep.subr.bf16.mxu0 0
          %4415 = vmatpush1.bf16.xpose.msra.mxu0 0
          %4416 = vmatprep.subr.bf16.mxu0 0
          %4417 = vmatpush1.bf16.xpose.msra.mxu0 0
          %4418 = vmatprep.subr.bf16.mxu0 0
          %4419 = vmatpush1.bf16.xpose.msra.mxu0 0
          %4420 = vmatprep.subr.bf16.mxu0 0
          %4421 = vmatpush1.bf16.xpose.msra.mxu0 0
          %4422 = vmatprep.subr.bf16.mxu0 0
          %4423 = vmatpush1.bf16.xpose.msra.mxu0 0
          %4424 = vmatprep.subr.bf16.mxu0 0
          %4425 = vmatpush1.bf16.xpose.msra.mxu0 0
          %4426 = vmatprep.subr.bf16.mxu0 0
          %4427 = vmatpush1.bf16.xpose.msra.mxu0 0
          %4428 = vmatprep.subr.bf16.mxu0 0
          %4429 = vmatpush1.bf16.xpose.msra.mxu0 0
          %4430 = vmatprep.subr.bf16.mxu0 0
          %4431 = vmatpush1.bf16.xpose.msra.mxu0 0
          %4432 = vmatprep.subr.bf16.mxu0 0
          %4433 = vmatpush1.bf16.xpose.msra.mxu0 0
          %4434 = vmatprep.subr.bf16.mxu0 0
          %4435 = vmatpush1.bf16.xpose.msra.mxu0 0
          %4436 = vmatprep.subr.bf16.mxu0 0
          %4437 = vmatpush1.bf16.xpose.msra.mxu0 0
          %4438 = vmatprep.subr.bf16.mxu0 0
          %4439 = vmatpush1.bf16.xpose.msra.mxu0 0
          %4440 = vmatprep.subr.bf16.mxu0 0
          %4441 = vmatpush1.bf16.xpose.msra.mxu0 0
          %4442 = vmatprep.mubr.bf16.mxu0 0
          %4443 = vmatmul.mubr.bf16.gmra.mrb[0].mxu0 %v4405
          %v4444 = vpop.f32.mrb[0].mxu0
          %v4445 = vadd.f32 0.0, %v4444
          %v4446 = vpop.f32.mrb[0].mxu0
          %v4447 = vpop.f32.mrb[0].mxu0
          %v4448 = vadd.f32 0.0, %v4447
          %v4449 = vpop.f32.mrb[0].mxu0
          %4450 = vdwg.mxu0
          %4451 = vrot.lane.b32.xlu0 %v934, 104
          %v4452 = vpop.permute.xlu0 %4451
          %4453 = vrot.lane.b32.xlu0 %v934, 72
          %v4454 = vpop.permute.xlu0 %4453
          %v4456 = vsel %vm942, %v4452, 0
          %v4459 = vsel %vm942, %v4454, 0
          %4461 = vmatprep.subr.bf16.mxu0 0
          %4462 = vmatpush1.bf16.xpose.msra.mxu0 %v4459
          %4463 = vmatprep.subr.bf16.mxu0 0
          %4464 = vmatpush1.bf16.xpose.msra.mxu0 0
          %4465 = vmatprep.subr.bf16.mxu0 0
          %4466 = vmatpush1.bf16.xpose.msra.mxu0 0
          %4467 = vmatprep.subr.bf16.mxu0 0
          %4468 = vmatpush1.bf16.xpose.msra.mxu0 0
          %4469 = vmatprep.subr.bf16.mxu0 0
          %4470 = vmatpush1.bf16.xpose.msra.mxu0 0
          %4471 = vmatprep.subr.bf16.mxu0 0
          %4472 = vmatpush1.bf16.xpose.msra.mxu0 0
          %4473 = vmatprep.subr.bf16.mxu0 0
          %4474 = vmatpush1.bf16.xpose.msra.mxu0 0
          %4475 = vmatprep.subr.bf16.mxu0 0
          %4476 = vmatpush1.bf16.xpose.msra.mxu0 0
          %4477 = vmatprep.subr.bf16.mxu0 0
          %4478 = vmatpush1.bf16.xpose.msra.mxu0 0
          %4479 = vmatprep.subr.bf16.mxu0 0
          %4480 = vmatpush1.bf16.xpose.msra.mxu0 0
          %4481 = vmatprep.subr.bf16.mxu0 0
          %4482 = vmatpush1.bf16.xpose.msra.mxu0 0
          %4483 = vmatprep.subr.bf16.mxu0 0
          %4484 = vmatpush1.bf16.xpose.msra.mxu0 0
          %4485 = vmatprep.subr.bf16.mxu0 0
          %4486 = vmatpush1.bf16.xpose.msra.mxu0 0
          %4487 = vmatprep.subr.bf16.mxu0 0
          %4488 = vmatpush1.bf16.xpose.msra.mxu0 0
          %4489 = vmatprep.subr.bf16.mxu0 0
          %4490 = vmatpush1.bf16.xpose.msra.mxu0 0
          %4491 = vmatprep.subr.bf16.mxu0 0
          %4492 = vmatpush1.bf16.xpose.msra.mxu0 0
          %4493 = vmatprep.mubr.bf16.mxu0 0
          %4494 = vmatmul.mubr.bf16.gmra.mrb[0].mxu0 %v4456
          %v4495 = vpop.f32.mrb[0].mxu0
          %v4496 = vadd.f32 0.0, %v4495
          %v4497 = vpop.f32.mrb[0].mxu0
          %v4498 = vpop.f32.mrb[0].mxu0
          %v4499 = vadd.f32 0.0, %v4498
          %v4500 = vpop.f32.mrb[0].mxu0
          %4501 = vdwg.mxu0
          %4502 = vrot.lane.b32.xlu0 %v935, 104
          %v4503 = vpop.permute.xlu0 %4502
          %4504 = vrot.lane.b32.xlu0 %v935, 72
          %v4505 = vpop.permute.xlu0 %4504
          %v4507 = vsel %vm942, %v4503, 0
          %v4510 = vsel %vm942, %v4505, 0
          %4512 = vmatprep.subr.bf16.mxu0 0
          %4513 = vmatpush1.bf16.xpose.msra.mxu0 %v4510
          %4514 = vmatprep.subr.bf16.mxu0 0
          %4515 = vmatpush1.bf16.xpose.msra.mxu0 0
          %4516 = vmatprep.subr.bf16.mxu0 0
          %4517 = vmatpush1.bf16.xpose.msra.mxu0 0
          %4518 = vmatprep.subr.bf16.mxu0 0
          %4519 = vmatpush1.bf16.xpose.msra.mxu0 0
          %4520 = vmatprep.subr.bf16.mxu0 0
          %4521 = vmatpush1.bf16.xpose.msra.mxu0 0
          %4522 = vmatprep.subr.bf16.mxu0 0
          %4523 = vmatpush1.bf16.xpose.msra.mxu0 0
          %4524 = vmatprep.subr.bf16.mxu0 0
          %4525 = vmatpush1.bf16.xpose.msra.mxu0 0
          %4526 = vmatprep.subr.bf16.mxu0 0
          %4527 = vmatpush1.bf16.xpose.msra.mxu0 0
          %4528 = vmatprep.subr.bf16.mxu0 0
          %4529 = vmatpush1.bf16.xpose.msra.mxu0 0
          %4530 = vmatprep.subr.bf16.mxu0 0
          %4531 = vmatpush1.bf16.xpose.msra.mxu0 0
          %4532 = vmatprep.subr.bf16.mxu0 0
          %4533 = vmatpush1.bf16.xpose.msra.mxu0 0
          %4534 = vmatprep.subr.bf16.mxu0 0
          %4535 = vmatpush1.bf16.xpose.msra.mxu0 0
          %4536 = vmatprep.subr.bf16.mxu0 0
          %4537 = vmatpush1.bf16.xpose.msra.mxu0 0
          %4538 = vmatprep.subr.bf16.mxu0 0
          %4539 = vmatpush1.bf16.xpose.msra.mxu0 0
          %4540 = vmatprep.subr.bf16.mxu0 0
          %4541 = vmatpush1.bf16.xpose.msra.mxu0 0
          %4542 = vmatprep.subr.bf16.mxu0 0
          %4543 = vmatpush1.bf16.xpose.msra.mxu0 0
          %4544 = vmatprep.mubr.bf16.mxu0 0
          %4545 = vmatmul.mubr.bf16.gmra.mrb[0].mxu0 %v4507
          %v4546 = vpop.f32.mrb[0].mxu0
          %v4547 = vadd.f32 0.0, %v4546
          %v4548 = vpop.f32.mrb[0].mxu0
          %v4549 = vpop.f32.mrb[0].mxu0
          %v4550 = vadd.f32 0.0, %v4549
          %v4551 = vpop.f32.mrb[0].mxu0
          %4552 = vdwg.mxu0
          %4553 = vrot.lane.b32.xlu0 %v936, 104
          %v4554 = vpop.permute.xlu0 %4553
          %4555 = vrot.lane.b32.xlu0 %v936, 72
          %v4556 = vpop.permute.xlu0 %4555
          %v4558 = vsel %vm942, %v4554, 0
          %v4561 = vsel %vm942, %v4556, 0
          %4563 = vmatprep.subr.bf16.mxu0 0
          %4564 = vmatpush1.bf16.xpose.msra.mxu0 %v4561
          %4565 = vmatprep.subr.bf16.mxu0 0
          %4566 = vmatpush1.bf16.xpose.msra.mxu0 0
          %4567 = vmatprep.subr.bf16.mxu0 0
          %4568 = vmatpush1.bf16.xpose.msra.mxu0 0
          %4569 = vmatprep.subr.bf16.mxu0 0
          %4570 = vmatpush1.bf16.xpose.msra.mxu0 0
          %4571 = vmatprep.subr.bf16.mxu0 0
          %4572 = vmatpush1.bf16.xpose.msra.mxu0 0
          %4573 = vmatprep.subr.bf16.mxu0 0
          %4574 = vmatpush1.bf16.xpose.msra.mxu0 0
          %4575 = vmatprep.subr.bf16.mxu0 0
          %4576 = vmatpush1.bf16.xpose.msra.mxu0 0
          %4577 = vmatprep.subr.bf16.mxu0 0
          %4578 = vmatpush1.bf16.xpose.msra.mxu0 0
          %4579 = vmatprep.subr.bf16.mxu0 0
          %4580 = vmatpush1.bf16.xpose.msra.mxu0 0
          %4581 = vmatprep.subr.bf16.mxu0 0
          %4582 = vmatpush1.bf16.xpose.msra.mxu0 0
          %4583 = vmatprep.subr.bf16.mxu0 0
          %4584 = vmatpush1.bf16.xpose.msra.mxu0 0
          %4585 = vmatprep.subr.bf16.mxu0 0
          %4586 = vmatpush1.bf16.xpose.msra.mxu0 0
          %4587 = vmatprep.subr.bf16.mxu0 0
          %4588 = vmatpush1.bf16.xpose.msra.mxu0 0
          %4589 = vmatprep.subr.bf16.mxu0 0
          %4590 = vmatpush1.bf16.xpose.msra.mxu0 0
          %4591 = vmatprep.subr.bf16.mxu0 0
          %4592 = vmatpush1.bf16.xpose.msra.mxu0 0
          %4593 = vmatprep.subr.bf16.mxu0 0
          %4594 = vmatpush1.bf16.xpose.msra.mxu0 0
          %4595 = vmatprep.mubr.bf16.mxu0 0
          %4596 = vmatmul.mubr.bf16.gmra.mrb[0].mxu0 %v4558
          %v4597 = vpop.f32.mrb[0].mxu0
          %v4598 = vadd.f32 0.0, %v4597
          %v4599 = vpop.f32.mrb[0].mxu0
          %v4600 = vpop.f32.mrb[0].mxu0
          %v4601 = vadd.f32 0.0, %v4600
          %v4602 = vpop.f32.mrb[0].mxu0
          %4603 = vdwg.mxu0
          %4604 = vrot.lane.b32.xlu0 %v937, 104
          %v4605 = vpop.permute.xlu0 %4604
          %4606 = vrot.lane.b32.xlu0 %v937, 72
          %v4607 = vpop.permute.xlu0 %4606
          %v4609 = vsel %vm942, %v4605, 0
          %v4612 = vsel %vm942, %v4607, 0
          %4614 = vmatprep.subr.bf16.mxu0 0
          %4615 = vmatpush1.bf16.xpose.msra.mxu0 %v4612
          %4616 = vmatprep.subr.bf16.mxu0 0
          %4617 = vmatpush1.bf16.xpose.msra.mxu0 0
          %4618 = vmatprep.subr.bf16.mxu0 0
          %4619 = vmatpush1.bf16.xpose.msra.mxu0 0
          %4620 = vmatprep.subr.bf16.mxu0 0
          %4621 = vmatpush1.bf16.xpose.msra.mxu0 0
          %4622 = vmatprep.subr.bf16.mxu0 0
          %4623 = vmatpush1.bf16.xpose.msra.mxu0 0
          %4624 = vmatprep.subr.bf16.mxu0 0
          %4625 = vmatpush1.bf16.xpose.msra.mxu0 0
          %4626 = vmatprep.subr.bf16.mxu0 0
          %4627 = vmatpush1.bf16.xpose.msra.mxu0 0
          %4628 = vmatprep.subr.bf16.mxu0 0
          %4629 = vmatpush1.bf16.xpose.msra.mxu0 0
          %4630 = vmatprep.subr.bf16.mxu0 0
          %4631 = vmatpush1.bf16.xpose.msra.mxu0 0
          %4632 = vmatprep.subr.bf16.mxu0 0
          %4633 = vmatpush1.bf16.xpose.msra.mxu0 0
          %4634 = vmatprep.subr.bf16.mxu0 0
          %4635 = vmatpush1.bf16.xpose.msra.mxu0 0
          %4636 = vmatprep.subr.bf16.mxu0 0
          %4637 = vmatpush1.bf16.xpose.msra.mxu0 0
          %4638 = vmatprep.subr.bf16.mxu0 0
          %4639 = vmatpush1.bf16.xpose.msra.mxu0 0
          %4640 = vmatprep.subr.bf16.mxu0 0
          %4641 = vmatpush1.bf16.xpose.msra.mxu0 0
          %4642 = vmatprep.subr.bf16.mxu0 0
          %4643 = vmatpush1.bf16.xpose.msra.mxu0 0
          %4644 = vmatprep.subr.bf16.mxu0 0
          %4645 = vmatpush1.bf16.xpose.msra.mxu0 0
          %4646 = vmatprep.mubr.bf16.mxu0 0
          %4647 = vmatmul.mubr.bf16.gmra.mrb[0].mxu0 %v4609
          %v4648 = vpop.f32.mrb[0].mxu0
          %v4649 = vadd.f32 0.0, %v4648
          %v4650 = vpop.f32.mrb[0].mxu0
          %v4651 = vpop.f32.mrb[0].mxu0
          %v4652 = vadd.f32 0.0, %v4651
          %v4653 = vpop.f32.mrb[0].mxu0
          %4654 = vdwg.mxu0
          %4655 = vrot.lane.b32.xlu0 %v938, 104
          %v4656 = vpop.permute.xlu0 %4655
          %4657 = vrot.lane.b32.xlu0 %v938, 72
          %v4658 = vpop.permute.xlu0 %4657
          %v4660 = vsel %vm942, %v4656, 0
          %v4663 = vsel %vm942, %v4658, 0
          %4665 = vmatprep.subr.bf16.mxu0 0
          %4666 = vmatpush1.bf16.xpose.msra.mxu0 %v4663
          %4667 = vmatprep.subr.bf16.mxu0 0
          %4668 = vmatpush1.bf16.xpose.msra.mxu0 0
          %4669 = vmatprep.subr.bf16.mxu0 0
          %4670 = vmatpush1.bf16.xpose.msra.mxu0 0
          %4671 = vmatprep.subr.bf16.mxu0 0
          %4672 = vmatpush1.bf16.xpose.msra.mxu0 0
          %4673 = vmatprep.subr.bf16.mxu0 0
          %4674 = vmatpush1.bf16.xpose.msra.mxu0 0
          %4675 = vmatprep.subr.bf16.mxu0 0
          %4676 = vmatpush1.bf16.xpose.msra.mxu0 0
          %4677 = vmatprep.subr.bf16.mxu0 0
          %4678 = vmatpush1.bf16.xpose.msra.mxu0 0
          %4679 = vmatprep.subr.bf16.mxu0 0
          %4680 = vmatpush1.bf16.xpose.msra.mxu0 0
          %4681 = vmatprep.subr.bf16.mxu0 0
          %4682 = vmatpush1.bf16.xpose.msra.mxu0 0
          %4683 = vmatprep.subr.bf16.mxu0 0
          %4684 = vmatpush1.bf16.xpose.msra.mxu0 0
          %4685 = vmatprep.subr.bf16.mxu0 0
          %4686 = vmatpush1.bf16.xpose.msra.mxu0 0
          %4687 = vmatprep.subr.bf16.mxu0 0
          %4688 = vmatpush1.bf16.xpose.msra.mxu0 0
          %4689 = vmatprep.subr.bf16.mxu0 0
          %4690 = vmatpush1.bf16.xpose.msra.mxu0 0
          %4691 = vmatprep.subr.bf16.mxu0 0
          %4692 = vmatpush1.bf16.xpose.msra.mxu0 0
          %4693 = vmatprep.subr.bf16.mxu0 0
          %4694 = vmatpush1.bf16.xpose.msra.mxu0 0
          %4695 = vmatprep.subr.bf16.mxu0 0
          %4696 = vmatpush1.bf16.xpose.msra.mxu0 0
          %4697 = vmatprep.mubr.bf16.mxu0 0
          %4698 = vmatmul.mubr.bf16.gmra.mrb[0].mxu0 %v4660
          %v4699 = vpop.f32.mrb[0].mxu0
          %v4700 = vadd.f32 0.0, %v4699
          %v4701 = vpop.f32.mrb[0].mxu0
          %v4702 = vpop.f32.mrb[0].mxu0
          %v4703 = vadd.f32 0.0, %v4702
          %v4704 = vpop.f32.mrb[0].mxu0
          %4705 = vdwg.mxu0
          %v4706 = vmul.f32 %v4343, 0.35355338
          %v4707 = vmul.f32 %v4346, 0.35355338
          %v4708 = vmul.f32 %v4394, 0.35355338
          %v4709 = vmul.f32 %v4397, 0.35355338
          %v4710 = vmul.f32 %v4445, 0.35355338
          %v4711 = vmul.f32 %v4448, 0.35355338
          %v4712 = vmul.f32 %v4496, 0.35355338
          %v4713 = vmul.f32 %v4499, 0.35355338
          %v4714 = vmul.f32 %v4547, 0.35355338
          %v4715 = vmul.f32 %v4550, 0.35355338
          %v4716 = vmul.f32 %v4598, 0.35355338
          %v4717 = vmul.f32 %v4601, 0.35355338
          %v4718 = vmul.f32 %v4649, 0.35355338
          %v4719 = vmul.f32 %v4652, 0.35355338
          %v4720 = vmul.f32 %v4700, 0.35355338
          %v4721 = vmul.f32 %v4703, 0.35355338
          %v4722 = vsel %vm1356, %v4706, -inf
          %4723 = vmax.xlane.f32.xlu0 %v4722
          %v4724 = vpop.xlane.xlu0 %4723
          %v4725 = vsel %vm1356, %v4707, -inf
          %4726 = vmax.xlane.f32.xlu0 %v4725
          %v4727 = vpop.xlane.xlu0 %4726
          %v4728 = vsel %vm1356, %v4708, -inf
          %4729 = vmax.xlane.f32.xlu0 %v4728
          %v4730 = vpop.xlane.xlu0 %4729
          %v4731 = vsel %vm1356, %v4709, -inf
          %4732 = vmax.xlane.f32.xlu0 %v4731
          %v4733 = vpop.xlane.xlu0 %4732
          %v4734 = vsel %vm1356, %v4710, -inf
          %4735 = vmax.xlane.f32.xlu0 %v4734
          %v4736 = vpop.xlane.xlu0 %4735
          %v4737 = vsel %vm1356, %v4711, -inf
          %4738 = vmax.xlane.f32.xlu0 %v4737
          %v4739 = vpop.xlane.xlu0 %4738
          %v4740 = vsel %vm1356, %v4712, -inf
          %4741 = vmax.xlane.f32.xlu0 %v4740
          %v4742 = vpop.xlane.xlu0 %4741
          %v4743 = vsel %vm1356, %v4713, -inf
          %4744 = vmax.xlane.f32.xlu0 %v4743
          %v4745 = vpop.xlane.xlu0 %4744
          %v4746 = vsel %vm1356, %v4714, -inf
          %4747 = vmax.xlane.f32.xlu0 %v4746
          %v4748 = vpop.xlane.xlu0 %4747
          %v4749 = vsel %vm1356, %v4715, -inf
          %4750 = vmax.xlane.f32.xlu0 %v4749
          %v4751 = vpop.xlane.xlu0 %4750
          %v4752 = vsel %vm1356, %v4716, -inf
          %4753 = vmax.xlane.f32.xlu0 %v4752
          %v4754 = vpop.xlane.xlu0 %4753
          %v4755 = vsel %vm1356, %v4717, -inf
          %4756 = vmax.xlane.f32.xlu0 %v4755
          %v4757 = vpop.xlane.xlu0 %4756
          %v4758 = vsel %vm1356, %v4718, -inf
          %4759 = vmax.xlane.f32.xlu0 %v4758
          %v4760 = vpop.xlane.xlu0 %4759
          %v4761 = vsel %vm1356, %v4719, -inf
          %4762 = vmax.xlane.f32.xlu0 %v4761
          %v4763 = vpop.xlane.xlu0 %4762
          %v4764 = vsel %vm1356, %v4720, -inf
          %4765 = vmax.xlane.f32.xlu0 %v4764
          %v4766 = vpop.xlane.xlu0 %4765
          %v4767 = vsel %vm1356, %v4721, -inf
          %4768 = vmax.xlane.f32.xlu0 %v4767
          %v4769 = vpop.xlane.xlu0 %4768
          %v4770 = vsub.f32 %v4706, %v4724
          %v4771 = vsub.f32 %v4707, %v4727
          %v4772 = vsub.f32 %v4708, %v4730
          %v4773 = vsub.f32 %v4709, %v4733
          %v4774 = vsub.f32 %v4710, %v4736
          %v4775 = vsub.f32 %v4711, %v4739
          %v4776 = vsub.f32 %v4712, %v4742
          %v4777 = vsub.f32 %v4713, %v4745
          %v4778 = vsub.f32 %v4714, %v4748
          %v4779 = vsub.f32 %v4715, %v4751
          %v4780 = vsub.f32 %v4716, %v4754
          %v4781 = vsub.f32 %v4717, %v4757
          %v4782 = vsub.f32 %v4718, %v4760
          %v4783 = vsub.f32 %v4719, %v4763
          %v4784 = vsub.f32 %v4720, %v4766
          %v4785 = vsub.f32 %v4721, %v4769
          %v4786 = vmul.f32 %v4770, 1.442695
          %v4787 = vpow.pop %v4786
          %v4788 = vmul.f32 %v4771, 1.442695
          %v4789 = vpow.pop %v4788
          %v4790 = vmul.f32 %v4772, 1.442695
          %v4791 = vpow.pop %v4790
          %v4792 = vmul.f32 %v4773, 1.442695
          %v4793 = vpow.pop %v4792
          %v4794 = vmul.f32 %v4774, 1.442695
          %v4795 = vpow.pop %v4794
          %v4796 = vmul.f32 %v4775, 1.442695
          %v4797 = vpow.pop %v4796
          %v4798 = vmul.f32 %v4776, 1.442695
          %v4799 = vpow.pop %v4798
          %v4800 = vmul.f32 %v4777, 1.442695
          %v4801 = vpow.pop %v4800
          %v4802 = vmul.f32 %v4778, 1.442695
          %v4803 = vpow.pop %v4802
          %v4804 = vmul.f32 %v4779, 1.442695
          %v4805 = vpow.pop %v4804
          %v4806 = vmul.f32 %v4780, 1.442695
          %v4807 = vpow.pop %v4806
          %v4808 = vmul.f32 %v4781, 1.442695
          %v4809 = vpow.pop %v4808
          %v4810 = vmul.f32 %v4782, 1.442695
          %v4811 = vpow.pop %v4810
          %v4812 = vmul.f32 %v4783, 1.442695
          %v4813 = vpow.pop %v4812
          %v4814 = vmul.f32 %v4784, 1.442695
          %v4815 = vpow.pop %v4814
          %v4816 = vmul.f32 %v4785, 1.442695
          %v4817 = vpow.pop %v4816
          %v4818 = vsel %vm1356, %v4787, 0.0
          %4819 = vadd.xlane.f32.xlu0 %v4818
          %v4820 = vpop.xlane.xlu0 %4819
          %v4821 = vsel %vm1356, %v4789, 0.0
          %4822 = vadd.xlane.f32.xlu0 %v4821
          %v4823 = vpop.xlane.xlu0 %4822
          %v4824 = vsel %vm1356, %v4791, 0.0
          %4825 = vadd.xlane.f32.xlu0 %v4824
          %v4826 = vpop.xlane.xlu0 %4825
          %v4827 = vsel %vm1356, %v4793, 0.0
          %4828 = vadd.xlane.f32.xlu0 %v4827
          %v4829 = vpop.xlane.xlu0 %4828
          %v4830 = vsel %vm1356, %v4795, 0.0
          %4831 = vadd.xlane.f32.xlu0 %v4830
          %v4832 = vpop.xlane.xlu0 %4831
          %v4833 = vsel %vm1356, %v4797, 0.0
          %4834 = vadd.xlane.f32.xlu0 %v4833
          %v4835 = vpop.xlane.xlu0 %4834
          %v4836 = vsel %vm1356, %v4799, 0.0
          %4837 = vadd.xlane.f32.xlu0 %v4836
          %v4838 = vpop.xlane.xlu0 %4837
          %v4839 = vsel %vm1356, %v4801, 0.0
          %4840 = vadd.xlane.f32.xlu0 %v4839
          %v4841 = vpop.xlane.xlu0 %4840
          %v4842 = vsel %vm1356, %v4803, 0.0
          %4843 = vadd.xlane.f32.xlu0 %v4842
          %v4844 = vpop.xlane.xlu0 %4843
          %v4845 = vsel %vm1356, %v4805, 0.0
          %4846 = vadd.xlane.f32.xlu0 %v4845
          %v4847 = vpop.xlane.xlu0 %4846
          %v4848 = vsel %vm1356, %v4807, 0.0
          %4849 = vadd.xlane.f32.xlu0 %v4848
          %v4850 = vpop.xlane.xlu0 %4849
          %v4851 = vsel %vm1356, %v4809, 0.0
          %4852 = vadd.xlane.f32.xlu0 %v4851
          %v4853 = vpop.xlane.xlu0 %4852
          %v4854 = vsel %vm1356, %v4811, 0.0
          %4855 = vadd.xlane.f32.xlu0 %v4854
          %v4856 = vpop.xlane.xlu0 %4855
          %v4857 = vsel %vm1356, %v4813, 0.0
          %4858 = vadd.xlane.f32.xlu0 %v4857
          %v4859 = vpop.xlane.xlu0 %4858
          %v4860 = vsel %vm1356, %v4815, 0.0
          %4861 = vadd.xlane.f32.xlu0 %v4860
          %v4862 = vpop.xlane.xlu0 %4861
          %v4863 = vsel %vm1356, %v4817, 0.0
          %4864 = vadd.xlane.f32.xlu0 %v4863
          %v4865 = vpop.xlane.xlu0 %4864
          %v4866 = vrcp.pop %v4820
          %v4867 = vrcp.pop %v4823
          %v4868 = vrcp.pop %v4826
          %v4869 = vrcp.pop %v4829
          %v4870 = vrcp.pop %v4832
          %v4871 = vrcp.pop %v4835
          %v4872 = vrcp.pop %v4838
          %v4873 = vrcp.pop %v4841
          %v4874 = vrcp.pop %v4844
          %v4875 = vrcp.pop %v4847
          %v4876 = vrcp.pop %v4850
          %v4877 = vrcp.pop %v4853
          %v4878 = vrcp.pop %v4856
          %v4879 = vrcp.pop %v4859
          %v4880 = vrcp.pop %v4862
          %v4881 = vrcp.pop %v4865
          %v4882 = vmul.f32 %v4787, %v4866
          %v4883 = vmul.f32 %v4789, %v4867
          %v4884 = vmul.f32 %v4791, %v4868
          %v4885 = vmul.f32 %v4793, %v4869
          %v4886 = vmul.f32 %v4795, %v4870
          %v4887 = vmul.f32 %v4797, %v4871
          %v4888 = vmul.f32 %v4799, %v4872
          %v4889 = vmul.f32 %v4801, %v4873
          %v4890 = vmul.f32 %v4803, %v4874
          %v4891 = vmul.f32 %v4805, %v4875
          %v4892 = vmul.f32 %v4807, %v4876
          %v4893 = vmul.f32 %v4809, %v4877
          %v4894 = vmul.f32 %v4811, %v4878
          %v4895 = vmul.f32 %v4813, %v4879
          %v4896 = vmul.f32 %v4815, %v4880
          %v4897 = vmul.f32 %v4817, %v4881
          %v4898 = vpack.c.bf16 %v4883, %v4882
          %v4899 = vpack.c.bf16 %v4885, %v4884
          %v4900 = vpack.c.bf16 %v4887, %v4886
          %v4901 = vpack.c.bf16 %v4889, %v4888
          %v4902 = vpack.c.bf16 %v4891, %v4890
          %v4903 = vpack.c.bf16 %v4893, %v4892
          %v4904 = vpack.c.bf16 %v4895, %v4894
          %v4905 = vpack.c.bf16 %v4897, %v4896
          %4906 = vrot.lane.b32.xlu0 %v931, 40
          %v4907 = vpop.permute.xlu0 %4906
          %v4910 = vsel %vm1356, %v4898, 0
          %4912 = vmatprep.subr.bf16.mxu0 0
          %4913 = vmatpush1.bf16.msra.mxu0 %v4907
          %4914 = vmatprep.subr.bf16.mxu0 0
          %4915 = vmatpush1.bf16.msra.mxu0 0
          %4916 = vmatprep.subr.bf16.mxu0 0
          %4917 = vmatpush1.bf16.msra.mxu0 0
          %4918 = vmatprep.subr.bf16.mxu0 0
          %4919 = vmatpush1.bf16.msra.mxu0 0
          %4920 = vmatprep.subr.bf16.mxu0 0
          %4921 = vmatpush1.bf16.msra.mxu0 0
          %4922 = vmatprep.subr.bf16.mxu0 0
          %4923 = vmatpush1.bf16.msra.mxu0 0
          %4924 = vmatprep.subr.bf16.mxu0 0
          %4925 = vmatpush1.bf16.msra.mxu0 0
          %4926 = vmatprep.subr.bf16.mxu0 0
          %4927 = vmatpush1.bf16.msra.mxu0 0
          %4928 = vmatprep.subr.bf16.mxu0 0
          %4929 = vmatpush1.bf16.msra.mxu0 0
          %4930 = vmatprep.subr.bf16.mxu0 0
          %4931 = vmatpush1.bf16.msra.mxu0 0
          %4932 = vmatprep.subr.bf16.mxu0 0
          %4933 = vmatpush1.bf16.msra.mxu0 0
          %4934 = vmatprep.subr.bf16.mxu0 0
          %4935 = vmatpush1.bf16.msra.mxu0 0
          %4936 = vmatprep.subr.bf16.mxu0 0
          %4937 = vmatpush1.bf16.msra.mxu0 0
          %4938 = vmatprep.subr.bf16.mxu0 0
          %4939 = vmatpush1.bf16.msra.mxu0 0
          %4940 = vmatprep.subr.bf16.mxu0 0
          %4941 = vmatpush1.bf16.msra.mxu0 0
          %4942 = vmatprep.subr.bf16.mxu0 0
          %4943 = vmatpush1.bf16.msra.mxu0 0
          %4944 = vmatprep.mubr.bf16.mxu0 0
          %4945 = vmatmul.mubr.bf16.gmra.mrb[0].mxu0 %v4910
          %v4946 = vpop.f32.mrb[0].mxu0
          %v4947 = vadd.f32 0.0, %v4946
          %v4948 = vpop.f32.mrb[0].mxu0
          %v4949 = vpop.f32.mrb[0].mxu0
          %v4950 = vadd.f32 0.0, %v4949
          %v4951 = vpop.f32.mrb[0].mxu0
          %4952 = vdwg.mxu0
          %4953 = vrot.lane.b32.xlu0 %v932, 40
          %v4954 = vpop.permute.xlu0 %4953
          %v4957 = vsel %vm1356, %v4899, 0
          %4959 = vmatprep.subr.bf16.mxu0 0
          %4960 = vmatpush1.bf16.msra.mxu0 %v4954
          %4961 = vmatprep.subr.bf16.mxu0 0
          %4962 = vmatpush1.bf16.msra.mxu0 0
          %4963 = vmatprep.subr.bf16.mxu0 0
          %4964 = vmatpush1.bf16.msra.mxu0 0
          %4965 = vmatprep.subr.bf16.mxu0 0
          %4966 = vmatpush1.bf16.msra.mxu0 0
          %4967 = vmatprep.subr.bf16.mxu0 0
          %4968 = vmatpush1.bf16.msra.mxu0 0
          %4969 = vmatprep.subr.bf16.mxu0 0
          %4970 = vmatpush1.bf16.msra.mxu0 0
          %4971 = vmatprep.subr.bf16.mxu0 0
          %4972 = vmatpush1.bf16.msra.mxu0 0
          %4973 = vmatprep.subr.bf16.mxu0 0
          %4974 = vmatpush1.bf16.msra.mxu0 0
          %4975 = vmatprep.subr.bf16.mxu0 0
          %4976 = vmatpush1.bf16.msra.mxu0 0
          %4977 = vmatprep.subr.bf16.mxu0 0
          %4978 = vmatpush1.bf16.msra.mxu0 0
          %4979 = vmatprep.subr.bf16.mxu0 0
          %4980 = vmatpush1.bf16.msra.mxu0 0
          %4981 = vmatprep.subr.bf16.mxu0 0
          %4982 = vmatpush1.bf16.msra.mxu0 0
          %4983 = vmatprep.subr.bf16.mxu0 0
          %4984 = vmatpush1.bf16.msra.mxu0 0
          %4985 = vmatprep.subr.bf16.mxu0 0
          %4986 = vmatpush1.bf16.msra.mxu0 0
          %4987 = vmatprep.subr.bf16.mxu0 0
          %4988 = vmatpush1.bf16.msra.mxu0 0
          %4989 = vmatprep.subr.bf16.mxu0 0
          %4990 = vmatpush1.bf16.msra.mxu0 0
          %4991 = vmatprep.mubr.bf16.mxu0 0
          %4992 = vmatmul.mubr.bf16.gmra.mrb[0].mxu0 %v4957
          %v4993 = vpop.f32.mrb[0].mxu0
          %v4994 = vadd.f32 0.0, %v4993
          %v4995 = vpop.f32.mrb[0].mxu0
          %v4996 = vpop.f32.mrb[0].mxu0
          %v4997 = vadd.f32 0.0, %v4996
          %v4998 = vpop.f32.mrb[0].mxu0
          %4999 = vdwg.mxu0
          %5000 = vrot.lane.b32.xlu0 %v933, 40
          %v5001 = vpop.permute.xlu0 %5000
          %v5004 = vsel %vm1356, %v4900, 0
          %5006 = vmatprep.subr.bf16.mxu0 0
          %5007 = vmatpush1.bf16.msra.mxu0 %v5001
          %5008 = vmatprep.subr.bf16.mxu0 0
          %5009 = vmatpush1.bf16.msra.mxu0 0
          %5010 = vmatprep.subr.bf16.mxu0 0
          %5011 = vmatpush1.bf16.msra.mxu0 0
          %5012 = vmatprep.subr.bf16.mxu0 0
          %5013 = vmatpush1.bf16.msra.mxu0 0
          %5014 = vmatprep.subr.bf16.mxu0 0
          %5015 = vmatpush1.bf16.msra.mxu0 0
          %5016 = vmatprep.subr.bf16.mxu0 0
          %5017 = vmatpush1.bf16.msra.mxu0 0
          %5018 = vmatprep.subr.bf16.mxu0 0
          %5019 = vmatpush1.bf16.msra.mxu0 0
          %5020 = vmatprep.subr.bf16.mxu0 0
          %5021 = vmatpush1.bf16.msra.mxu0 0
          %5022 = vmatprep.subr.bf16.mxu0 0
          %5023 = vmatpush1.bf16.msra.mxu0 0
          %5024 = vmatprep.subr.bf16.mxu0 0
          %5025 = vmatpush1.bf16.msra.mxu0 0
          %5026 = vmatprep.subr.bf16.mxu0 0
          %5027 = vmatpush1.bf16.msra.mxu0 0
          %5028 = vmatprep.subr.bf16.mxu0 0
          %5029 = vmatpush1.bf16.msra.mxu0 0
          %5030 = vmatprep.subr.bf16.mxu0 0
          %5031 = vmatpush1.bf16.msra.mxu0 0
          %5032 = vmatprep.subr.bf16.mxu0 0
          %5033 = vmatpush1.bf16.msra.mxu0 0
          %5034 = vmatprep.subr.bf16.mxu0 0
          %5035 = vmatpush1.bf16.msra.mxu0 0
          %5036 = vmatprep.subr.bf16.mxu0 0
          %5037 = vmatpush1.bf16.msra.mxu0 0
          %5038 = vmatprep.mubr.bf16.mxu0 0
          %5039 = vmatmul.mubr.bf16.gmra.mrb[0].mxu0 %v5004
          %v5040 = vpop.f32.mrb[0].mxu0
          %v5041 = vadd.f32 0.0, %v5040
          %v5042 = vpop.f32.mrb[0].mxu0
          %v5043 = vpop.f32.mrb[0].mxu0
          %v5044 = vadd.f32 0.0, %v5043
          %v5045 = vpop.f32.mrb[0].mxu0
          %5046 = vdwg.mxu0
          %5047 = vrot.lane.b32.xlu0 %v934, 40
          %v5048 = vpop.permute.xlu0 %5047
          %v5051 = vsel %vm1356, %v4901, 0
          %5053 = vmatprep.subr.bf16.mxu0 0
          %5054 = vmatpush1.bf16.msra.mxu0 %v5048
          %5055 = vmatprep.subr.bf16.mxu0 0
          %5056 = vmatpush1.bf16.msra.mxu0 0
          %5057 = vmatprep.subr.bf16.mxu0 0
          %5058 = vmatpush1.bf16.msra.mxu0 0
          %5059 = vmatprep.subr.bf16.mxu0 0
          %5060 = vmatpush1.bf16.msra.mxu0 0
          %5061 = vmatprep.subr.bf16.mxu0 0
          %5062 = vmatpush1.bf16.msra.mxu0 0
          %5063 = vmatprep.subr.bf16.mxu0 0
          %5064 = vmatpush1.bf16.msra.mxu0 0
          %5065 = vmatprep.subr.bf16.mxu0 0
          %5066 = vmatpush1.bf16.msra.mxu0 0
          %5067 = vmatprep.subr.bf16.mxu0 0
          %5068 = vmatpush1.bf16.msra.mxu0 0
          %5069 = vmatprep.subr.bf16.mxu0 0
          %5070 = vmatpush1.bf16.msra.mxu0 0
          %5071 = vmatprep.subr.bf16.mxu0 0
          %5072 = vmatpush1.bf16.msra.mxu0 0
          %5073 = vmatprep.subr.bf16.mxu0 0
          %5074 = vmatpush1.bf16.msra.mxu0 0
          %5075 = vmatprep.subr.bf16.mxu0 0
          %5076 = vmatpush1.bf16.msra.mxu0 0
          %5077 = vmatprep.subr.bf16.mxu0 0
          %5078 = vmatpush1.bf16.msra.mxu0 0
          %5079 = vmatprep.subr.bf16.mxu0 0
          %5080 = vmatpush1.bf16.msra.mxu0 0
          %5081 = vmatprep.subr.bf16.mxu0 0
          %5082 = vmatpush1.bf16.msra.mxu0 0
          %5083 = vmatprep.subr.bf16.mxu0 0
          %5084 = vmatpush1.bf16.msra.mxu0 0
          %5085 = vmatprep.mubr.bf16.mxu0 0
          %5086 = vmatmul.mubr.bf16.gmra.mrb[0].mxu0 %v5051
          %v5087 = vpop.f32.mrb[0].mxu0
          %v5088 = vadd.f32 0.0, %v5087
          %v5089 = vpop.f32.mrb[0].mxu0
          %v5090 = vpop.f32.mrb[0].mxu0
          %v5091 = vadd.f32 0.0, %v5090
          %v5092 = vpop.f32.mrb[0].mxu0
          %5093 = vdwg.mxu0
          %5094 = vrot.lane.b32.xlu0 %v935, 40
          %v5095 = vpop.permute.xlu0 %5094
          %v5098 = vsel %vm1356, %v4902, 0
          %5100 = vmatprep.subr.bf16.mxu0 0
          %5101 = vmatpush1.bf16.msra.mxu0 %v5095
          %5102 = vmatprep.subr.bf16.mxu0 0
          %5103 = vmatpush1.bf16.msra.mxu0 0
          %5104 = vmatprep.subr.bf16.mxu0 0
          %5105 = vmatpush1.bf16.msra.mxu0 0
          %5106 = vmatprep.subr.bf16.mxu0 0
          %5107 = vmatpush1.bf16.msra.mxu0 0
          %5108 = vmatprep.subr.bf16.mxu0 0
          %5109 = vmatpush1.bf16.msra.mxu0 0
          %5110 = vmatprep.subr.bf16.mxu0 0
          %5111 = vmatpush1.bf16.msra.mxu0 0
          %5112 = vmatprep.subr.bf16.mxu0 0
          %5113 = vmatpush1.bf16.msra.mxu0 0
          %5114 = vmatprep.subr.bf16.mxu0 0
          %5115 = vmatpush1.bf16.msra.mxu0 0
          %5116 = vmatprep.subr.bf16.mxu0 0
          %5117 = vmatpush1.bf16.msra.mxu0 0
          %5118 = vmatprep.subr.bf16.mxu0 0
          %5119 = vmatpush1.bf16.msra.mxu0 0
          %5120 = vmatprep.subr.bf16.mxu0 0
          %5121 = vmatpush1.bf16.msra.mxu0 0
          %5122 = vmatprep.subr.bf16.mxu0 0
          %5123 = vmatpush1.bf16.msra.mxu0 0
          %5124 = vmatprep.subr.bf16.mxu0 0
          %5125 = vmatpush1.bf16.msra.mxu0 0
          %5126 = vmatprep.subr.bf16.mxu0 0
          %5127 = vmatpush1.bf16.msra.mxu0 0
          %5128 = vmatprep.subr.bf16.mxu0 0
          %5129 = vmatpush1.bf16.msra.mxu0 0
          %5130 = vmatprep.subr.bf16.mxu0 0
          %5131 = vmatpush1.bf16.msra.mxu0 0
          %5132 = vmatprep.mubr.bf16.mxu0 0
          %5133 = vmatmul.mubr.bf16.gmra.mrb[0].mxu0 %v5098
          %v5134 = vpop.f32.mrb[0].mxu0
          %v5135 = vadd.f32 0.0, %v5134
          %v5136 = vpop.f32.mrb[0].mxu0
          %v5137 = vpop.f32.mrb[0].mxu0
          %v5138 = vadd.f32 0.0, %v5137
          %v5139 = vpop.f32.mrb[0].mxu0
          %5140 = vdwg.mxu0
          %5141 = vrot.lane.b32.xlu0 %v936, 40
          %v5142 = vpop.permute.xlu0 %5141
          %v5145 = vsel %vm1356, %v4903, 0
          %5147 = vmatprep.subr.bf16.mxu0 0
          %5148 = vmatpush1.bf16.msra.mxu0 %v5142
          %5149 = vmatprep.subr.bf16.mxu0 0
          %5150 = vmatpush1.bf16.msra.mxu0 0
          %5151 = vmatprep.subr.bf16.mxu0 0
          %5152 = vmatpush1.bf16.msra.mxu0 0
          %5153 = vmatprep.subr.bf16.mxu0 0
          %5154 = vmatpush1.bf16.msra.mxu0 0
          %5155 = vmatprep.subr.bf16.mxu0 0
          %5156 = vmatpush1.bf16.msra.mxu0 0
          %5157 = vmatprep.subr.bf16.mxu0 0
          %5158 = vmatpush1.bf16.msra.mxu0 0
          %5159 = vmatprep.subr.bf16.mxu0 0
          %5160 = vmatpush1.bf16.msra.mxu0 0
          %5161 = vmatprep.subr.bf16.mxu0 0
          %5162 = vmatpush1.bf16.msra.mxu0 0
          %5163 = vmatprep.subr.bf16.mxu0 0
          %5164 = vmatpush1.bf16.msra.mxu0 0
          %5165 = vmatprep.subr.bf16.mxu0 0
          %5166 = vmatpush1.bf16.msra.mxu0 0
          %5167 = vmatprep.subr.bf16.mxu0 0
          %5168 = vmatpush1.bf16.msra.mxu0 0
          %5169 = vmatprep.subr.bf16.mxu0 0
          %5170 = vmatpush1.bf16.msra.mxu0 0
          %5171 = vmatprep.subr.bf16.mxu0 0
          %5172 = vmatpush1.bf16.msra.mxu0 0
          %5173 = vmatprep.subr.bf16.mxu0 0
          %5174 = vmatpush1.bf16.msra.mxu0 0
          %5175 = vmatprep.subr.bf16.mxu0 0
          %5176 = vmatpush1.bf16.msra.mxu0 0
          %5177 = vmatprep.subr.bf16.mxu0 0
          %5178 = vmatpush1.bf16.msra.mxu0 0
          %5179 = vmatprep.mubr.bf16.mxu0 0
          %5180 = vmatmul.mubr.bf16.gmra.mrb[0].mxu0 %v5145
          %v5181 = vpop.f32.mrb[0].mxu0
          %v5182 = vadd.f32 0.0, %v5181
          %v5183 = vpop.f32.mrb[0].mxu0
          %v5184 = vpop.f32.mrb[0].mxu0
          %v5185 = vadd.f32 0.0, %v5184
          %v5186 = vpop.f32.mrb[0].mxu0
          %5187 = vdwg.mxu0
          %5188 = vrot.lane.b32.xlu0 %v937, 40
          %v5189 = vpop.permute.xlu0 %5188
          %v5192 = vsel %vm1356, %v4904, 0
          %5194 = vmatprep.subr.bf16.mxu0 0
          %5195 = vmatpush1.bf16.msra.mxu0 %v5189
          %5196 = vmatprep.subr.bf16.mxu0 0
          %5197 = vmatpush1.bf16.msra.mxu0 0
          %5198 = vmatprep.subr.bf16.mxu0 0
          %5199 = vmatpush1.bf16.msra.mxu0 0
          %5200 = vmatprep.subr.bf16.mxu0 0
          %5201 = vmatpush1.bf16.msra.mxu0 0
          %5202 = vmatprep.subr.bf16.mxu0 0
          %5203 = vmatpush1.bf16.msra.mxu0 0
          %5204 = vmatprep.subr.bf16.mxu0 0
          %5205 = vmatpush1.bf16.msra.mxu0 0
          %5206 = vmatprep.subr.bf16.mxu0 0
          %5207 = vmatpush1.bf16.msra.mxu0 0
          %5208 = vmatprep.subr.bf16.mxu0 0
          %5209 = vmatpush1.bf16.msra.mxu0 0
          %5210 = vmatprep.subr.bf16.mxu0 0
          %5211 = vmatpush1.bf16.msra.mxu0 0
          %5212 = vmatprep.subr.bf16.mxu0 0
          %5213 = vmatpush1.bf16.msra.mxu0 0
          %5214 = vmatprep.subr.bf16.mxu0 0
          %5215 = vmatpush1.bf16.msra.mxu0 0
          %5216 = vmatprep.subr.bf16.mxu0 0
          %5217 = vmatpush1.bf16.msra.mxu0 0
          %5218 = vmatprep.subr.bf16.mxu0 0
          %5219 = vmatpush1.bf16.msra.mxu0 0
          %5220 = vmatprep.subr.bf16.mxu0 0
          %5221 = vmatpush1.bf16.msra.mxu0 0
          %5222 = vmatprep.subr.bf16.mxu0 0
          %5223 = vmatpush1.bf16.msra.mxu0 0
          %5224 = vmatprep.subr.bf16.mxu0 0
          %5225 = vmatpush1.bf16.msra.mxu0 0
          %5226 = vmatprep.mubr.bf16.mxu0 0
          %5227 = vmatmul.mubr.bf16.gmra.mrb[0].mxu0 %v5192
          %v5228 = vpop.f32.mrb[0].mxu0
          %v5229 = vadd.f32 0.0, %v5228
          %v5230 = vpop.f32.mrb[0].mxu0
          %v5231 = vpop.f32.mrb[0].mxu0
          %v5232 = vadd.f32 0.0, %v5231
          %v5233 = vpop.f32.mrb[0].mxu0
          %5234 = vdwg.mxu0
          %5235 = vrot.lane.b32.xlu0 %v938, 40
          %v5236 = vpop.permute.xlu0 %5235
          %v5239 = vsel %vm1356, %v4905, 0
          %5241 = vmatprep.subr.bf16.mxu0 0
          %5242 = vmatpush1.bf16.msra.mxu0 %v5236
          %5243 = vmatprep.subr.bf16.mxu0 0
          %5244 = vmatpush1.bf16.msra.mxu0 0
          %5245 = vmatprep.subr.bf16.mxu0 0
          %5246 = vmatpush1.bf16.msra.mxu0 0
          %5247 = vmatprep.subr.bf16.mxu0 0
          %5248 = vmatpush1.bf16.msra.mxu0 0
          %5249 = vmatprep.subr.bf16.mxu0 0
          %5250 = vmatpush1.bf16.msra.mxu0 0
          %5251 = vmatprep.subr.bf16.mxu0 0
          %5252 = vmatpush1.bf16.msra.mxu0 0
          %5253 = vmatprep.subr.bf16.mxu0 0
          %5254 = vmatpush1.bf16.msra.mxu0 0
          %5255 = vmatprep.subr.bf16.mxu0 0
          %5256 = vmatpush1.bf16.msra.mxu0 0
          %5257 = vmatprep.subr.bf16.mxu0 0
          %5258 = vmatpush1.bf16.msra.mxu0 0
          %5259 = vmatprep.subr.bf16.mxu0 0
          %5260 = vmatpush1.bf16.msra.mxu0 0
          %5261 = vmatprep.subr.bf16.mxu0 0
          %5262 = vmatpush1.bf16.msra.mxu0 0
          %5263 = vmatprep.subr.bf16.mxu0 0
          %5264 = vmatpush1.bf16.msra.mxu0 0
          %5265 = vmatprep.subr.bf16.mxu0 0
          %5266 = vmatpush1.bf16.msra.mxu0 0
          %5267 = vmatprep.subr.bf16.mxu0 0
          %5268 = vmatpush1.bf16.msra.mxu0 0
          %5269 = vmatprep.subr.bf16.mxu0 0
          %5270 = vmatpush1.bf16.msra.mxu0 0
          %5271 = vmatprep.subr.bf16.mxu0 0
          %5272 = vmatpush1.bf16.msra.mxu0 0
          %5273 = vmatprep.mubr.bf16.mxu0 0
          %5274 = vmatmul.mubr.bf16.gmra.mrb[0].mxu0 %v5239
          %v5275 = vpop.f32.mrb[0].mxu0
          %v5276 = vadd.f32 0.0, %v5275
          %v5277 = vpop.f32.mrb[0].mxu0
          %v5278 = vpop.f32.mrb[0].mxu0
          %v5279 = vadd.f32 0.0, %v5278
          %v5280 = vpop.f32.mrb[0].mxu0
          %5281 = vdwg.mxu0
          %v5282 = vpack.c.bf16 %v4950, %v4947
          %v5283 = vpack.c.bf16 %v4997, %v4994
          %v5284 = vpack.c.bf16 %v5044, %v5041
          %v5285 = vpack.c.bf16 %v5091, %v5088
          %v5286 = vpack.c.bf16 %v5138, %v5135
          %v5287 = vpack.c.bf16 %v5185, %v5182
          %v5288 = vpack.c.bf16 %v5232, %v5229
          %v5289 = vpack.c.bf16 %v5279, %v5276
          %v5291 = vsel %vm942, %v5282, 0
          %v5294 = vsel %vm942, %v5283, 0
          %v5297 = vsel %vm942, %v5284, 0
          %v5300 = vsel %vm942, %v5285, 0
          %v5303 = vsel %vm942, %v5286, 0
          %v5306 = vsel %vm942, %v5287, 0
          %v5309 = vsel %vm942, %v5288, 0
          %v5312 = vsel %vm942, %v5289, 0
          %v5315 = vsel %vm2941, %v930, 0
          %5317 = vmatprep.subr.bf16.mxu0 0
          %5318 = vmatpush1.bf16.msra.mxu0 %v5315
          %5319 = vmatprep.subr.bf16.mxu0 0
          %5320 = vmatpush1.bf16.msra.mxu0 0
          %5321 = vmatprep.subr.bf16.mxu0 0
          %5322 = vmatpush1.bf16.msra.mxu0 0
          %5323 = vmatprep.subr.bf16.mxu0 0
          %5324 = vmatpush1.bf16.msra.mxu0 0
          %5325 = vmatprep.subr.bf16.mxu0 0
          %5326 = vmatpush1.bf16.msra.mxu0 0
          %5327 = vmatprep.subr.bf16.mxu0 0
          %5328 = vmatpush1.bf16.msra.mxu0 0
          %5329 = vmatprep.subr.bf16.mxu0 0
          %5330 = vmatpush1.bf16.msra.mxu0 0
          %5331 = vmatprep.subr.bf16.mxu0 0
          %5332 = vmatpush1.bf16.msra.mxu0 0
          %5333 = vmatprep.subr.bf16.mxu0 0
          %5334 = vmatpush1.bf16.msra.mxu0 0
          %5335 = vmatprep.subr.bf16.mxu0 0
          %5336 = vmatpush1.bf16.msra.mxu0 0
          %5337 = vmatprep.subr.bf16.mxu0 0
          %5338 = vmatpush1.bf16.msra.mxu0 0
          %5339 = vmatprep.subr.bf16.mxu0 0
          %5340 = vmatpush1.bf16.msra.mxu0 0
          %5341 = vmatprep.subr.bf16.mxu0 0
          %5342 = vmatpush1.bf16.msra.mxu0 0
          %5343 = vmatprep.subr.bf16.mxu0 0
          %5344 = vmatpush1.bf16.msra.mxu0 0
          %5345 = vmatprep.subr.bf16.mxu0 0
          %5346 = vmatpush1.bf16.msra.mxu0 0
          %5347 = vmatprep.subr.bf16.mxu0 0
          %5348 = vmatpush1.bf16.msra.mxu0 0
          %5349 = vmatprep.mubr.bf16.mxu0 0
          %5350 = vmatmul.mubr.bf16.gmra.mrb[0].mxu0 %v5291
          %v5351 = vpop.f32.mrb[0].mxu0
          %v5352 = vadd.f32 0.0, %v5351
          %v5353 = vpop.f32.mrb[0].mxu0
          %v5354 = vpop.f32.mrb[0].mxu0
          %v5355 = vadd.f32 0.0, %v5354
          %v5356 = vpop.f32.mrb[0].mxu0
          %5357 = vmatprep.mubr.bf16.mxu0 0
          %5358 = vmatmul.mubr.bf16.gmra.mrb[0].mxu0 %v5294
          %v5359 = vpop.f32.mrb[0].mxu0
          %v5360 = vadd.f32 0.0, %v5359
          %v5361 = vpop.f32.mrb[0].mxu0
          %v5362 = vpop.f32.mrb[0].mxu0
          %v5363 = vadd.f32 0.0, %v5362
          %v5364 = vpop.f32.mrb[0].mxu0
          %5365 = vmatprep.mubr.bf16.mxu0 0
          %5366 = vmatmul.mubr.bf16.gmra.mrb[0].mxu0 %v5297
          %v5367 = vpop.f32.mrb[0].mxu0
          %v5368 = vadd.f32 0.0, %v5367
          %v5369 = vpop.f32.mrb[0].mxu0
          %v5370 = vpop.f32.mrb[0].mxu0
          %v5371 = vadd.f32 0.0, %v5370
          %v5372 = vpop.f32.mrb[0].mxu0
          %5373 = vmatprep.mubr.bf16.mxu0 0
          %5374 = vmatmul.mubr.bf16.gmra.mrb[0].mxu0 %v5300
          %v5375 = vpop.f32.mrb[0].mxu0
          %v5376 = vadd.f32 0.0, %v5375
          %v5377 = vpop.f32.mrb[0].mxu0
          %v5378 = vpop.f32.mrb[0].mxu0
          %v5379 = vadd.f32 0.0, %v5378
          %v5380 = vpop.f32.mrb[0].mxu0
          %5381 = vmatprep.mubr.bf16.mxu0 0
          %5382 = vmatmul.mubr.bf16.gmra.mrb[0].mxu0 %v5303
          %v5383 = vpop.f32.mrb[0].mxu0
          %v5384 = vadd.f32 0.0, %v5383
          %v5385 = vpop.f32.mrb[0].mxu0
          %v5386 = vpop.f32.mrb[0].mxu0
          %v5387 = vadd.f32 0.0, %v5386
          %v5388 = vpop.f32.mrb[0].mxu0
          %5389 = vmatprep.mubr.bf16.mxu0 0
          %5390 = vmatmul.mubr.bf16.gmra.mrb[0].mxu0 %v5306
          %v5391 = vpop.f32.mrb[0].mxu0
          %v5392 = vadd.f32 0.0, %v5391
          %v5393 = vpop.f32.mrb[0].mxu0
          %v5394 = vpop.f32.mrb[0].mxu0
          %v5395 = vadd.f32 0.0, %v5394
          %v5396 = vpop.f32.mrb[0].mxu0
          %5397 = vmatprep.mubr.bf16.mxu0 0
          %5398 = vmatmul.mubr.bf16.gmra.mrb[0].mxu0 %v5309
          %v5399 = vpop.f32.mrb[0].mxu0
          %v5400 = vadd.f32 0.0, %v5399
          %v5401 = vpop.f32.mrb[0].mxu0
          %v5402 = vpop.f32.mrb[0].mxu0
          %v5403 = vadd.f32 0.0, %v5402
          %v5404 = vpop.f32.mrb[0].mxu0
          %5405 = vmatprep.mubr.bf16.mxu0 0
          %5406 = vmatmul.mubr.bf16.gmra.mrb[0].mxu0 %v5312
          %v5407 = vpop.f32.mrb[0].mxu0
          %v5408 = vadd.f32 0.0, %v5407
          %v5409 = vpop.f32.mrb[0].mxu0
          %v5410 = vpop.f32.mrb[0].mxu0
          %v5411 = vadd.f32 0.0, %v5410
          %v5412 = vpop.f32.mrb[0].mxu0
          %5413 = vdwg.mxu0
          %v5414 = vadd.f32 %v4282, %v5352
          %v5415 = vadd.f32 %v4283, %v5355
          %v5416 = vadd.f32 %v4284, %v5360
          %v5417 = vadd.f32 %v4285, %v5363
          %v5418 = vadd.f32 %v4286, %v5368
          %v5419 = vadd.f32 %v4287, %v5371
          %v5420 = vadd.f32 %v4288, %v5376
          %v5421 = vadd.f32 %v4289, %v5379
          %v5422 = vadd.f32 %v4290, %v5384
          %v5423 = vadd.f32 %v4291, %v5387
          %v5424 = vadd.f32 %v4292, %v5392
          %v5425 = vadd.f32 %v4293, %v5395
          %v5426 = vadd.f32 %v4294, %v5400
          %v5427 = vadd.f32 %v4295, %v5403
          %v5428 = vadd.f32 %v4296, %v5408
          %v5429 = vadd.f32 %v4297, %v5411
          %s5430 = scalar_lea.vmem %s7, %s747
          %v5431 = vld [vmem:[%s5430] sm:$0x1]
          %v5433 = vlaneseq
          %v5434 = vshrl.u32 %v5433, 7
          %v5435 = vsub.s32 0, %v5434
          %v5436 = vrot.slane %v5431, %v5435
          %v5438 = vadd.f32 %v5414, %v5436
          %v5439 = vadd.f32 %v5415, %v5436
          %v5440 = vadd.f32 %v5416, %v5436
          %v5441 = vadd.f32 %v5417, %v5436
          %v5442 = vadd.f32 %v5418, %v5436
          %v5443 = vadd.f32 %v5419, %v5436
          %v5444 = vadd.f32 %v5420, %v5436
          %v5445 = vadd.f32 %v5421, %v5436
          %v5446 = vadd.f32 %v5422, %v5436
          %v5447 = vadd.f32 %v5423, %v5436
          %v5448 = vadd.f32 %v5424, %v5436
          %v5449 = vadd.f32 %v5425, %v5436
          %v5450 = vadd.f32 %v5426, %v5436
          %v5451 = vadd.f32 %v5427, %v5436
          %v5452 = vadd.f32 %v5428, %v5436
          %v5453 = vadd.f32 %v5429, %v5436
          %v5454 = vadd.f32 %v752, %v5438
          %v5455 = vadd.f32 %v753, %v5439
          %v5456 = vadd.f32 %v754, %v5440
          %v5457 = vadd.f32 %v755, %v5441
          %v5458 = vadd.f32 %v756, %v5442
          %v5459 = vadd.f32 %v757, %v5443
          %v5460 = vadd.f32 %v758, %v5444
          %v5461 = vadd.f32 %v759, %v5445
          %v5462 = vadd.f32 %v760, %v5446
          %v5463 = vadd.f32 %v761, %v5447
          %v5464 = vadd.f32 %v762, %v5448
          %v5465 = vadd.f32 %v763, %v5449
          %v5466 = vadd.f32 %v764, %v5450
          %v5467 = vadd.f32 %v765, %v5451
          %v5468 = vadd.f32 %v766, %v5452
          %v5469 = vadd.f32 %v767, %v5453
          %s5470 = scalar_lea.vmem %s8, %s747
          %v5471 = vld [vmem:[%s5470] sm:$0x1]
          %s5472 = scalar_lea.vmem %s9, %s747
          %v5473 = vld [vmem:[%s5472] sm:$0x1]
          %v5474 = vsel %vm803, %v5454, 0.0
          %5475 = vadd.xlane.f32.xlu0 %v5474
          %v5476 = vpop.xlane.xlu0 %5475
          %v5477 = vsel %vm803, %v5455, 0.0
          %5478 = vadd.xlane.f32.xlu0 %v5477
          %v5479 = vpop.xlane.xlu0 %5478
          %v5480 = vsel %vm803, %v5456, 0.0
          %5481 = vadd.xlane.f32.xlu0 %v5480
          %v5482 = vpop.xlane.xlu0 %5481
          %v5483 = vsel %vm803, %v5457, 0.0
          %5484 = vadd.xlane.f32.xlu0 %v5483
          %v5485 = vpop.xlane.xlu0 %5484
          %v5486 = vsel %vm803, %v5458, 0.0
          %5487 = vadd.xlane.f32.xlu0 %v5486
          %v5488 = vpop.xlane.xlu0 %5487
          %v5489 = vsel %vm803, %v5459, 0.0
          %5490 = vadd.xlane.f32.xlu0 %v5489
          %v5491 = vpop.xlane.xlu0 %5490
          %v5492 = vsel %vm803, %v5460, 0.0
          %5493 = vadd.xlane.f32.xlu0 %v5492
          %v5494 = vpop.xlane.xlu0 %5493
          %v5495 = vsel %vm803, %v5461, 0.0
          %5496 = vadd.xlane.f32.xlu0 %v5495
          %v5497 = vpop.xlane.xlu0 %5496
          %v5498 = vsel %vm803, %v5462, 0.0
          %5499 = vadd.xlane.f32.xlu0 %v5498
          %v5500 = vpop.xlane.xlu0 %5499
          %v5501 = vsel %vm803, %v5463, 0.0
          %5502 = vadd.xlane.f32.xlu0 %v5501
          %v5503 = vpop.xlane.xlu0 %5502
          %v5504 = vsel %vm803, %v5464, 0.0
          %5505 = vadd.xlane.f32.xlu0 %v5504
          %v5506 = vpop.xlane.xlu0 %5505
          %v5507 = vsel %vm803, %v5465, 0.0
          %5508 = vadd.xlane.f32.xlu0 %v5507
          %v5509 = vpop.xlane.xlu0 %5508
          %v5510 = vsel %vm803, %v5466, 0.0
          %5511 = vadd.xlane.f32.xlu0 %v5510
          %v5512 = vpop.xlane.xlu0 %5511
          %v5513 = vsel %vm803, %v5467, 0.0
          %5514 = vadd.xlane.f32.xlu0 %v5513
          %v5515 = vpop.xlane.xlu0 %5514
          %v5516 = vsel %vm803, %v5468, 0.0
          %5517 = vadd.xlane.f32.xlu0 %v5516
          %v5518 = vpop.xlane.xlu0 %5517
          %v5519 = vsel %vm803, %v5469, 0.0
          %5520 = vadd.xlane.f32.xlu0 %v5519
          %v5521 = vpop.xlane.xlu0 %5520
          %v5522 = vrcp.pop 32.0
          %v5523 = vmul.f32 %v5476, %v5522
          %v5524 = vmul.f32 %v5479, %v5522
          %v5525 = vmul.f32 %v5482, %v5522
          %v5526 = vmul.f32 %v5485, %v5522
          %v5527 = vmul.f32 %v5488, %v5522
          %v5528 = vmul.f32 %v5491, %v5522
          %v5529 = vmul.f32 %v5494, %v5522
          %v5530 = vmul.f32 %v5497, %v5522
          %v5531 = vmul.f32 %v5500, %v5522
          %v5532 = vmul.f32 %v5503, %v5522
          %v5533 = vmul.f32 %v5506, %v5522
          %v5534 = vmul.f32 %v5509, %v5522
          %v5535 = vmul.f32 %v5512, %v5522
          %v5536 = vmul.f32 %v5515, %v5522
          %v5537 = vmul.f32 %v5518, %v5522
          %v5538 = vmul.f32 %v5521, %v5522
          %v5539 = vsub.f32 %v5454, %v5523
          %v5540 = vsub.f32 %v5455, %v5524
          %v5541 = vsub.f32 %v5456, %v5525
          %v5542 = vsub.f32 %v5457, %v5526
          %v5543 = vsub.f32 %v5458, %v5527
          %v5544 = vsub.f32 %v5459, %v5528
          %v5545 = vsub.f32 %v5460, %v5529
          %v5546 = vsub.f32 %v5461, %v5530
          %v5547 = vsub.f32 %v5462, %v5531
          %v5548 = vsub.f32 %v5463, %v5532
          %v5549 = vsub.f32 %v5464, %v5533
          %v5550 = vsub.f32 %v5465, %v5534
          %v5551 = vsub.f32 %v5466, %v5535
          %v5552 = vsub.f32 %v5467, %v5536
          %v5553 = vsub.f32 %v5468, %v5537
          %v5554 = vsub.f32 %v5469, %v5538
          %v5555 = vmul.f32 %v5539, %v5539
          %v5556 = vmul.f32 %v5540, %v5540
          %v5557 = vmul.f32 %v5541, %v5541
          %v5558 = vmul.f32 %v5542, %v5542
          %v5559 = vmul.f32 %v5543, %v5543
          %v5560 = vmul.f32 %v5544, %v5544
          %v5561 = vmul.f32 %v5545, %v5545
          %v5562 = vmul.f32 %v5546, %v5546
          %v5563 = vmul.f32 %v5547, %v5547
          %v5564 = vmul.f32 %v5548, %v5548
          %v5565 = vmul.f32 %v5549, %v5549
          %v5566 = vmul.f32 %v5550, %v5550
          %v5567 = vmul.f32 %v5551, %v5551
          %v5568 = vmul.f32 %v5552, %v5552
          %v5569 = vmul.f32 %v5553, %v5553
          %v5570 = vmul.f32 %v5554, %v5554
          %v5571 = vsel %vm803, %v5555, 0.0
          %5572 = vadd.xlane.f32.xlu0 %v5571
          %v5573 = vpop.xlane.xlu0 %5572
          %v5574 = vsel %vm803, %v5556, 0.0
          %5575 = vadd.xlane.f32.xlu0 %v5574
          %v5576 = vpop.xlane.xlu0 %5575
          %v5577 = vsel %vm803, %v5557, 0.0
          %5578 = vadd.xlane.f32.xlu0 %v5577
          %v5579 = vpop.xlane.xlu0 %5578
          %v5580 = vsel %vm803, %v5558, 0.0
          %5581 = vadd.xlane.f32.xlu0 %v5580
          %v5582 = vpop.xlane.xlu0 %5581
          %v5583 = vsel %vm803, %v5559, 0.0
          %5584 = vadd.xlane.f32.xlu0 %v5583
          %v5585 = vpop.xlane.xlu0 %5584
          %v5586 = vsel %vm803, %v5560, 0.0
          %5587 = vadd.xlane.f32.xlu0 %v5586
          %v5588 = vpop.xlane.xlu0 %5587
          %v5589 = vsel %vm803, %v5561, 0.0
          %5590 = vadd.xlane.f32.xlu0 %v5589
          %v5591 = vpop.xlane.xlu0 %5590
          %v5592 = vsel %vm803, %v5562, 0.0
          %5593 = vadd.xlane.f32.xlu0 %v5592
          %v5594 = vpop.xlane.xlu0 %5593
          %v5595 = vsel %vm803, %v5563, 0.0
          %5596 = vadd.xlane.f32.xlu0 %v5595
          %v5597 = vpop.xlane.xlu0 %5596
          %v5598 = vsel %vm803, %v5564, 0.0
          %5599 = vadd.xlane.f32.xlu0 %v5598
          %v5600 = vpop.xlane.xlu0 %5599
          %v5601 = vsel %vm803, %v5565, 0.0
          %5602 = vadd.xlane.f32.xlu0 %v5601
          %v5603 = vpop.xlane.xlu0 %5602
          %v5604 = vsel %vm803, %v5566, 0.0
          %5605 = vadd.xlane.f32.xlu0 %v5604
          %v5606 = vpop.xlane.xlu0 %5605
          %v5607 = vsel %vm803, %v5567, 0.0
          %5608 = vadd.xlane.f32.xlu0 %v5607
          %v5609 = vpop.xlane.xlu0 %5608
          %v5610 = vsel %vm803, %v5568, 0.0
          %5611 = vadd.xlane.f32.xlu0 %v5610
          %v5612 = vpop.xlane.xlu0 %5611
          %v5613 = vsel %vm803, %v5569, 0.0
          %5614 = vadd.xlane.f32.xlu0 %v5613
          %v5615 = vpop.xlane.xlu0 %5614
          %v5616 = vsel %vm803, %v5570, 0.0
          %5617 = vadd.xlane.f32.xlu0 %v5616
          %v5618 = vpop.xlane.xlu0 %5617
          %v5619 = vmul.f32 %v5573, %v5522
          %v5620 = vmul.f32 %v5576, %v5522
          %v5621 = vmul.f32 %v5579, %v5522
          %v5622 = vmul.f32 %v5582, %v5522
          %v5623 = vmul.f32 %v5585, %v5522
          %v5624 = vmul.f32 %v5588, %v5522
          %v5625 = vmul.f32 %v5591, %v5522
          %v5626 = vmul.f32 %v5594, %v5522
          %v5627 = vmul.f32 %v5597, %v5522
          %v5628 = vmul.f32 %v5600, %v5522
          %v5629 = vmul.f32 %v5603, %v5522
          %v5630 = vmul.f32 %v5606, %v5522
          %v5631 = vmul.f32 %v5609, %v5522
          %v5632 = vmul.f32 %v5612, %v5522
          %v5633 = vmul.f32 %v5615, %v5522
          %v5634 = vmul.f32 %v5618, %v5522
          %v5635 = vadd.f32 %v5619, 1e-05
          %v5636 = vadd.f32 %v5620, 1e-05
          %v5637 = vadd.f32 %v5621, 1e-05
          %v5638 = vadd.f32 %v5622, 1e-05
          %v5639 = vadd.f32 %v5623, 1e-05
          %v5640 = vadd.f32 %v5624, 1e-05
          %v5641 = vadd.f32 %v5625, 1e-05
          %v5642 = vadd.f32 %v5626, 1e-05
          %v5643 = vadd.f32 %v5627, 1e-05
          %v5644 = vadd.f32 %v5628, 1e-05
          %v5645 = vadd.f32 %v5629, 1e-05
          %v5646 = vadd.f32 %v5630, 1e-05
          %v5647 = vadd.f32 %v5631, 1e-05
          %v5648 = vadd.f32 %v5632, 1e-05
          %v5649 = vadd.f32 %v5633, 1e-05
          %v5650 = vadd.f32 %v5634, 1e-05
          %v5651 = vrsqrt.pop %v5635
          %v5652 = vrsqrt.pop %v5636
          %v5653 = vrsqrt.pop %v5637
          %v5654 = vrsqrt.pop %v5638
          %v5655 = vrsqrt.pop %v5639
          %v5656 = vrsqrt.pop %v5640
          %v5657 = vrsqrt.pop %v5641
          %v5658 = vrsqrt.pop %v5642
          %v5659 = vrsqrt.pop %v5643
          %v5660 = vrsqrt.pop %v5644
          %v5661 = vrsqrt.pop %v5645
          %v5662 = vrsqrt.pop %v5646
          %v5663 = vrsqrt.pop %v5647
          %v5664 = vrsqrt.pop %v5648
          %v5665 = vrsqrt.pop %v5649
          %v5666 = vrsqrt.pop %v5650
          %v5667 = vmul.f32 %v5539, %v5651
          %v5668 = vmul.f32 %v5540, %v5652
          %v5669 = vmul.f32 %v5541, %v5653
          %v5670 = vmul.f32 %v5542, %v5654
          %v5671 = vmul.f32 %v5543, %v5655
          %v5672 = vmul.f32 %v5544, %v5656
          %v5673 = vmul.f32 %v5545, %v5657
          %v5674 = vmul.f32 %v5546, %v5658
          %v5675 = vmul.f32 %v5547, %v5659
          %v5676 = vmul.f32 %v5548, %v5660
          %v5677 = vmul.f32 %v5549, %v5661
          %v5678 = vmul.f32 %v5550, %v5662
          %v5679 = vmul.f32 %v5551, %v5663
          %v5680 = vmul.f32 %v5552, %v5664
          %v5681 = vmul.f32 %v5553, %v5665
          %v5682 = vmul.f32 %v5554, %v5666
          %v5684 = vlaneseq
          %v5685 = vshrl.u32 %v5684, 7
          %v5686 = vsub.s32 0, %v5685
          %v5687 = vrot.slane %v5471, %v5686
          %v5689 = vmul.f32 %v5667, %v5687
          %v5690 = vmul.f32 %v5668, %v5687
          %v5691 = vmul.f32 %v5669, %v5687
          %v5692 = vmul.f32 %v5670, %v5687
          %v5693 = vmul.f32 %v5671, %v5687
          %v5694 = vmul.f32 %v5672, %v5687
          %v5695 = vmul.f32 %v5673, %v5687
          %v5696 = vmul.f32 %v5674, %v5687
          %v5697 = vmul.f32 %v5675, %v5687
          %v5698 = vmul.f32 %v5676, %v5687
          %v5699 = vmul.f32 %v5677, %v5687
          %v5700 = vmul.f32 %v5678, %v5687
          %v5701 = vmul.f32 %v5679, %v5687
          %v5702 = vmul.f32 %v5680, %v5687
          %v5703 = vmul.f32 %v5681, %v5687
          %v5704 = vmul.f32 %v5682, %v5687
          %v5706 = vlaneseq
          %v5707 = vshrl.u32 %v5706, 7
          %v5708 = vsub.s32 0, %v5707
          %v5709 = vrot.slane %v5473, %v5708
          %v5711 = vadd.f32 %v5689, %v5709
          %v5712 = vadd.f32 %v5690, %v5709
          %v5713 = vadd.f32 %v5691, %v5709
          %v5714 = vadd.f32 %v5692, %v5709
          %v5715 = vadd.f32 %v5693, %v5709
          %v5716 = vadd.f32 %v5694, %v5709
          %v5717 = vadd.f32 %v5695, %v5709
          %v5718 = vadd.f32 %v5696, %v5709
          %v5719 = vadd.f32 %v5697, %v5709
          %v5720 = vadd.f32 %v5698, %v5709
          %v5721 = vadd.f32 %v5699, %v5709
          %v5722 = vadd.f32 %v5700, %v5709
          %v5723 = vadd.f32 %v5701, %v5709
          %v5724 = vadd.f32 %v5702, %v5709
          %v5725 = vadd.f32 %v5703, %v5709
          %v5726 = vadd.f32 %v5704, %v5709
          %s5727 = smul.addr %s768, 4
          %s5728 = scalar_lea.vmem %s10, %s5727
          %v5729 = vld [vmem:[%s5728] sm:$0xf]
          %v5730 = vld [vmem:[%s5728 + $0x4] sm:$0xf]
          %v5731 = vld [vmem:[%s5728 + $0x8] sm:$0xf]
          %v5732 = vld [vmem:[%s5728 + $0xc] sm:$0xf]
          %v5733 = vpack.c.bf16 %v5712, %v5711
          %v5734 = vpack.c.bf16 %v5714, %v5713
          %v5735 = vpack.c.bf16 %v5716, %v5715
          %v5736 = vpack.c.bf16 %v5718, %v5717
          %v5737 = vpack.c.bf16 %v5720, %v5719
          %v5738 = vpack.c.bf16 %v5722, %v5721
          %v5739 = vpack.c.bf16 %v5724, %v5723
          %v5740 = vpack.c.bf16 %v5726, %v5725
          %s5741 = scalar_lea.vmem %s11, %s747
          %v5742 = vld [vmem:[%s5741] sm:$0x1]
          %v5744 = vlaneseq
          %v5745 = vshrl.u32 %v5744, 7
          %v5746 = vsub.s32 0, %v5745
          %v5747 = vrot.slane %v5742, %v5746
          %v5753 = vunpack.c.l.b16 %v5729
          %v5754 = vunpack.c.l.b16 %v5730
          %v5755 = vunpack.c.l.b16 %v5731
          %v5756 = vunpack.c.l.b16 %v5732
          %v5757 = vpack.c.b16 %v5754, %v5753
          %v5758 = vpack.c.b16 %v5756, %v5755
          %v5762 = vsel %vm803, %v5733, 0
          %v5765 = vsel %vm803, %v5734, 0
          %v5768 = vsel %vm803, %v5735, 0
          %v5771 = vsel %vm803, %v5736, 0
          %v5774 = vsel %vm803, %v5737, 0
          %v5777 = vsel %vm803, %v5738, 0
          %v5780 = vsel %vm803, %v5739, 0
          %v5783 = vsel %vm803, %v5740, 0
          %5785 = vmatprep.subr.bf16.mxu0 0
          %5786 = vmatpush1.bf16.msra.mxu0 %v5757
          %5787 = vmatprep.subr.bf16.mxu0 0
          %5788 = vmatpush1.bf16.msra.mxu0 %v5758
          %5789 = vmatprep.subr.bf16.mxu0 0
          %5790 = vmatpush1.bf16.msra.mxu0 0
          %5791 = vmatprep.subr.bf16.mxu0 0
          %5792 = vmatpush1.bf16.msra.mxu0 0
          %5793 = vmatprep.subr.bf16.mxu0 0
          %5794 = vmatpush1.bf16.msra.mxu0 0
          %5795 = vmatprep.subr.bf16.mxu0 0
          %5796 = vmatpush1.bf16.msra.mxu0 0
          %5797 = vmatprep.subr.bf16.mxu0 0
          %5798 = vmatpush1.bf16.msra.mxu0 0
          %5799 = vmatprep.subr.bf16.mxu0 0
          %5800 = vmatpush1.bf16.msra.mxu0 0
          %5801 = vmatprep.subr.bf16.mxu0 0
          %5802 = vmatpush1.bf16.msra.mxu0 0
          %5803 = vmatprep.subr.bf16.mxu0 0
          %5804 = vmatpush1.bf16.msra.mxu0 0
          %5805 = vmatprep.subr.bf16.mxu0 0
          %5806 = vmatpush1.bf16.msra.mxu0 0
          %5807 = vmatprep.subr.bf16.mxu0 0
          %5808 = vmatpush1.bf16.msra.mxu0 0
          %5809 = vmatprep.subr.bf16.mxu0 0
          %5810 = vmatpush1.bf16.msra.mxu0 0
          %5811 = vmatprep.subr.bf16.mxu0 0
          %5812 = vmatpush1.bf16.msra.mxu0 0
          %5813 = vmatprep.subr.bf16.mxu0 0
          %5814 = vmatpush1.bf16.msra.mxu0 0
          %5815 = vmatprep.subr.bf16.mxu0 0
          %5816 = vmatpush1.bf16.msra.mxu0 0
          %5817 = vmatprep.mubr.bf16.mxu0 0
          %5818 = vmatmul.mubr.bf16.gmra.mrb[0].mxu0 %v5762
          %v5819 = vpop.f32.mrb[0].mxu0
          %v5820 = vadd.f32 %v5747, %v5819
          %v5821 = vpop.f32.mrb[0].mxu0
          %v5822 = vpop.f32.mrb[0].mxu0
          %v5823 = vadd.f32 %v5747, %v5822
          %v5824 = vpop.f32.mrb[0].mxu0
          %5825 = vmatprep.mubr.bf16.mxu0 0
          %5826 = vmatmul.mubr.bf16.gmra.mrb[0].mxu0 %v5765
          %v5827 = vpop.f32.mrb[0].mxu0
          %v5828 = vadd.f32 %v5747, %v5827
          %v5829 = vpop.f32.mrb[0].mxu0
          %v5830 = vpop.f32.mrb[0].mxu0
          %v5831 = vadd.f32 %v5747, %v5830
          %v5832 = vpop.f32.mrb[0].mxu0
          %5833 = vmatprep.mubr.bf16.mxu0 0
          %5834 = vmatmul.mubr.bf16.gmra.mrb[0].mxu0 %v5768
          %v5835 = vpop.f32.mrb[0].mxu0
          %v5836 = vadd.f32 %v5747, %v5835
          %v5837 = vpop.f32.mrb[0].mxu0
          %v5838 = vpop.f32.mrb[0].mxu0
          %v5839 = vadd.f32 %v5747, %v5838
          %v5840 = vpop.f32.mrb[0].mxu0
          %5841 = vmatprep.mubr.bf16.mxu0 0
          %5842 = vmatmul.mubr.bf16.gmra.mrb[0].mxu0 %v5771
          %v5843 = vpop.f32.mrb[0].mxu0
          %v5844 = vadd.f32 %v5747, %v5843
          %v5845 = vpop.f32.mrb[0].mxu0
          %v5846 = vpop.f32.mrb[0].mxu0
          %v5847 = vadd.f32 %v5747, %v5846
          %v5848 = vpop.f32.mrb[0].mxu0
          %5849 = vmatprep.mubr.bf16.mxu0 0
          %5850 = vmatmul.mubr.bf16.gmra.mrb[0].mxu0 %v5774
          %v5851 = vpop.f32.mrb[0].mxu0
          %v5852 = vadd.f32 %v5747, %v5851
          %v5853 = vpop.f32.mrb[0].mxu0
          %v5854 = vpop.f32.mrb[0].mxu0
          %v5855 = vadd.f32 %v5747, %v5854
          %v5856 = vpop.f32.mrb[0].mxu0
          %5857 = vmatprep.mubr.bf16.mxu0 0
          %5858 = vmatmul.mubr.bf16.gmra.mrb[0].mxu0 %v5777
          %v5859 = vpop.f32.mrb[0].mxu0
          %v5860 = vadd.f32 %v5747, %v5859
          %v5861 = vpop.f32.mrb[0].mxu0
          %v5862 = vpop.f32.mrb[0].mxu0
          %v5863 = vadd.f32 %v5747, %v5862
          %v5864 = vpop.f32.mrb[0].mxu0
          %5865 = vmatprep.mubr.bf16.mxu0 0
          %5866 = vmatmul.mubr.bf16.gmra.mrb[0].mxu0 %v5780
          %v5867 = vpop.f32.mrb[0].mxu0
          %v5868 = vadd.f32 %v5747, %v5867
          %v5869 = vpop.f32.mrb[0].mxu0
          %v5870 = vpop.f32.mrb[0].mxu0
          %v5871 = vadd.f32 %v5747, %v5870
          %v5872 = vpop.f32.mrb[0].mxu0
          %5873 = vmatprep.mubr.bf16.mxu0 0
          %5874 = vmatmul.mubr.bf16.gmra.mrb[0].mxu0 %v5783
          %v5875 = vpop.f32.mrb[0].mxu0
          %v5876 = vadd.f32 %v5747, %v5875
          %v5877 = vpop.f32.mrb[0].mxu0
          %v5878 = vpop.f32.mrb[0].mxu0
          %v5879 = vadd.f32 %v5747, %v5878
          %v5880 = vpop.f32.mrb[0].mxu0
          %5881 = vdwg.mxu0
          %v5882 = vmax.f32 %v5820, 0.0
          %v5883 = vmax.f32 %v5823, 0.0
          %v5884 = vmax.f32 %v5828, 0.0
          %v5885 = vmax.f32 %v5831, 0.0
          %v5886 = vmax.f32 %v5836, 0.0
          %v5887 = vmax.f32 %v5839, 0.0
          %v5888 = vmax.f32 %v5844, 0.0
          %v5889 = vmax.f32 %v5847, 0.0
          %v5890 = vmax.f32 %v5852, 0.0
          %v5891 = vmax.f32 %v5855, 0.0
          %v5892 = vmax.f32 %v5860, 0.0
          %v5893 = vmax.f32 %v5863, 0.0
          %v5894 = vmax.f32 %v5868, 0.0
          %v5895 = vmax.f32 %v5871, 0.0
          %v5896 = vmax.f32 %v5876, 0.0
          %v5897 = vmax.f32 %v5879, 0.0
          %s5898 = smul.u32 %s747, 8
          %s5899 = smul.addr %s5898, 4
          %s5900 = scalar_lea.vmem %s12, %s5899
          %v5901 = vld [vmem:[%s5900] sm:$0xf]
          %v5902 = vld [vmem:[%s5900 + $0x4] sm:$0xf]
          %v5903 = vld [vmem:[%s5900 + $0x8] sm:$0xf]
          %v5904 = vld [vmem:[%s5900 + $0xc] sm:$0xf]
          %v5905 = vld [vmem:[%s5900 + $0x10] sm:$0xf]
          %v5906 = vld [vmem:[%s5900 + $0x14] sm:$0xf]
          %v5907 = vld [vmem:[%s5900 + $0x18] sm:$0xf]
          %v5908 = vld [vmem:[%s5900 + $0x1c] sm:$0xf]
          %v5909 = vpack.c.bf16 %v5883, %v5882
          %v5910 = vpack.c.bf16 %v5885, %v5884
          %v5911 = vpack.c.bf16 %v5887, %v5886
          %v5912 = vpack.c.bf16 %v5889, %v5888
          %v5913 = vpack.c.bf16 %v5891, %v5890
          %v5914 = vpack.c.bf16 %v5893, %v5892
          %v5915 = vpack.c.bf16 %v5895, %v5894
          %v5916 = vpack.c.bf16 %v5897, %v5896
          %s5917 = scalar_lea.vmem %s13, %s747
          %v5918 = vld [vmem:[%s5917] sm:$0x1]
          %v5920 = vlaneseq
          %v5921 = vshrl.u32 %v5920, 7
          %v5922 = vsub.s32 0, %v5921
          %v5923 = vrot.slane %v5918, %v5922
          %v5933 = vunpack.c.l.b16 %v5901
          %v5934 = vunpack.c.l.b16 %v5902
          %v5935 = vunpack.c.l.b16 %v5903
          %v5936 = vunpack.c.l.b16 %v5904
          %v5937 = vunpack.c.l.b16 %v5905
          %v5938 = vunpack.c.l.b16 %v5906
          %v5939 = vunpack.c.l.b16 %v5907
          %v5940 = vunpack.c.l.b16 %v5908
          %v5941 = vpack.c.b16 %v5934, %v5933
          %v5942 = vpack.c.b16 %v5936, %v5935
          %v5943 = vpack.c.b16 %v5938, %v5937
          %v5944 = vpack.c.b16 %v5940, %v5939
          %v5950 = vsel %vm606, %v5909, 0
          %v5953 = vsel %vm606, %v5910, 0
          %v5956 = vsel %vm606, %v5911, 0
          %v5959 = vsel %vm606, %v5912, 0
          %v5962 = vsel %vm606, %v5913, 0
          %v5965 = vsel %vm606, %v5914, 0
          %v5968 = vsel %vm606, %v5915, 0
          %v5971 = vsel %vm606, %v5916, 0
          %5973 = vmatprep.subr.bf16.mxu0 0
          %5974 = vmatpush1.bf16.msra.mxu0 %v5941
          %5975 = vmatprep.subr.bf16.mxu0 0
          %5976 = vmatpush1.bf16.msra.mxu0 %v5942
          %5977 = vmatprep.subr.bf16.mxu0 0
          %5978 = vmatpush1.bf16.msra.mxu0 %v5943
          %5979 = vmatprep.subr.bf16.mxu0 0
          %5980 = vmatpush1.bf16.msra.mxu0 %v5944
          %5981 = vmatprep.subr.bf16.mxu0 0
          %5982 = vmatpush1.bf16.msra.mxu0 0
          %5983 = vmatprep.subr.bf16.mxu0 0
          %5984 = vmatpush1.bf16.msra.mxu0 0
          %5985 = vmatprep.subr.bf16.mxu0 0
          %5986 = vmatpush1.bf16.msra.mxu0 0
          %5987 = vmatprep.subr.bf16.mxu0 0
          %5988 = vmatpush1.bf16.msra.mxu0 0
          %5989 = vmatprep.subr.bf16.mxu0 0
          %5990 = vmatpush1.bf16.msra.mxu0 0
          %5991 = vmatprep.subr.bf16.mxu0 0
          %5992 = vmatpush1.bf16.msra.mxu0 0
          %5993 = vmatprep.subr.bf16.mxu0 0
          %5994 = vmatpush1.bf16.msra.mxu0 0
          %5995 = vmatprep.subr.bf16.mxu0 0
          %5996 = vmatpush1.bf16.msra.mxu0 0
          %5997 = vmatprep.subr.bf16.mxu0 0
          %5998 = vmatpush1.bf16.msra.mxu0 0
          %5999 = vmatprep.subr.bf16.mxu0 0
          %6000 = vmatpush1.bf16.msra.mxu0 0
          %6001 = vmatprep.subr.bf16.mxu0 0
          %6002 = vmatpush1.bf16.msra.mxu0 0
          %6003 = vmatprep.subr.bf16.mxu0 0
          %6004 = vmatpush1.bf16.msra.mxu0 0
          %6005 = vmatprep.mubr.bf16.mxu0 0
          %6006 = vmatmul.mubr.bf16.gmra.mrb[0].mxu0 %v5950
          %v6007 = vpop.f32.mrb[0].mxu0
          %v6008 = vadd.f32 %v5923, %v6007
          %v6009 = vpop.f32.mrb[0].mxu0
          %v6010 = vpop.f32.mrb[0].mxu0
          %v6011 = vadd.f32 %v5923, %v6010
          %v6012 = vpop.f32.mrb[0].mxu0
          %6013 = vmatprep.mubr.bf16.mxu0 0
          %6014 = vmatmul.mubr.bf16.gmra.mrb[0].mxu0 %v5953
          %v6015 = vpop.f32.mrb[0].mxu0
          %v6016 = vadd.f32 %v5923, %v6015
          %v6017 = vpop.f32.mrb[0].mxu0
          %v6018 = vpop.f32.mrb[0].mxu0
          %v6019 = vadd.f32 %v5923, %v6018
          %v6020 = vpop.f32.mrb[0].mxu0
          %6021 = vmatprep.mubr.bf16.mxu0 0
          %6022 = vmatmul.mubr.bf16.gmra.mrb[0].mxu0 %v5956
          %v6023 = vpop.f32.mrb[0].mxu0
          %v6024 = vadd.f32 %v5923, %v6023
          %v6025 = vpop.f32.mrb[0].mxu0
          %v6026 = vpop.f32.mrb[0].mxu0
          %v6027 = vadd.f32 %v5923, %v6026
          %v6028 = vpop.f32.mrb[0].mxu0
          %6029 = vmatprep.mubr.bf16.mxu0 0
          %6030 = vmatmul.mubr.bf16.gmra.mrb[0].mxu0 %v5959
          %v6031 = vpop.f32.mrb[0].mxu0
          %v6032 = vadd.f32 %v5923, %v6031
          %v6033 = vpop.f32.mrb[0].mxu0
          %v6034 = vpop.f32.mrb[0].mxu0
          %v6035 = vadd.f32 %v5923, %v6034
          %v6036 = vpop.f32.mrb[0].mxu0
          %6037 = vmatprep.mubr.bf16.mxu0 0
          %6038 = vmatmul.mubr.bf16.gmra.mrb[0].mxu0 %v5962
          %v6039 = vpop.f32.mrb[0].mxu0
          %v6040 = vadd.f32 %v5923, %v6039
          %v6041 = vpop.f32.mrb[0].mxu0
          %v6042 = vpop.f32.mrb[0].mxu0
          %v6043 = vadd.f32 %v5923, %v6042
          %v6044 = vpop.f32.mrb[0].mxu0
          %6045 = vmatprep.mubr.bf16.mxu0 0
          %6046 = vmatmul.mubr.bf16.gmra.mrb[0].mxu0 %v5965
          %v6047 = vpop.f32.mrb[0].mxu0
          %v6048 = vadd.f32 %v5923, %v6047
          %v6049 = vpop.f32.mrb[0].mxu0
          %v6050 = vpop.f32.mrb[0].mxu0
          %v6051 = vadd.f32 %v5923, %v6050
          %v6052 = vpop.f32.mrb[0].mxu0
          %6053 = vmatprep.mubr.bf16.mxu0 0
          %6054 = vmatmul.mubr.bf16.gmra.mrb[0].mxu0 %v5968
          %v6055 = vpop.f32.mrb[0].mxu0
          %v6056 = vadd.f32 %v5923, %v6055
          %v6057 = vpop.f32.mrb[0].mxu0
          %v6058 = vpop.f32.mrb[0].mxu0
          %v6059 = vadd.f32 %v5923, %v6058
          %v6060 = vpop.f32.mrb[0].mxu0
          %6061 = vmatprep.mubr.bf16.mxu0 0
          %6062 = vmatmul.mubr.bf16.gmra.mrb[0].mxu0 %v5971
          %v6063 = vpop.f32.mrb[0].mxu0
          %v6064 = vadd.f32 %v5923, %v6063
          %v6065 = vpop.f32.mrb[0].mxu0
          %v6066 = vpop.f32.mrb[0].mxu0
          %v6067 = vadd.f32 %v5923, %v6066
          %v6068 = vpop.f32.mrb[0].mxu0
          %6069 = vdwg.mxu0
          %v6070 = vadd.f32 %v5711, %v6008
          %v6071 = vadd.f32 %v5712, %v6011
          %v6072 = vadd.f32 %v5713, %v6016
          %v6073 = vadd.f32 %v5714, %v6019
          %v6074 = vadd.f32 %v5715, %v6024
          %v6075 = vadd.f32 %v5716, %v6027
          %v6076 = vadd.f32 %v5717, %v6032
          %v6077 = vadd.f32 %v5718, %v6035
          %v6078 = vadd.f32 %v5719, %v6040
          %v6079 = vadd.f32 %v5720, %v6043
          %v6080 = vadd.f32 %v5721, %v6048
          %v6081 = vadd.f32 %v5722, %v6051
          %v6082 = vadd.f32 %v5723, %v6056
          %v6083 = vadd.f32 %v5724, %v6059
          %v6084 = vadd.f32 %v5725, %v6064
          %v6085 = vadd.f32 %v5726, %v6067
          %s6086 = scalar_lea.vmem %s14, %s747
          %v6087 = vld [vmem:[%s6086] sm:$0x1]
          %s6088 = scalar_lea.vmem %s15, %s747
          %v6089 = vld [vmem:[%s6088] sm:$0x1]
          %v6090 = vsel %vm803, %v6070, 0.0
          %6091 = vadd.xlane.f32.xlu0 %v6090
          %v6092 = vpop.xlane.xlu0 %6091
          %v6093 = vsel %vm803, %v6071, 0.0
          %6094 = vadd.xlane.f32.xlu0 %v6093
          %v6095 = vpop.xlane.xlu0 %6094
          %v6096 = vsel %vm803, %v6072, 0.0
          %6097 = vadd.xlane.f32.xlu0 %v6096
          %v6098 = vpop.xlane.xlu0 %6097
          %v6099 = vsel %vm803, %v6073, 0.0
          %6100 = vadd.xlane.f32.xlu0 %v6099
          %v6101 = vpop.xlane.xlu0 %6100
          %v6102 = vsel %vm803, %v6074, 0.0
          %6103 = vadd.xlane.f32.xlu0 %v6102
          %v6104 = vpop.xlane.xlu0 %6103
          %v6105 = vsel %vm803, %v6075, 0.0
          %6106 = vadd.xlane.f32.xlu0 %v6105
          %v6107 = vpop.xlane.xlu0 %6106
          %v6108 = vsel %vm803, %v6076, 0.0
          %6109 = vadd.xlane.f32.xlu0 %v6108
          %v6110 = vpop.xlane.xlu0 %6109
          %v6111 = vsel %vm803, %v6077, 0.0
          %6112 = vadd.xlane.f32.xlu0 %v6111
          %v6113 = vpop.xlane.xlu0 %6112
          %v6114 = vsel %vm803, %v6078, 0.0
          %6115 = vadd.xlane.f32.xlu0 %v6114
          %v6116 = vpop.xlane.xlu0 %6115
          %v6117 = vsel %vm803, %v6079, 0.0
          %6118 = vadd.xlane.f32.xlu0 %v6117
          %v6119 = vpop.xlane.xlu0 %6118
          %v6120 = vsel %vm803, %v6080, 0.0
          %6121 = vadd.xlane.f32.xlu0 %v6120
          %v6122 = vpop.xlane.xlu0 %6121
          %v6123 = vsel %vm803, %v6081, 0.0
          %6124 = vadd.xlane.f32.xlu0 %v6123
          %v6125 = vpop.xlane.xlu0 %6124
          %v6126 = vsel %vm803, %v6082, 0.0
          %6127 = vadd.xlane.f32.xlu0 %v6126
          %v6128 = vpop.xlane.xlu0 %6127
          %v6129 = vsel %vm803, %v6083, 0.0
          %6130 = vadd.xlane.f32.xlu0 %v6129
          %v6131 = vpop.xlane.xlu0 %6130
          %v6132 = vsel %vm803, %v6084, 0.0
          %6133 = vadd.xlane.f32.xlu0 %v6132
          %v6134 = vpop.xlane.xlu0 %6133
          %v6135 = vsel %vm803, %v6085, 0.0
          %6136 = vadd.xlane.f32.xlu0 %v6135
          %v6137 = vpop.xlane.xlu0 %6136
          %v6138 = vmul.f32 %v6092, %v5522
          %v6139 = vmul.f32 %v6095, %v5522
          %v6140 = vmul.f32 %v6098, %v5522
          %v6141 = vmul.f32 %v6101, %v5522
          %v6142 = vmul.f32 %v6104, %v5522
          %v6143 = vmul.f32 %v6107, %v5522
          %v6144 = vmul.f32 %v6110, %v5522
          %v6145 = vmul.f32 %v6113, %v5522
          %v6146 = vmul.f32 %v6116, %v5522
          %v6147 = vmul.f32 %v6119, %v5522
          %v6148 = vmul.f32 %v6122, %v5522
          %v6149 = vmul.f32 %v6125, %v5522
          %v6150 = vmul.f32 %v6128, %v5522
          %v6151 = vmul.f32 %v6131, %v5522
          %v6152 = vmul.f32 %v6134, %v5522
          %v6153 = vmul.f32 %v6137, %v5522
          %v6154 = vsub.f32 %v6070, %v6138
          %v6155 = vsub.f32 %v6071, %v6139
          %v6156 = vsub.f32 %v6072, %v6140
          %v6157 = vsub.f32 %v6073, %v6141
          %v6158 = vsub.f32 %v6074, %v6142
          %v6159 = vsub.f32 %v6075, %v6143
          %v6160 = vsub.f32 %v6076, %v6144
          %v6161 = vsub.f32 %v6077, %v6145
          %v6162 = vsub.f32 %v6078, %v6146
          %v6163 = vsub.f32 %v6079, %v6147
          %v6164 = vsub.f32 %v6080, %v6148
          %v6165 = vsub.f32 %v6081, %v6149
          %v6166 = vsub.f32 %v6082, %v6150
          %v6167 = vsub.f32 %v6083, %v6151
          %v6168 = vsub.f32 %v6084, %v6152
          %v6169 = vsub.f32 %v6085, %v6153
          %v6170 = vmul.f32 %v6154, %v6154
          %v6171 = vmul.f32 %v6155, %v6155
          %v6172 = vmul.f32 %v6156, %v6156
          %v6173 = vmul.f32 %v6157, %v6157
          %v6174 = vmul.f32 %v6158, %v6158
          %v6175 = vmul.f32 %v6159, %v6159
          %v6176 = vmul.f32 %v6160, %v6160
          %v6177 = vmul.f32 %v6161, %v6161
          %v6178 = vmul.f32 %v6162, %v6162
          %v6179 = vmul.f32 %v6163, %v6163
          %v6180 = vmul.f32 %v6164, %v6164
          %v6181 = vmul.f32 %v6165, %v6165
          %v6182 = vmul.f32 %v6166, %v6166
          %v6183 = vmul.f32 %v6167, %v6167
          %v6184 = vmul.f32 %v6168, %v6168
          %v6185 = vmul.f32 %v6169, %v6169
          %v6186 = vsel %vm803, %v6170, 0.0
          %6187 = vadd.xlane.f32.xlu0 %v6186
          %v6188 = vpop.xlane.xlu0 %6187
          %v6189 = vsel %vm803, %v6171, 0.0
          %6190 = vadd.xlane.f32.xlu0 %v6189
          %v6191 = vpop.xlane.xlu0 %6190
          %v6192 = vsel %vm803, %v6172, 0.0
          %6193 = vadd.xlane.f32.xlu0 %v6192
          %v6194 = vpop.xlane.xlu0 %6193
          %v6195 = vsel %vm803, %v6173, 0.0
          %6196 = vadd.xlane.f32.xlu0 %v6195
          %v6197 = vpop.xlane.xlu0 %6196
          %v6198 = vsel %vm803, %v6174, 0.0
          %6199 = vadd.xlane.f32.xlu0 %v6198
          %v6200 = vpop.xlane.xlu0 %6199
          %v6201 = vsel %vm803, %v6175, 0.0
          %6202 = vadd.xlane.f32.xlu0 %v6201
          %v6203 = vpop.xlane.xlu0 %6202
          %v6204 = vsel %vm803, %v6176, 0.0
          %6205 = vadd.xlane.f32.xlu0 %v6204
          %v6206 = vpop.xlane.xlu0 %6205
          %v6207 = vsel %vm803, %v6177, 0.0
          %6208 = vadd.xlane.f32.xlu0 %v6207
          %v6209 = vpop.xlane.xlu0 %6208
          %v6210 = vsel %vm803, %v6178, 0.0
          %6211 = vadd.xlane.f32.xlu0 %v6210
          %v6212 = vpop.xlane.xlu0 %6211
          %v6213 = vsel %vm803, %v6179, 0.0
          %6214 = vadd.xlane.f32.xlu0 %v6213
          %v6215 = vpop.xlane.xlu0 %6214
          %v6216 = vsel %vm803, %v6180, 0.0
          %6217 = vadd.xlane.f32.xlu0 %v6216
          %v6218 = vpop.xlane.xlu0 %6217
          %v6219 = vsel %vm803, %v6181, 0.0
          %6220 = vadd.xlane.f32.xlu0 %v6219
          %v6221 = vpop.xlane.xlu0 %6220
          %v6222 = vsel %vm803, %v6182, 0.0
          %6223 = vadd.xlane.f32.xlu0 %v6222
          %v6224 = vpop.xlane.xlu0 %6223
          %v6225 = vsel %vm803, %v6183, 0.0
          %6226 = vadd.xlane.f32.xlu0 %v6225
          %v6227 = vpop.xlane.xlu0 %6226
          %v6228 = vsel %vm803, %v6184, 0.0
          %6229 = vadd.xlane.f32.xlu0 %v6228
          %v6230 = vpop.xlane.xlu0 %6229
          %v6231 = vsel %vm803, %v6185, 0.0
          %6232 = vadd.xlane.f32.xlu0 %v6231
          %v6233 = vpop.xlane.xlu0 %6232
          %v6234 = vmul.f32 %v6188, %v5522
          %v6235 = vmul.f32 %v6191, %v5522
          %v6236 = vmul.f32 %v6194, %v5522
          %v6237 = vmul.f32 %v6197, %v5522
          %v6238 = vmul.f32 %v6200, %v5522
          %v6239 = vmul.f32 %v6203, %v5522
          %v6240 = vmul.f32 %v6206, %v5522
          %v6241 = vmul.f32 %v6209, %v5522
          %v6242 = vmul.f32 %v6212, %v5522
          %v6243 = vmul.f32 %v6215, %v5522
          %v6244 = vmul.f32 %v6218, %v5522
          %v6245 = vmul.f32 %v6221, %v5522
          %v6246 = vmul.f32 %v6224, %v5522
          %v6247 = vmul.f32 %v6227, %v5522
          %v6248 = vmul.f32 %v6230, %v5522
          %v6249 = vmul.f32 %v6233, %v5522
          %v6250 = vadd.f32 %v6234, 1e-05
          %v6251 = vadd.f32 %v6235, 1e-05
          %v6252 = vadd.f32 %v6236, 1e-05
          %v6253 = vadd.f32 %v6237, 1e-05
          %v6254 = vadd.f32 %v6238, 1e-05
          %v6255 = vadd.f32 %v6239, 1e-05
          %v6256 = vadd.f32 %v6240, 1e-05
          %v6257 = vadd.f32 %v6241, 1e-05
          %v6258 = vadd.f32 %v6242, 1e-05
          %v6259 = vadd.f32 %v6243, 1e-05
          %v6260 = vadd.f32 %v6244, 1e-05
          %v6261 = vadd.f32 %v6245, 1e-05
          %v6262 = vadd.f32 %v6246, 1e-05
          %v6263 = vadd.f32 %v6247, 1e-05
          %v6264 = vadd.f32 %v6248, 1e-05
          %v6265 = vadd.f32 %v6249, 1e-05
          %v6266 = vrsqrt.pop %v6250
          %v6267 = vrsqrt.pop %v6251
          %v6268 = vrsqrt.pop %v6252
          %v6269 = vrsqrt.pop %v6253
          %v6270 = vrsqrt.pop %v6254
          %v6271 = vrsqrt.pop %v6255
          %v6272 = vrsqrt.pop %v6256
          %v6273 = vrsqrt.pop %v6257
          %v6274 = vrsqrt.pop %v6258
          %v6275 = vrsqrt.pop %v6259
          %v6276 = vrsqrt.pop %v6260
          %v6277 = vrsqrt.pop %v6261
          %v6278 = vrsqrt.pop %v6262
          %v6279 = vrsqrt.pop %v6263
          %v6280 = vrsqrt.pop %v6264
          %v6281 = vrsqrt.pop %v6265
          %v6282 = vmul.f32 %v6154, %v6266
          %v6283 = vmul.f32 %v6155, %v6267
          %v6284 = vmul.f32 %v6156, %v6268
          %v6285 = vmul.f32 %v6157, %v6269
          %v6286 = vmul.f32 %v6158, %v6270
          %v6287 = vmul.f32 %v6159, %v6271
          %v6288 = vmul.f32 %v6160, %v6272
          %v6289 = vmul.f32 %v6161, %v6273
          %v6290 = vmul.f32 %v6162, %v6274
          %v6291 = vmul.f32 %v6163, %v6275
          %v6292 = vmul.f32 %v6164, %v6276
          %v6293 = vmul.f32 %v6165, %v6277
          %v6294 = vmul.f32 %v6166, %v6278
          %v6295 = vmul.f32 %v6167, %v6279
          %v6296 = vmul.f32 %v6168, %v6280
          %v6297 = vmul.f32 %v6169, %v6281
          %v6299 = vlaneseq
          %v6300 = vshrl.u32 %v6299, 7
          %v6301 = vsub.s32 0, %v6300
          %v6302 = vrot.slane %v6087, %v6301
          %v6304 = vmul.f32 %v6282, %v6302
          %v6305 = vmul.f32 %v6283, %v6302
          %v6306 = vmul.f32 %v6284, %v6302
          %v6307 = vmul.f32 %v6285, %v6302
          %v6308 = vmul.f32 %v6286, %v6302
          %v6309 = vmul.f32 %v6287, %v6302
          %v6310 = vmul.f32 %v6288, %v6302
          %v6311 = vmul.f32 %v6289, %v6302
          %v6312 = vmul.f32 %v6290, %v6302
          %v6313 = vmul.f32 %v6291, %v6302
          %v6314 = vmul.f32 %v6292, %v6302
          %v6315 = vmul.f32 %v6293, %v6302
          %v6316 = vmul.f32 %v6294, %v6302
          %v6317 = vmul.f32 %v6295, %v6302
          %v6318 = vmul.f32 %v6296, %v6302
          %v6319 = vmul.f32 %v6297, %v6302
          %v6321 = vlaneseq
          %v6322 = vshrl.u32 %v6321, 7
          %v6323 = vsub.s32 0, %v6322
          %v6324 = vrot.slane %v6089, %v6323
          %v6326 = vadd.f32 %v6304, %v6324
          %v6327 = vadd.f32 %v6305, %v6324
          %v6328 = vadd.f32 %v6306, %v6324
          %v6329 = vadd.f32 %v6307, %v6324
          %v6330 = vadd.f32 %v6308, %v6324
          %v6331 = vadd.f32 %v6309, %v6324
          %v6332 = vadd.f32 %v6310, %v6324
          %v6333 = vadd.f32 %v6311, %v6324
          %v6334 = vadd.f32 %v6312, %v6324
          %v6335 = vadd.f32 %v6313, %v6324
          %v6336 = vadd.f32 %v6314, %v6324
          %v6337 = vadd.f32 %v6315, %v6324
          %v6338 = vadd.f32 %v6316, %v6324
          %v6339 = vadd.f32 %v6317, %v6324
          %v6340 = vadd.f32 %v6318, %v6324
          %v6341 = vadd.f32 %v6319, %v6324
        $region93: #{tpu_custom_call.1} parent=83 // loop_footer
          %s751 = sadd.s32 1, %s747
        $region94: #{tpu_custom_call.1} parent=83 // loop_footer_branch
          %746 = sbr.rel target = $region90
        $region95: #{tpu_custom_call.1} parent=83 // loop_exit
          _
        %vm6342 = vcmask 261120
        %v6343 = vsel %vm6342, %v752, 0.0
        %v6344 = vsel %vm6342, %v753, 0.0
        %v6345 = vadd.f32 %v6343, %v6344
        %v6346 = vrot.slane %v6345, 4
        %v6347 = vadd.f32 %v6345, %v6346
        %v6348 = vrot.slane %v6347, 2
        %v6349 = vadd.f32 %v6347, %v6348
        %v6350 = vrot.slane %v6349, 1
        %v6351 = vadd.f32 %v6349, %v6350
        %v6352 = vsel %vm6342, %v754, 0.0
        %v6353 = vsel %vm6342, %v755, 0.0
        %v6354 = vadd.f32 %v6352, %v6353
        %v6355 = vrot.slane %v6354, 4
        %v6356 = vadd.f32 %v6354, %v6355
        %v6357 = vrot.slane %v6356, 2
        %v6358 = vadd.f32 %v6356, %v6357
        %v6359 = vrot.slane %v6358, 1
        %v6360 = vadd.f32 %v6358, %v6359
        %v6361 = vsel %vm6342, %v756, 0.0
        %v6362 = vsel %vm6342, %v757, 0.0
        %v6363 = vadd.f32 %v6361, %v6362
        %v6364 = vrot.slane %v6363, 4
        %v6365 = vadd.f32 %v6363, %v6364
        %v6366 = vrot.slane %v6365, 2
        %v6367 = vadd.f32 %v6365, %v6366
        %v6368 = vrot.slane %v6367, 1
        %v6369 = vadd.f32 %v6367, %v6368
        %v6370 = vsel %vm6342, %v758, 0.0
        %v6371 = vsel %vm6342, %v759, 0.0
        %v6372 = vadd.f32 %v6370, %v6371
        %v6373 = vrot.slane %v6372, 4
        %v6374 = vadd.f32 %v6372, %v6373
        %v6375 = vrot.slane %v6374, 2
        %v6376 = vadd.f32 %v6374, %v6375
        %v6377 = vrot.slane %v6376, 1
        %v6378 = vadd.f32 %v6376, %v6377
        %v6379 = vsel %vm6342, %v760, 0.0
        %v6380 = vsel %vm6342, %v761, 0.0
        %v6381 = vadd.f32 %v6379, %v6380
        %v6382 = vrot.slane %v6381, 4
        %v6383 = vadd.f32 %v6381, %v6382
        %v6384 = vrot.slane %v6383, 2
        %v6385 = vadd.f32 %v6383, %v6384
        %v6386 = vrot.slane %v6385, 1
        %v6387 = vadd.f32 %v6385, %v6386
        %v6388 = vsel %vm6342, %v762, 0.0
        %v6389 = vsel %vm6342, %v763, 0.0
        %v6390 = vadd.f32 %v6388, %v6389
        %v6391 = vrot.slane %v6390, 4
        %v6392 = vadd.f32 %v6390, %v6391
        %v6393 = vrot.slane %v6392, 2
        %v6394 = vadd.f32 %v6392, %v6393
        %v6395 = vrot.slane %v6394, 1
        %v6396 = vadd.f32 %v6394, %v6395
        %v6397 = vsel %vm6342, %v764, 0.0
        %v6398 = vsel %vm6342, %v765, 0.0
        %v6399 = vadd.f32 %v6397, %v6398
        %v6400 = vrot.slane %v6399, 4
        %v6401 = vadd.f32 %v6399, %v6400
        %v6402 = vrot.slane %v6401, 2
        %v6403 = vadd.f32 %v6401, %v6402
        %v6404 = vrot.slane %v6403, 1
        %v6405 = vadd.f32 %v6403, %v6404
        %v6406 = vsel %vm6342, %v766, 0.0
        %v6407 = vsel %vm6342, %v767, 0.0
        %v6408 = vadd.f32 %v6406, %v6407
        %v6409 = vrot.slane %v6408, 4
        %v6410 = vadd.f32 %v6408, %v6409
        %v6411 = vrot.slane %v6410, 2
        %v6412 = vadd.f32 %v6410, %v6411
        %v6413 = vrot.slane %v6412, 1
        %v6414 = vadd.f32 %v6412, %v6413
        %v6415 = vrcp.pop 16.0
        %v6416 = vmul.f32 %v6351, %v6415
        %v6417 = vmul.f32 %v6360, %v6415
        %v6418 = vmul.f32 %v6369, %v6415
        %v6419 = vmul.f32 %v6378, %v6415
        %v6420 = vmul.f32 %v6387, %v6415
        %v6421 = vmul.f32 %v6396, %v6415
        %v6422 = vmul.f32 %v6405, %v6415
        %v6423 = vmul.f32 %v6414, %v6415
        %vm6432 = vcmask 1041409
        %v6433 = vsel %vm6432, %v6417, %v6416
        %vm6434 = vcmask 1042434
        %v6435 = vsel %vm6434, %v6418, %v6433
        %vm6436 = vcmask 1043459
        %v6437 = vsel %vm6436, %v6419, %v6435
        %vm6438 = vcmask 1044484
        %v6439 = vsel %vm6438, %v6420, %v6437
        %vm6440 = vcmask 1045509
        %v6441 = vsel %vm6440, %v6421, %v6439
        %vm6442 = vcmask 1046534
        %v6443 = vsel %vm6442, %v6422, %v6441
        %vm6444 = vcmask 1047559
        %v6445 = vsel %vm6444, %v6423, %v6443
        %6447 = vst.msk [vmem:[%s540] sm:$0xff] %vm6342, %v6445
        %s6448 = sand.u32 %s382, 1
        %s6449 = scalar_lea.sflag [#allocation4], %s6448
        %s6450 = sand.u32 %s382, 1
        %s6451 = smul.addr %s6450, 8
        %s6452 = scalar_lea.vmem [#allocation5], %s6451
        // Predicated region
        $region96: #{tpu_custom_call.1} parent=83 // pred_check
          %p6453 = pneg %p392
        $region97: #{tpu_custom_call.1} parent=83 // pred_check_branch
          %6455 = sbr.rel (%p6453) target = $region99
        $region98: #{tpu_custom_call.1} parent=83 // pred_region
          %s6457 = ssub.s32 128, 128
          %6458 = vsyncadd %s6449, %s6457
          %s6459 = smul.addr %s33, 128
          %s6460 = scalar_lea.hbm %s16, %s6459
          %s6462 = sshll.u32 %s6452, 4
          %s6463 = int_to_ptr.vmem [resolvable:$true] %s6462
          %6465 = dma.vmem_to_hbm [thread:$0]  %s6463, 128, %s6460, %s6449
        $region99: #{tpu_custom_call.1} parent=83 // pred_fallthru
          _
      $region84: #{tpu_custom_call.1} parent=5 // pred_fallthru
        _
      %p6466 = scmp.le.s32.totalorder 2, %s28
      // Predicated region
      $region100: #{tpu_custom_call.1} parent=5 // pred_check
        %p6467 = pneg %p6466
      $region101: #{tpu_custom_call.1} parent=5 // pred_check_branch
        %6469 = sbr.rel (%p6467) target = $region103
      $region102: #{tpu_custom_call.1} parent=5 // pred_region
        %s6470 = ssub.s32 %s28, 2
        // Predicated region
        $region104: #{tpu_custom_call.1} parent=102 // pred_check
          %p6471 = pneg %p398
        $region105: #{tpu_custom_call.1} parent=102 // pred_check_branch
          %6473 = sbr.rel (%p6471) target = $region107
        $region106: #{tpu_custom_call.1} parent=102 // pred_region
          %s6474 = sand.u32 %s383, 1
          %s6475 = scalar_lea.sflag [#allocation4], %s6474
          %s6476 = sand.u32 %s383, 1
          %s6477 = smul.addr %s6476, 8
          %s6478 = scalar_lea.vmem [#allocation5], %s6477
          %6479 = dma.done %s6475, 128
        $region107: #{tpu_custom_call.1} parent=102 // pred_fallthru
          _
      $region103: #{tpu_custom_call.1} parent=5 // pred_fallthru
        _
    $region6: #{tpu_custom_call.1} parent=1 // loop_footer
      %s32 = sadd.s32 1, %s28
    $region7: #{tpu_custom_call.1} parent=1 // loop_footer_branch
      %27 = sbr.rel target = $region3
    $region8: #{tpu_custom_call.1} parent=1 // loop_exit
      _
    %6480 = vsyncpa [#allocation3], 1
    %s6481 = scalar_lea.sflag [#allocation3], 1
    %6482 = vsyncpa %s6481, 1
    %6483 = vsyncpa [#allocation4], 1
    %s6484 = scalar_lea.sflag [#allocation4], 1
    %6485 = vsyncpa %s6484, 1

</llo_original>
